<compile_context>
chip_gen: v5e
topology: v5e:2x2
jax: 0.10.0
libtpu: 0.0.40
codegen_flags: <defaults>
</compile_context>

<pallas_src>
import math
import functools

import jax
import jax.numpy as jnp
from jax.experimental import pallas as pl
from jax.experimental.pallas import tpu as pltpu

D_MODEL = 768            # hard-coded in the PyTorch module
N_HEADS = 12
HEAD_DIM = D_MODEL // N_HEADS
LN_EPS = 1e-12


# ----------------------------------------------------------------------------
# Fused kernel: QKV proj + 12-head cross attention + output dense + residual LN
# ----------------------------------------------------------------------------
def _bert_cross_attention_kernel(s1_ref, s2_ref, mask_ref,
                                 wq_ref, bq_ref, wkv_ref, bkv_ref,
                                 wo_ref, bo_ref, g_ref, beta_ref,
                                 o_ref, *, n_heads, eps):
    s1 = s1_ref[0]                       # (L1, D) f32
    s2 = s2_ref[0]                       # (L2, D) f32
    m = mask_ref[0]                      # (1, L2) additive mask, f32
    D = s1.shape[-1]
    d = D // n_heads
    scale = 1.0 / math.sqrt(d)

    # ---- BertCoAttention -------------------------------------------------
    # Q from s1; K|V from s2 through the fused (D, 2D) weight.
    q = jnp.dot(s1.astype(jnp.bfloat16), wq_ref[...],
                preferred_element_type=jnp.float32) + bq_ref[...]       # (L1, D)
    kv = jnp.dot(s2.astype(jnp.bfloat16), wkv_ref[...],
                 preferred_element_type=jnp.float32) + bkv_ref[...]     # (L2, 2D)
    k = kv[:, :D]
    v = kv[:, D:]

    ctx_parts = []
    for h in range(n_heads):             # static unroll; everything stays in VMEM
        lo = h * d
        qh = q[:, lo:lo + d].astype(jnp.bfloat16)    # (L1, d)
        kh = k[:, lo:lo + d].astype(jnp.bfloat16)    # (L2, d)
        vh = v[:, lo:lo + d].astype(jnp.bfloat16)    # (L2, d)
        # scores: contract head dims directly (no explicit transpose of K).
        s = jax.lax.dot_general(qh, kh, (((1,), (1,)), ((), ())),
                                preferred_element_type=jnp.float32)     # (L1, L2)
        s = s * scale + m
        s = s - jnp.max(s, axis=-1, keepdims=True)
        p = jnp.exp(s)
        p = p / jnp.sum(p, axis=-1, keepdims=True)
        # TODO(synk): attention-probability dropout omitted (inference).
        ctx_parts.append(jnp.dot(p.astype(jnp.bfloat16), vh,
                                 preferred_element_type=jnp.float32))   # (L1, d)
    ctx = jnp.concatenate(ctx_parts, axis=-1)                           # (L1, D)

    # ---- BertSelfOutput: dense + residual + TF-style LayerNorm -----------
    hid = jnp.dot(ctx.astype(jnp.bfloat16), wo_ref[...],
                  preferred_element_type=jnp.float32) + bo_ref[...]     # (L1, D)
    x = hid + s1
    u = jnp.mean(x, axis=-1, keepdims=True)
    xc = x - u
    var = jnp.mean(xc * xc, axis=-1, keepdims=True)
    y = xc * jax.lax.rsqrt(var + eps)
    o_ref[0] = (g_ref[...] * y + beta_ref[...]).astype(o_ref.dtype)


def bert_cross_attention(s1_input, s2_input, s2_attention_mask, params):
    """BertCrossAttention forward.

    s1_input:           (B, L1, 768)  query-side hidden states
    s2_input:           (B, L2, 768)  key/value-side hidden states
    s2_attention_mask:  additive mask broadcastable to (B, 1, 1, L2)
                        (standard BERT extended mask: 0 keep, -10000 pad)
    """
    B, L1, D = s1_input.shape
    L2 = s2_input.shape[1]

    mask = jnp.reshape(s2_attention_mask.astype(jnp.float32), (B, 1, L2))

    # bf16 weights for the MXU; biases / LN params stay f32.
    wq = params["wq"].astype(jnp.bfloat16)
    wkv = jnp.concatenate([params["wk"], params["wv"]], axis=1).astype(jnp.bfloat16)
    wo = params["wo"].astype(jnp.bfloat16)
    bq = params["bq"].reshape(1, D).astype(jnp.float32)
    bkv = jnp.concatenate([params["bk"], params["bv"]], axis=0).reshape(1, 2 * D).astype(jnp.float32)
    bo = params["bo"].reshape(1, D).astype(jnp.float32)
    gamma = params["ln_gamma"].reshape(1, D).astype(jnp.float32)
    beta = params["ln_beta"].reshape(1, D).astype(jnp.float32)

    kernel = functools.partial(_bert_cross_attention_kernel,
                               n_heads=N_HEADS, eps=LN_EPS)
    return pl.pallas_call(
        kernel,
        out_shape=jax.ShapeDtypeStruct((B, L1, D), s1_input.dtype),
        grid_spec=pltpu.PrefetchScalarGridSpec(
            num_scalar_prefetch=0,
            grid=(B,),
            in_specs=[
                pl.BlockSpec((1, L1, D), lambda b: (b, 0, 0)),      # s1
                pl.BlockSpec((1, L2, D), lambda b: (b, 0, 0)),      # s2
                pl.BlockSpec((1, 1, L2), lambda b: (b, 0, 0)),      # additive mask
                pl.BlockSpec((D, D), lambda b: (0, 0)),             # Wq (bf16)
                pl.BlockSpec((1, D), lambda b: (0, 0)),             # bq
                pl.BlockSpec((D, 2 * D), lambda b: (0, 0)),         # Wkv (bf16)
                pl.BlockSpec((1, 2 * D), lambda b: (0, 0)),         # bkv
                pl.BlockSpec((D, D), lambda b: (0, 0)),             # Wo (bf16)
                pl.BlockSpec((1, D), lambda b: (0, 0)),             # bo
                pl.BlockSpec((1, D), lambda b: (0, 0)),             # LN gamma
                pl.BlockSpec((1, D), lambda b: (0, 0)),             # LN beta
            ],
            out_specs=pl.BlockSpec((1, L1, D), lambda b: (b, 0, 0)),
        ),
        compiler_params=pltpu.CompilerParams(
            dimension_semantics=("parallel",),
            vmem_limit_bytes=32 * 1024 * 1024,
        ),
    )(s1_input, s2_input, mask, wq, bq, wkv, bkv, wo, bo, gamma, beta)


# ----------------------------------------------------------------------------
# Pure-JAX f32 reference (mirrors the PyTorch module) for a sanity check
# ----------------------------------------------------------------------------
def bert_cross_attention_reference(s1, s2, s2_attention_mask, params):
    B, L1, D = s1.shape
    L2 = s2.shape[1]
    d = D // N_HEADS
    q = s1 @ params["wq"] + params["bq"]
    k = s2 @ params["wk"] + params["bk"]
    v = s2 @ params["wv"] + params["bv"]

    def split(x, L):
        return x.reshape(B, L, N_HEADS, d).transpose(0, 2, 1, 3)

    qh, kh, vh = split(q, L1), split(k, L2), split(v, L2)
    scores = jnp.einsum("bhqd,bhkd->bhqk", qh, kh) / math.sqrt(d)
    scores = scores + s2_attention_mask.reshape(B, 1, 1, L2)
    probs = jax.nn.softmax(scores, axis=-1)
    ctx = jnp.einsum("bhqk,bhkd->bhqd", probs, vh)
    ctx = ctx.transpose(0, 2, 1, 3).reshape(B, L1, D)
    hid = ctx @ params["wo"] + params["bo"]
    x = hid + s1
    u = x.mean(-1, keepdims=True)
    var = ((x - u) ** 2).mean(-1, keepdims=True)
    y = (x - u) / jnp.sqrt(var + LN_EPS)
    return params["ln_gamma"] * y + params["ln_beta"]


# ----------------------------------------------------------------------------
# Deterministic parameter initialization
# ----------------------------------------------------------------------------
def init_params(key):
    ks = jax.random.split(key, 10)
    n = lambda k, shape, s=0.02: s * jax.random.normal(k, shape, jnp.float32)
    return dict(
        wq=n(ks[0], (D_MODEL, D_MODEL)), bq=n(ks[1], (D_MODEL,)),
        wk=n(ks[2], (D_MODEL, D_MODEL)), bk=n(ks[3], (D_MODEL,)),
        wv=n(ks[4], (D_MODEL, D_MODEL)), bv=n(ks[5], (D_MODEL,)),
        wo=n(ks[6], (D_MODEL, D_MODEL)), bo=n(ks[7], (D_MODEL,)),
        ln_gamma=1.0 + n(ks[8], (D_MODEL,), 0.1),
        ln_beta=n(ks[9], (D_MODEL,), 0.1),
    )


# ----------------------------------------------------------------------------
if __name__ == "__main__":
    key = jax.random.PRNGKey(0)
    k_p, k_s1, k_s2 = jax.random.split(key, 3)

    B, L1, L2 = 2, 8, 8
    params = init_params(k_p)
    s1 = jax.random.normal(k_s1, (B, L1, D_MODEL), jnp.float32)
    s2 = jax.random.normal(k_s2, (B, L2, D_MODEL), jnp.float32)

    # second sample has two padded s2 positions -> non-trivial additive mask
    binary_mask = jnp.array([[1.0] * L2,
                             [1.0] * (L2 - 2) + [0.0] * 2], jnp.float32)
    s2_attention_mask = ((1.0 - binary_mask) * -10000.0)[:, None, None, :]  # (B,1,1,L2)

    fwd = jax.jit(bert_cross_attention)
    out = fwd(s1, s2, s2_attention_mask, params)
    jax.block_until_ready(out)

    ref = bert_cross_attention_reference(s1, s2, s2_attention_mask, params)
    assert out.shape == (B, L1, D_MODEL)
    max_err = float(jnp.max(jnp.abs(out - ref)))
    # bf16 MXU matmuls vs f32 reference -> loose tolerance; real bugs are O(1).
    assert max_err < 1e-1, f"max abs error vs reference: {max_err}"
    print("KERNEL_OK")
</pallas_src>

<mosaic_0001>
module attributes {stable_mosaic.version = 11 : i64} {
  func.func @_bert_cross_attention_kernel(%arg0: i32, %arg1: memref<1x8x768xf32, #tpu.memory_space<vmem>>, %arg2: memref<1x8x768xf32, #tpu.memory_space<vmem>>, %arg3: memref<1x1x8xf32, #tpu.memory_space<vmem>>, %arg4: memref<768x768xbf16, #tpu.memory_space<vmem>>, %arg5: memref<1x768xf32, #tpu.memory_space<vmem>>, %arg6: memref<768x1536xbf16, #tpu.memory_space<vmem>>, %arg7: memref<1x1536xf32, #tpu.memory_space<vmem>>, %arg8: memref<768x768xbf16, #tpu.memory_space<vmem>>, %arg9: memref<1x768xf32, #tpu.memory_space<vmem>>, %arg10: memref<1x768xf32, #tpu.memory_space<vmem>>, %arg11: memref<1x768xf32, #tpu.memory_space<vmem>>, %arg12: memref<1x8x768xf32, #tpu.memory_space<vmem>>) attributes {dimension_semantics = [#tpu.dimension_semantics<parallel>], iteration_bounds = array<i64: 2>, scalar_prefetch = 0 : i64, scratch_operands = 0 : i64, tpu.core_type = #tpu.core_type<tc>, window_params = [{transform_indices = @transform_0, window_bounds = array<i64: 1, 8, 768>}, {transform_indices = @transform_1, window_bounds = array<i64: 1, 8, 768>}, {transform_indices = @transform_2, window_bounds = array<i64: 1, 1, 8>}, {pipeline_mode = #tpu.pipeline_mode<synchronous>, transform_indices = @transform_3, window_bounds = array<i64: 768, 768>}, {pipeline_mode = #tpu.pipeline_mode<synchronous>, transform_indices = @transform_4, window_bounds = array<i64: 1, 768>}, {pipeline_mode = #tpu.pipeline_mode<synchronous>, transform_indices = @transform_5, window_bounds = array<i64: 768, 1536>}, {pipeline_mode = #tpu.pipeline_mode<synchronous>, transform_indices = @transform_6, window_bounds = array<i64: 1, 1536>}, {pipeline_mode = #tpu.pipeline_mode<synchronous>, transform_indices = @transform_7, window_bounds = array<i64: 768, 768>}, {pipeline_mode = #tpu.pipeline_mode<synchronous>, transform_indices = @transform_8, window_bounds = array<i64: 1, 768>}, {pipeline_mode = #tpu.pipeline_mode<synchronous>, transform_indices = @transform_9, window_bounds = array<i64: 1, 768>}, {pipeline_mode = #tpu.pipeline_mode<synchronous>, transform_indices = @transform_10, window_bounds = array<i64: 1, 768>}, {transform_indices = @transform_11, window_bounds = array<i64: 1, 8, 768>}]} {
    %c0 = arith.constant 0 : index
    %c0_0 = arith.constant 0 : index
    %c0_1 = arith.constant 0 : index
    %0 = vector.load %arg1[%c0, %c0_0, %c0_1] : memref<1x8x768xf32, #tpu.memory_space<vmem>>, vector<1x8x768xf32>
    %1 = vector.shape_cast %0 : vector<1x8x768xf32> to vector<8x768xf32>
    %c0_2 = arith.constant 0 : index
    %c0_3 = arith.constant 0 : index
    %c0_4 = arith.constant 0 : index
    %2 = vector.load %arg2[%c0_2, %c0_3, %c0_4] : memref<1x8x768xf32, #tpu.memory_space<vmem>>, vector<1x8x768xf32>
    %3 = vector.shape_cast %2 : vector<1x8x768xf32> to vector<8x768xf32>
    %c0_5 = arith.constant 0 : index
    %c0_6 = arith.constant 0 : index
    %c0_7 = arith.constant 0 : index
    %4 = vector.load %arg3[%c0_5, %c0_6, %c0_7] : memref<1x1x8xf32, #tpu.memory_space<vmem>>, vector<1x1x8xf32>
    %5 = vector.shape_cast %4 : vector<1x1x8xf32> to vector<1x8xf32>
    %6 = arith.truncf %1 : vector<8x768xf32> to vector<8x768xbf16>
    %c0_8 = arith.constant 0 : index
    %c0_9 = arith.constant 0 : index
    %7 = vector.load %arg4[%c0_8, %c0_9] : memref<768x768xbf16, #tpu.memory_space<vmem>>, vector<768x768xbf16>
    %cst = arith.constant dense<0.000000e+00> : vector<8x768xf32>
    %8 = tpu.matmul %6, %7, %cst {dimension_numbers = #tpu.dot_dimension_numbers<[1], [0], [0], [1], [0, 0, 1, 1], [], []>} : vector<8x768xbf16>, vector<768x768xbf16>, vector<8x768xf32> -> vector<8x768xf32>
    %c0_10 = arith.constant 0 : index
    %c0_11 = arith.constant 0 : index
    %9 = vector.load %arg5[%c0_10, %c0_11] : memref<1x768xf32, #tpu.memory_space<vmem>>, vector<1x768xf32>
    %10 = vector.broadcast %9 : vector<1x768xf32> to vector<8x768xf32>
    %11 = arith.addf %8, %10 : vector<8x768xf32>
    %12 = arith.truncf %3 : vector<8x768xf32> to vector<8x768xbf16>
    %c0_12 = arith.constant 0 : index
    %c0_13 = arith.constant 0 : index
    %13 = vector.load %arg6[%c0_12, %c0_13] : memref<768x1536xbf16, #tpu.memory_space<vmem>>, vector<768x1536xbf16>
    %cst_14 = arith.constant dense<0.000000e+00> : vector<8x1536xf32>
    %14 = tpu.matmul %12, %13, %cst_14 {dimension_numbers = #tpu.dot_dimension_numbers<[1], [0], [0], [1], [0, 0, 1, 1], [], []>} : vector<8x768xbf16>, vector<768x1536xbf16>, vector<8x1536xf32> -> vector<8x1536xf32>
    %c0_15 = arith.constant 0 : index
    %c0_16 = arith.constant 0 : index
    %15 = vector.load %arg7[%c0_15, %c0_16] : memref<1x1536xf32, #tpu.memory_space<vmem>>, vector<1x1536xf32>
    %16 = vector.broadcast %15 : vector<1x1536xf32> to vector<8x1536xf32>
    %17 = arith.addf %14, %16 : vector<8x1536xf32>
    %18 = vector.extract_strided_slice %17 {offsets = [0, 0], sizes = [8, 768], strides = [1, 1]} : vector<8x1536xf32> to vector<8x768xf32>
    %19 = vector.extract_strided_slice %17 {offsets = [0, 768], sizes = [8, 768], strides = [1, 1]} : vector<8x1536xf32> to vector<8x768xf32>
    %20 = vector.extract_strided_slice %11 {offsets = [0, 0], sizes = [8, 64], strides = [1, 1]} : vector<8x768xf32> to vector<8x64xf32>
    %21 = arith.truncf %20 : vector<8x64xf32> to vector<8x64xbf16>
    %22 = vector.extract_strided_slice %18 {offsets = [0, 0], sizes = [8, 64], strides = [1, 1]} : vector<8x768xf32> to vector<8x64xf32>
    %23 = arith.truncf %22 : vector<8x64xf32> to vector<8x64xbf16>
    %24 = vector.extract_strided_slice %19 {offsets = [0, 0], sizes = [8, 64], strides = [1, 1]} : vector<8x768xf32> to vector<8x64xf32>
    %25 = arith.truncf %24 : vector<8x64xf32> to vector<8x64xbf16>
    %cst_17 = arith.constant dense<0.000000e+00> : vector<8x8xf32>
    %26 = tpu.matmul %21, %23, %cst_17 {dimension_numbers = #tpu.dot_dimension_numbers<[1], [1], [0], [0], [0, 0, 1, 0], [], []>} : vector<8x64xbf16>, vector<8x64xbf16>, vector<8x8xf32> -> vector<8x8xf32>
    %cst_18 = arith.constant 1.250000e-01 : f32
    %27 = vector.broadcast %cst_18 : f32 to vector<8x8xf32>
    %28 = arith.mulf %26, %27 : vector<8x8xf32>
    %29 = vector.broadcast %5 : vector<1x8xf32> to vector<8x8xf32>
    %30 = arith.addf %28, %29 : vector<8x8xf32>
    %cst_19 = arith.constant dense<0xFF800000> : vector<8xf32>
    %31 = vector.multi_reduction <maximumf>, %30, %cst_19 [1] : vector<8x8xf32> to vector<8xf32>
    %32 = vector.shape_cast %31 : vector<8xf32> to vector<8x1xf32>
    %33 = vector.broadcast %32 : vector<8x1xf32> to vector<8x8xf32>
    %34 = arith.subf %30, %33 : vector<8x8xf32>
    %35 = math.exp %34 : vector<8x8xf32>
    %cst_20 = arith.constant dense<0.000000e+00> : vector<8xf32>
    %36 = vector.multi_reduction <add>, %35, %cst_20 [1] : vector<8x8xf32> to vector<8xf32>
    %37 = vector.shape_cast %36 : vector<8xf32> to vector<8x1xf32>
    %38 = vector.broadcast %37 : vector<8x1xf32> to vector<8x8xf32>
    %39 = arith.divf %35, %38 : vector<8x8xf32>
    %40 = arith.truncf %39 : vector<8x8xf32> to vector<8x8xbf16>
    %cst_21 = arith.constant dense<0.000000e+00> : vector<8x64xf32>
    %41 = tpu.matmul %40, %25, %cst_21 {dimension_numbers = #tpu.dot_dimension_numbers<[1], [0], [0], [1], [0, 0, 1, 1], [], []>} : vector<8x8xbf16>, vector<8x64xbf16>, vector<8x64xf32> -> vector<8x64xf32>
    %42 = vector.extract_strided_slice %11 {offsets = [0, 64], sizes = [8, 64], strides = [1, 1]} : vector<8x768xf32> to vector<8x64xf32>
    %43 = arith.truncf %42 : vector<8x64xf32> to vector<8x64xbf16>
    %44 = vector.extract_strided_slice %18 {offsets = [0, 64], sizes = [8, 64], strides = [1, 1]} : vector<8x768xf32> to vector<8x64xf32>
    %45 = arith.truncf %44 : vector<8x64xf32> to vector<8x64xbf16>
    %46 = vector.extract_strided_slice %19 {offsets = [0, 64], sizes = [8, 64], strides = [1, 1]} : vector<8x768xf32> to vector<8x64xf32>
    %47 = arith.truncf %46 : vector<8x64xf32> to vector<8x64xbf16>
    %cst_22 = arith.constant dense<0.000000e+00> : vector<8x8xf32>
    %48 = tpu.matmul %43, %45, %cst_22 {dimension_numbers = #tpu.dot_dimension_numbers<[1], [1], [0], [0], [0, 0, 1, 0], [], []>} : vector<8x64xbf16>, vector<8x64xbf16>, vector<8x8xf32> -> vector<8x8xf32>
    %cst_23 = arith.constant 1.250000e-01 : f32
    %49 = vector.broadcast %cst_23 : f32 to vector<8x8xf32>
    %50 = arith.mulf %48, %49 : vector<8x8xf32>
    %51 = vector.broadcast %5 : vector<1x8xf32> to vector<8x8xf32>
    %52 = arith.addf %50, %51 : vector<8x8xf32>
    %cst_24 = arith.constant dense<0xFF800000> : vector<8xf32>
    %53 = vector.multi_reduction <maximumf>, %52, %cst_24 [1] : vector<8x8xf32> to vector<8xf32>
    %54 = vector.shape_cast %53 : vector<8xf32> to vector<8x1xf32>
    %55 = vector.broadcast %54 : vector<8x1xf32> to vector<8x8xf32>
    %56 = arith.subf %52, %55 : vector<8x8xf32>
    %57 = math.exp %56 : vector<8x8xf32>
    %cst_25 = arith.constant dense<0.000000e+00> : vector<8xf32>
    %58 = vector.multi_reduction <add>, %57, %cst_25 [1] : vector<8x8xf32> to vector<8xf32>
    %59 = vector.shape_cast %58 : vector<8xf32> to vector<8x1xf32>
    %60 = vector.broadcast %59 : vector<8x1xf32> to vector<8x8xf32>
    %61 = arith.divf %57, %60 : vector<8x8xf32>
    %62 = arith.truncf %61 : vector<8x8xf32> to vector<8x8xbf16>
    %cst_26 = arith.constant dense<0.000000e+00> : vector<8x64xf32>
    %63 = tpu.matmul %62, %47, %cst_26 {dimension_numbers = #tpu.dot_dimension_numbers<[1], [0], [0], [1], [0, 0, 1, 1], [], []>} : vector<8x8xbf16>, vector<8x64xbf16>, vector<8x64xf32> -> vector<8x64xf32>
    %64 = vector.extract_strided_slice %11 {offsets = [0, 128], sizes = [8, 64], strides = [1, 1]} : vector<8x768xf32> to vector<8x64xf32>
    %65 = arith.truncf %64 : vector<8x64xf32> to vector<8x64xbf16>
    %66 = vector.extract_strided_slice %18 {offsets = [0, 128], sizes = [8, 64], strides = [1, 1]} : vector<8x768xf32> to vector<8x64xf32>
    %67 = arith.truncf %66 : vector<8x64xf32> to vector<8x64xbf16>
    %68 = vector.extract_strided_slice %19 {offsets = [0, 128], sizes = [8, 64], strides = [1, 1]} : vector<8x768xf32> to vector<8x64xf32>
    %69 = arith.truncf %68 : vector<8x64xf32> to vector<8x64xbf16>
    %cst_27 = arith.constant dense<0.000000e+00> : vector<8x8xf32>
    %70 = tpu.matmul %65, %67, %cst_27 {dimension_numbers = #tpu.dot_dimension_numbers<[1], [1], [0], [0], [0, 0, 1, 0], [], []>} : vector<8x64xbf16>, vector<8x64xbf16>, vector<8x8xf32> -> vector<8x8xf32>
    %cst_28 = arith.constant 1.250000e-01 : f32
    %71 = vector.broadcast %cst_28 : f32 to vector<8x8xf32>
    %72 = arith.mulf %70, %71 : vector<8x8xf32>
    %73 = vector.broadcast %5 : vector<1x8xf32> to vector<8x8xf32>
    %74 = arith.addf %72, %73 : vector<8x8xf32>
    %cst_29 = arith.constant dense<0xFF800000> : vector<8xf32>
    %75 = vector.multi_reduction <maximumf>, %74, %cst_29 [1] : vector<8x8xf32> to vector<8xf32>
    %76 = vector.shape_cast %75 : vector<8xf32> to vector<8x1xf32>
    %77 = vector.broadcast %76 : vector<8x1xf32> to vector<8x8xf32>
    %78 = arith.subf %74, %77 : vector<8x8xf32>
    %79 = math.exp %78 : vector<8x8xf32>
    %cst_30 = arith.constant dense<0.000000e+00> : vector<8xf32>
    %80 = vector.multi_reduction <add>, %79, %cst_30 [1] : vector<8x8xf32> to vector<8xf32>
    %81 = vector.shape_cast %80 : vector<8xf32> to vector<8x1xf32>
    %82 = vector.broadcast %81 : vector<8x1xf32> to vector<8x8xf32>
    %83 = arith.divf %79, %82 : vector<8x8xf32>
    %84 = arith.truncf %83 : vector<8x8xf32> to vector<8x8xbf16>
    %cst_31 = arith.constant dense<0.000000e+00> : vector<8x64xf32>
    %85 = tpu.matmul %84, %69, %cst_31 {dimension_numbers = #tpu.dot_dimension_numbers<[1], [0], [0], [1], [0, 0, 1, 1], [], []>} : vector<8x8xbf16>, vector<8x64xbf16>, vector<8x64xf32> -> vector<8x64xf32>
    %86 = vector.extract_strided_slice %11 {offsets = [0, 192], sizes = [8, 64], strides = [1, 1]} : vector<8x768xf32> to vector<8x64xf32>
    %87 = arith.truncf %86 : vector<8x64xf32> to vector<8x64xbf16>
    %88 = vector.extract_strided_slice %18 {offsets = [0, 192], sizes = [8, 64], strides = [1, 1]} : vector<8x768xf32> to vector<8x64xf32>
    %89 = arith.truncf %88 : vector<8x64xf32> to vector<8x64xbf16>
    %90 = vector.extract_strided_slice %19 {offsets = [0, 192], sizes = [8, 64], strides = [1, 1]} : vector<8x768xf32> to vector<8x64xf32>
    %91 = arith.truncf %90 : vector<8x64xf32> to vector<8x64xbf16>
    %cst_32 = arith.constant dense<0.000000e+00> : vector<8x8xf32>
    %92 = tpu.matmul %87, %89, %cst_32 {dimension_numbers = #tpu.dot_dimension_numbers<[1], [1], [0], [0], [0, 0, 1, 0], [], []>} : vector<8x64xbf16>, vector<8x64xbf16>, vector<8x8xf32> -> vector<8x8xf32>
    %cst_33 = arith.constant 1.250000e-01 : f32
    %93 = vector.broadcast %cst_33 : f32 to vector<8x8xf32>
    %94 = arith.mulf %92, %93 : vector<8x8xf32>
    %95 = vector.broadcast %5 : vector<1x8xf32> to vector<8x8xf32>
    %96 = arith.addf %94, %95 : vector<8x8xf32>
    %cst_34 = arith.constant dense<0xFF800000> : vector<8xf32>
    %97 = vector.multi_reduction <maximumf>, %96, %cst_34 [1] : vector<8x8xf32> to vector<8xf32>
    %98 = vector.shape_cast %97 : vector<8xf32> to vector<8x1xf32>
    %99 = vector.broadcast %98 : vector<8x1xf32> to vector<8x8xf32>
    %100 = arith.subf %96, %99 : vector<8x8xf32>
    %101 = math.exp %100 : vector<8x8xf32>
    %cst_35 = arith.constant dense<0.000000e+00> : vector<8xf32>
    %102 = vector.multi_reduction <add>, %101, %cst_35 [1] : vector<8x8xf32> to vector<8xf32>
    %103 = vector.shape_cast %102 : vector<8xf32> to vector<8x1xf32>
    %104 = vector.broadcast %103 : vector<8x1xf32> to vector<8x8xf32>
    %105 = arith.divf %101, %104 : vector<8x8xf32>
    %106 = arith.truncf %105 : vector<8x8xf32> to vector<8x8xbf16>
    %cst_36 = arith.constant dense<0.000000e+00> : vector<8x64xf32>
    %107 = tpu.matmul %106, %91, %cst_36 {dimension_numbers = #tpu.dot_dimension_numbers<[1], [0], [0], [1], [0, 0, 1, 1], [], []>} : vector<8x8xbf16>, vector<8x64xbf16>, vector<8x64xf32> -> vector<8x64xf32>
    %108 = vector.extract_strided_slice %11 {offsets = [0, 256], sizes = [8, 64], strides = [1, 1]} : vector<8x768xf32> to vector<8x64xf32>
    %109 = arith.truncf %108 : vector<8x64xf32> to vector<8x64xbf16>
    %110 = vector.extract_strided_slice %18 {offsets = [0, 256], sizes = [8, 64], strides = [1, 1]} : vector<8x768xf32> to vector<8x64xf32>
    %111 = arith.truncf %110 : vector<8x64xf32> to vector<8x64xbf16>
    %112 = vector.extract_strided_slice %19 {offsets = [0, 256], sizes = [8, 64], strides = [1, 1]} : vector<8x768xf32> to vector<8x64xf32>
    %113 = arith.truncf %112 : vector<8x64xf32> to vector<8x64xbf16>
    %cst_37 = arith.constant dense<0.000000e+00> : vector<8x8xf32>
    %114 = tpu.matmul %109, %111, %cst_37 {dimension_numbers = #tpu.dot_dimension_numbers<[1], [1], [0], [0], [0, 0, 1, 0], [], []>} : vector<8x64xbf16>, vector<8x64xbf16>, vector<8x8xf32> -> vector<8x8xf32>
    %cst_38 = arith.constant 1.250000e-01 : f32
    %115 = vector.broadcast %cst_38 : f32 to vector<8x8xf32>
    %116 = arith.mulf %114, %115 : vector<8x8xf32>
    %117 = vector.broadcast %5 : vector<1x8xf32> to vector<8x8xf32>
    %118 = arith.addf %116, %117 : vector<8x8xf32>
    %cst_39 = arith.constant dense<0xFF800000> : vector<8xf32>
    %119 = vector.multi_reduction <maximumf>, %118, %cst_39 [1] : vector<8x8xf32> to vector<8xf32>
    %120 = vector.shape_cast %119 : vector<8xf32> to vector<8x1xf32>
    %121 = vector.broadcast %120 : vector<8x1xf32> to vector<8x8xf32>
    %122 = arith.subf %118, %121 : vector<8x8xf32>
    %123 = math.exp %122 : vector<8x8xf32>
    %cst_40 = arith.constant dense<0.000000e+00> : vector<8xf32>
    %124 = vector.multi_reduction <add>, %123, %cst_40 [1] : vector<8x8xf32> to vector<8xf32>
    %125 = vector.shape_cast %124 : vector<8xf32> to vector<8x1xf32>
    %126 = vector.broadcast %125 : vector<8x1xf32> to vector<8x8xf32>
    %127 = arith.divf %123, %126 : vector<8x8xf32>
    %128 = arith.truncf %127 : vector<8x8xf32> to vector<8x8xbf16>
    %cst_41 = arith.constant dense<0.000000e+00> : vector<8x64xf32>
    %129 = tpu.matmul %128, %113, %cst_41 {dimension_numbers = #tpu.dot_dimension_numbers<[1], [0], [0], [1], [0, 0, 1, 1], [], []>} : vector<8x8xbf16>, vector<8x64xbf16>, vector<8x64xf32> -> vector<8x64xf32>
    %130 = vector.extract_strided_slice %11 {offsets = [0, 320], sizes = [8, 64], strides = [1, 1]} : vector<8x768xf32> to vector<8x64xf32>
    %131 = arith.truncf %130 : vector<8x64xf32> to vector<8x64xbf16>
    %132 = vector.extract_strided_slice %18 {offsets = [0, 320], sizes = [8, 64], strides = [1, 1]} : vector<8x768xf32> to vector<8x64xf32>
    %133 = arith.truncf %132 : vector<8x64xf32> to vector<8x64xbf16>
    %134 = vector.extract_strided_slice %19 {offsets = [0, 320], sizes = [8, 64], strides = [1, 1]} : vector<8x768xf32> to vector<8x64xf32>
    %135 = arith.truncf %134 : vector<8x64xf32> to vector<8x64xbf16>
    %cst_42 = arith.constant dense<0.000000e+00> : vector<8x8xf32>
    %136 = tpu.matmul %131, %133, %cst_42 {dimension_numbers = #tpu.dot_dimension_numbers<[1], [1], [0], [0], [0, 0, 1, 0], [], []>} : vector<8x64xbf16>, vector<8x64xbf16>, vector<8x8xf32> -> vector<8x8xf32>
    %cst_43 = arith.constant 1.250000e-01 : f32
    %137 = vector.broadcast %cst_43 : f32 to vector<8x8xf32>
    %138 = arith.mulf %136, %137 : vector<8x8xf32>
    %139 = vector.broadcast %5 : vector<1x8xf32> to vector<8x8xf32>
    %140 = arith.addf %138, %139 : vector<8x8xf32>
    %cst_44 = arith.constant dense<0xFF800000> : vector<8xf32>
    %141 = vector.multi_reduction <maximumf>, %140, %cst_44 [1] : vector<8x8xf32> to vector<8xf32>
    %142 = vector.shape_cast %141 : vector<8xf32> to vector<8x1xf32>
    %143 = vector.broadcast %142 : vector<8x1xf32> to vector<8x8xf32>
    %144 = arith.subf %140, %143 : vector<8x8xf32>
    %145 = math.exp %144 : vector<8x8xf32>
    %cst_45 = arith.constant dense<0.000000e+00> : vector<8xf32>
    %146 = vector.multi_reduction <add>, %145, %cst_45 [1] : vector<8x8xf32> to vector<8xf32>
    %147 = vector.shape_cast %146 : vector<8xf32> to vector<8x1xf32>
    %148 = vector.broadcast %147 : vector<8x1xf32> to vector<8x8xf32>
    %149 = arith.divf %145, %148 : vector<8x8xf32>
    %150 = arith.truncf %149 : vector<8x8xf32> to vector<8x8xbf16>
    %cst_46 = arith.constant dense<0.000000e+00> : vector<8x64xf32>
    %151 = tpu.matmul %150, %135, %cst_46 {dimension_numbers = #tpu.dot_dimension_numbers<[1], [0], [0], [1], [0, 0, 1, 1], [], []>} : vector<8x8xbf16>, vector<8x64xbf16>, vector<8x64xf32> -> vector<8x64xf32>
    %152 = vector.extract_strided_slice %11 {offsets = [0, 384], sizes = [8, 64], strides = [1, 1]} : vector<8x768xf32> to vector<8x64xf32>
    %153 = arith.truncf %152 : vector<8x64xf32> to vector<8x64xbf16>
    %154 = vector.extract_strided_slice %18 {offsets = [0, 384], sizes = [8, 64], strides = [1, 1]} : vector<8x768xf32> to vector<8x64xf32>
    %155 = arith.truncf %154 : vector<8x64xf32> to vector<8x64xbf16>
    %156 = vector.extract_strided_slice %19 {offsets = [0, 384], sizes = [8, 64], strides = [1, 1]} : vector<8x768xf32> to vector<8x64xf32>
    %157 = arith.truncf %156 : vector<8x64xf32> to vector<8x64xbf16>
    %cst_47 = arith.constant dense<0.000000e+00> : vector<8x8xf32>
    %158 = tpu.matmul %153, %155, %cst_47 {dimension_numbers = #tpu.dot_dimension_numbers<[1], [1], [0], [0], [0, 0, 1, 0], [], []>} : vector<8x64xbf16>, vector<8x64xbf16>, vector<8x8xf32> -> vector<8x8xf32>
    %cst_48 = arith.constant 1.250000e-01 : f32
    %159 = vector.broadcast %cst_48 : f32 to vector<8x8xf32>
    %160 = arith.mulf %158, %159 : vector<8x8xf32>
    %161 = vector.broadcast %5 : vector<1x8xf32> to vector<8x8xf32>
    %162 = arith.addf %160, %161 : vector<8x8xf32>
    %cst_49 = arith.constant dense<0xFF800000> : vector<8xf32>
    %163 = vector.multi_reduction <maximumf>, %162, %cst_49 [1] : vector<8x8xf32> to vector<8xf32>
    %164 = vector.shape_cast %163 : vector<8xf32> to vector<8x1xf32>
    %165 = vector.broadcast %164 : vector<8x1xf32> to vector<8x8xf32>
    %166 = arith.subf %162, %165 : vector<8x8xf32>
    %167 = math.exp %166 : vector<8x8xf32>
    %cst_50 = arith.constant dense<0.000000e+00> : vector<8xf32>
    %168 = vector.multi_reduction <add>, %167, %cst_50 [1] : vector<8x8xf32> to vector<8xf32>
    %169 = vector.shape_cast %168 : vector<8xf32> to vector<8x1xf32>
    %170 = vector.broadcast %169 : vector<8x1xf32> to vector<8x8xf32>
    %171 = arith.divf %167, %170 : vector<8x8xf32>
    %172 = arith.truncf %171 : vector<8x8xf32> to vector<8x8xbf16>
    %cst_51 = arith.constant dense<0.000000e+00> : vector<8x64xf32>
    %173 = tpu.matmul %172, %157, %cst_51 {dimension_numbers = #tpu.dot_dimension_numbers<[1], [0], [0], [1], [0, 0, 1, 1], [], []>} : vector<8x8xbf16>, vector<8x64xbf16>, vector<8x64xf32> -> vector<8x64xf32>
    %174 = vector.extract_strided_slice %11 {offsets = [0, 448], sizes = [8, 64], strides = [1, 1]} : vector<8x768xf32> to vector<8x64xf32>
    %175 = arith.truncf %174 : vector<8x64xf32> to vector<8x64xbf16>
    %176 = vector.extract_strided_slice %18 {offsets = [0, 448], sizes = [8, 64], strides = [1, 1]} : vector<8x768xf32> to vector<8x64xf32>
    %177 = arith.truncf %176 : vector<8x64xf32> to vector<8x64xbf16>
    %178 = vector.extract_strided_slice %19 {offsets = [0, 448], sizes = [8, 64], strides = [1, 1]} : vector<8x768xf32> to vector<8x64xf32>
    %179 = arith.truncf %178 : vector<8x64xf32> to vector<8x64xbf16>
    %cst_52 = arith.constant dense<0.000000e+00> : vector<8x8xf32>
    %180 = tpu.matmul %175, %177, %cst_52 {dimension_numbers = #tpu.dot_dimension_numbers<[1], [1], [0], [0], [0, 0, 1, 0], [], []>} : vector<8x64xbf16>, vector<8x64xbf16>, vector<8x8xf32> -> vector<8x8xf32>
    %cst_53 = arith.constant 1.250000e-01 : f32
    %181 = vector.broadcast %cst_53 : f32 to vector<8x8xf32>
    %182 = arith.mulf %180, %181 : vector<8x8xf32>
    %183 = vector.broadcast %5 : vector<1x8xf32> to vector<8x8xf32>
    %184 = arith.addf %182, %183 : vector<8x8xf32>
    %cst_54 = arith.constant dense<0xFF800000> : vector<8xf32>
    %185 = vector.multi_reduction <maximumf>, %184, %cst_54 [1] : vector<8x8xf32> to vector<8xf32>
    %186 = vector.shape_cast %185 : vector<8xf32> to vector<8x1xf32>
    %187 = vector.broadcast %186 : vector<8x1xf32> to vector<8x8xf32>
    %188 = arith.subf %184, %187 : vector<8x8xf32>
    %189 = math.exp %188 : vector<8x8xf32>
    %cst_55 = arith.constant dense<0.000000e+00> : vector<8xf32>
    %190 = vector.multi_reduction <add>, %189, %cst_55 [1] : vector<8x8xf32> to vector<8xf32>
    %191 = vector.shape_cast %190 : vector<8xf32> to vector<8x1xf32>
    %192 = vector.broadcast %191 : vector<8x1xf32> to vector<8x8xf32>
    %193 = arith.divf %189, %192 : vector<8x8xf32>
    %194 = arith.truncf %193 : vector<8x8xf32> to vector<8x8xbf16>
    %cst_56 = arith.constant dense<0.000000e+00> : vector<8x64xf32>
    %195 = tpu.matmul %194, %179, %cst_56 {dimension_numbers = #tpu.dot_dimension_numbers<[1], [0], [0], [1], [0, 0, 1, 1], [], []>} : vector<8x8xbf16>, vector<8x64xbf16>, vector<8x64xf32> -> vector<8x64xf32>
    %196 = vector.extract_strided_slice %11 {offsets = [0, 512], sizes = [8, 64], strides = [1, 1]} : vector<8x768xf32> to vector<8x64xf32>
    %197 = arith.truncf %196 : vector<8x64xf32> to vector<8x64xbf16>
    %198 = vector.extract_strided_slice %18 {offsets = [0, 512], sizes = [8, 64], strides = [1, 1]} : vector<8x768xf32> to vector<8x64xf32>
    %199 = arith.truncf %198 : vector<8x64xf32> to vector<8x64xbf16>
    %200 = vector.extract_strided_slice %19 {offsets = [0, 512], sizes = [8, 64], strides = [1, 1]} : vector<8x768xf32> to vector<8x64xf32>
    %201 = arith.truncf %200 : vector<8x64xf32> to vector<8x64xbf16>
    %cst_57 = arith.constant dense<0.000000e+00> : vector<8x8xf32>
    %202 = tpu.matmul %197, %199, %cst_57 {dimension_numbers = #tpu.dot_dimension_numbers<[1], [1], [0], [0], [0, 0, 1, 0], [], []>} : vector<8x64xbf16>, vector<8x64xbf16>, vector<8x8xf32> -> vector<8x8xf32>
    %cst_58 = arith.constant 1.250000e-01 : f32
    %203 = vector.broadcast %cst_58 : f32 to vector<8x8xf32>
    %204 = arith.mulf %202, %203 : vector<8x8xf32>
    %205 = vector.broadcast %5 : vector<1x8xf32> to vector<8x8xf32>
    %206 = arith.addf %204, %205 : vector<8x8xf32>
    %cst_59 = arith.constant dense<0xFF800000> : vector<8xf32>
    %207 = vector.multi_reduction <maximumf>, %206, %cst_59 [1] : vector<8x8xf32> to vector<8xf32>
    %208 = vector.shape_cast %207 : vector<8xf32> to vector<8x1xf32>
    %209 = vector.broadcast %208 : vector<8x1xf32> to vector<8x8xf32>
    %210 = arith.subf %206, %209 : vector<8x8xf32>
    %211 = math.exp %210 : vector<8x8xf32>
    %cst_60 = arith.constant dense<0.000000e+00> : vector<8xf32>
    %212 = vector.multi_reduction <add>, %211, %cst_60 [1] : vector<8x8xf32> to vector<8xf32>
    %213 = vector.shape_cast %212 : vector<8xf32> to vector<8x1xf32>
    %214 = vector.broadcast %213 : vector<8x1xf32> to vector<8x8xf32>
    %215 = arith.divf %211, %214 : vector<8x8xf32>
    %216 = arith.truncf %215 : vector<8x8xf32> to vector<8x8xbf16>
    %cst_61 = arith.constant dense<0.000000e+00> : vector<8x64xf32>
    %217 = tpu.matmul %216, %201, %cst_61 {dimension_numbers = #tpu.dot_dimension_numbers<[1], [0], [0], [1], [0, 0, 1, 1], [], []>} : vector<8x8xbf16>, vector<8x64xbf16>, vector<8x64xf32> -> vector<8x64xf32>
    %218 = vector.extract_strided_slice %11 {offsets = [0, 576], sizes = [8, 64], strides = [1, 1]} : vector<8x768xf32> to vector<8x64xf32>
    %219 = arith.truncf %218 : vector<8x64xf32> to vector<8x64xbf16>
    %220 = vector.extract_strided_slice %18 {offsets = [0, 576], sizes = [8, 64], strides = [1, 1]} : vector<8x768xf32> to vector<8x64xf32>
    %221 = arith.truncf %220 : vector<8x64xf32> to vector<8x64xbf16>
    %222 = vector.extract_strided_slice %19 {offsets = [0, 576], sizes = [8, 64], strides = [1, 1]} : vector<8x768xf32> to vector<8x64xf32>
    %223 = arith.truncf %222 : vector<8x64xf32> to vector<8x64xbf16>
    %cst_62 = arith.constant dense<0.000000e+00> : vector<8x8xf32>
    %224 = tpu.matmul %219, %221, %cst_62 {dimension_numbers = #tpu.dot_dimension_numbers<[1], [1], [0], [0], [0, 0, 1, 0], [], []>} : vector<8x64xbf16>, vector<8x64xbf16>, vector<8x8xf32> -> vector<8x8xf32>
    %cst_63 = arith.constant 1.250000e-01 : f32
    %225 = vector.broadcast %cst_63 : f32 to vector<8x8xf32>
    %226 = arith.mulf %224, %225 : vector<8x8xf32>
    %227 = vector.broadcast %5 : vector<1x8xf32> to vector<8x8xf32>
    %228 = arith.addf %226, %227 : vector<8x8xf32>
    %cst_64 = arith.constant dense<0xFF800000> : vector<8xf32>
    %229 = vector.multi_reduction <maximumf>, %228, %cst_64 [1] : vector<8x8xf32> to vector<8xf32>
    %230 = vector.shape_cast %229 : vector<8xf32> to vector<8x1xf32>
    %231 = vector.broadcast %230 : vector<8x1xf32> to vector<8x8xf32>
    %232 = arith.subf %228, %231 : vector<8x8xf32>
    %233 = math.exp %232 : vector<8x8xf32>
    %cst_65 = arith.constant dense<0.000000e+00> : vector<8xf32>
    %234 = vector.multi_reduction <add>, %233, %cst_65 [1] : vector<8x8xf32> to vector<8xf32>
    %235 = vector.shape_cast %234 : vector<8xf32> to vector<8x1xf32>
    %236 = vector.broadcast %235 : vector<8x1xf32> to vector<8x8xf32>
    %237 = arith.divf %233, %236 : vector<8x8xf32>
    %238 = arith.truncf %237 : vector<8x8xf32> to vector<8x8xbf16>
    %cst_66 = arith.constant dense<0.000000e+00> : vector<8x64xf32>
    %239 = tpu.matmul %238, %223, %cst_66 {dimension_numbers = #tpu.dot_dimension_numbers<[1], [0], [0], [1], [0, 0, 1, 1], [], []>} : vector<8x8xbf16>, vector<8x64xbf16>, vector<8x64xf32> -> vector<8x64xf32>
    %240 = vector.extract_strided_slice %11 {offsets = [0, 640], sizes = [8, 64], strides = [1, 1]} : vector<8x768xf32> to vector<8x64xf32>
    %241 = arith.truncf %240 : vector<8x64xf32> to vector<8x64xbf16>
    %242 = vector.extract_strided_slice %18 {offsets = [0, 640], sizes = [8, 64], strides = [1, 1]} : vector<8x768xf32> to vector<8x64xf32>
    %243 = arith.truncf %242 : vector<8x64xf32> to vector<8x64xbf16>
    %244 = vector.extract_strided_slice %19 {offsets = [0, 640], sizes = [8, 64], strides = [1, 1]} : vector<8x768xf32> to vector<8x64xf32>
    %245 = arith.truncf %244 : vector<8x64xf32> to vector<8x64xbf16>
    %cst_67 = arith.constant dense<0.000000e+00> : vector<8x8xf32>
    %246 = tpu.matmul %241, %243, %cst_67 {dimension_numbers = #tpu.dot_dimension_numbers<[1], [1], [0], [0], [0, 0, 1, 0], [], []>} : vector<8x64xbf16>, vector<8x64xbf16>, vector<8x8xf32> -> vector<8x8xf32>
    %cst_68 = arith.constant 1.250000e-01 : f32
    %247 = vector.broadcast %cst_68 : f32 to vector<8x8xf32>
    %248 = arith.mulf %246, %247 : vector<8x8xf32>
    %249 = vector.broadcast %5 : vector<1x8xf32> to vector<8x8xf32>
    %250 = arith.addf %248, %249 : vector<8x8xf32>
    %cst_69 = arith.constant dense<0xFF800000> : vector<8xf32>
    %251 = vector.multi_reduction <maximumf>, %250, %cst_69 [1] : vector<8x8xf32> to vector<8xf32>
    %252 = vector.shape_cast %251 : vector<8xf32> to vector<8x1xf32>
    %253 = vector.broadcast %252 : vector<8x1xf32> to vector<8x8xf32>
    %254 = arith.subf %250, %253 : vector<8x8xf32>
    %255 = math.exp %254 : vector<8x8xf32>
    %cst_70 = arith.constant dense<0.000000e+00> : vector<8xf32>
    %256 = vector.multi_reduction <add>, %255, %cst_70 [1] : vector<8x8xf32> to vector<8xf32>
    %257 = vector.shape_cast %256 : vector<8xf32> to vector<8x1xf32>
    %258 = vector.broadcast %257 : vector<8x1xf32> to vector<8x8xf32>
    %259 = arith.divf %255, %258 : vector<8x8xf32>
    %260 = arith.truncf %259 : vector<8x8xf32> to vector<8x8xbf16>
    %cst_71 = arith.constant dense<0.000000e+00> : vector<8x64xf32>
    %261 = tpu.matmul %260, %245, %cst_71 {dimension_numbers = #tpu.dot_dimension_numbers<[1], [0], [0], [1], [0, 0, 1, 1], [], []>} : vector<8x8xbf16>, vector<8x64xbf16>, vector<8x64xf32> -> vector<8x64xf32>
    %262 = vector.extract_strided_slice %11 {offsets = [0, 704], sizes = [8, 64], strides = [1, 1]} : vector<8x768xf32> to vector<8x64xf32>
    %263 = arith.truncf %262 : vector<8x64xf32> to vector<8x64xbf16>
    %264 = vector.extract_strided_slice %18 {offsets = [0, 704], sizes = [8, 64], strides = [1, 1]} : vector<8x768xf32> to vector<8x64xf32>
    %265 = arith.truncf %264 : vector<8x64xf32> to vector<8x64xbf16>
    %266 = vector.extract_strided_slice %19 {offsets = [0, 704], sizes = [8, 64], strides = [1, 1]} : vector<8x768xf32> to vector<8x64xf32>
    %267 = arith.truncf %266 : vector<8x64xf32> to vector<8x64xbf16>
    %cst_72 = arith.constant dense<0.000000e+00> : vector<8x8xf32>
    %268 = tpu.matmul %263, %265, %cst_72 {dimension_numbers = #tpu.dot_dimension_numbers<[1], [1], [0], [0], [0, 0, 1, 0], [], []>} : vector<8x64xbf16>, vector<8x64xbf16>, vector<8x8xf32> -> vector<8x8xf32>
    %cst_73 = arith.constant 1.250000e-01 : f32
    %269 = vector.broadcast %cst_73 : f32 to vector<8x8xf32>
    %270 = arith.mulf %268, %269 : vector<8x8xf32>
    %271 = vector.broadcast %5 : vector<1x8xf32> to vector<8x8xf32>
    %272 = arith.addf %270, %271 : vector<8x8xf32>
    %cst_74 = arith.constant dense<0xFF800000> : vector<8xf32>
    %273 = vector.multi_reduction <maximumf>, %272, %cst_74 [1] : vector<8x8xf32> to vector<8xf32>
    %274 = vector.shape_cast %273 : vector<8xf32> to vector<8x1xf32>
    %275 = vector.broadcast %274 : vector<8x1xf32> to vector<8x8xf32>
    %276 = arith.subf %272, %275 : vector<8x8xf32>
    %277 = math.exp %276 : vector<8x8xf32>
    %cst_75 = arith.constant dense<0.000000e+00> : vector<8xf32>
    %278 = vector.multi_reduction <add>, %277, %cst_75 [1] : vector<8x8xf32> to vector<8xf32>
    %279 = vector.shape_cast %278 : vector<8xf32> to vector<8x1xf32>
    %280 = vector.broadcast %279 : vector<8x1xf32> to vector<8x8xf32>
    %281 = arith.divf %277, %280 : vector<8x8xf32>
    %282 = arith.truncf %281 : vector<8x8xf32> to vector<8x8xbf16>
    %cst_76 = arith.constant dense<0.000000e+00> : vector<8x64xf32>
    %283 = tpu.matmul %282, %267, %cst_76 {dimension_numbers = #tpu.dot_dimension_numbers<[1], [0], [0], [1], [0, 0, 1, 1], [], []>} : vector<8x8xbf16>, vector<8x64xbf16>, vector<8x64xf32> -> vector<8x64xf32>
    %284 = tpu.concatenate %41, %63, %85, %107, %129, %151, %173, %195, %217, %239, %261, %283 in 1 : vector<8x64xf32>, vector<8x64xf32>, vector<8x64xf32>, vector<8x64xf32>, vector<8x64xf32>, vector<8x64xf32>, vector<8x64xf32>, vector<8x64xf32>, vector<8x64xf32>, vector<8x64xf32>, vector<8x64xf32>, vector<8x64xf32> -> vector<8x768xf32>
    %285 = arith.truncf %284 : vector<8x768xf32> to vector<8x768xbf16>
    %c0_77 = arith.constant 0 : index
    %c0_78 = arith.constant 0 : index
    %286 = vector.load %arg8[%c0_77, %c0_78] : memref<768x768xbf16, #tpu.memory_space<vmem>>, vector<768x768xbf16>
    %cst_79 = arith.constant dense<0.000000e+00> : vector<8x768xf32>
    %287 = tpu.matmul %285, %286, %cst_79 {dimension_numbers = #tpu.dot_dimension_numbers<[1], [0], [0], [1], [0, 0, 1, 1], [], []>} : vector<8x768xbf16>, vector<768x768xbf16>, vector<8x768xf32> -> vector<8x768xf32>
    %c0_80 = arith.constant 0 : index
    %c0_81 = arith.constant 0 : index
    %288 = vector.load %arg9[%c0_80, %c0_81] : memref<1x768xf32, #tpu.memory_space<vmem>>, vector<1x768xf32>
    %289 = vector.broadcast %288 : vector<1x768xf32> to vector<8x768xf32>
    %290 = arith.addf %287, %289 : vector<8x768xf32>
    %291 = arith.addf %290, %1 : vector<8x768xf32>
    %cst_82 = arith.constant dense<0.000000e+00> : vector<8xf32>
    %292 = vector.multi_reduction <add>, %291, %cst_82 [1] : vector<8x768xf32> to vector<8xf32>
    %293 = vector.shape_cast %292 : vector<8xf32> to vector<8x1xf32>
    %cst_83 = arith.constant 7.680000e+02 : f32
    %294 = vector.broadcast %cst_83 : f32 to vector<8x1xf32>
    %295 = arith.divf %293, %294 : vector<8x1xf32>
    %296 = vector.broadcast %295 : vector<8x1xf32> to vector<8x768xf32>
    %297 = arith.subf %291, %296 : vector<8x768xf32>
    %298 = arith.mulf %297, %297 : vector<8x768xf32>
    %cst_84 = arith.constant dense<0.000000e+00> : vector<8xf32>
    %299 = vector.multi_reduction <add>, %298, %cst_84 [1] : vector<8x768xf32> to vector<8xf32>
    %300 = vector.shape_cast %299 : vector<8xf32> to vector<8x1xf32>
    %cst_85 = arith.constant 7.680000e+02 : f32
    %301 = vector.broadcast %cst_85 : f32 to vector<8x1xf32>
    %302 = arith.divf %300, %301 : vector<8x1xf32>
    %cst_86 = arith.constant 9.99999996E-13 : f32
    %303 = vector.broadcast %cst_86 : f32 to vector<8x1xf32>
    %304 = arith.addf %302, %303 : vector<8x1xf32>
    %305 = math.rsqrt %304 : vector<8x1xf32>
    %306 = vector.broadcast %305 : vector<8x1xf32> to vector<8x768xf32>
    %307 = arith.mulf %297, %306 : vector<8x768xf32>
    %c0_87 = arith.constant 0 : index
    %c0_88 = arith.constant 0 : index
    %308 = vector.load %arg10[%c0_87, %c0_88] : memref<1x768xf32, #tpu.memory_space<vmem>>, vector<1x768xf32>
    %309 = vector.broadcast %308 : vector<1x768xf32> to vector<8x768xf32>
    %310 = arith.mulf %309, %307 : vector<8x768xf32>
    %c0_89 = arith.constant 0 : index
    %c0_90 = arith.constant 0 : index
    %311 = vector.load %arg11[%c0_89, %c0_90] : memref<1x768xf32, #tpu.memory_space<vmem>>, vector<1x768xf32>
    %312 = vector.broadcast %311 : vector<1x768xf32> to vector<8x768xf32>
    %313 = arith.addf %310, %312 : vector<8x768xf32>
    %c0_91 = arith.constant 0 : index
    %c0_92 = arith.constant 0 : index
    %c0_93 = arith.constant 0 : index
    %314 = vector.load %arg12[%c0_91, %c0_92, %c0_93] : memref<1x8x768xf32, #tpu.memory_space<vmem>>, vector<1x8x768xf32>
    %315 = vector.shape_cast %314 : vector<1x8x768xf32> to vector<8x768xf32>
    %316 = vector.shape_cast %313 : vector<8x768xf32> to vector<1x8x768xf32>
    tpu.vector_store %arg12[%c0_91, %c0_92, %c0_93], %316 {strides = array<i32>} : memref<1x8x768xf32, #tpu.memory_space<vmem>>, vector<1x8x768xf32>,
    return
  }
  func.func @transform_0(%arg0: i32) -> (i32, i32, i32) {
    %c0_i32 = arith.constant 0 : i32
    %c0_i32_0 = arith.constant 0 : i32
    %c0_i32_1 = arith.constant 0 : i32
    return %arg0, %c0_i32, %c0_i32_0 : i32, i32, i32
  }
  func.func @transform_1(%arg0: i32) -> (i32, i32, i32) {
    %c0_i32 = arith.constant 0 : i32
    %c0_i32_0 = arith.constant 0 : i32
    %c0_i32_1 = arith.constant 0 : i32
    return %arg0, %c0_i32, %c0_i32_0 : i32, i32, i32
  }
  func.func @transform_2(%arg0: i32) -> (i32, i32, i32) {
    %c0_i32 = arith.constant 0 : i32
    %c0_i32_0 = arith.constant 0 : i32
    %c0_i32_1 = arith.constant 0 : i32
    return %arg0, %c0_i32, %c0_i32_0 : i32, i32, i32
  }
  func.func @transform_3(%arg0: i32) -> (i32, i32) {
    %c0_i32 = arith.constant 0 : i32
    %c0_i32_0 = arith.constant 0 : i32
    %c0_i32_1 = arith.constant 0 : i32
    return %c0_i32, %c0_i32_0 : i32, i32
  }
  func.func @transform_4(%arg0: i32) -> (i32, i32) {
    %c0_i32 = arith.constant 0 : i32
    %c0_i32_0 = arith.constant 0 : i32
    %c0_i32_1 = arith.constant 0 : i32
    return %c0_i32, %c0_i32_0 : i32, i32
  }
  func.func @transform_5(%arg0: i32) -> (i32, i32) {
    %c0_i32 = arith.constant 0 : i32
    %c0_i32_0 = arith.constant 0 : i32
    %c0_i32_1 = arith.constant 0 : i32
    return %c0_i32, %c0_i32_0 : i32, i32
  }
  func.func @transform_6(%arg0: i32) -> (i32, i32) {
    %c0_i32 = arith.constant 0 : i32
    %c0_i32_0 = arith.constant 0 : i32
    %c0_i32_1 = arith.constant 0 : i32
    return %c0_i32, %c0_i32_0 : i32, i32
  }
  func.func @transform_7(%arg0: i32) -> (i32, i32) {
    %c0_i32 = arith.constant 0 : i32
    %c0_i32_0 = arith.constant 0 : i32
    %c0_i32_1 = arith.constant 0 : i32
    return %c0_i32, %c0_i32_0 : i32, i32
  }
  func.func @transform_8(%arg0: i32) -> (i32, i32) {
    %c0_i32 = arith.constant 0 : i32
    %c0_i32_0 = arith.constant 0 : i32
    %c0_i32_1 = arith.constant 0 : i32
    return %c0_i32, %c0_i32_0 : i32, i32
  }
  func.func @transform_9(%arg0: i32) -> (i32, i32) {
    %c0_i32 = arith.constant 0 : i32
    %c0_i32_0 = arith.constant 0 : i32
    %c0_i32_1 = arith.constant 0 : i32
    return %c0_i32, %c0_i32_0 : i32, i32
  }
  func.func @transform_10(%arg0: i32) -> (i32, i32) {
    %c0_i32 = arith.constant 0 : i32
    %c0_i32_0 = arith.constant 0 : i32
    %c0_i32_1 = arith.constant 0 : i32
    return %c0_i32, %c0_i32_0 : i32, i32
  }
  func.func @transform_11(%arg0: i32) -> (i32, i32, i32) {
    %c0_i32 = arith.constant 0 : i32
    %c0_i32_0 = arith.constant 0 : i32
    %c0_i32_1 = arith.constant 0 : i32
    return %arg0, %c0_i32, %c0_i32_0 : i32, i32, i32
  }
}

</mosaic_0001>

<llo_original>
// kernel: bert_cross_attention.1
$region0: #{bert_cross_attention.1}
  #allocation0 [shape = 'u32[]', space=smem, size = 0x4, offset = 0x4, fixed_abs, tag = 'smem constant byte address 0x4 - core index']
  #allocation1 [shape = 'u32[72,128]{1,0:T(1,128)}', space=vmem, size = 0x9000, scoped, tag = 'internal scratch']
  %s0 = inlined_call_operand.vmem [shape: f32[2,8,768], index: 0, kind: input, shape index: {}]
  %s1 = inlined_call_operand.vmem [shape: f32[2,8,768], index: 1, kind: input, shape index: {}]
  %s2 = inlined_call_operand.vmem [shape: f32[2,1,8], index: 2, kind: input, shape index: {}]
  %s3 = inlined_call_operand.vmem [shape: bf16[768,768], index: 3, kind: input, shape index: {}]
  %s4 = inlined_call_operand.vmem [shape: f32[1,768], index: 4, kind: input, shape index: {}]
  %s5 = inlined_call_operand.vmem [shape: bf16[768,1536], index: 5, kind: input, shape index: {}]
  %s6 = inlined_call_operand.vmem [shape: f32[1,1536], index: 6, kind: input, shape index: {}]
  %s7 = inlined_call_operand.vmem [shape: bf16[768,768], index: 7, kind: input, shape index: {}]
  %s8 = inlined_call_operand.vmem [shape: f32[1,768], index: 8, kind: input, shape index: {}]
  %s9 = inlined_call_operand.vmem [shape: f32[1,768], index: 9, kind: input, shape index: {}]
  %s10 = inlined_call_operand.vmem [shape: f32[1,768], index: 10, kind: input, shape index: {}]
  %s11 = inlined_call_operand.hbm [shape: f32[2,8,768], index: 11, kind: output, shape index: {}]
  %s12 = sld [smem:[#allocation0]]
  $region77: #{bert_cross_attention.1} parent=0
    _
  %s14 = ssub.s32 1, %s12
  %s15 = scalar_select 0, %s14, %s12
  $region1: #{bert_cross_attention.1} parent=0
    #allocation2 [shape = 'u8[49152]{0}', space=vmem, size = 0xc000, scoped, tag = 'output window, operand 0']
    #allocation3 [shape = 's32[2]{0}', space=sflag, size = 0x8, scoped, tag = 'scoped memory for bert_cross_attention.1']
    %16 = vsyncpa [#allocation3], 0
    %s17 = scalar_lea.sflag [#allocation3], 1
    %18 = vsyncpa %s17, 0
    loop: start=0, step=1, limit=4
    $region2: #{bert_cross_attention.1} parent=1 // loop_pre_header
      _
    $region3: #{bert_cross_attention.1} parent=1 // loop_header
      %s20 = sphi 0, %s24
      %p21 = scmp.ge.s32.totalorder %s20, 4
      %s30 = sphi 0, %s32
      %s33 = sphi 0, %s30
      %s34 = sphi 0, %s33
      %s50 = sphi 0, %s34
      %s56 = sphi 0, %s58
      %s59 = sphi 0, %s56
      %s60 = sphi 0, %s59
      %s76 = sphi 0, %s60
      %s82 = sphi 0, %s84
      %s85 = sphi 0, %s82
      %s86 = sphi 0, %s85
      %s102 = sphi 0, %s86
      %s106 = sphi 0, %s106
      %s108 = sphi 0, %s106
      %s109 = sphi 0, %s108
      %s123 = sphi 0, %s109
      %s127 = sphi 0, %s127
      %s129 = sphi 0, %s127
      %s130 = sphi 0, %s129
      %s144 = sphi 0, %s130
      %s148 = sphi 0, %s148
      %s150 = sphi 0, %s148
      %s151 = sphi 0, %s150
      %s165 = sphi 0, %s151
      %s169 = sphi 0, %s169
      %s171 = sphi 0, %s169
      %s172 = sphi 0, %s171
      %s186 = sphi 0, %s172
      %s190 = sphi 0, %s190
      %s192 = sphi 0, %s190
      %s193 = sphi 0, %s192
      %s207 = sphi 0, %s193
      %s211 = sphi 0, %s211
      %s213 = sphi 0, %s211
      %s214 = sphi 0, %s213
      %s228 = sphi 0, %s214
      %s232 = sphi 0, %s232
      %s234 = sphi 0, %s232
      %s235 = sphi 0, %s234
      %s249 = sphi 0, %s235
      %s253 = sphi 0, %s253
      %s255 = sphi 0, %s253
      %s256 = sphi 0, %s255
      %s270 = sphi 0, %s256
      %s276 = sphi 0, %s278
      %s279 = sphi 0, %s276
      %s280 = sphi 0, %s279
      %s296 = sphi 0, %s280
    $region4: #{bert_cross_attention.1} parent=1 // loop_header_branch
      %23 = sbr.rel (%p21) target = $region8
    $region5: #{bert_cross_attention.1} parent=1 // loop_body
      %s25 = ssub.s32 %s20, 1
      %s26 = ssub.s32 %s20, 2
      %s27 = sadd.s32 %s20, 1
      %s28 = ssub.s32 %s20, %s27
      %p29 = scmp.eq.s32.totalorder %s28, 0
      %s31 = sadd.s32 %s30, 1
      %s32 = scalar_select %p29, %s30, %s31
      %p35 = pneg %p29
      %p36 = scmp.eq.s32.totalorder %s20, 1
      %p37 = por %p35, %p36
      %p38 = scmp.ne.s32.totalorder %s30, %s33
      %p39 = scmp.eq.s32.totalorder %s20, 0
      %p40 = por %p38, %p39
      %p41 = scmp.ne.s32.totalorder %s30, %s33
      %p42 = scmp.eq.s32.totalorder %s25, 1
      %p43 = por %p41, %p42
      %p44 = scmp.ne.s32.totalorder %s33, %s34
      %p45 = scmp.eq.s32.totalorder %s25, 0
      %p46 = por %p44, %p45
      %p47 = scmp.ne.s32.totalorder %s33, %s34
      %p48 = scmp.eq.s32.totalorder %s26, 1
      %p49 = por %p47, %p48
      %p51 = scmp.ne.s32.totalorder %s34, %s50
      %p52 = scmp.eq.s32.totalorder %s26, 0
      %p53 = por %p51, %p52
      %s54 = ssub.s32 %s20, %s27
      %p55 = scmp.eq.s32.totalorder %s54, 0
      %s57 = sadd.s32 %s56, 1
      %s58 = scalar_select %p55, %s56, %s57
      %p61 = pneg %p55
      %p62 = scmp.eq.s32.totalorder %s20, 1
      %p63 = por %p61, %p62
      %p64 = scmp.ne.s32.totalorder %s56, %s59
      %p65 = scmp.eq.s32.totalorder %s20, 0
      %p66 = por %p64, %p65
      %p67 = scmp.ne.s32.totalorder %s56, %s59
      %p68 = scmp.eq.s32.totalorder %s25, 1
      %p69 = por %p67, %p68
      %p70 = scmp.ne.s32.totalorder %s59, %s60
      %p71 = scmp.eq.s32.totalorder %s25, 0
      %p72 = por %p70, %p71
      %p73 = scmp.ne.s32.totalorder %s59, %s60
      %p74 = scmp.eq.s32.totalorder %s26, 1
      %p75 = por %p73, %p74
      %p77 = scmp.ne.s32.totalorder %s60, %s76
      %p78 = scmp.eq.s32.totalorder %s26, 0
      %p79 = por %p77, %p78
      %s80 = ssub.s32 %s20, %s27
      %p81 = scmp.eq.s32.totalorder %s80, 0
      %s83 = sadd.s32 %s82, 1
      %s84 = scalar_select %p81, %s82, %s83
      %p87 = pneg %p81
      %p88 = scmp.eq.s32.totalorder %s20, 1
      %p89 = por %p87, %p88
      %p90 = scmp.ne.s32.totalorder %s82, %s85
      %p91 = scmp.eq.s32.totalorder %s20, 0
      %p92 = por %p90, %p91
      %p93 = scmp.ne.s32.totalorder %s82, %s85
      %p94 = scmp.eq.s32.totalorder %s25, 1
      %p95 = por %p93, %p94
      %p96 = scmp.ne.s32.totalorder %s85, %s86
      %p97 = scmp.eq.s32.totalorder %s25, 0
      %p98 = por %p96, %p97
      %p99 = scmp.ne.s32.totalorder %s85, %s86
      %p100 = scmp.eq.s32.totalorder %s26, 1
      %p101 = por %p99, %p100
      %p103 = scmp.ne.s32.totalorder %s86, %s102
      %p104 = scmp.eq.s32.totalorder %s26, 0
      %p105 = por %p103, %p104
      %s107 = sadd.s32 %s106, 1
      %p110 = scmp.eq.s32.totalorder %s20, 1
      %p111 = scmp.ne.s32.totalorder %s106, %s108
      %p112 = scmp.eq.s32.totalorder %s20, 0
      %p113 = por %p111, %p112
      %p114 = scmp.ne.s32.totalorder %s106, %s108
      %p115 = scmp.eq.s32.totalorder %s25, 1
      %p116 = por %p114, %p115
      %p117 = scmp.ne.s32.totalorder %s108, %s109
      %p118 = scmp.eq.s32.totalorder %s25, 0
      %p119 = por %p117, %p118
      %p120 = scmp.ne.s32.totalorder %s108, %s109
      %p121 = scmp.eq.s32.totalorder %s26, 1
      %p122 = por %p120, %p121
      %p124 = scmp.ne.s32.totalorder %s109, %s123
      %p125 = scmp.eq.s32.totalorder %s26, 0
      %p126 = por %p124, %p125
      %s128 = sadd.s32 %s127, 1
      %p131 = scmp.eq.s32.totalorder %s20, 1
      %p132 = scmp.ne.s32.totalorder %s127, %s129
      %p133 = scmp.eq.s32.totalorder %s20, 0
      %p134 = por %p132, %p133
      %p135 = scmp.ne.s32.totalorder %s127, %s129
      %p136 = scmp.eq.s32.totalorder %s25, 1
      %p137 = por %p135, %p136
      %p138 = scmp.ne.s32.totalorder %s129, %s130
      %p139 = scmp.eq.s32.totalorder %s25, 0
      %p140 = por %p138, %p139
      %p141 = scmp.ne.s32.totalorder %s129, %s130
      %p142 = scmp.eq.s32.totalorder %s26, 1
      %p143 = por %p141, %p142
      %p145 = scmp.ne.s32.totalorder %s130, %s144
      %p146 = scmp.eq.s32.totalorder %s26, 0
      %p147 = por %p145, %p146
      %s149 = sadd.s32 %s148, 1
      %p152 = scmp.eq.s32.totalorder %s20, 1
      %p153 = scmp.ne.s32.totalorder %s148, %s150
      %p154 = scmp.eq.s32.totalorder %s20, 0
      %p155 = por %p153, %p154
      %p156 = scmp.ne.s32.totalorder %s148, %s150
      %p157 = scmp.eq.s32.totalorder %s25, 1
      %p158 = por %p156, %p157
      %p159 = scmp.ne.s32.totalorder %s150, %s151
      %p160 = scmp.eq.s32.totalorder %s25, 0
      %p161 = por %p159, %p160
      %p162 = scmp.ne.s32.totalorder %s150, %s151
      %p163 = scmp.eq.s32.totalorder %s26, 1
      %p164 = por %p162, %p163
      %p166 = scmp.ne.s32.totalorder %s151, %s165
      %p167 = scmp.eq.s32.totalorder %s26, 0
      %p168 = por %p166, %p167
      %s170 = sadd.s32 %s169, 1
      %p173 = scmp.eq.s32.totalorder %s20, 1
      %p174 = scmp.ne.s32.totalorder %s169, %s171
      %p175 = scmp.eq.s32.totalorder %s20, 0
      %p176 = por %p174, %p175
      %p177 = scmp.ne.s32.totalorder %s169, %s171
      %p178 = scmp.eq.s32.totalorder %s25, 1
      %p179 = por %p177, %p178
      %p180 = scmp.ne.s32.totalorder %s171, %s172
      %p181 = scmp.eq.s32.totalorder %s25, 0
      %p182 = por %p180, %p181
      %p183 = scmp.ne.s32.totalorder %s171, %s172
      %p184 = scmp.eq.s32.totalorder %s26, 1
      %p185 = por %p183, %p184
      %p187 = scmp.ne.s32.totalorder %s172, %s186
      %p188 = scmp.eq.s32.totalorder %s26, 0
      %p189 = por %p187, %p188
      %s191 = sadd.s32 %s190, 1
      %p194 = scmp.eq.s32.totalorder %s20, 1
      %p195 = scmp.ne.s32.totalorder %s190, %s192
      %p196 = scmp.eq.s32.totalorder %s20, 0
      %p197 = por %p195, %p196
      %p198 = scmp.ne.s32.totalorder %s190, %s192
      %p199 = scmp.eq.s32.totalorder %s25, 1
      %p200 = por %p198, %p199
      %p201 = scmp.ne.s32.totalorder %s192, %s193
      %p202 = scmp.eq.s32.totalorder %s25, 0
      %p203 = por %p201, %p202
      %p204 = scmp.ne.s32.totalorder %s192, %s193
      %p205 = scmp.eq.s32.totalorder %s26, 1
      %p206 = por %p204, %p205
      %p208 = scmp.ne.s32.totalorder %s193, %s207
      %p209 = scmp.eq.s32.totalorder %s26, 0
      %p210 = por %p208, %p209
      %s212 = sadd.s32 %s211, 1
      %p215 = scmp.eq.s32.totalorder %s20, 1
      %p216 = scmp.ne.s32.totalorder %s211, %s213
      %p217 = scmp.eq.s32.totalorder %s20, 0
      %p218 = por %p216, %p217
      %p219 = scmp.ne.s32.totalorder %s211, %s213
      %p220 = scmp.eq.s32.totalorder %s25, 1
      %p221 = por %p219, %p220
      %p222 = scmp.ne.s32.totalorder %s213, %s214
      %p223 = scmp.eq.s32.totalorder %s25, 0
      %p224 = por %p222, %p223
      %p225 = scmp.ne.s32.totalorder %s213, %s214
      %p226 = scmp.eq.s32.totalorder %s26, 1
      %p227 = por %p225, %p226
      %p229 = scmp.ne.s32.totalorder %s214, %s228
      %p230 = scmp.eq.s32.totalorder %s26, 0
      %p231 = por %p229, %p230
      %s233 = sadd.s32 %s232, 1
      %p236 = scmp.eq.s32.totalorder %s20, 1
      %p237 = scmp.ne.s32.totalorder %s232, %s234
      %p238 = scmp.eq.s32.totalorder %s20, 0
      %p239 = por %p237, %p238
      %p240 = scmp.ne.s32.totalorder %s232, %s234
      %p241 = scmp.eq.s32.totalorder %s25, 1
      %p242 = por %p240, %p241
      %p243 = scmp.ne.s32.totalorder %s234, %s235
      %p244 = scmp.eq.s32.totalorder %s25, 0
      %p245 = por %p243, %p244
      %p246 = scmp.ne.s32.totalorder %s234, %s235
      %p247 = scmp.eq.s32.totalorder %s26, 1
      %p248 = por %p246, %p247
      %p250 = scmp.ne.s32.totalorder %s235, %s249
      %p251 = scmp.eq.s32.totalorder %s26, 0
      %p252 = por %p250, %p251
      %s254 = sadd.s32 %s253, 1
      %p257 = scmp.eq.s32.totalorder %s20, 1
      %p258 = scmp.ne.s32.totalorder %s253, %s255
      %p259 = scmp.eq.s32.totalorder %s20, 0
      %p260 = por %p258, %p259
      %p261 = scmp.ne.s32.totalorder %s253, %s255
      %p262 = scmp.eq.s32.totalorder %s25, 1
      %p263 = por %p261, %p262
      %p264 = scmp.ne.s32.totalorder %s255, %s256
      %p265 = scmp.eq.s32.totalorder %s25, 0
      %p266 = por %p264, %p265
      %p267 = scmp.ne.s32.totalorder %s255, %s256
      %p268 = scmp.eq.s32.totalorder %s26, 1
      %p269 = por %p267, %p268
      %p271 = scmp.ne.s32.totalorder %s256, %s270
      %p272 = scmp.eq.s32.totalorder %s26, 0
      %p273 = por %p271, %p272
      %s274 = ssub.s32 %s20, %s27
      %p275 = scmp.eq.s32.totalorder %s274, 0
      %s277 = sadd.s32 %s276, 1
      %s278 = scalar_select %p275, %s276, %s277
      %p281 = pneg %p275
      %p282 = scmp.eq.s32.totalorder %s20, 1
      %p283 = por %p281, %p282
      %p284 = scmp.ne.s32.totalorder %s276, %s279
      %p285 = scmp.eq.s32.totalorder %s20, 0
      %p286 = por %p284, %p285
      %p287 = scmp.ne.s32.totalorder %s276, %s279
      %p288 = scmp.eq.s32.totalorder %s25, 1
      %p289 = por %p287, %p288
      %p290 = scmp.ne.s32.totalorder %s279, %s280
      %p291 = scmp.eq.s32.totalorder %s25, 0
      %p292 = por %p290, %p291
      %p293 = scmp.ne.s32.totalorder %s279, %s280
      %p294 = scmp.eq.s32.totalorder %s26, 1
      %p295 = por %p293, %p294
      %p297 = scmp.ne.s32.totalorder %s280, %s296
      %p298 = scmp.eq.s32.totalorder %s26, 0
      %p299 = por %p297, %p298
      %p300 = scmp.le.s32.totalorder 1, %s20
      %p301 = scmp.lt.s32.totalorder %s20, 3
      %p302 = pnand %p300, %p301
      %p303 = pneg %p302
      // Predicated region
      $region9: #{bert_cross_attention.1} parent=5 // pred_check
        _
      $region10: #{bert_cross_attention.1} parent=5 // pred_check_branch
        %305 = sbr.rel (%p302) target = $region12
      $region11: #{bert_cross_attention.1} parent=5 // pred_region
        %s306 = ssub.s32 %s20, 1
        // Predicated region
        $region13: #{bert_cross_attention.1} parent=11 // pred_check
          %p307 = pneg %p119
        $region14: #{bert_cross_attention.1} parent=11 // pred_check_branch
          %309 = sbr.rel (%p307) target = $region16
        $region15: #{bert_cross_attention.1} parent=11 // pred_region
          _
        $region16: #{bert_cross_attention.1} parent=11 // pred_fallthru
          _
        // Predicated region
        $region17: #{bert_cross_attention.1} parent=11 // pred_check
          %p310 = pneg %p140
        $region18: #{bert_cross_attention.1} parent=11 // pred_check_branch
          %312 = sbr.rel (%p310) target = $region20
        $region19: #{bert_cross_attention.1} parent=11 // pred_region
          _
        $region20: #{bert_cross_attention.1} parent=11 // pred_fallthru
          _
        // Predicated region
        $region21: #{bert_cross_attention.1} parent=11 // pred_check
          %p313 = pneg %p161
        $region22: #{bert_cross_attention.1} parent=11 // pred_check_branch
          %315 = sbr.rel (%p313) target = $region24
        $region23: #{bert_cross_attention.1} parent=11 // pred_region
          _
        $region24: #{bert_cross_attention.1} parent=11 // pred_fallthru
          _
        // Predicated region
        $region25: #{bert_cross_attention.1} parent=11 // pred_check
          %p316 = pneg %p182
        $region26: #{bert_cross_attention.1} parent=11 // pred_check_branch
          %318 = sbr.rel (%p316) target = $region28
        $region27: #{bert_cross_attention.1} parent=11 // pred_region
          _
        $region28: #{bert_cross_attention.1} parent=11 // pred_fallthru
          _
        // Predicated region
        $region29: #{bert_cross_attention.1} parent=11 // pred_check
          %p319 = pneg %p203
        $region30: #{bert_cross_attention.1} parent=11 // pred_check_branch
          %321 = sbr.rel (%p319) target = $region32
        $region31: #{bert_cross_attention.1} parent=11 // pred_region
          _
        $region32: #{bert_cross_attention.1} parent=11 // pred_fallthru
          _
        // Predicated region
        $region33: #{bert_cross_attention.1} parent=11 // pred_check
          %p322 = pneg %p224
        $region34: #{bert_cross_attention.1} parent=11 // pred_check_branch
          %324 = sbr.rel (%p322) target = $region36
        $region35: #{bert_cross_attention.1} parent=11 // pred_region
          _
        $region36: #{bert_cross_attention.1} parent=11 // pred_fallthru
          _
        // Predicated region
        $region37: #{bert_cross_attention.1} parent=11 // pred_check
          %p325 = pneg %p245
        $region38: #{bert_cross_attention.1} parent=11 // pred_check_branch
          %327 = sbr.rel (%p325) target = $region40
        $region39: #{bert_cross_attention.1} parent=11 // pred_region
          _
        $region40: #{bert_cross_attention.1} parent=11 // pred_fallthru
          _
        // Predicated region
        $region41: #{bert_cross_attention.1} parent=11 // pred_check
          %p328 = pneg %p266
        $region42: #{bert_cross_attention.1} parent=11 // pred_check_branch
          %330 = sbr.rel (%p328) target = $region44
        $region43: #{bert_cross_attention.1} parent=11 // pred_region
          _
        $region44: #{bert_cross_attention.1} parent=11 // pred_fallthru
          _
      $region12: #{bert_cross_attention.1} parent=5 // pred_fallthru
        _
      %p331 = scmp.lt.s32.totalorder %s20, 2
      // Predicated region
      $region45: #{bert_cross_attention.1} parent=5 // pred_check
        %p332 = pneg %p331
      $region46: #{bert_cross_attention.1} parent=5 // pred_check_branch
        %334 = sbr.rel (%p332) target = $region48
      $region47: #{bert_cross_attention.1} parent=5 // pred_region
        // Predicated region
        $region49: #{bert_cross_attention.1} parent=47 // pred_check
          %p335 = pneg %p40
        $region50: #{bert_cross_attention.1} parent=47 // pred_check_branch
          %337 = sbr.rel (%p335) target = $region52
        $region51: #{bert_cross_attention.1} parent=47 // pred_region
          %p338 = scmp.lt.s32.totalorder %s20, 1
          %s339 = scalar_select %p338, %s20, 1
          %s340 = smul.addr %s339, 6
          %s341 = smul.addr %s340, 8
          %s342 = scalar_lea.vmem %s0, %s341
        $region52: #{bert_cross_attention.1} parent=47 // pred_fallthru
          _
        // Predicated region
        $region53: #{bert_cross_attention.1} parent=47 // pred_check
          %p343 = pneg %p66
        $region54: #{bert_cross_attention.1} parent=47 // pred_check_branch
          %345 = sbr.rel (%p343) target = $region56
        $region55: #{bert_cross_attention.1} parent=47 // pred_region
          %p346 = scmp.lt.s32.totalorder %s20, 1
          %s347 = scalar_select %p346, %s20, 1
          %s348 = smul.addr %s347, 6
          %s349 = smul.addr %s348, 8
          %s350 = scalar_lea.vmem %s1, %s349
        $region56: #{bert_cross_attention.1} parent=47 // pred_fallthru
          _
        // Predicated region
        $region57: #{bert_cross_attention.1} parent=47 // pred_check
          %p351 = pneg %p92
        $region58: #{bert_cross_attention.1} parent=47 // pred_check_branch
          %353 = sbr.rel (%p351) target = $region60
        $region59: #{bert_cross_attention.1} parent=47 // pred_region
          %p354 = scmp.lt.s32.totalorder %s20, 1
          %s355 = scalar_select %p354, %s20, 1
          %s356 = scalar_lea.vmem %s2, %s355
        $region60: #{bert_cross_attention.1} parent=47 // pred_fallthru
          _
      $region48: #{bert_cross_attention.1} parent=5 // pred_fallthru
        _
      %p357 = scmp.le.s32.totalorder 1, %s20
      %p358 = scmp.lt.s32.totalorder %s20, 3
      %p359 = pnand %p357, %p358
      %p360 = pneg %p359
      // Predicated region
      $region61: #{bert_cross_attention.1} parent=5 // pred_check
        _
      $region62: #{bert_cross_attention.1} parent=5 // pred_check_branch
        %362 = sbr.rel (%p359) target = $region64
      $region63: #{bert_cross_attention.1} parent=5 // pred_region
        %s363 = ssub.s32 %s20, 1
        %p364 = scmp.lt.s32.totalorder %s25, 1
        %s365 = scalar_select %p364, %s25, 1
        %s366 = smul.addr %s365, 6
        %s367 = smul.addr %s366, 8
        %s368 = scalar_lea.vmem %s0, %s367
        %p369 = pneg %p46
        %p370 = pneg %p43
        %p371 = scmp.lt.s32.totalorder %s25, 1
        %s372 = scalar_select %p371, %s25, 1
        %s373 = smul.addr %s372, 6
        %s374 = smul.addr %s373, 8
        %s375 = scalar_lea.vmem %s1, %s374
        %p376 = pneg %p72
        %p377 = pneg %p69
        %p378 = scmp.lt.s32.totalorder %s25, 1
        %s379 = scalar_select %p378, %s25, 1
        %s380 = scalar_lea.vmem %s2, %s379
        %p381 = pneg %p98
        %p382 = pneg %p95
        %p383 = pneg %p119
        %p384 = pneg %p116
        %p385 = pneg %p140
        %p386 = pneg %p137
        %p387 = pneg %p161
        %p388 = pneg %p158
        %p389 = pneg %p182
        %p390 = pneg %p179
        %p391 = pneg %p203
        %p392 = pneg %p200
        %p393 = pneg %p224
        %p394 = pneg %p221
        %p395 = pneg %p245
        %p396 = pneg %p242
        %p397 = pneg %p266
        %p398 = pneg %p263
        %p399 = pneg %p292
        %p400 = pneg %p289
        %s401 = sand.u32 %s279, 1
        %s402 = scalar_lea.sflag [#allocation3], %s401
        %s403 = sand.u32 %s279, 1
        %s404 = smul.addr %s403, 48
        %s405 = scalar_lea.vmem [#allocation2], %s404
        %p406 = scmp.lt.s32.totalorder %s25, 1
        %s407 = scalar_select %p406, %s25, 1
        %s408 = smul.addr %s407, 6
        %s409 = smul.addr %s408, 8
        %s410 = scalar_lea.vmem %s0, %s409
        %p411 = scmp.lt.s32.totalorder %s25, 1
        %s412 = scalar_select %p411, %s25, 1
        %s413 = smul.addr %s412, 6
        %s414 = smul.addr %s413, 8
        %s415 = scalar_lea.vmem %s1, %s414
        %p416 = scmp.lt.s32.totalorder %s25, 1
        %s417 = scalar_select %p416, %s25, 1
        %s418 = scalar_lea.vmem %s2, %s417
        %v420 = vld [vmem:[%s410] sm:$0xff]
        %v421 = vld [vmem:[%s410 + $0x8] sm:$0xff]
        %v422 = vld [vmem:[%s410 + $0x10] sm:$0xff]
        %v423 = vld [vmem:[%s410 + $0x18] sm:$0xff]
        %v424 = vld [vmem:[%s410 + $0x20] sm:$0xff]
        %v425 = vld [vmem:[%s410 + $0x28] sm:$0xff]
        %v426 = vld [vmem:[%s415] sm:$0xff]
        %v427 = vld [vmem:[%s415 + $0x8] sm:$0xff]
        %v428 = vld [vmem:[%s415 + $0x10] sm:$0xff]
        %v429 = vld [vmem:[%s415 + $0x18] sm:$0xff]
        %v430 = vld [vmem:[%s415 + $0x20] sm:$0xff]
        %v431 = vld [vmem:[%s415 + $0x28] sm:$0xff]
        %v432 = vld [vmem:[%s418] sm:$0x1]
        %v433 = vpack.c.bf16 %v420, %v420
        %v434 = vpack.c.bf16 %v421, %v421
        %v435 = vpack.c.bf16 %v422, %v422
        %v436 = vpack.c.bf16 %v423, %v423
        %v437 = vpack.c.bf16 %v424, %v424
        %v438 = vpack.c.bf16 %v425, %v425
        %v439 = vld [vmem:[%s3] sm:$0xff]
        %v440 = vld [vmem:[%s3 + $0x8] sm:$0xff]
        %v441 = vld [vmem:[%s3 + $0x10] sm:$0xff]
        %v442 = vld [vmem:[%s3 + $0x18] sm:$0xff]
        %v443 = vld [vmem:[%s3 + $0x20] sm:$0xff]
        %v444 = vld [vmem:[%s3 + $0x28] sm:$0xff]
        %v445 = vld [vmem:[%s3 + $0x30] sm:$0xff]
        %v446 = vld [vmem:[%s3 + $0x38] sm:$0xff]
        %v447 = vld [vmem:[%s3 + $0x40] sm:$0xff]
        %v448 = vld [vmem:[%s3 + $0x48] sm:$0xff]
        %v449 = vld [vmem:[%s3 + $0x50] sm:$0xff]
        %v450 = vld [vmem:[%s3 + $0x58] sm:$0xff]
        %v451 = vld [vmem:[%s3 + $0x60] sm:$0xff]
        %v452 = vld [vmem:[%s3 + $0x68] sm:$0xff]
        %v453 = vld [vmem:[%s3 + $0x70] sm:$0xff]
        %v454 = vld [vmem:[%s3 + $0x78] sm:$0xff]
        %v455 = vld [vmem:[%s3 + $0x80] sm:$0xff]
        %v456 = vld [vmem:[%s3 + $0x88] sm:$0xff]
        %v457 = vld [vmem:[%s3 + $0x90] sm:$0xff]
        %v458 = vld [vmem:[%s3 + $0x98] sm:$0xff]
        %v459 = vld [vmem:[%s3 + $0xa0] sm:$0xff]
        %v460 = vld [vmem:[%s3 + $0xa8] sm:$0xff]
        %v461 = vld [vmem:[%s3 + $0xb0] sm:$0xff]
        %v462 = vld [vmem:[%s3 + $0xb8] sm:$0xff]
        %v463 = vld [vmem:[%s3 + $0xc0] sm:$0xff]
        %v464 = vld [vmem:[%s3 + $0xc8] sm:$0xff]
        %v465 = vld [vmem:[%s3 + $0xd0] sm:$0xff]
        %v466 = vld [vmem:[%s3 + $0xd8] sm:$0xff]
        %v467 = vld [vmem:[%s3 + $0xe0] sm:$0xff]
        %v468 = vld [vmem:[%s3 + $0xe8] sm:$0xff]
        %v469 = vld [vmem:[%s3 + $0xf0] sm:$0xff]
        %v470 = vld [vmem:[%s3 + $0xf8] sm:$0xff]
        %v471 = vld [vmem:[%s3 + $0x100] sm:$0xff]
        %v472 = vld [vmem:[%s3 + $0x108] sm:$0xff]
        %v473 = vld [vmem:[%s3 + $0x110] sm:$0xff]
        %v474 = vld [vmem:[%s3 + $0x118] sm:$0xff]
        %v475 = vld [vmem:[%s3 + $0x120] sm:$0xff]
        %v476 = vld [vmem:[%s3 + $0x128] sm:$0xff]
        %v477 = vld [vmem:[%s3 + $0x130] sm:$0xff]
        %v478 = vld [vmem:[%s3 + $0x138] sm:$0xff]
        %v479 = vld [vmem:[%s3 + $0x140] sm:$0xff]
        %v480 = vld [vmem:[%s3 + $0x148] sm:$0xff]
        %v481 = vld [vmem:[%s3 + $0x150] sm:$0xff]
        %v482 = vld [vmem:[%s3 + $0x158] sm:$0xff]
        %v483 = vld [vmem:[%s3 + $0x160] sm:$0xff]
        %v484 = vld [vmem:[%s3 + $0x168] sm:$0xff]
        %v485 = vld [vmem:[%s3 + $0x170] sm:$0xff]
        %v486 = vld [vmem:[%s3 + $0x178] sm:$0xff]
        %v487 = vld [vmem:[%s3 + $0x180] sm:$0xff]
        %v488 = vld [vmem:[%s3 + $0x188] sm:$0xff]
        %v489 = vld [vmem:[%s3 + $0x190] sm:$0xff]
        %v490 = vld [vmem:[%s3 + $0x198] sm:$0xff]
        %v491 = vld [vmem:[%s3 + $0x1a0] sm:$0xff]
        %v492 = vld [vmem:[%s3 + $0x1a8] sm:$0xff]
        %v493 = vld [vmem:[%s3 + $0x1b0] sm:$0xff]
        %v494 = vld [vmem:[%s3 + $0x1b8] sm:$0xff]
        %v495 = vld [vmem:[%s3 + $0x1c0] sm:$0xff]
        %v496 = vld [vmem:[%s3 + $0x1c8] sm:$0xff]
        %v497 = vld [vmem:[%s3 + $0x1d0] sm:$0xff]
        %v498 = vld [vmem:[%s3 + $0x1d8] sm:$0xff]
        %v499 = vld [vmem:[%s3 + $0x1e0] sm:$0xff]
        %v500 = vld [vmem:[%s3 + $0x1e8] sm:$0xff]
        %v501 = vld [vmem:[%s3 + $0x1f0] sm:$0xff]
        %v502 = vld [vmem:[%s3 + $0x1f8] sm:$0xff]
        %v503 = vld [vmem:[%s3 + $0x200] sm:$0xff]
        %v504 = vld [vmem:[%s3 + $0x208] sm:$0xff]
        %v505 = vld [vmem:[%s3 + $0x210] sm:$0xff]
        %v506 = vld [vmem:[%s3 + $0x218] sm:$0xff]
        %v507 = vld [vmem:[%s3 + $0x220] sm:$0xff]
        %v508 = vld [vmem:[%s3 + $0x228] sm:$0xff]
        %v509 = vld [vmem:[%s3 + $0x230] sm:$0xff]
        %v510 = vld [vmem:[%s3 + $0x238] sm:$0xff]
        %v511 = vld [vmem:[%s3 + $0x240] sm:$0xff]
        %v512 = vld [vmem:[%s3 + $0x248] sm:$0xff]
        %v513 = vld [vmem:[%s3 + $0x250] sm:$0xff]
        %v514 = vld [vmem:[%s3 + $0x258] sm:$0xff]
        %v515 = vld [vmem:[%s3 + $0x260] sm:$0xff]
        %v516 = vld [vmem:[%s3 + $0x268] sm:$0xff]
        %v517 = vld [vmem:[%s3 + $0x270] sm:$0xff]
        %v518 = vld [vmem:[%s3 + $0x278] sm:$0xff]
        %v519 = vld [vmem:[%s3 + $0x280] sm:$0xff]
        %v520 = vld [vmem:[%s3 + $0x288] sm:$0xff]
        %v521 = vld [vmem:[%s3 + $0x290] sm:$0xff]
        %v522 = vld [vmem:[%s3 + $0x298] sm:$0xff]
        %v523 = vld [vmem:[%s3 + $0x2a0] sm:$0xff]
        %v524 = vld [vmem:[%s3 + $0x2a8] sm:$0xff]
        %v525 = vld [vmem:[%s3 + $0x2b0] sm:$0xff]
        %v526 = vld [vmem:[%s3 + $0x2b8] sm:$0xff]
        %v527 = vld [vmem:[%s3 + $0x2c0] sm:$0xff]
        %v528 = vld [vmem:[%s3 + $0x2c8] sm:$0xff]
        %v529 = vld [vmem:[%s3 + $0x2d0] sm:$0xff]
        %v530 = vld [vmem:[%s3 + $0x2d8] sm:$0xff]
        %v531 = vld [vmem:[%s3 + $0x2e0] sm:$0xff]
        %v532 = vld [vmem:[%s3 + $0x2e8] sm:$0xff]
        %v533 = vld [vmem:[%s3 + $0x2f0] sm:$0xff]
        %v534 = vld [vmem:[%s3 + $0x2f8] sm:$0xff]
        %v535 = vld [vmem:[%s3 + $0x300] sm:$0xff]
        %v536 = vld [vmem:[%s3 + $0x308] sm:$0xff]
        %v537 = vld [vmem:[%s3 + $0x310] sm:$0xff]
        %v538 = vld [vmem:[%s3 + $0x318] sm:$0xff]
        %v539 = vld [vmem:[%s3 + $0x320] sm:$0xff]
        %v540 = vld [vmem:[%s3 + $0x328] sm:$0xff]
        %v541 = vld [vmem:[%s3 + $0x330] sm:$0xff]
        %v542 = vld [vmem:[%s3 + $0x338] sm:$0xff]
        %v543 = vld [vmem:[%s3 + $0x340] sm:$0xff]
        %v544 = vld [vmem:[%s3 + $0x348] sm:$0xff]
        %v545 = vld [vmem:[%s3 + $0x350] sm:$0xff]
        %v546 = vld [vmem:[%s3 + $0x358] sm:$0xff]
        %v547 = vld [vmem:[%s3 + $0x360] sm:$0xff]
        %v548 = vld [vmem:[%s3 + $0x368] sm:$0xff]
        %v549 = vld [vmem:[%s3 + $0x370] sm:$0xff]
        %v550 = vld [vmem:[%s3 + $0x378] sm:$0xff]
        %v551 = vld [vmem:[%s3 + $0x380] sm:$0xff]
        %v552 = vld [vmem:[%s3 + $0x388] sm:$0xff]
        %v553 = vld [vmem:[%s3 + $0x390] sm:$0xff]
        %v554 = vld [vmem:[%s3 + $0x398] sm:$0xff]
        %v555 = vld [vmem:[%s3 + $0x3a0] sm:$0xff]
        %v556 = vld [vmem:[%s3 + $0x3a8] sm:$0xff]
        %v557 = vld [vmem:[%s3 + $0x3b0] sm:$0xff]
        %v558 = vld [vmem:[%s3 + $0x3b8] sm:$0xff]
        %v559 = vld [vmem:[%s3 + $0x3c0] sm:$0xff]
        %v560 = vld [vmem:[%s3 + $0x3c8] sm:$0xff]
        %v561 = vld [vmem:[%s3 + $0x3d0] sm:$0xff]
        %v562 = vld [vmem:[%s3 + $0x3d8] sm:$0xff]
        %v563 = vld [vmem:[%s3 + $0x3e0] sm:$0xff]
        %v564 = vld [vmem:[%s3 + $0x3e8] sm:$0xff]
        %v565 = vld [vmem:[%s3 + $0x3f0] sm:$0xff]
        %v566 = vld [vmem:[%s3 + $0x3f8] sm:$0xff]
        %v567 = vld [vmem:[%s3 + $0x400] sm:$0xff]
        %v568 = vld [vmem:[%s3 + $0x408] sm:$0xff]
        %v569 = vld [vmem:[%s3 + $0x410] sm:$0xff]
        %v570 = vld [vmem:[%s3 + $0x418] sm:$0xff]
        %v571 = vld [vmem:[%s3 + $0x420] sm:$0xff]
        %v572 = vld [vmem:[%s3 + $0x428] sm:$0xff]
        %v573 = vld [vmem:[%s3 + $0x430] sm:$0xff]
        %v574 = vld [vmem:[%s3 + $0x438] sm:$0xff]
        %v575 = vld [vmem:[%s3 + $0x440] sm:$0xff]
        %v576 = vld [vmem:[%s3 + $0x448] sm:$0xff]
        %v577 = vld [vmem:[%s3 + $0x450] sm:$0xff]
        %v578 = vld [vmem:[%s3 + $0x458] sm:$0xff]
        %v579 = vld [vmem:[%s3 + $0x460] sm:$0xff]
        %v580 = vld [vmem:[%s3 + $0x468] sm:$0xff]
        %v581 = vld [vmem:[%s3 + $0x470] sm:$0xff]
        %v582 = vld [vmem:[%s3 + $0x478] sm:$0xff]
        %v583 = vld [vmem:[%s3 + $0x480] sm:$0xff]
        %v584 = vld [vmem:[%s3 + $0x488] sm:$0xff]
        %v585 = vld [vmem:[%s3 + $0x490] sm:$0xff]
        %v586 = vld [vmem:[%s3 + $0x498] sm:$0xff]
        %v587 = vld [vmem:[%s3 + $0x4a0] sm:$0xff]
        %v588 = vld [vmem:[%s3 + $0x4a8] sm:$0xff]
        %v589 = vld [vmem:[%s3 + $0x4b0] sm:$0xff]
        %v590 = vld [vmem:[%s3 + $0x4b8] sm:$0xff]
        %v591 = vld [vmem:[%s3 + $0x4c0] sm:$0xff]
        %v592 = vld [vmem:[%s3 + $0x4c8] sm:$0xff]
        %v593 = vld [vmem:[%s3 + $0x4d0] sm:$0xff]
        %v594 = vld [vmem:[%s3 + $0x4d8] sm:$0xff]
        %v595 = vld [vmem:[%s3 + $0x4e0] sm:$0xff]
        %v596 = vld [vmem:[%s3 + $0x4e8] sm:$0xff]
        %v597 = vld [vmem:[%s3 + $0x4f0] sm:$0xff]
        %v598 = vld [vmem:[%s3 + $0x4f8] sm:$0xff]
        %v599 = vld [vmem:[%s3 + $0x500] sm:$0xff]
        %v600 = vld [vmem:[%s3 + $0x508] sm:$0xff]
        %v601 = vld [vmem:[%s3 + $0x510] sm:$0xff]
        %v602 = vld [vmem:[%s3 + $0x518] sm:$0xff]
        %v603 = vld [vmem:[%s3 + $0x520] sm:$0xff]
        %v604 = vld [vmem:[%s3 + $0x528] sm:$0xff]
        %v605 = vld [vmem:[%s3 + $0x530] sm:$0xff]
        %v606 = vld [vmem:[%s3 + $0x538] sm:$0xff]
        %v607 = vld [vmem:[%s3 + $0x540] sm:$0xff]
        %v608 = vld [vmem:[%s3 + $0x548] sm:$0xff]
        %v609 = vld [vmem:[%s3 + $0x550] sm:$0xff]
        %v610 = vld [vmem:[%s3 + $0x558] sm:$0xff]
        %v611 = vld [vmem:[%s3 + $0x560] sm:$0xff]
        %v612 = vld [vmem:[%s3 + $0x568] sm:$0xff]
        %v613 = vld [vmem:[%s3 + $0x570] sm:$0xff]
        %v614 = vld [vmem:[%s3 + $0x578] sm:$0xff]
        %v615 = vld [vmem:[%s3 + $0x580] sm:$0xff]
        %v616 = vld [vmem:[%s3 + $0x588] sm:$0xff]
        %v617 = vld [vmem:[%s3 + $0x590] sm:$0xff]
        %v618 = vld [vmem:[%s3 + $0x598] sm:$0xff]
        %v619 = vld [vmem:[%s3 + $0x5a0] sm:$0xff]
        %v620 = vld [vmem:[%s3 + $0x5a8] sm:$0xff]
        %v621 = vld [vmem:[%s3 + $0x5b0] sm:$0xff]
        %v622 = vld [vmem:[%s3 + $0x5b8] sm:$0xff]
        %v623 = vld [vmem:[%s3 + $0x5c0] sm:$0xff]
        %v624 = vld [vmem:[%s3 + $0x5c8] sm:$0xff]
        %v625 = vld [vmem:[%s3 + $0x5d0] sm:$0xff]
        %v626 = vld [vmem:[%s3 + $0x5d8] sm:$0xff]
        %v627 = vld [vmem:[%s3 + $0x5e0] sm:$0xff]
        %v628 = vld [vmem:[%s3 + $0x5e8] sm:$0xff]
        %v629 = vld [vmem:[%s3 + $0x5f0] sm:$0xff]
        %v630 = vld [vmem:[%s3 + $0x5f8] sm:$0xff]
        %v631 = vld [vmem:[%s3 + $0x600] sm:$0xff]
        %v632 = vld [vmem:[%s3 + $0x608] sm:$0xff]
        %v633 = vld [vmem:[%s3 + $0x610] sm:$0xff]
        %v634 = vld [vmem:[%s3 + $0x618] sm:$0xff]
        %v635 = vld [vmem:[%s3 + $0x620] sm:$0xff]
        %v636 = vld [vmem:[%s3 + $0x628] sm:$0xff]
        %v637 = vld [vmem:[%s3 + $0x630] sm:$0xff]
        %v638 = vld [vmem:[%s3 + $0x638] sm:$0xff]
        %v639 = vld [vmem:[%s3 + $0x640] sm:$0xff]
        %v640 = vld [vmem:[%s3 + $0x648] sm:$0xff]
        %v641 = vld [vmem:[%s3 + $0x650] sm:$0xff]
        %v642 = vld [vmem:[%s3 + $0x658] sm:$0xff]
        %v643 = vld [vmem:[%s3 + $0x660] sm:$0xff]
        %v644 = vld [vmem:[%s3 + $0x668] sm:$0xff]
        %v645 = vld [vmem:[%s3 + $0x670] sm:$0xff]
        %v646 = vld [vmem:[%s3 + $0x678] sm:$0xff]
        %v647 = vld [vmem:[%s3 + $0x680] sm:$0xff]
        %v648 = vld [vmem:[%s3 + $0x688] sm:$0xff]
        %v649 = vld [vmem:[%s3 + $0x690] sm:$0xff]
        %v650 = vld [vmem:[%s3 + $0x698] sm:$0xff]
        %v651 = vld [vmem:[%s3 + $0x6a0] sm:$0xff]
        %v652 = vld [vmem:[%s3 + $0x6a8] sm:$0xff]
        %v653 = vld [vmem:[%s3 + $0x6b0] sm:$0xff]
        %v654 = vld [vmem:[%s3 + $0x6b8] sm:$0xff]
        %v655 = vld [vmem:[%s3 + $0x6c0] sm:$0xff]
        %v656 = vld [vmem:[%s3 + $0x6c8] sm:$0xff]
        %v657 = vld [vmem:[%s3 + $0x6d0] sm:$0xff]
        %v658 = vld [vmem:[%s3 + $0x6d8] sm:$0xff]
        %v659 = vld [vmem:[%s3 + $0x6e0] sm:$0xff]
        %v660 = vld [vmem:[%s3 + $0x6e8] sm:$0xff]
        %v661 = vld [vmem:[%s3 + $0x6f0] sm:$0xff]
        %v662 = vld [vmem:[%s3 + $0x6f8] sm:$0xff]
        %v663 = vld [vmem:[%s3 + $0x700] sm:$0xff]
        %v664 = vld [vmem:[%s3 + $0x708] sm:$0xff]
        %v665 = vld [vmem:[%s3 + $0x710] sm:$0xff]
        %v666 = vld [vmem:[%s3 + $0x718] sm:$0xff]
        %v667 = vld [vmem:[%s3 + $0x720] sm:$0xff]
        %v668 = vld [vmem:[%s3 + $0x728] sm:$0xff]
        %v669 = vld [vmem:[%s3 + $0x730] sm:$0xff]
        %v670 = vld [vmem:[%s3 + $0x738] sm:$0xff]
        %v671 = vld [vmem:[%s3 + $0x740] sm:$0xff]
        %v672 = vld [vmem:[%s3 + $0x748] sm:$0xff]
        %v673 = vld [vmem:[%s3 + $0x750] sm:$0xff]
        %v674 = vld [vmem:[%s3 + $0x758] sm:$0xff]
        %v675 = vld [vmem:[%s3 + $0x760] sm:$0xff]
        %v676 = vld [vmem:[%s3 + $0x768] sm:$0xff]
        %v677 = vld [vmem:[%s3 + $0x770] sm:$0xff]
        %v678 = vld [vmem:[%s3 + $0x778] sm:$0xff]
        %v679 = vld [vmem:[%s3 + $0x780] sm:$0xff]
        %v680 = vld [vmem:[%s3 + $0x788] sm:$0xff]
        %v681 = vld [vmem:[%s3 + $0x790] sm:$0xff]
        %v682 = vld [vmem:[%s3 + $0x798] sm:$0xff]
        %v683 = vld [vmem:[%s3 + $0x7a0] sm:$0xff]
        %v684 = vld [vmem:[%s3 + $0x7a8] sm:$0xff]
        %v685 = vld [vmem:[%s3 + $0x7b0] sm:$0xff]
        %v686 = vld [vmem:[%s3 + $0x7b8] sm:$0xff]
        %v687 = vld [vmem:[%s3 + $0x7c0] sm:$0xff]
        %v688 = vld [vmem:[%s3 + $0x7c8] sm:$0xff]
        %v689 = vld [vmem:[%s3 + $0x7d0] sm:$0xff]
        %v690 = vld [vmem:[%s3 + $0x7d8] sm:$0xff]
        %v691 = vld [vmem:[%s3 + $0x7e0] sm:$0xff]
        %v692 = vld [vmem:[%s3 + $0x7e8] sm:$0xff]
        %v693 = vld [vmem:[%s3 + $0x7f0] sm:$0xff]
        %v694 = vld [vmem:[%s3 + $0x7f8] sm:$0xff]
        %v695 = vld [vmem:[%s3 + $0x800] sm:$0xff]
        %v696 = vld [vmem:[%s3 + $0x808] sm:$0xff]
        %v697 = vld [vmem:[%s3 + $0x810] sm:$0xff]
        %v698 = vld [vmem:[%s3 + $0x818] sm:$0xff]
        %v699 = vld [vmem:[%s3 + $0x820] sm:$0xff]
        %v700 = vld [vmem:[%s3 + $0x828] sm:$0xff]
        %v701 = vld [vmem:[%s3 + $0x830] sm:$0xff]
        %v702 = vld [vmem:[%s3 + $0x838] sm:$0xff]
        %v703 = vld [vmem:[%s3 + $0x840] sm:$0xff]
        %v704 = vld [vmem:[%s3 + $0x848] sm:$0xff]
        %v705 = vld [vmem:[%s3 + $0x850] sm:$0xff]
        %v706 = vld [vmem:[%s3 + $0x858] sm:$0xff]
        %v707 = vld [vmem:[%s3 + $0x860] sm:$0xff]
        %v708 = vld [vmem:[%s3 + $0x868] sm:$0xff]
        %v709 = vld [vmem:[%s3 + $0x870] sm:$0xff]
        %v710 = vld [vmem:[%s3 + $0x878] sm:$0xff]
        %v711 = vld [vmem:[%s3 + $0x880] sm:$0xff]
        %v712 = vld [vmem:[%s3 + $0x888] sm:$0xff]
        %v713 = vld [vmem:[%s3 + $0x890] sm:$0xff]
        %v714 = vld [vmem:[%s3 + $0x898] sm:$0xff]
        %v715 = vld [vmem:[%s3 + $0x8a0] sm:$0xff]
        %v716 = vld [vmem:[%s3 + $0x8a8] sm:$0xff]
        %v717 = vld [vmem:[%s3 + $0x8b0] sm:$0xff]
        %v718 = vld [vmem:[%s3 + $0x8b8] sm:$0xff]
        %v719 = vld [vmem:[%s3 + $0x8c0] sm:$0xff]
        %v720 = vld [vmem:[%s3 + $0x8c8] sm:$0xff]
        %v721 = vld [vmem:[%s3 + $0x8d0] sm:$0xff]
        %v722 = vld [vmem:[%s3 + $0x8d8] sm:$0xff]
        %v723 = vld [vmem:[%s3 + $0x8e0] sm:$0xff]
        %v724 = vld [vmem:[%s3 + $0x8e8] sm:$0xff]
        %v725 = vld [vmem:[%s3 + $0x8f0] sm:$0xff]
        %v726 = vld [vmem:[%s3 + $0x8f8] sm:$0xff]
        %v727 = vld [vmem:[%s4] sm:$0x3f]
        %v729 = vperm.slane %v727, 0
        %v730 = vperm.slane %v727, 1
        %v731 = vperm.slane %v727, 2
        %v732 = vperm.slane %v727, 3
        %v733 = vperm.slane %v727, 4
        %v734 = vperm.slane %v727, 5
        %v1029 = vunpack.c.l.b16 %v439
        %v1030 = vunpack.c.h.b16 %v439
        %v1031 = vunpack.c.l.b16 %v440
        %v1032 = vunpack.c.h.b16 %v440
        %v1033 = vunpack.c.l.b16 %v441
        %v1034 = vunpack.c.h.b16 %v441
        %v1035 = vunpack.c.l.b16 %v442
        %v1036 = vunpack.c.h.b16 %v442
        %v1037 = vunpack.c.l.b16 %v443
        %v1038 = vunpack.c.h.b16 %v443
        %v1039 = vunpack.c.l.b16 %v444
        %v1040 = vunpack.c.h.b16 %v444
        %v1041 = vunpack.c.l.b16 %v445
        %v1042 = vunpack.c.h.b16 %v445
        %v1043 = vunpack.c.l.b16 %v446
        %v1044 = vunpack.c.h.b16 %v446
        %v1045 = vunpack.c.l.b16 %v447
        %v1046 = vunpack.c.h.b16 %v447
        %v1047 = vunpack.c.l.b16 %v448
        %v1048 = vunpack.c.h.b16 %v448
        %v1049 = vunpack.c.l.b16 %v449
        %v1050 = vunpack.c.h.b16 %v449
        %v1051 = vunpack.c.l.b16 %v450
        %v1052 = vunpack.c.h.b16 %v450
        %v1053 = vunpack.c.l.b16 %v451
        %v1054 = vunpack.c.h.b16 %v451
        %v1055 = vunpack.c.l.b16 %v452
        %v1056 = vunpack.c.h.b16 %v452
        %v1057 = vunpack.c.l.b16 %v453
        %v1058 = vunpack.c.h.b16 %v453
        %v1059 = vunpack.c.l.b16 %v454
        %v1060 = vunpack.c.h.b16 %v454
        %v1061 = vunpack.c.l.b16 %v455
        %v1062 = vunpack.c.h.b16 %v455
        %v1063 = vunpack.c.l.b16 %v456
        %v1064 = vunpack.c.h.b16 %v456
        %v1065 = vunpack.c.l.b16 %v457
        %v1066 = vunpack.c.h.b16 %v457
        %v1067 = vunpack.c.l.b16 %v458
        %v1068 = vunpack.c.h.b16 %v458
        %v1069 = vunpack.c.l.b16 %v459
        %v1070 = vunpack.c.h.b16 %v459
        %v1071 = vunpack.c.l.b16 %v460
        %v1072 = vunpack.c.h.b16 %v460
        %v1073 = vunpack.c.l.b16 %v461
        %v1074 = vunpack.c.h.b16 %v461
        %v1075 = vunpack.c.l.b16 %v462
        %v1076 = vunpack.c.h.b16 %v462
        %v1077 = vunpack.c.l.b16 %v463
        %v1078 = vunpack.c.h.b16 %v463
        %v1079 = vunpack.c.l.b16 %v464
        %v1080 = vunpack.c.h.b16 %v464
        %v1081 = vunpack.c.l.b16 %v465
        %v1082 = vunpack.c.h.b16 %v465
        %v1083 = vunpack.c.l.b16 %v466
        %v1084 = vunpack.c.h.b16 %v466
        %v1085 = vunpack.c.l.b16 %v467
        %v1086 = vunpack.c.h.b16 %v467
        %v1087 = vunpack.c.l.b16 %v468
        %v1088 = vunpack.c.h.b16 %v468
        %v1089 = vunpack.c.l.b16 %v469
        %v1090 = vunpack.c.h.b16 %v469
        %v1091 = vunpack.c.l.b16 %v470
        %v1092 = vunpack.c.h.b16 %v470
        %v1093 = vunpack.c.l.b16 %v471
        %v1094 = vunpack.c.h.b16 %v471
        %v1095 = vunpack.c.l.b16 %v472
        %v1096 = vunpack.c.h.b16 %v472
        %v1097 = vunpack.c.l.b16 %v473
        %v1098 = vunpack.c.h.b16 %v473
        %v1099 = vunpack.c.l.b16 %v474
        %v1100 = vunpack.c.h.b16 %v474
        %v1101 = vunpack.c.l.b16 %v475
        %v1102 = vunpack.c.h.b16 %v475
        %v1103 = vunpack.c.l.b16 %v476
        %v1104 = vunpack.c.h.b16 %v476
        %v1105 = vunpack.c.l.b16 %v477
        %v1106 = vunpack.c.h.b16 %v477
        %v1107 = vunpack.c.l.b16 %v478
        %v1108 = vunpack.c.h.b16 %v478
        %v1109 = vunpack.c.l.b16 %v479
        %v1110 = vunpack.c.h.b16 %v479
        %v1111 = vunpack.c.l.b16 %v480
        %v1112 = vunpack.c.h.b16 %v480
        %v1113 = vunpack.c.l.b16 %v481
        %v1114 = vunpack.c.h.b16 %v481
        %v1115 = vunpack.c.l.b16 %v482
        %v1116 = vunpack.c.h.b16 %v482
        %v1117 = vunpack.c.l.b16 %v483
        %v1118 = vunpack.c.h.b16 %v483
        %v1119 = vunpack.c.l.b16 %v484
        %v1120 = vunpack.c.h.b16 %v484
        %v1121 = vunpack.c.l.b16 %v485
        %v1122 = vunpack.c.h.b16 %v485
        %v1123 = vunpack.c.l.b16 %v486
        %v1124 = vunpack.c.h.b16 %v486
        %v1125 = vunpack.c.l.b16 %v487
        %v1126 = vunpack.c.h.b16 %v487
        %v1127 = vunpack.c.l.b16 %v488
        %v1128 = vunpack.c.h.b16 %v488
        %v1129 = vunpack.c.l.b16 %v489
        %v1130 = vunpack.c.h.b16 %v489
        %v1131 = vunpack.c.l.b16 %v490
        %v1132 = vunpack.c.h.b16 %v490
        %v1133 = vunpack.c.l.b16 %v491
        %v1134 = vunpack.c.h.b16 %v491
        %v1135 = vunpack.c.l.b16 %v492
        %v1136 = vunpack.c.h.b16 %v492
        %v1137 = vunpack.c.l.b16 %v493
        %v1138 = vunpack.c.h.b16 %v493
        %v1139 = vunpack.c.l.b16 %v494
        %v1140 = vunpack.c.h.b16 %v494
        %v1141 = vunpack.c.l.b16 %v495
        %v1142 = vunpack.c.h.b16 %v495
        %v1143 = vunpack.c.l.b16 %v496
        %v1144 = vunpack.c.h.b16 %v496
        %v1145 = vunpack.c.l.b16 %v497
        %v1146 = vunpack.c.h.b16 %v497
        %v1147 = vunpack.c.l.b16 %v498
        %v1148 = vunpack.c.h.b16 %v498
        %v1149 = vunpack.c.l.b16 %v499
        %v1150 = vunpack.c.h.b16 %v499
        %v1151 = vunpack.c.l.b16 %v500
        %v1152 = vunpack.c.h.b16 %v500
        %v1153 = vunpack.c.l.b16 %v501
        %v1154 = vunpack.c.h.b16 %v501
        %v1155 = vunpack.c.l.b16 %v502
        %v1156 = vunpack.c.h.b16 %v502
        %v1157 = vunpack.c.l.b16 %v503
        %v1158 = vunpack.c.h.b16 %v503
        %v1159 = vunpack.c.l.b16 %v504
        %v1160 = vunpack.c.h.b16 %v504
        %v1161 = vunpack.c.l.b16 %v505
        %v1162 = vunpack.c.h.b16 %v505
        %v1163 = vunpack.c.l.b16 %v506
        %v1164 = vunpack.c.h.b16 %v506
        %v1165 = vunpack.c.l.b16 %v507
        %v1166 = vunpack.c.h.b16 %v507
        %v1167 = vunpack.c.l.b16 %v508
        %v1168 = vunpack.c.h.b16 %v508
        %v1169 = vunpack.c.l.b16 %v509
        %v1170 = vunpack.c.h.b16 %v509
        %v1171 = vunpack.c.l.b16 %v510
        %v1172 = vunpack.c.h.b16 %v510
        %v1173 = vunpack.c.l.b16 %v511
        %v1174 = vunpack.c.h.b16 %v511
        %v1175 = vunpack.c.l.b16 %v512
        %v1176 = vunpack.c.h.b16 %v512
        %v1177 = vunpack.c.l.b16 %v513
        %v1178 = vunpack.c.h.b16 %v513
        %v1179 = vunpack.c.l.b16 %v514
        %v1180 = vunpack.c.h.b16 %v514
        %v1181 = vunpack.c.l.b16 %v515
        %v1182 = vunpack.c.h.b16 %v515
        %v1183 = vunpack.c.l.b16 %v516
        %v1184 = vunpack.c.h.b16 %v516
        %v1185 = vunpack.c.l.b16 %v517
        %v1186 = vunpack.c.h.b16 %v517
        %v1187 = vunpack.c.l.b16 %v518
        %v1188 = vunpack.c.h.b16 %v518
        %v1189 = vunpack.c.l.b16 %v519
        %v1190 = vunpack.c.h.b16 %v519
        %v1191 = vunpack.c.l.b16 %v520
        %v1192 = vunpack.c.h.b16 %v520
        %v1193 = vunpack.c.l.b16 %v521
        %v1194 = vunpack.c.h.b16 %v521
        %v1195 = vunpack.c.l.b16 %v522
        %v1196 = vunpack.c.h.b16 %v522
        %v1197 = vunpack.c.l.b16 %v523
        %v1198 = vunpack.c.h.b16 %v523
        %v1199 = vunpack.c.l.b16 %v524
        %v1200 = vunpack.c.h.b16 %v524
        %v1201 = vunpack.c.l.b16 %v525
        %v1202 = vunpack.c.h.b16 %v525
        %v1203 = vunpack.c.l.b16 %v526
        %v1204 = vunpack.c.h.b16 %v526
        %v1205 = vunpack.c.l.b16 %v527
        %v1206 = vunpack.c.h.b16 %v527
        %v1207 = vunpack.c.l.b16 %v528
        %v1208 = vunpack.c.h.b16 %v528
        %v1209 = vunpack.c.l.b16 %v529
        %v1210 = vunpack.c.h.b16 %v529
        %v1211 = vunpack.c.l.b16 %v530
        %v1212 = vunpack.c.h.b16 %v530
        %v1213 = vunpack.c.l.b16 %v531
        %v1214 = vunpack.c.h.b16 %v531
        %v1215 = vunpack.c.l.b16 %v532
        %v1216 = vunpack.c.h.b16 %v532
        %v1217 = vunpack.c.l.b16 %v533
        %v1218 = vunpack.c.h.b16 %v533
        %v1219 = vunpack.c.l.b16 %v534
        %v1220 = vunpack.c.h.b16 %v534
        %v1221 = vunpack.c.l.b16 %v535
        %v1222 = vunpack.c.h.b16 %v535
        %v1223 = vunpack.c.l.b16 %v536
        %v1224 = vunpack.c.h.b16 %v536
        %v1225 = vunpack.c.l.b16 %v537
        %v1226 = vunpack.c.h.b16 %v537
        %v1227 = vunpack.c.l.b16 %v538
        %v1228 = vunpack.c.h.b16 %v538
        %v1229 = vunpack.c.l.b16 %v539
        %v1230 = vunpack.c.h.b16 %v539
        %v1231 = vunpack.c.l.b16 %v540
        %v1232 = vunpack.c.h.b16 %v540
        %v1233 = vunpack.c.l.b16 %v541
        %v1234 = vunpack.c.h.b16 %v541
        %v1235 = vunpack.c.l.b16 %v542
        %v1236 = vunpack.c.h.b16 %v542
        %v1237 = vunpack.c.l.b16 %v543
        %v1238 = vunpack.c.h.b16 %v543
        %v1239 = vunpack.c.l.b16 %v544
        %v1240 = vunpack.c.h.b16 %v544
        %v1241 = vunpack.c.l.b16 %v545
        %v1242 = vunpack.c.h.b16 %v545
        %v1243 = vunpack.c.l.b16 %v546
        %v1244 = vunpack.c.h.b16 %v546
        %v1245 = vunpack.c.l.b16 %v547
        %v1246 = vunpack.c.h.b16 %v547
        %v1247 = vunpack.c.l.b16 %v548
        %v1248 = vunpack.c.h.b16 %v548
        %v1249 = vunpack.c.l.b16 %v549
        %v1250 = vunpack.c.h.b16 %v549
        %v1251 = vunpack.c.l.b16 %v550
        %v1252 = vunpack.c.h.b16 %v550
        %v1253 = vunpack.c.l.b16 %v551
        %v1254 = vunpack.c.h.b16 %v551
        %v1255 = vunpack.c.l.b16 %v552
        %v1256 = vunpack.c.h.b16 %v552
        %v1257 = vunpack.c.l.b16 %v553
        %v1258 = vunpack.c.h.b16 %v553
        %v1259 = vunpack.c.l.b16 %v554
        %v1260 = vunpack.c.h.b16 %v554
        %v1261 = vunpack.c.l.b16 %v555
        %v1262 = vunpack.c.h.b16 %v555
        %v1263 = vunpack.c.l.b16 %v556
        %v1264 = vunpack.c.h.b16 %v556
        %v1265 = vunpack.c.l.b16 %v557
        %v1266 = vunpack.c.h.b16 %v557
        %v1267 = vunpack.c.l.b16 %v558
        %v1268 = vunpack.c.h.b16 %v558
        %v1269 = vunpack.c.l.b16 %v559
        %v1270 = vunpack.c.h.b16 %v559
        %v1271 = vunpack.c.l.b16 %v560
        %v1272 = vunpack.c.h.b16 %v560
        %v1273 = vunpack.c.l.b16 %v561
        %v1274 = vunpack.c.h.b16 %v561
        %v1275 = vunpack.c.l.b16 %v562
        %v1276 = vunpack.c.h.b16 %v562
        %v1277 = vunpack.c.l.b16 %v563
        %v1278 = vunpack.c.h.b16 %v563
        %v1279 = vunpack.c.l.b16 %v564
        %v1280 = vunpack.c.h.b16 %v564
        %v1281 = vunpack.c.l.b16 %v565
        %v1282 = vunpack.c.h.b16 %v565
        %v1283 = vunpack.c.l.b16 %v566
        %v1284 = vunpack.c.h.b16 %v566
        %v1285 = vunpack.c.l.b16 %v567
        %v1286 = vunpack.c.h.b16 %v567
        %v1287 = vunpack.c.l.b16 %v568
        %v1288 = vunpack.c.h.b16 %v568
        %v1289 = vunpack.c.l.b16 %v569
        %v1290 = vunpack.c.h.b16 %v569
        %v1291 = vunpack.c.l.b16 %v570
        %v1292 = vunpack.c.h.b16 %v570
        %v1293 = vunpack.c.l.b16 %v571
        %v1294 = vunpack.c.h.b16 %v571
        %v1295 = vunpack.c.l.b16 %v572
        %v1296 = vunpack.c.h.b16 %v572
        %v1297 = vunpack.c.l.b16 %v573
        %v1298 = vunpack.c.h.b16 %v573
        %v1299 = vunpack.c.l.b16 %v574
        %v1300 = vunpack.c.h.b16 %v574
        %v1301 = vunpack.c.l.b16 %v575
        %v1302 = vunpack.c.h.b16 %v575
        %v1303 = vunpack.c.l.b16 %v576
        %v1304 = vunpack.c.h.b16 %v576
        %v1305 = vunpack.c.l.b16 %v577
        %v1306 = vunpack.c.h.b16 %v577
        %v1307 = vunpack.c.l.b16 %v578
        %v1308 = vunpack.c.h.b16 %v578
        %v1309 = vunpack.c.l.b16 %v579
        %v1310 = vunpack.c.h.b16 %v579
        %v1311 = vunpack.c.l.b16 %v580
        %v1312 = vunpack.c.h.b16 %v580
        %v1313 = vunpack.c.l.b16 %v581
        %v1314 = vunpack.c.h.b16 %v581
        %v1315 = vunpack.c.l.b16 %v582
        %v1316 = vunpack.c.h.b16 %v582
        %v1317 = vunpack.c.l.b16 %v583
        %v1318 = vunpack.c.h.b16 %v583
        %v1319 = vunpack.c.l.b16 %v584
        %v1320 = vunpack.c.h.b16 %v584
        %v1321 = vunpack.c.l.b16 %v585
        %v1322 = vunpack.c.h.b16 %v585
        %v1323 = vunpack.c.l.b16 %v586
        %v1324 = vunpack.c.h.b16 %v586
        %v1325 = vunpack.c.l.b16 %v587
        %v1326 = vunpack.c.h.b16 %v587
        %v1327 = vunpack.c.l.b16 %v588
        %v1328 = vunpack.c.h.b16 %v588
        %v1329 = vunpack.c.l.b16 %v589
        %v1330 = vunpack.c.h.b16 %v589
        %v1331 = vunpack.c.l.b16 %v590
        %v1332 = vunpack.c.h.b16 %v590
        %v1333 = vunpack.c.l.b16 %v591
        %v1334 = vunpack.c.h.b16 %v591
        %v1335 = vunpack.c.l.b16 %v592
        %v1336 = vunpack.c.h.b16 %v592
        %v1337 = vunpack.c.l.b16 %v593
        %v1338 = vunpack.c.h.b16 %v593
        %v1339 = vunpack.c.l.b16 %v594
        %v1340 = vunpack.c.h.b16 %v594
        %v1341 = vunpack.c.l.b16 %v595
        %v1342 = vunpack.c.h.b16 %v595
        %v1343 = vunpack.c.l.b16 %v596
        %v1344 = vunpack.c.h.b16 %v596
        %v1345 = vunpack.c.l.b16 %v597
        %v1346 = vunpack.c.h.b16 %v597
        %v1347 = vunpack.c.l.b16 %v598
        %v1348 = vunpack.c.h.b16 %v598
        %v1349 = vunpack.c.l.b16 %v599
        %v1350 = vunpack.c.h.b16 %v599
        %v1351 = vunpack.c.l.b16 %v600
        %v1352 = vunpack.c.h.b16 %v600
        %v1353 = vunpack.c.l.b16 %v601
        %v1354 = vunpack.c.h.b16 %v601
        %v1355 = vunpack.c.l.b16 %v602
        %v1356 = vunpack.c.h.b16 %v602
        %v1357 = vunpack.c.l.b16 %v603
        %v1358 = vunpack.c.h.b16 %v603
        %v1359 = vunpack.c.l.b16 %v604
        %v1360 = vunpack.c.h.b16 %v604
        %v1361 = vunpack.c.l.b16 %v605
        %v1362 = vunpack.c.h.b16 %v605
        %v1363 = vunpack.c.l.b16 %v606
        %v1364 = vunpack.c.h.b16 %v606
        %v1365 = vunpack.c.l.b16 %v607
        %v1366 = vunpack.c.h.b16 %v607
        %v1367 = vunpack.c.l.b16 %v608
        %v1368 = vunpack.c.h.b16 %v608
        %v1369 = vunpack.c.l.b16 %v609
        %v1370 = vunpack.c.h.b16 %v609
        %v1371 = vunpack.c.l.b16 %v610
        %v1372 = vunpack.c.h.b16 %v610
        %v1373 = vunpack.c.l.b16 %v611
        %v1374 = vunpack.c.h.b16 %v611
        %v1375 = vunpack.c.l.b16 %v612
        %v1376 = vunpack.c.h.b16 %v612
        %v1377 = vunpack.c.l.b16 %v613
        %v1378 = vunpack.c.h.b16 %v613
        %v1379 = vunpack.c.l.b16 %v614
        %v1380 = vunpack.c.h.b16 %v614
        %v1381 = vunpack.c.l.b16 %v615
        %v1382 = vunpack.c.h.b16 %v615
        %v1383 = vunpack.c.l.b16 %v616
        %v1384 = vunpack.c.h.b16 %v616
        %v1385 = vunpack.c.l.b16 %v617
        %v1386 = vunpack.c.h.b16 %v617
        %v1387 = vunpack.c.l.b16 %v618
        %v1388 = vunpack.c.h.b16 %v618
        %v1389 = vunpack.c.l.b16 %v619
        %v1390 = vunpack.c.h.b16 %v619
        %v1391 = vunpack.c.l.b16 %v620
        %v1392 = vunpack.c.h.b16 %v620
        %v1393 = vunpack.c.l.b16 %v621
        %v1394 = vunpack.c.h.b16 %v621
        %v1395 = vunpack.c.l.b16 %v622
        %v1396 = vunpack.c.h.b16 %v622
        %v1397 = vunpack.c.l.b16 %v623
        %v1398 = vunpack.c.h.b16 %v623
        %v1399 = vunpack.c.l.b16 %v624
        %v1400 = vunpack.c.h.b16 %v624
        %v1401 = vunpack.c.l.b16 %v625
        %v1402 = vunpack.c.h.b16 %v625
        %v1403 = vunpack.c.l.b16 %v626
        %v1404 = vunpack.c.h.b16 %v626
        %v1405 = vunpack.c.l.b16 %v627
        %v1406 = vunpack.c.h.b16 %v627
        %v1407 = vunpack.c.l.b16 %v628
        %v1408 = vunpack.c.h.b16 %v628
        %v1409 = vunpack.c.l.b16 %v629
        %v1410 = vunpack.c.h.b16 %v629
        %v1411 = vunpack.c.l.b16 %v630
        %v1412 = vunpack.c.h.b16 %v630
        %v1413 = vunpack.c.l.b16 %v631
        %v1414 = vunpack.c.h.b16 %v631
        %v1415 = vunpack.c.l.b16 %v632
        %v1416 = vunpack.c.h.b16 %v632
        %v1417 = vunpack.c.l.b16 %v633
        %v1418 = vunpack.c.h.b16 %v633
        %v1419 = vunpack.c.l.b16 %v634
        %v1420 = vunpack.c.h.b16 %v634
        %v1421 = vunpack.c.l.b16 %v635
        %v1422 = vunpack.c.h.b16 %v635
        %v1423 = vunpack.c.l.b16 %v636
        %v1424 = vunpack.c.h.b16 %v636
        %v1425 = vunpack.c.l.b16 %v637
        %v1426 = vunpack.c.h.b16 %v637
        %v1427 = vunpack.c.l.b16 %v638
        %v1428 = vunpack.c.h.b16 %v638
        %v1429 = vunpack.c.l.b16 %v639
        %v1430 = vunpack.c.h.b16 %v639
        %v1431 = vunpack.c.l.b16 %v640
        %v1432 = vunpack.c.h.b16 %v640
        %v1433 = vunpack.c.l.b16 %v641
        %v1434 = vunpack.c.h.b16 %v641
        %v1435 = vunpack.c.l.b16 %v642
        %v1436 = vunpack.c.h.b16 %v642
        %v1437 = vunpack.c.l.b16 %v643
        %v1438 = vunpack.c.h.b16 %v643
        %v1439 = vunpack.c.l.b16 %v644
        %v1440 = vunpack.c.h.b16 %v644
        %v1441 = vunpack.c.l.b16 %v645
        %v1442 = vunpack.c.h.b16 %v645
        %v1443 = vunpack.c.l.b16 %v646
        %v1444 = vunpack.c.h.b16 %v646
        %v1445 = vunpack.c.l.b16 %v647
        %v1446 = vunpack.c.h.b16 %v647
        %v1447 = vunpack.c.l.b16 %v648
        %v1448 = vunpack.c.h.b16 %v648
        %v1449 = vunpack.c.l.b16 %v649
        %v1450 = vunpack.c.h.b16 %v649
        %v1451 = vunpack.c.l.b16 %v650
        %v1452 = vunpack.c.h.b16 %v650
        %v1453 = vunpack.c.l.b16 %v651
        %v1454 = vunpack.c.h.b16 %v651
        %v1455 = vunpack.c.l.b16 %v652
        %v1456 = vunpack.c.h.b16 %v652
        %v1457 = vunpack.c.l.b16 %v653
        %v1458 = vunpack.c.h.b16 %v653
        %v1459 = vunpack.c.l.b16 %v654
        %v1460 = vunpack.c.h.b16 %v654
        %v1461 = vunpack.c.l.b16 %v655
        %v1462 = vunpack.c.h.b16 %v655
        %v1463 = vunpack.c.l.b16 %v656
        %v1464 = vunpack.c.h.b16 %v656
        %v1465 = vunpack.c.l.b16 %v657
        %v1466 = vunpack.c.h.b16 %v657
        %v1467 = vunpack.c.l.b16 %v658
        %v1468 = vunpack.c.h.b16 %v658
        %v1469 = vunpack.c.l.b16 %v659
        %v1470 = vunpack.c.h.b16 %v659
        %v1471 = vunpack.c.l.b16 %v660
        %v1472 = vunpack.c.h.b16 %v660
        %v1473 = vunpack.c.l.b16 %v661
        %v1474 = vunpack.c.h.b16 %v661
        %v1475 = vunpack.c.l.b16 %v662
        %v1476 = vunpack.c.h.b16 %v662
        %v1477 = vunpack.c.l.b16 %v663
        %v1478 = vunpack.c.h.b16 %v663
        %v1479 = vunpack.c.l.b16 %v664
        %v1480 = vunpack.c.h.b16 %v664
        %v1481 = vunpack.c.l.b16 %v665
        %v1482 = vunpack.c.h.b16 %v665
        %v1483 = vunpack.c.l.b16 %v666
        %v1484 = vunpack.c.h.b16 %v666
        %v1485 = vunpack.c.l.b16 %v667
        %v1486 = vunpack.c.h.b16 %v667
        %v1487 = vunpack.c.l.b16 %v668
        %v1488 = vunpack.c.h.b16 %v668
        %v1489 = vunpack.c.l.b16 %v669
        %v1490 = vunpack.c.h.b16 %v669
        %v1491 = vunpack.c.l.b16 %v670
        %v1492 = vunpack.c.h.b16 %v670
        %v1493 = vunpack.c.l.b16 %v671
        %v1494 = vunpack.c.h.b16 %v671
        %v1495 = vunpack.c.l.b16 %v672
        %v1496 = vunpack.c.h.b16 %v672
        %v1497 = vunpack.c.l.b16 %v673
        %v1498 = vunpack.c.h.b16 %v673
        %v1499 = vunpack.c.l.b16 %v674
        %v1500 = vunpack.c.h.b16 %v674
        %v1501 = vunpack.c.l.b16 %v675
        %v1502 = vunpack.c.h.b16 %v675
        %v1503 = vunpack.c.l.b16 %v676
        %v1504 = vunpack.c.h.b16 %v676
        %v1505 = vunpack.c.l.b16 %v677
        %v1506 = vunpack.c.h.b16 %v677
        %v1507 = vunpack.c.l.b16 %v678
        %v1508 = vunpack.c.h.b16 %v678
        %v1509 = vunpack.c.l.b16 %v679
        %v1510 = vunpack.c.h.b16 %v679
        %v1511 = vunpack.c.l.b16 %v680
        %v1512 = vunpack.c.h.b16 %v680
        %v1513 = vunpack.c.l.b16 %v681
        %v1514 = vunpack.c.h.b16 %v681
        %v1515 = vunpack.c.l.b16 %v682
        %v1516 = vunpack.c.h.b16 %v682
        %v1517 = vunpack.c.l.b16 %v683
        %v1518 = vunpack.c.h.b16 %v683
        %v1519 = vunpack.c.l.b16 %v684
        %v1520 = vunpack.c.h.b16 %v684
        %v1521 = vunpack.c.l.b16 %v685
        %v1522 = vunpack.c.h.b16 %v685
        %v1523 = vunpack.c.l.b16 %v686
        %v1524 = vunpack.c.h.b16 %v686
        %v1525 = vunpack.c.l.b16 %v687
        %v1526 = vunpack.c.h.b16 %v687
        %v1527 = vunpack.c.l.b16 %v688
        %v1528 = vunpack.c.h.b16 %v688
        %v1529 = vunpack.c.l.b16 %v689
        %v1530 = vunpack.c.h.b16 %v689
        %v1531 = vunpack.c.l.b16 %v690
        %v1532 = vunpack.c.h.b16 %v690
        %v1533 = vunpack.c.l.b16 %v691
        %v1534 = vunpack.c.h.b16 %v691
        %v1535 = vunpack.c.l.b16 %v692
        %v1536 = vunpack.c.h.b16 %v692
        %v1537 = vunpack.c.l.b16 %v693
        %v1538 = vunpack.c.h.b16 %v693
        %v1539 = vunpack.c.l.b16 %v694
        %v1540 = vunpack.c.h.b16 %v694
        %v1541 = vunpack.c.l.b16 %v695
        %v1542 = vunpack.c.h.b16 %v695
        %v1543 = vunpack.c.l.b16 %v696
        %v1544 = vunpack.c.h.b16 %v696
        %v1545 = vunpack.c.l.b16 %v697
        %v1546 = vunpack.c.h.b16 %v697
        %v1547 = vunpack.c.l.b16 %v698
        %v1548 = vunpack.c.h.b16 %v698
        %v1549 = vunpack.c.l.b16 %v699
        %v1550 = vunpack.c.h.b16 %v699
        %v1551 = vunpack.c.l.b16 %v700
        %v1552 = vunpack.c.h.b16 %v700
        %v1553 = vunpack.c.l.b16 %v701
        %v1554 = vunpack.c.h.b16 %v701
        %v1555 = vunpack.c.l.b16 %v702
        %v1556 = vunpack.c.h.b16 %v702
        %v1557 = vunpack.c.l.b16 %v703
        %v1558 = vunpack.c.h.b16 %v703
        %v1559 = vunpack.c.l.b16 %v704
        %v1560 = vunpack.c.h.b16 %v704
        %v1561 = vunpack.c.l.b16 %v705
        %v1562 = vunpack.c.h.b16 %v705
        %v1563 = vunpack.c.l.b16 %v706
        %v1564 = vunpack.c.h.b16 %v706
        %v1565 = vunpack.c.l.b16 %v707
        %v1566 = vunpack.c.h.b16 %v707
        %v1567 = vunpack.c.l.b16 %v708
        %v1568 = vunpack.c.h.b16 %v708
        %v1569 = vunpack.c.l.b16 %v709
        %v1570 = vunpack.c.h.b16 %v709
        %v1571 = vunpack.c.l.b16 %v710
        %v1572 = vunpack.c.h.b16 %v710
        %v1573 = vunpack.c.l.b16 %v711
        %v1574 = vunpack.c.h.b16 %v711
        %v1575 = vunpack.c.l.b16 %v712
        %v1576 = vunpack.c.h.b16 %v712
        %v1577 = vunpack.c.l.b16 %v713
        %v1578 = vunpack.c.h.b16 %v713
        %v1579 = vunpack.c.l.b16 %v714
        %v1580 = vunpack.c.h.b16 %v714
        %v1581 = vunpack.c.l.b16 %v715
        %v1582 = vunpack.c.h.b16 %v715
        %v1583 = vunpack.c.l.b16 %v716
        %v1584 = vunpack.c.h.b16 %v716
        %v1585 = vunpack.c.l.b16 %v717
        %v1586 = vunpack.c.h.b16 %v717
        %v1587 = vunpack.c.l.b16 %v718
        %v1588 = vunpack.c.h.b16 %v718
        %v1589 = vunpack.c.l.b16 %v719
        %v1590 = vunpack.c.h.b16 %v719
        %v1591 = vunpack.c.l.b16 %v720
        %v1592 = vunpack.c.h.b16 %v720
        %v1593 = vunpack.c.l.b16 %v721
        %v1594 = vunpack.c.h.b16 %v721
        %v1595 = vunpack.c.l.b16 %v722
        %v1596 = vunpack.c.h.b16 %v722
        %v1597 = vunpack.c.l.b16 %v723
        %v1598 = vunpack.c.h.b16 %v723
        %v1599 = vunpack.c.l.b16 %v724
        %v1600 = vunpack.c.h.b16 %v724
        %v1601 = vunpack.c.l.b16 %v725
        %v1602 = vunpack.c.h.b16 %v725
        %v1603 = vunpack.c.l.b16 %v726
        %v1604 = vunpack.c.h.b16 %v726
        %v1605 = vpack.c.b16 %v1035, %v1029
        %v1606 = vpack.c.b16 %v1036, %v1030
        %v1607 = vpack.c.b16 %v1037, %v1031
        %v1608 = vpack.c.b16 %v1038, %v1032
        %v1609 = vpack.c.b16 %v1039, %v1033
        %v1610 = vpack.c.b16 %v1040, %v1034
        %v1611 = vpack.c.b16 %v1047, %v1041
        %v1612 = vpack.c.b16 %v1048, %v1042
        %v1613 = vpack.c.b16 %v1049, %v1043
        %v1614 = vpack.c.b16 %v1050, %v1044
        %v1615 = vpack.c.b16 %v1051, %v1045
        %v1616 = vpack.c.b16 %v1052, %v1046
        %v1617 = vpack.c.b16 %v1059, %v1053
        %v1618 = vpack.c.b16 %v1060, %v1054
        %v1619 = vpack.c.b16 %v1061, %v1055
        %v1620 = vpack.c.b16 %v1062, %v1056
        %v1621 = vpack.c.b16 %v1063, %v1057
        %v1622 = vpack.c.b16 %v1064, %v1058
        %v1623 = vpack.c.b16 %v1071, %v1065
        %v1624 = vpack.c.b16 %v1072, %v1066
        %v1625 = vpack.c.b16 %v1073, %v1067
        %v1626 = vpack.c.b16 %v1074, %v1068
        %v1627 = vpack.c.b16 %v1075, %v1069
        %v1628 = vpack.c.b16 %v1076, %v1070
        %v1629 = vpack.c.b16 %v1083, %v1077
        %v1630 = vpack.c.b16 %v1084, %v1078
        %v1631 = vpack.c.b16 %v1085, %v1079
        %v1632 = vpack.c.b16 %v1086, %v1080
        %v1633 = vpack.c.b16 %v1087, %v1081
        %v1634 = vpack.c.b16 %v1088, %v1082
        %v1635 = vpack.c.b16 %v1095, %v1089
        %v1636 = vpack.c.b16 %v1096, %v1090
        %v1637 = vpack.c.b16 %v1097, %v1091
        %v1638 = vpack.c.b16 %v1098, %v1092
        %v1639 = vpack.c.b16 %v1099, %v1093
        %v1640 = vpack.c.b16 %v1100, %v1094
        %v1641 = vpack.c.b16 %v1107, %v1101
        %v1642 = vpack.c.b16 %v1108, %v1102
        %v1643 = vpack.c.b16 %v1109, %v1103
        %v1644 = vpack.c.b16 %v1110, %v1104
        %v1645 = vpack.c.b16 %v1111, %v1105
        %v1646 = vpack.c.b16 %v1112, %v1106
        %v1647 = vpack.c.b16 %v1119, %v1113
        %v1648 = vpack.c.b16 %v1120, %v1114
        %v1649 = vpack.c.b16 %v1121, %v1115
        %v1650 = vpack.c.b16 %v1122, %v1116
        %v1651 = vpack.c.b16 %v1123, %v1117
        %v1652 = vpack.c.b16 %v1124, %v1118
        %v1653 = vpack.c.b16 %v1131, %v1125
        %v1654 = vpack.c.b16 %v1132, %v1126
        %v1655 = vpack.c.b16 %v1133, %v1127
        %v1656 = vpack.c.b16 %v1134, %v1128
        %v1657 = vpack.c.b16 %v1135, %v1129
        %v1658 = vpack.c.b16 %v1136, %v1130
        %v1659 = vpack.c.b16 %v1143, %v1137
        %v1660 = vpack.c.b16 %v1144, %v1138
        %v1661 = vpack.c.b16 %v1145, %v1139
        %v1662 = vpack.c.b16 %v1146, %v1140
        %v1663 = vpack.c.b16 %v1147, %v1141
        %v1664 = vpack.c.b16 %v1148, %v1142
        %v1665 = vpack.c.b16 %v1155, %v1149
        %v1666 = vpack.c.b16 %v1156, %v1150
        %v1667 = vpack.c.b16 %v1157, %v1151
        %v1668 = vpack.c.b16 %v1158, %v1152
        %v1669 = vpack.c.b16 %v1159, %v1153
        %v1670 = vpack.c.b16 %v1160, %v1154
        %v1671 = vpack.c.b16 %v1167, %v1161
        %v1672 = vpack.c.b16 %v1168, %v1162
        %v1673 = vpack.c.b16 %v1169, %v1163
        %v1674 = vpack.c.b16 %v1170, %v1164
        %v1675 = vpack.c.b16 %v1171, %v1165
        %v1676 = vpack.c.b16 %v1172, %v1166
        %v1677 = vpack.c.b16 %v1179, %v1173
        %v1678 = vpack.c.b16 %v1180, %v1174
        %v1679 = vpack.c.b16 %v1181, %v1175
        %v1680 = vpack.c.b16 %v1182, %v1176
        %v1681 = vpack.c.b16 %v1183, %v1177
        %v1682 = vpack.c.b16 %v1184, %v1178
        %v1683 = vpack.c.b16 %v1191, %v1185
        %v1684 = vpack.c.b16 %v1192, %v1186
        %v1685 = vpack.c.b16 %v1193, %v1187
        %v1686 = vpack.c.b16 %v1194, %v1188
        %v1687 = vpack.c.b16 %v1195, %v1189
        %v1688 = vpack.c.b16 %v1196, %v1190
        %v1689 = vpack.c.b16 %v1203, %v1197
        %v1690 = vpack.c.b16 %v1204, %v1198
        %v1691 = vpack.c.b16 %v1205, %v1199
        %v1692 = vpack.c.b16 %v1206, %v1200
        %v1693 = vpack.c.b16 %v1207, %v1201
        %v1694 = vpack.c.b16 %v1208, %v1202
        %v1695 = vpack.c.b16 %v1215, %v1209
        %v1696 = vpack.c.b16 %v1216, %v1210
        %v1697 = vpack.c.b16 %v1217, %v1211
        %v1698 = vpack.c.b16 %v1218, %v1212
        %v1699 = vpack.c.b16 %v1219, %v1213
        %v1700 = vpack.c.b16 %v1220, %v1214
        %v1701 = vpack.c.b16 %v1227, %v1221
        %v1702 = vpack.c.b16 %v1228, %v1222
        %v1703 = vpack.c.b16 %v1229, %v1223
        %v1704 = vpack.c.b16 %v1230, %v1224
        %v1705 = vpack.c.b16 %v1231, %v1225
        %v1706 = vpack.c.b16 %v1232, %v1226
        %v1707 = vpack.c.b16 %v1239, %v1233
        %v1708 = vpack.c.b16 %v1240, %v1234
        %v1709 = vpack.c.b16 %v1241, %v1235
        %v1710 = vpack.c.b16 %v1242, %v1236
        %v1711 = vpack.c.b16 %v1243, %v1237
        %v1712 = vpack.c.b16 %v1244, %v1238
        %v1713 = vpack.c.b16 %v1251, %v1245
        %v1714 = vpack.c.b16 %v1252, %v1246
        %v1715 = vpack.c.b16 %v1253, %v1247
        %v1716 = vpack.c.b16 %v1254, %v1248
        %v1717 = vpack.c.b16 %v1255, %v1249
        %v1718 = vpack.c.b16 %v1256, %v1250
        %v1719 = vpack.c.b16 %v1263, %v1257
        %v1720 = vpack.c.b16 %v1264, %v1258
        %v1721 = vpack.c.b16 %v1265, %v1259
        %v1722 = vpack.c.b16 %v1266, %v1260
        %v1723 = vpack.c.b16 %v1267, %v1261
        %v1724 = vpack.c.b16 %v1268, %v1262
        %v1725 = vpack.c.b16 %v1275, %v1269
        %v1726 = vpack.c.b16 %v1276, %v1270
        %v1727 = vpack.c.b16 %v1277, %v1271
        %v1728 = vpack.c.b16 %v1278, %v1272
        %v1729 = vpack.c.b16 %v1279, %v1273
        %v1730 = vpack.c.b16 %v1280, %v1274
        %v1731 = vpack.c.b16 %v1287, %v1281
        %v1732 = vpack.c.b16 %v1288, %v1282
        %v1733 = vpack.c.b16 %v1289, %v1283
        %v1734 = vpack.c.b16 %v1290, %v1284
        %v1735 = vpack.c.b16 %v1291, %v1285
        %v1736 = vpack.c.b16 %v1292, %v1286
        %v1737 = vpack.c.b16 %v1299, %v1293
        %v1738 = vpack.c.b16 %v1300, %v1294
        %v1739 = vpack.c.b16 %v1301, %v1295
        %v1740 = vpack.c.b16 %v1302, %v1296
        %v1741 = vpack.c.b16 %v1303, %v1297
        %v1742 = vpack.c.b16 %v1304, %v1298
        %v1743 = vpack.c.b16 %v1311, %v1305
        %v1744 = vpack.c.b16 %v1312, %v1306
        %v1745 = vpack.c.b16 %v1313, %v1307
        %v1746 = vpack.c.b16 %v1314, %v1308
        %v1747 = vpack.c.b16 %v1315, %v1309
        %v1748 = vpack.c.b16 %v1316, %v1310
        %v1749 = vpack.c.b16 %v1323, %v1317
        %v1750 = vpack.c.b16 %v1324, %v1318
        %v1751 = vpack.c.b16 %v1325, %v1319
        %v1752 = vpack.c.b16 %v1326, %v1320
        %v1753 = vpack.c.b16 %v1327, %v1321
        %v1754 = vpack.c.b16 %v1328, %v1322
        %v1755 = vpack.c.b16 %v1335, %v1329
        %v1756 = vpack.c.b16 %v1336, %v1330
        %v1757 = vpack.c.b16 %v1337, %v1331
        %v1758 = vpack.c.b16 %v1338, %v1332
        %v1759 = vpack.c.b16 %v1339, %v1333
        %v1760 = vpack.c.b16 %v1340, %v1334
        %v1761 = vpack.c.b16 %v1347, %v1341
        %v1762 = vpack.c.b16 %v1348, %v1342
        %v1763 = vpack.c.b16 %v1349, %v1343
        %v1764 = vpack.c.b16 %v1350, %v1344
        %v1765 = vpack.c.b16 %v1351, %v1345
        %v1766 = vpack.c.b16 %v1352, %v1346
        %v1767 = vpack.c.b16 %v1359, %v1353
        %v1768 = vpack.c.b16 %v1360, %v1354
        %v1769 = vpack.c.b16 %v1361, %v1355
        %v1770 = vpack.c.b16 %v1362, %v1356
        %v1771 = vpack.c.b16 %v1363, %v1357
        %v1772 = vpack.c.b16 %v1364, %v1358
        %v1773 = vpack.c.b16 %v1371, %v1365
        %v1774 = vpack.c.b16 %v1372, %v1366
        %v1775 = vpack.c.b16 %v1373, %v1367
        %v1776 = vpack.c.b16 %v1374, %v1368
        %v1777 = vpack.c.b16 %v1375, %v1369
        %v1778 = vpack.c.b16 %v1376, %v1370
        %v1779 = vpack.c.b16 %v1383, %v1377
        %v1780 = vpack.c.b16 %v1384, %v1378
        %v1781 = vpack.c.b16 %v1385, %v1379
        %v1782 = vpack.c.b16 %v1386, %v1380
        %v1783 = vpack.c.b16 %v1387, %v1381
        %v1784 = vpack.c.b16 %v1388, %v1382
        %v1785 = vpack.c.b16 %v1395, %v1389
        %v1786 = vpack.c.b16 %v1396, %v1390
        %v1787 = vpack.c.b16 %v1397, %v1391
        %v1788 = vpack.c.b16 %v1398, %v1392
        %v1789 = vpack.c.b16 %v1399, %v1393
        %v1790 = vpack.c.b16 %v1400, %v1394
        %v1791 = vpack.c.b16 %v1407, %v1401
        %v1792 = vpack.c.b16 %v1408, %v1402
        %v1793 = vpack.c.b16 %v1409, %v1403
        %v1794 = vpack.c.b16 %v1410, %v1404
        %v1795 = vpack.c.b16 %v1411, %v1405
        %v1796 = vpack.c.b16 %v1412, %v1406
        %v1797 = vpack.c.b16 %v1419, %v1413
        %v1798 = vpack.c.b16 %v1420, %v1414
        %v1799 = vpack.c.b16 %v1421, %v1415
        %v1800 = vpack.c.b16 %v1422, %v1416
        %v1801 = vpack.c.b16 %v1423, %v1417
        %v1802 = vpack.c.b16 %v1424, %v1418
        %v1803 = vpack.c.b16 %v1431, %v1425
        %v1804 = vpack.c.b16 %v1432, %v1426
        %v1805 = vpack.c.b16 %v1433, %v1427
        %v1806 = vpack.c.b16 %v1434, %v1428
        %v1807 = vpack.c.b16 %v1435, %v1429
        %v1808 = vpack.c.b16 %v1436, %v1430
        %v1809 = vpack.c.b16 %v1443, %v1437
        %v1810 = vpack.c.b16 %v1444, %v1438
        %v1811 = vpack.c.b16 %v1445, %v1439
        %v1812 = vpack.c.b16 %v1446, %v1440
        %v1813 = vpack.c.b16 %v1447, %v1441
        %v1814 = vpack.c.b16 %v1448, %v1442
        %v1815 = vpack.c.b16 %v1455, %v1449
        %v1816 = vpack.c.b16 %v1456, %v1450
        %v1817 = vpack.c.b16 %v1457, %v1451
        %v1818 = vpack.c.b16 %v1458, %v1452
        %v1819 = vpack.c.b16 %v1459, %v1453
        %v1820 = vpack.c.b16 %v1460, %v1454
        %v1821 = vpack.c.b16 %v1467, %v1461
        %v1822 = vpack.c.b16 %v1468, %v1462
        %v1823 = vpack.c.b16 %v1469, %v1463
        %v1824 = vpack.c.b16 %v1470, %v1464
        %v1825 = vpack.c.b16 %v1471, %v1465
        %v1826 = vpack.c.b16 %v1472, %v1466
        %v1827 = vpack.c.b16 %v1479, %v1473
        %v1828 = vpack.c.b16 %v1480, %v1474
        %v1829 = vpack.c.b16 %v1481, %v1475
        %v1830 = vpack.c.b16 %v1482, %v1476
        %v1831 = vpack.c.b16 %v1483, %v1477
        %v1832 = vpack.c.b16 %v1484, %v1478
        %v1833 = vpack.c.b16 %v1491, %v1485
        %v1834 = vpack.c.b16 %v1492, %v1486
        %v1835 = vpack.c.b16 %v1493, %v1487
        %v1836 = vpack.c.b16 %v1494, %v1488
        %v1837 = vpack.c.b16 %v1495, %v1489
        %v1838 = vpack.c.b16 %v1496, %v1490
        %v1839 = vpack.c.b16 %v1503, %v1497
        %v1840 = vpack.c.b16 %v1504, %v1498
        %v1841 = vpack.c.b16 %v1505, %v1499
        %v1842 = vpack.c.b16 %v1506, %v1500
        %v1843 = vpack.c.b16 %v1507, %v1501
        %v1844 = vpack.c.b16 %v1508, %v1502
        %v1845 = vpack.c.b16 %v1515, %v1509
        %v1846 = vpack.c.b16 %v1516, %v1510
        %v1847 = vpack.c.b16 %v1517, %v1511
        %v1848 = vpack.c.b16 %v1518, %v1512
        %v1849 = vpack.c.b16 %v1519, %v1513
        %v1850 = vpack.c.b16 %v1520, %v1514
        %v1851 = vpack.c.b16 %v1527, %v1521
        %v1852 = vpack.c.b16 %v1528, %v1522
        %v1853 = vpack.c.b16 %v1529, %v1523
        %v1854 = vpack.c.b16 %v1530, %v1524
        %v1855 = vpack.c.b16 %v1531, %v1525
        %v1856 = vpack.c.b16 %v1532, %v1526
        %v1857 = vpack.c.b16 %v1539, %v1533
        %v1858 = vpack.c.b16 %v1540, %v1534
        %v1859 = vpack.c.b16 %v1541, %v1535
        %v1860 = vpack.c.b16 %v1542, %v1536
        %v1861 = vpack.c.b16 %v1543, %v1537
        %v1862 = vpack.c.b16 %v1544, %v1538
        %v1863 = vpack.c.b16 %v1551, %v1545
        %v1864 = vpack.c.b16 %v1552, %v1546
        %v1865 = vpack.c.b16 %v1553, %v1547
        %v1866 = vpack.c.b16 %v1554, %v1548
        %v1867 = vpack.c.b16 %v1555, %v1549
        %v1868 = vpack.c.b16 %v1556, %v1550
        %v1869 = vpack.c.b16 %v1563, %v1557
        %v1870 = vpack.c.b16 %v1564, %v1558
        %v1871 = vpack.c.b16 %v1565, %v1559
        %v1872 = vpack.c.b16 %v1566, %v1560
        %v1873 = vpack.c.b16 %v1567, %v1561
        %v1874 = vpack.c.b16 %v1568, %v1562
        %v1875 = vpack.c.b16 %v1575, %v1569
        %v1876 = vpack.c.b16 %v1576, %v1570
        %v1877 = vpack.c.b16 %v1577, %v1571
        %v1878 = vpack.c.b16 %v1578, %v1572
        %v1879 = vpack.c.b16 %v1579, %v1573
        %v1880 = vpack.c.b16 %v1580, %v1574
        %v1881 = vpack.c.b16 %v1587, %v1581
        %v1882 = vpack.c.b16 %v1588, %v1582
        %v1883 = vpack.c.b16 %v1589, %v1583
        %v1884 = vpack.c.b16 %v1590, %v1584
        %v1885 = vpack.c.b16 %v1591, %v1585
        %v1886 = vpack.c.b16 %v1592, %v1586
        %v1887 = vpack.c.b16 %v1599, %v1593
        %v1888 = vpack.c.b16 %v1600, %v1594
        %v1889 = vpack.c.b16 %v1601, %v1595
        %v1890 = vpack.c.b16 %v1602, %v1596
        %v1891 = vpack.c.b16 %v1603, %v1597
        %v1892 = vpack.c.b16 %v1604, %v1598
        %2181 = vmatpush.bf16.msra.mxu0 %v1647
        %2182 = vmatpush.bf16.msra.mxu0 %v1641
        %2183 = vmatpush.bf16.msra.mxu0 %v1635
        %2184 = vmatpush.bf16.msra.mxu0 %v1629
        %2185 = vmatpush.bf16.msra.mxu0 %v1623
        %2186 = vmatpush.bf16.msra.mxu0 %v1617
        %2187 = vmatpush.bf16.msra.mxu0 %v1611
        %2188 = vmatpush.bf16.msra.mxu0 %v1605
        %2189 = vmatmul.bf16.gmra.mxu0 %v433
        %v2190 = vpop.f32.mrf.mxu0
        %v2191 = vadd.f32 %v729, %v2190
        %v2192 = vpop.f32.mrf.mxu0
        %2193 = vdwg.mxu0
        %2194 = vmatpush.bf16.msra.mxu0 %v1695
        %2195 = vmatpush.bf16.msra.mxu0 %v1689
        %2196 = vmatpush.bf16.msra.mxu0 %v1683
        %2197 = vmatpush.bf16.msra.mxu0 %v1677
        %2198 = vmatpush.bf16.msra.mxu0 %v1671
        %2199 = vmatpush.bf16.msra.mxu0 %v1665
        %2200 = vmatpush.bf16.msra.mxu0 %v1659
        %2201 = vmatpush.bf16.msra.mxu0 %v1653
        %2202 = vmatmul.bf16.gmra.mxu0 %v434
        %v2203 = vpop.f32.mrf.mxu0
        %v2204 = vadd.f32 %v2191, %v2203
        %v2205 = vpop.f32.mrf.mxu0
        %2206 = vdwg.mxu0
        %2207 = vmatpush.bf16.msra.mxu0 %v1743
        %2208 = vmatpush.bf16.msra.mxu0 %v1737
        %2209 = vmatpush.bf16.msra.mxu0 %v1731
        %2210 = vmatpush.bf16.msra.mxu0 %v1725
        %2211 = vmatpush.bf16.msra.mxu0 %v1719
        %2212 = vmatpush.bf16.msra.mxu0 %v1713
        %2213 = vmatpush.bf16.msra.mxu0 %v1707
        %2214 = vmatpush.bf16.msra.mxu0 %v1701
        %2215 = vmatmul.bf16.gmra.mxu0 %v435
        %v2216 = vpop.f32.mrf.mxu0
        %v2217 = vadd.f32 %v2204, %v2216
        %v2218 = vpop.f32.mrf.mxu0
        %2219 = vdwg.mxu0
        %2220 = vmatpush.bf16.msra.mxu0 %v1791
        %2221 = vmatpush.bf16.msra.mxu0 %v1785
        %2222 = vmatpush.bf16.msra.mxu0 %v1779
        %2223 = vmatpush.bf16.msra.mxu0 %v1773
        %2224 = vmatpush.bf16.msra.mxu0 %v1767
        %2225 = vmatpush.bf16.msra.mxu0 %v1761
        %2226 = vmatpush.bf16.msra.mxu0 %v1755
        %2227 = vmatpush.bf16.msra.mxu0 %v1749
        %2228 = vmatmul.bf16.gmra.mxu0 %v436
        %v2229 = vpop.f32.mrf.mxu0
        %v2230 = vadd.f32 %v2217, %v2229
        %v2231 = vpop.f32.mrf.mxu0
        %2232 = vdwg.mxu0
        %2233 = vmatpush.bf16.msra.mxu0 %v1839
        %2234 = vmatpush.bf16.msra.mxu0 %v1833
        %2235 = vmatpush.bf16.msra.mxu0 %v1827
        %2236 = vmatpush.bf16.msra.mxu0 %v1821
        %2237 = vmatpush.bf16.msra.mxu0 %v1815
        %2238 = vmatpush.bf16.msra.mxu0 %v1809
        %2239 = vmatpush.bf16.msra.mxu0 %v1803
        %2240 = vmatpush.bf16.msra.mxu0 %v1797
        %2241 = vmatmul.bf16.gmra.mxu0 %v437
        %v2242 = vpop.f32.mrf.mxu0
        %v2243 = vadd.f32 %v2230, %v2242
        %v2244 = vpop.f32.mrf.mxu0
        %2245 = vdwg.mxu0
        %2246 = vmatpush.bf16.msra.mxu0 %v1887
        %2247 = vmatpush.bf16.msra.mxu0 %v1881
        %2248 = vmatpush.bf16.msra.mxu0 %v1875
        %2249 = vmatpush.bf16.msra.mxu0 %v1869
        %2250 = vmatpush.bf16.msra.mxu0 %v1863
        %2251 = vmatpush.bf16.msra.mxu0 %v1857
        %2252 = vmatpush.bf16.msra.mxu0 %v1851
        %2253 = vmatpush.bf16.msra.mxu0 %v1845
        %2254 = vmatmul.bf16.gmra.mxu0 %v438
        %v2255 = vpop.f32.mrf.mxu0
        %v2256 = vadd.f32 %v2243, %v2255
        %v2257 = vpop.f32.mrf.mxu0
        %2258 = vdwg.mxu0
        %2259 = vmatpush.bf16.msra.mxu0 %v1648
        %2260 = vmatpush.bf16.msra.mxu0 %v1642
        %2261 = vmatpush.bf16.msra.mxu0 %v1636
        %2262 = vmatpush.bf16.msra.mxu0 %v1630
        %2263 = vmatpush.bf16.msra.mxu0 %v1624
        %2264 = vmatpush.bf16.msra.mxu0 %v1618
        %2265 = vmatpush.bf16.msra.mxu0 %v1612
        %2266 = vmatpush.bf16.msra.mxu0 %v1606
        %2267 = vmatmul.bf16.gmra.mxu0 %v433
        %v2268 = vpop.f32.mrf.mxu0
        %v2269 = vadd.f32 %v730, %v2268
        %v2270 = vpop.f32.mrf.mxu0
        %2271 = vdwg.mxu0
        %2272 = vmatpush.bf16.msra.mxu0 %v1696
        %2273 = vmatpush.bf16.msra.mxu0 %v1690
        %2274 = vmatpush.bf16.msra.mxu0 %v1684
        %2275 = vmatpush.bf16.msra.mxu0 %v1678
        %2276 = vmatpush.bf16.msra.mxu0 %v1672
        %2277 = vmatpush.bf16.msra.mxu0 %v1666
        %2278 = vmatpush.bf16.msra.mxu0 %v1660
        %2279 = vmatpush.bf16.msra.mxu0 %v1654
        %2280 = vmatmul.bf16.gmra.mxu0 %v434
        %v2281 = vpop.f32.mrf.mxu0
        %v2282 = vadd.f32 %v2269, %v2281
        %v2283 = vpop.f32.mrf.mxu0
        %2284 = vdwg.mxu0
        %2285 = vmatpush.bf16.msra.mxu0 %v1744
        %2286 = vmatpush.bf16.msra.mxu0 %v1738
        %2287 = vmatpush.bf16.msra.mxu0 %v1732
        %2288 = vmatpush.bf16.msra.mxu0 %v1726
        %2289 = vmatpush.bf16.msra.mxu0 %v1720
        %2290 = vmatpush.bf16.msra.mxu0 %v1714
        %2291 = vmatpush.bf16.msra.mxu0 %v1708
        %2292 = vmatpush.bf16.msra.mxu0 %v1702
        %2293 = vmatmul.bf16.gmra.mxu0 %v435
        %v2294 = vpop.f32.mrf.mxu0
        %v2295 = vadd.f32 %v2282, %v2294
        %v2296 = vpop.f32.mrf.mxu0
        %2297 = vdwg.mxu0
        %2298 = vmatpush.bf16.msra.mxu0 %v1792
        %2299 = vmatpush.bf16.msra.mxu0 %v1786
        %2300 = vmatpush.bf16.msra.mxu0 %v1780
        %2301 = vmatpush.bf16.msra.mxu0 %v1774
        %2302 = vmatpush.bf16.msra.mxu0 %v1768
        %2303 = vmatpush.bf16.msra.mxu0 %v1762
        %2304 = vmatpush.bf16.msra.mxu0 %v1756
        %2305 = vmatpush.bf16.msra.mxu0 %v1750
        %2306 = vmatmul.bf16.gmra.mxu0 %v436
        %v2307 = vpop.f32.mrf.mxu0
        %v2308 = vadd.f32 %v2295, %v2307
        %v2309 = vpop.f32.mrf.mxu0
        %2310 = vdwg.mxu0
        %2311 = vmatpush.bf16.msra.mxu0 %v1840
        %2312 = vmatpush.bf16.msra.mxu0 %v1834
        %2313 = vmatpush.bf16.msra.mxu0 %v1828
        %2314 = vmatpush.bf16.msra.mxu0 %v1822
        %2315 = vmatpush.bf16.msra.mxu0 %v1816
        %2316 = vmatpush.bf16.msra.mxu0 %v1810
        %2317 = vmatpush.bf16.msra.mxu0 %v1804
        %2318 = vmatpush.bf16.msra.mxu0 %v1798
        %2319 = vmatmul.bf16.gmra.mxu0 %v437
        %v2320 = vpop.f32.mrf.mxu0
        %v2321 = vadd.f32 %v2308, %v2320
        %v2322 = vpop.f32.mrf.mxu0
        %2323 = vdwg.mxu0
        %2324 = vmatpush.bf16.msra.mxu0 %v1888
        %2325 = vmatpush.bf16.msra.mxu0 %v1882
        %2326 = vmatpush.bf16.msra.mxu0 %v1876
        %2327 = vmatpush.bf16.msra.mxu0 %v1870
        %2328 = vmatpush.bf16.msra.mxu0 %v1864
        %2329 = vmatpush.bf16.msra.mxu0 %v1858
        %2330 = vmatpush.bf16.msra.mxu0 %v1852
        %2331 = vmatpush.bf16.msra.mxu0 %v1846
        %2332 = vmatmul.bf16.gmra.mxu0 %v438
        %v2333 = vpop.f32.mrf.mxu0
        %v2334 = vadd.f32 %v2321, %v2333
        %v2335 = vpop.f32.mrf.mxu0
        %2336 = vdwg.mxu0
        %2337 = vmatpush.bf16.msra.mxu0 %v1649
        %2338 = vmatpush.bf16.msra.mxu0 %v1643
        %2339 = vmatpush.bf16.msra.mxu0 %v1637
        %2340 = vmatpush.bf16.msra.mxu0 %v1631
        %2341 = vmatpush.bf16.msra.mxu0 %v1625
        %2342 = vmatpush.bf16.msra.mxu0 %v1619
        %2343 = vmatpush.bf16.msra.mxu0 %v1613
        %2344 = vmatpush.bf16.msra.mxu0 %v1607
        %2345 = vmatmul.bf16.gmra.mxu0 %v433
        %v2346 = vpop.f32.mrf.mxu0
        %v2347 = vadd.f32 %v731, %v2346
        %v2348 = vpop.f32.mrf.mxu0
        %2349 = vdwg.mxu0
        %2350 = vmatpush.bf16.msra.mxu0 %v1697
        %2351 = vmatpush.bf16.msra.mxu0 %v1691
        %2352 = vmatpush.bf16.msra.mxu0 %v1685
        %2353 = vmatpush.bf16.msra.mxu0 %v1679
        %2354 = vmatpush.bf16.msra.mxu0 %v1673
        %2355 = vmatpush.bf16.msra.mxu0 %v1667
        %2356 = vmatpush.bf16.msra.mxu0 %v1661
        %2357 = vmatpush.bf16.msra.mxu0 %v1655
        %2358 = vmatmul.bf16.gmra.mxu0 %v434
        %v2359 = vpop.f32.mrf.mxu0
        %v2360 = vadd.f32 %v2347, %v2359
        %v2361 = vpop.f32.mrf.mxu0
        %2362 = vdwg.mxu0
        %2363 = vmatpush.bf16.msra.mxu0 %v1745
        %2364 = vmatpush.bf16.msra.mxu0 %v1739
        %2365 = vmatpush.bf16.msra.mxu0 %v1733
        %2366 = vmatpush.bf16.msra.mxu0 %v1727
        %2367 = vmatpush.bf16.msra.mxu0 %v1721
        %2368 = vmatpush.bf16.msra.mxu0 %v1715
        %2369 = vmatpush.bf16.msra.mxu0 %v1709
        %2370 = vmatpush.bf16.msra.mxu0 %v1703
        %2371 = vmatmul.bf16.gmra.mxu0 %v435
        %v2372 = vpop.f32.mrf.mxu0
        %v2373 = vadd.f32 %v2360, %v2372
        %v2374 = vpop.f32.mrf.mxu0
        %2375 = vdwg.mxu0
        %2376 = vmatpush.bf16.msra.mxu0 %v1793
        %2377 = vmatpush.bf16.msra.mxu0 %v1787
        %2378 = vmatpush.bf16.msra.mxu0 %v1781
        %2379 = vmatpush.bf16.msra.mxu0 %v1775
        %2380 = vmatpush.bf16.msra.mxu0 %v1769
        %2381 = vmatpush.bf16.msra.mxu0 %v1763
        %2382 = vmatpush.bf16.msra.mxu0 %v1757
        %2383 = vmatpush.bf16.msra.mxu0 %v1751
        %2384 = vmatmul.bf16.gmra.mxu0 %v436
        %v2385 = vpop.f32.mrf.mxu0
        %v2386 = vadd.f32 %v2373, %v2385
        %v2387 = vpop.f32.mrf.mxu0
        %2388 = vdwg.mxu0
        %2389 = vmatpush.bf16.msra.mxu0 %v1841
        %2390 = vmatpush.bf16.msra.mxu0 %v1835
        %2391 = vmatpush.bf16.msra.mxu0 %v1829
        %2392 = vmatpush.bf16.msra.mxu0 %v1823
        %2393 = vmatpush.bf16.msra.mxu0 %v1817
        %2394 = vmatpush.bf16.msra.mxu0 %v1811
        %2395 = vmatpush.bf16.msra.mxu0 %v1805
        %2396 = vmatpush.bf16.msra.mxu0 %v1799
        %2397 = vmatmul.bf16.gmra.mxu0 %v437
        %v2398 = vpop.f32.mrf.mxu0
        %v2399 = vadd.f32 %v2386, %v2398
        %v2400 = vpop.f32.mrf.mxu0
        %2401 = vdwg.mxu0
        %2402 = vmatpush.bf16.msra.mxu0 %v1889
        %2403 = vmatpush.bf16.msra.mxu0 %v1883
        %2404 = vmatpush.bf16.msra.mxu0 %v1877
        %2405 = vmatpush.bf16.msra.mxu0 %v1871
        %2406 = vmatpush.bf16.msra.mxu0 %v1865
        %2407 = vmatpush.bf16.msra.mxu0 %v1859
        %2408 = vmatpush.bf16.msra.mxu0 %v1853
        %2409 = vmatpush.bf16.msra.mxu0 %v1847
        %2410 = vmatmul.bf16.gmra.mxu0 %v438
        %v2411 = vpop.f32.mrf.mxu0
        %v2412 = vadd.f32 %v2399, %v2411
        %v2413 = vpop.f32.mrf.mxu0
        %2414 = vdwg.mxu0
        %2415 = vmatpush.bf16.msra.mxu0 %v1650
        %2416 = vmatpush.bf16.msra.mxu0 %v1644
        %2417 = vmatpush.bf16.msra.mxu0 %v1638
        %2418 = vmatpush.bf16.msra.mxu0 %v1632
        %2419 = vmatpush.bf16.msra.mxu0 %v1626
        %2420 = vmatpush.bf16.msra.mxu0 %v1620
        %2421 = vmatpush.bf16.msra.mxu0 %v1614
        %2422 = vmatpush.bf16.msra.mxu0 %v1608
        %2423 = vmatmul.bf16.gmra.mxu0 %v433
        %v2424 = vpop.f32.mrf.mxu0
        %v2425 = vadd.f32 %v732, %v2424
        %v2426 = vpop.f32.mrf.mxu0
        %2427 = vdwg.mxu0
        %2428 = vmatpush.bf16.msra.mxu0 %v1698
        %2429 = vmatpush.bf16.msra.mxu0 %v1692
        %2430 = vmatpush.bf16.msra.mxu0 %v1686
        %2431 = vmatpush.bf16.msra.mxu0 %v1680
        %2432 = vmatpush.bf16.msra.mxu0 %v1674
        %2433 = vmatpush.bf16.msra.mxu0 %v1668
        %2434 = vmatpush.bf16.msra.mxu0 %v1662
        %2435 = vmatpush.bf16.msra.mxu0 %v1656
        %2436 = vmatmul.bf16.gmra.mxu0 %v434
        %v2437 = vpop.f32.mrf.mxu0
        %v2438 = vadd.f32 %v2425, %v2437
        %v2439 = vpop.f32.mrf.mxu0
        %2440 = vdwg.mxu0
        %2441 = vmatpush.bf16.msra.mxu0 %v1746
        %2442 = vmatpush.bf16.msra.mxu0 %v1740
        %2443 = vmatpush.bf16.msra.mxu0 %v1734
        %2444 = vmatpush.bf16.msra.mxu0 %v1728
        %2445 = vmatpush.bf16.msra.mxu0 %v1722
        %2446 = vmatpush.bf16.msra.mxu0 %v1716
        %2447 = vmatpush.bf16.msra.mxu0 %v1710
        %2448 = vmatpush.bf16.msra.mxu0 %v1704
        %2449 = vmatmul.bf16.gmra.mxu0 %v435
        %v2450 = vpop.f32.mrf.mxu0
        %v2451 = vadd.f32 %v2438, %v2450
        %v2452 = vpop.f32.mrf.mxu0
        %2453 = vdwg.mxu0
        %2454 = vmatpush.bf16.msra.mxu0 %v1794
        %2455 = vmatpush.bf16.msra.mxu0 %v1788
        %2456 = vmatpush.bf16.msra.mxu0 %v1782
        %2457 = vmatpush.bf16.msra.mxu0 %v1776
        %2458 = vmatpush.bf16.msra.mxu0 %v1770
        %2459 = vmatpush.bf16.msra.mxu0 %v1764
        %2460 = vmatpush.bf16.msra.mxu0 %v1758
        %2461 = vmatpush.bf16.msra.mxu0 %v1752
        %2462 = vmatmul.bf16.gmra.mxu0 %v436
        %v2463 = vpop.f32.mrf.mxu0
        %v2464 = vadd.f32 %v2451, %v2463
        %v2465 = vpop.f32.mrf.mxu0
        %2466 = vdwg.mxu0
        %2467 = vmatpush.bf16.msra.mxu0 %v1842
        %2468 = vmatpush.bf16.msra.mxu0 %v1836
        %2469 = vmatpush.bf16.msra.mxu0 %v1830
        %2470 = vmatpush.bf16.msra.mxu0 %v1824
        %2471 = vmatpush.bf16.msra.mxu0 %v1818
        %2472 = vmatpush.bf16.msra.mxu0 %v1812
        %2473 = vmatpush.bf16.msra.mxu0 %v1806
        %2474 = vmatpush.bf16.msra.mxu0 %v1800
        %2475 = vmatmul.bf16.gmra.mxu0 %v437
        %v2476 = vpop.f32.mrf.mxu0
        %v2477 = vadd.f32 %v2464, %v2476
        %v2478 = vpop.f32.mrf.mxu0
        %2479 = vdwg.mxu0
        %2480 = vmatpush.bf16.msra.mxu0 %v1890
        %2481 = vmatpush.bf16.msra.mxu0 %v1884
        %2482 = vmatpush.bf16.msra.mxu0 %v1878
        %2483 = vmatpush.bf16.msra.mxu0 %v1872
        %2484 = vmatpush.bf16.msra.mxu0 %v1866
        %2485 = vmatpush.bf16.msra.mxu0 %v1860
        %2486 = vmatpush.bf16.msra.mxu0 %v1854
        %2487 = vmatpush.bf16.msra.mxu0 %v1848
        %2488 = vmatmul.bf16.gmra.mxu0 %v438
        %v2489 = vpop.f32.mrf.mxu0
        %v2490 = vadd.f32 %v2477, %v2489
        %v2491 = vpop.f32.mrf.mxu0
        %2492 = vdwg.mxu0
        %2493 = vmatpush.bf16.msra.mxu0 %v1651
        %2494 = vmatpush.bf16.msra.mxu0 %v1645
        %2495 = vmatpush.bf16.msra.mxu0 %v1639
        %2496 = vmatpush.bf16.msra.mxu0 %v1633
        %2497 = vmatpush.bf16.msra.mxu0 %v1627
        %2498 = vmatpush.bf16.msra.mxu0 %v1621
        %2499 = vmatpush.bf16.msra.mxu0 %v1615
        %2500 = vmatpush.bf16.msra.mxu0 %v1609
        %2501 = vmatmul.bf16.gmra.mxu0 %v433
        %v2502 = vpop.f32.mrf.mxu0
        %v2503 = vadd.f32 %v733, %v2502
        %v2504 = vpop.f32.mrf.mxu0
        %2505 = vdwg.mxu0
        %2506 = vmatpush.bf16.msra.mxu0 %v1699
        %2507 = vmatpush.bf16.msra.mxu0 %v1693
        %2508 = vmatpush.bf16.msra.mxu0 %v1687
        %2509 = vmatpush.bf16.msra.mxu0 %v1681
        %2510 = vmatpush.bf16.msra.mxu0 %v1675
        %2511 = vmatpush.bf16.msra.mxu0 %v1669
        %2512 = vmatpush.bf16.msra.mxu0 %v1663
        %2513 = vmatpush.bf16.msra.mxu0 %v1657
        %2514 = vmatmul.bf16.gmra.mxu0 %v434
        %v2515 = vpop.f32.mrf.mxu0
        %v2516 = vadd.f32 %v2503, %v2515
        %v2517 = vpop.f32.mrf.mxu0
        %2518 = vdwg.mxu0
        %2519 = vmatpush.bf16.msra.mxu0 %v1747
        %2520 = vmatpush.bf16.msra.mxu0 %v1741
        %2521 = vmatpush.bf16.msra.mxu0 %v1735
        %2522 = vmatpush.bf16.msra.mxu0 %v1729
        %2523 = vmatpush.bf16.msra.mxu0 %v1723
        %2524 = vmatpush.bf16.msra.mxu0 %v1717
        %2525 = vmatpush.bf16.msra.mxu0 %v1711
        %2526 = vmatpush.bf16.msra.mxu0 %v1705
        %2527 = vmatmul.bf16.gmra.mxu0 %v435
        %v2528 = vpop.f32.mrf.mxu0
        %v2529 = vadd.f32 %v2516, %v2528
        %v2530 = vpop.f32.mrf.mxu0
        %2531 = vdwg.mxu0
        %2532 = vmatpush.bf16.msra.mxu0 %v1795
        %2533 = vmatpush.bf16.msra.mxu0 %v1789
        %2534 = vmatpush.bf16.msra.mxu0 %v1783
        %2535 = vmatpush.bf16.msra.mxu0 %v1777
        %2536 = vmatpush.bf16.msra.mxu0 %v1771
        %2537 = vmatpush.bf16.msra.mxu0 %v1765
        %2538 = vmatpush.bf16.msra.mxu0 %v1759
        %2539 = vmatpush.bf16.msra.mxu0 %v1753
        %2540 = vmatmul.bf16.gmra.mxu0 %v436
        %v2541 = vpop.f32.mrf.mxu0
        %v2542 = vadd.f32 %v2529, %v2541
        %v2543 = vpop.f32.mrf.mxu0
        %2544 = vdwg.mxu0
        %2545 = vmatpush.bf16.msra.mxu0 %v1843
        %2546 = vmatpush.bf16.msra.mxu0 %v1837
        %2547 = vmatpush.bf16.msra.mxu0 %v1831
        %2548 = vmatpush.bf16.msra.mxu0 %v1825
        %2549 = vmatpush.bf16.msra.mxu0 %v1819
        %2550 = vmatpush.bf16.msra.mxu0 %v1813
        %2551 = vmatpush.bf16.msra.mxu0 %v1807
        %2552 = vmatpush.bf16.msra.mxu0 %v1801
        %2553 = vmatmul.bf16.gmra.mxu0 %v437
        %v2554 = vpop.f32.mrf.mxu0
        %v2555 = vadd.f32 %v2542, %v2554
        %v2556 = vpop.f32.mrf.mxu0
        %2557 = vdwg.mxu0
        %2558 = vmatpush.bf16.msra.mxu0 %v1891
        %2559 = vmatpush.bf16.msra.mxu0 %v1885
        %2560 = vmatpush.bf16.msra.mxu0 %v1879
        %2561 = vmatpush.bf16.msra.mxu0 %v1873
        %2562 = vmatpush.bf16.msra.mxu0 %v1867
        %2563 = vmatpush.bf16.msra.mxu0 %v1861
        %2564 = vmatpush.bf16.msra.mxu0 %v1855
        %2565 = vmatpush.bf16.msra.mxu0 %v1849
        %2566 = vmatmul.bf16.gmra.mxu0 %v438
        %v2567 = vpop.f32.mrf.mxu0
        %v2568 = vadd.f32 %v2555, %v2567
        %v2569 = vpop.f32.mrf.mxu0
        %2570 = vdwg.mxu0
        %2571 = vmatpush.bf16.msra.mxu0 %v1652
        %2572 = vmatpush.bf16.msra.mxu0 %v1646
        %2573 = vmatpush.bf16.msra.mxu0 %v1640
        %2574 = vmatpush.bf16.msra.mxu0 %v1634
        %2575 = vmatpush.bf16.msra.mxu0 %v1628
        %2576 = vmatpush.bf16.msra.mxu0 %v1622
        %2577 = vmatpush.bf16.msra.mxu0 %v1616
        %2578 = vmatpush.bf16.msra.mxu0 %v1610
        %2579 = vmatmul.bf16.gmra.mxu0 %v433
        %v2580 = vpop.f32.mrf.mxu0
        %v2581 = vadd.f32 %v734, %v2580
        %v2582 = vpop.f32.mrf.mxu0
        %2583 = vdwg.mxu0
        %2584 = vmatpush.bf16.msra.mxu0 %v1700
        %2585 = vmatpush.bf16.msra.mxu0 %v1694
        %2586 = vmatpush.bf16.msra.mxu0 %v1688
        %2587 = vmatpush.bf16.msra.mxu0 %v1682
        %2588 = vmatpush.bf16.msra.mxu0 %v1676
        %2589 = vmatpush.bf16.msra.mxu0 %v1670
        %2590 = vmatpush.bf16.msra.mxu0 %v1664
        %2591 = vmatpush.bf16.msra.mxu0 %v1658
        %2592 = vmatmul.bf16.gmra.mxu0 %v434
        %v2593 = vpop.f32.mrf.mxu0
        %v2594 = vadd.f32 %v2581, %v2593
        %v2595 = vpop.f32.mrf.mxu0
        %2596 = vdwg.mxu0
        %2597 = vmatpush.bf16.msra.mxu0 %v1748
        %2598 = vmatpush.bf16.msra.mxu0 %v1742
        %2599 = vmatpush.bf16.msra.mxu0 %v1736
        %2600 = vmatpush.bf16.msra.mxu0 %v1730
        %2601 = vmatpush.bf16.msra.mxu0 %v1724
        %2602 = vmatpush.bf16.msra.mxu0 %v1718
        %2603 = vmatpush.bf16.msra.mxu0 %v1712
        %2604 = vmatpush.bf16.msra.mxu0 %v1706
        %2605 = vmatmul.bf16.gmra.mxu0 %v435
        %v2606 = vpop.f32.mrf.mxu0
        %v2607 = vadd.f32 %v2594, %v2606
        %v2608 = vpop.f32.mrf.mxu0
        %2609 = vdwg.mxu0
        %2610 = vmatpush.bf16.msra.mxu0 %v1796
        %2611 = vmatpush.bf16.msra.mxu0 %v1790
        %2612 = vmatpush.bf16.msra.mxu0 %v1784
        %2613 = vmatpush.bf16.msra.mxu0 %v1778
        %2614 = vmatpush.bf16.msra.mxu0 %v1772
        %2615 = vmatpush.bf16.msra.mxu0 %v1766
        %2616 = vmatpush.bf16.msra.mxu0 %v1760
        %2617 = vmatpush.bf16.msra.mxu0 %v1754
        %2618 = vmatmul.bf16.gmra.mxu0 %v436
        %v2619 = vpop.f32.mrf.mxu0
        %v2620 = vadd.f32 %v2607, %v2619
        %v2621 = vpop.f32.mrf.mxu0
        %2622 = vdwg.mxu0
        %2623 = vmatpush.bf16.msra.mxu0 %v1844
        %2624 = vmatpush.bf16.msra.mxu0 %v1838
        %2625 = vmatpush.bf16.msra.mxu0 %v1832
        %2626 = vmatpush.bf16.msra.mxu0 %v1826
        %2627 = vmatpush.bf16.msra.mxu0 %v1820
        %2628 = vmatpush.bf16.msra.mxu0 %v1814
        %2629 = vmatpush.bf16.msra.mxu0 %v1808
        %2630 = vmatpush.bf16.msra.mxu0 %v1802
        %2631 = vmatmul.bf16.gmra.mxu0 %v437
        %v2632 = vpop.f32.mrf.mxu0
        %v2633 = vadd.f32 %v2620, %v2632
        %v2634 = vpop.f32.mrf.mxu0
        %2635 = vdwg.mxu0
        %2636 = vmatpush.bf16.msra.mxu0 %v1892
        %2637 = vmatpush.bf16.msra.mxu0 %v1886
        %2638 = vmatpush.bf16.msra.mxu0 %v1880
        %2639 = vmatpush.bf16.msra.mxu0 %v1874
        %2640 = vmatpush.bf16.msra.mxu0 %v1868
        %2641 = vmatpush.bf16.msra.mxu0 %v1862
        %2642 = vmatpush.bf16.msra.mxu0 %v1856
        %2643 = vmatpush.bf16.msra.mxu0 %v1850
        %2644 = vmatmul.bf16.gmra.mxu0 %v438
        %v2645 = vpop.f32.mrf.mxu0
        %v2646 = vadd.f32 %v2633, %v2645
        %v2647 = vpop.f32.mrf.mxu0
        %2648 = vdwg.mxu0
        %v2649 = vpack.c.bf16 %v426, %v426
        %v2650 = vpack.c.bf16 %v427, %v427
        %v2651 = vpack.c.bf16 %v428, %v428
        %v2652 = vpack.c.bf16 %v429, %v429
        %v2653 = vpack.c.bf16 %v430, %v430
        %v2654 = vpack.c.bf16 %v431, %v431
        %v2655 = vld [vmem:[%s5] sm:$0xff]
        %v2656 = vld [vmem:[%s5 + $0x8] sm:$0xff]
        %v2657 = vld [vmem:[%s5 + $0x10] sm:$0xff]
        %v2658 = vld [vmem:[%s5 + $0x18] sm:$0xff]
        %v2659 = vld [vmem:[%s5 + $0x20] sm:$0xff]
        %v2660 = vld [vmem:[%s5 + $0x28] sm:$0xff]
        %v2661 = vld [vmem:[%s5 + $0x30] sm:$0xff]
        %v2662 = vld [vmem:[%s5 + $0x38] sm:$0xff]
        %v2663 = vld [vmem:[%s5 + $0x40] sm:$0xff]
        %v2664 = vld [vmem:[%s5 + $0x48] sm:$0xff]
        %v2665 = vld [vmem:[%s5 + $0x50] sm:$0xff]
        %v2666 = vld [vmem:[%s5 + $0x58] sm:$0xff]
        %v2667 = vld [vmem:[%s5 + $0x60] sm:$0xff]
        %v2668 = vld [vmem:[%s5 + $0x68] sm:$0xff]
        %v2669 = vld [vmem:[%s5 + $0x70] sm:$0xff]
        %v2670 = vld [vmem:[%s5 + $0x78] sm:$0xff]
        %v2671 = vld [vmem:[%s5 + $0x80] sm:$0xff]
        %v2672 = vld [vmem:[%s5 + $0x88] sm:$0xff]
        %v2673 = vld [vmem:[%s5 + $0x90] sm:$0xff]
        %v2674 = vld [vmem:[%s5 + $0x98] sm:$0xff]
        %v2675 = vld [vmem:[%s5 + $0xa0] sm:$0xff]
        %v2676 = vld [vmem:[%s5 + $0xa8] sm:$0xff]
        %v2677 = vld [vmem:[%s5 + $0xb0] sm:$0xff]
        %v2678 = vld [vmem:[%s5 + $0xb8] sm:$0xff]
        %v2679 = vld [vmem:[%s5 + $0xc0] sm:$0xff]
        %v2680 = vld [vmem:[%s5 + $0xc8] sm:$0xff]
        %v2681 = vld [vmem:[%s5 + $0xd0] sm:$0xff]
        %v2682 = vld [vmem:[%s5 + $0xd8] sm:$0xff]
        %v2683 = vld [vmem:[%s5 + $0xe0] sm:$0xff]
        %v2684 = vld [vmem:[%s5 + $0xe8] sm:$0xff]
        %v2685 = vld [vmem:[%s5 + $0xf0] sm:$0xff]
        %v2686 = vld [vmem:[%s5 + $0xf8] sm:$0xff]
        %v2687 = vld [vmem:[%s5 + $0x100] sm:$0xff]
        %v2688 = vld [vmem:[%s5 + $0x108] sm:$0xff]
        %v2689 = vld [vmem:[%s5 + $0x110] sm:$0xff]
        %v2690 = vld [vmem:[%s5 + $0x118] sm:$0xff]
        %v2691 = vld [vmem:[%s5 + $0x120] sm:$0xff]
        %v2692 = vld [vmem:[%s5 + $0x128] sm:$0xff]
        %v2693 = vld [vmem:[%s5 + $0x130] sm:$0xff]
        %v2694 = vld [vmem:[%s5 + $0x138] sm:$0xff]
        %v2695 = vld [vmem:[%s5 + $0x140] sm:$0xff]
        %v2696 = vld [vmem:[%s5 + $0x148] sm:$0xff]
        %v2697 = vld [vmem:[%s5 + $0x150] sm:$0xff]
        %v2698 = vld [vmem:[%s5 + $0x158] sm:$0xff]
        %v2699 = vld [vmem:[%s5 + $0x160] sm:$0xff]
        %v2700 = vld [vmem:[%s5 + $0x168] sm:$0xff]
        %v2701 = vld [vmem:[%s5 + $0x170] sm:$0xff]
        %v2702 = vld [vmem:[%s5 + $0x178] sm:$0xff]
        %v2703 = vld [vmem:[%s5 + $0x180] sm:$0xff]
        %v2704 = vld [vmem:[%s5 + $0x188] sm:$0xff]
        %v2705 = vld [vmem:[%s5 + $0x190] sm:$0xff]
        %v2706 = vld [vmem:[%s5 + $0x198] sm:$0xff]
        %v2707 = vld [vmem:[%s5 + $0x1a0] sm:$0xff]
        %v2708 = vld [vmem:[%s5 + $0x1a8] sm:$0xff]
        %v2709 = vld [vmem:[%s5 + $0x1b0] sm:$0xff]
        %v2710 = vld [vmem:[%s5 + $0x1b8] sm:$0xff]
        %v2711 = vld [vmem:[%s5 + $0x1c0] sm:$0xff]
        %v2712 = vld [vmem:[%s5 + $0x1c8] sm:$0xff]
        %v2713 = vld [vmem:[%s5 + $0x1d0] sm:$0xff]
        %v2714 = vld [vmem:[%s5 + $0x1d8] sm:$0xff]
        %v2715 = vld [vmem:[%s5 + $0x1e0] sm:$0xff]
        %v2716 = vld [vmem:[%s5 + $0x1e8] sm:$0xff]
        %v2717 = vld [vmem:[%s5 + $0x1f0] sm:$0xff]
        %v2718 = vld [vmem:[%s5 + $0x1f8] sm:$0xff]
        %v2719 = vld [vmem:[%s5 + $0x200] sm:$0xff]
        %v2720 = vld [vmem:[%s5 + $0x208] sm:$0xff]
        %v2721 = vld [vmem:[%s5 + $0x210] sm:$0xff]
        %v2722 = vld [vmem:[%s5 + $0x218] sm:$0xff]
        %v2723 = vld [vmem:[%s5 + $0x220] sm:$0xff]
        %v2724 = vld [vmem:[%s5 + $0x228] sm:$0xff]
        %v2725 = vld [vmem:[%s5 + $0x230] sm:$0xff]
        %v2726 = vld [vmem:[%s5 + $0x238] sm:$0xff]
        %v2727 = vld [vmem:[%s5 + $0x240] sm:$0xff]
        %v2728 = vld [vmem:[%s5 + $0x248] sm:$0xff]
        %v2729 = vld [vmem:[%s5 + $0x250] sm:$0xff]
        %v2730 = vld [vmem:[%s5 + $0x258] sm:$0xff]
        %v2731 = vld [vmem:[%s5 + $0x260] sm:$0xff]
        %v2732 = vld [vmem:[%s5 + $0x268] sm:$0xff]
        %v2733 = vld [vmem:[%s5 + $0x270] sm:$0xff]
        %v2734 = vld [vmem:[%s5 + $0x278] sm:$0xff]
        %v2735 = vld [vmem:[%s5 + $0x280] sm:$0xff]
        %v2736 = vld [vmem:[%s5 + $0x288] sm:$0xff]
        %v2737 = vld [vmem:[%s5 + $0x290] sm:$0xff]
        %v2738 = vld [vmem:[%s5 + $0x298] sm:$0xff]
        %v2739 = vld [vmem:[%s5 + $0x2a0] sm:$0xff]
        %v2740 = vld [vmem:[%s5 + $0x2a8] sm:$0xff]
        %v2741 = vld [vmem:[%s5 + $0x2b0] sm:$0xff]
        %v2742 = vld [vmem:[%s5 + $0x2b8] sm:$0xff]
        %v2743 = vld [vmem:[%s5 + $0x2c0] sm:$0xff]
        %v2744 = vld [vmem:[%s5 + $0x2c8] sm:$0xff]
        %v2745 = vld [vmem:[%s5 + $0x2d0] sm:$0xff]
        %v2746 = vld [vmem:[%s5 + $0x2d8] sm:$0xff]
        %v2747 = vld [vmem:[%s5 + $0x2e0] sm:$0xff]
        %v2748 = vld [vmem:[%s5 + $0x2e8] sm:$0xff]
        %v2749 = vld [vmem:[%s5 + $0x2f0] sm:$0xff]
        %v2750 = vld [vmem:[%s5 + $0x2f8] sm:$0xff]
        %v2751 = vld [vmem:[%s5 + $0x300] sm:$0xff]
        %v2752 = vld [vmem:[%s5 + $0x308] sm:$0xff]
        %v2753 = vld [vmem:[%s5 + $0x310] sm:$0xff]
        %v2754 = vld [vmem:[%s5 + $0x318] sm:$0xff]
        %v2755 = vld [vmem:[%s5 + $0x320] sm:$0xff]
        %v2756 = vld [vmem:[%s5 + $0x328] sm:$0xff]
        %v2757 = vld [vmem:[%s5 + $0x330] sm:$0xff]
        %v2758 = vld [vmem:[%s5 + $0x338] sm:$0xff]
        %v2759 = vld [vmem:[%s5 + $0x340] sm:$0xff]
        %v2760 = vld [vmem:[%s5 + $0x348] sm:$0xff]
        %v2761 = vld [vmem:[%s5 + $0x350] sm:$0xff]
        %v2762 = vld [vmem:[%s5 + $0x358] sm:$0xff]
        %v2763 = vld [vmem:[%s5 + $0x360] sm:$0xff]
        %v2764 = vld [vmem:[%s5 + $0x368] sm:$0xff]
        %v2765 = vld [vmem:[%s5 + $0x370] sm:$0xff]
        %v2766 = vld [vmem:[%s5 + $0x378] sm:$0xff]
        %v2767 = vld [vmem:[%s5 + $0x380] sm:$0xff]
        %v2768 = vld [vmem:[%s5 + $0x388] sm:$0xff]
        %v2769 = vld [vmem:[%s5 + $0x390] sm:$0xff]
        %v2770 = vld [vmem:[%s5 + $0x398] sm:$0xff]
        %v2771 = vld [vmem:[%s5 + $0x3a0] sm:$0xff]
        %v2772 = vld [vmem:[%s5 + $0x3a8] sm:$0xff]
        %v2773 = vld [vmem:[%s5 + $0x3b0] sm:$0xff]
        %v2774 = vld [vmem:[%s5 + $0x3b8] sm:$0xff]
        %v2775 = vld [vmem:[%s5 + $0x3c0] sm:$0xff]
        %v2776 = vld [vmem:[%s5 + $0x3c8] sm:$0xff]
        %v2777 = vld [vmem:[%s5 + $0x3d0] sm:$0xff]
        %v2778 = vld [vmem:[%s5 + $0x3d8] sm:$0xff]
        %v2779 = vld [vmem:[%s5 + $0x3e0] sm:$0xff]
        %v2780 = vld [vmem:[%s5 + $0x3e8] sm:$0xff]
        %v2781 = vld [vmem:[%s5 + $0x3f0] sm:$0xff]
        %v2782 = vld [vmem:[%s5 + $0x3f8] sm:$0xff]
        %v2783 = vld [vmem:[%s5 + $0x400] sm:$0xff]
        %v2784 = vld [vmem:[%s5 + $0x408] sm:$0xff]
        %v2785 = vld [vmem:[%s5 + $0x410] sm:$0xff]
        %v2786 = vld [vmem:[%s5 + $0x418] sm:$0xff]
        %v2787 = vld [vmem:[%s5 + $0x420] sm:$0xff]
        %v2788 = vld [vmem:[%s5 + $0x428] sm:$0xff]
        %v2789 = vld [vmem:[%s5 + $0x430] sm:$0xff]
        %v2790 = vld [vmem:[%s5 + $0x438] sm:$0xff]
        %v2791 = vld [vmem:[%s5 + $0x440] sm:$0xff]
        %v2792 = vld [vmem:[%s5 + $0x448] sm:$0xff]
        %v2793 = vld [vmem:[%s5 + $0x450] sm:$0xff]
        %v2794 = vld [vmem:[%s5 + $0x458] sm:$0xff]
        %v2795 = vld [vmem:[%s5 + $0x460] sm:$0xff]
        %v2796 = vld [vmem:[%s5 + $0x468] sm:$0xff]
        %v2797 = vld [vmem:[%s5 + $0x470] sm:$0xff]
        %v2798 = vld [vmem:[%s5 + $0x478] sm:$0xff]
        %v2799 = vld [vmem:[%s5 + $0x480] sm:$0xff]
        %v2800 = vld [vmem:[%s5 + $0x488] sm:$0xff]
        %v2801 = vld [vmem:[%s5 + $0x490] sm:$0xff]
        %v2802 = vld [vmem:[%s5 + $0x498] sm:$0xff]
        %v2803 = vld [vmem:[%s5 + $0x4a0] sm:$0xff]
        %v2804 = vld [vmem:[%s5 + $0x4a8] sm:$0xff]
        %v2805 = vld [vmem:[%s5 + $0x4b0] sm:$0xff]
        %v2806 = vld [vmem:[%s5 + $0x4b8] sm:$0xff]
        %v2807 = vld [vmem:[%s5 + $0x4c0] sm:$0xff]
        %v2808 = vld [vmem:[%s5 + $0x4c8] sm:$0xff]
        %v2809 = vld [vmem:[%s5 + $0x4d0] sm:$0xff]
        %v2810 = vld [vmem:[%s5 + $0x4d8] sm:$0xff]
        %v2811 = vld [vmem:[%s5 + $0x4e0] sm:$0xff]
        %v2812 = vld [vmem:[%s5 + $0x4e8] sm:$0xff]
        %v2813 = vld [vmem:[%s5 + $0x4f0] sm:$0xff]
        %v2814 = vld [vmem:[%s5 + $0x4f8] sm:$0xff]
        %v2815 = vld [vmem:[%s5 + $0x500] sm:$0xff]
        %v2816 = vld [vmem:[%s5 + $0x508] sm:$0xff]
        %v2817 = vld [vmem:[%s5 + $0x510] sm:$0xff]
        %v2818 = vld [vmem:[%s5 + $0x518] sm:$0xff]
        %v2819 = vld [vmem:[%s5 + $0x520] sm:$0xff]
        %v2820 = vld [vmem:[%s5 + $0x528] sm:$0xff]
        %v2821 = vld [vmem:[%s5 + $0x530] sm:$0xff]
        %v2822 = vld [vmem:[%s5 + $0x538] sm:$0xff]
        %v2823 = vld [vmem:[%s5 + $0x540] sm:$0xff]
        %v2824 = vld [vmem:[%s5 + $0x548] sm:$0xff]
        %v2825 = vld [vmem:[%s5 + $0x550] sm:$0xff]
        %v2826 = vld [vmem:[%s5 + $0x558] sm:$0xff]
        %v2827 = vld [vmem:[%s5 + $0x560] sm:$0xff]
        %v2828 = vld [vmem:[%s5 + $0x568] sm:$0xff]
        %v2829 = vld [vmem:[%s5 + $0x570] sm:$0xff]
        %v2830 = vld [vmem:[%s5 + $0x578] sm:$0xff]
        %v2831 = vld [vmem:[%s5 + $0x580] sm:$0xff]
        %v2832 = vld [vmem:[%s5 + $0x588] sm:$0xff]
        %v2833 = vld [vmem:[%s5 + $0x590] sm:$0xff]
        %v2834 = vld [vmem:[%s5 + $0x598] sm:$0xff]
        %v2835 = vld [vmem:[%s5 + $0x5a0] sm:$0xff]
        %v2836 = vld [vmem:[%s5 + $0x5a8] sm:$0xff]
        %v2837 = vld [vmem:[%s5 + $0x5b0] sm:$0xff]
        %v2838 = vld [vmem:[%s5 + $0x5b8] sm:$0xff]
        %v2839 = vld [vmem:[%s5 + $0x5c0] sm:$0xff]
        %v2840 = vld [vmem:[%s5 + $0x5c8] sm:$0xff]
        %v2841 = vld [vmem:[%s5 + $0x5d0] sm:$0xff]
        %v2842 = vld [vmem:[%s5 + $0x5d8] sm:$0xff]
        %v2843 = vld [vmem:[%s5 + $0x5e0] sm:$0xff]
        %v2844 = vld [vmem:[%s5 + $0x5e8] sm:$0xff]
        %v2845 = vld [vmem:[%s5 + $0x5f0] sm:$0xff]
        %v2846 = vld [vmem:[%s5 + $0x5f8] sm:$0xff]
        %v2847 = vld [vmem:[%s5 + $0x600] sm:$0xff]
        %v2848 = vld [vmem:[%s5 + $0x608] sm:$0xff]
        %v2849 = vld [vmem:[%s5 + $0x610] sm:$0xff]
        %v2850 = vld [vmem:[%s5 + $0x618] sm:$0xff]
        %v2851 = vld [vmem:[%s5 + $0x620] sm:$0xff]
        %v2852 = vld [vmem:[%s5 + $0x628] sm:$0xff]
        %v2853 = vld [vmem:[%s5 + $0x630] sm:$0xff]
        %v2854 = vld [vmem:[%s5 + $0x638] sm:$0xff]
        %v2855 = vld [vmem:[%s5 + $0x640] sm:$0xff]
        %v2856 = vld [vmem:[%s5 + $0x648] sm:$0xff]
        %v2857 = vld [vmem:[%s5 + $0x650] sm:$0xff]
        %v2858 = vld [vmem:[%s5 + $0x658] sm:$0xff]
        %v2859 = vld [vmem:[%s5 + $0x660] sm:$0xff]
        %v2860 = vld [vmem:[%s5 + $0x668] sm:$0xff]
        %v2861 = vld [vmem:[%s5 + $0x670] sm:$0xff]
        %v2862 = vld [vmem:[%s5 + $0x678] sm:$0xff]
        %v2863 = vld [vmem:[%s5 + $0x680] sm:$0xff]
        %v2864 = vld [vmem:[%s5 + $0x688] sm:$0xff]
        %v2865 = vld [vmem:[%s5 + $0x690] sm:$0xff]
        %v2866 = vld [vmem:[%s5 + $0x698] sm:$0xff]
        %v2867 = vld [vmem:[%s5 + $0x6a0] sm:$0xff]
        %v2868 = vld [vmem:[%s5 + $0x6a8] sm:$0xff]
        %v2869 = vld [vmem:[%s5 + $0x6b0] sm:$0xff]
        %v2870 = vld [vmem:[%s5 + $0x6b8] sm:$0xff]
        %v2871 = vld [vmem:[%s5 + $0x6c0] sm:$0xff]
        %v2872 = vld [vmem:[%s5 + $0x6c8] sm:$0xff]
        %v2873 = vld [vmem:[%s5 + $0x6d0] sm:$0xff]
        %v2874 = vld [vmem:[%s5 + $0x6d8] sm:$0xff]
        %v2875 = vld [vmem:[%s5 + $0x6e0] sm:$0xff]
        %v2876 = vld [vmem:[%s5 + $0x6e8] sm:$0xff]
        %v2877 = vld [vmem:[%s5 + $0x6f0] sm:$0xff]
        %v2878 = vld [vmem:[%s5 + $0x6f8] sm:$0xff]
        %v2879 = vld [vmem:[%s5 + $0x700] sm:$0xff]
        %v2880 = vld [vmem:[%s5 + $0x708] sm:$0xff]
        %v2881 = vld [vmem:[%s5 + $0x710] sm:$0xff]
        %v2882 = vld [vmem:[%s5 + $0x718] sm:$0xff]
        %v2883 = vld [vmem:[%s5 + $0x720] sm:$0xff]
        %v2884 = vld [vmem:[%s5 + $0x728] sm:$0xff]
        %v2885 = vld [vmem:[%s5 + $0x730] sm:$0xff]
        %v2886 = vld [vmem:[%s5 + $0x738] sm:$0xff]
        %v2887 = vld [vmem:[%s5 + $0x740] sm:$0xff]
        %v2888 = vld [vmem:[%s5 + $0x748] sm:$0xff]
        %v2889 = vld [vmem:[%s5 + $0x750] sm:$0xff]
        %v2890 = vld [vmem:[%s5 + $0x758] sm:$0xff]
        %v2891 = vld [vmem:[%s5 + $0x760] sm:$0xff]
        %v2892 = vld [vmem:[%s5 + $0x768] sm:$0xff]
        %v2893 = vld [vmem:[%s5 + $0x770] sm:$0xff]
        %v2894 = vld [vmem:[%s5 + $0x778] sm:$0xff]
        %v2895 = vld [vmem:[%s5 + $0x780] sm:$0xff]
        %v2896 = vld [vmem:[%s5 + $0x788] sm:$0xff]
        %v2897 = vld [vmem:[%s5 + $0x790] sm:$0xff]
        %v2898 = vld [vmem:[%s5 + $0x798] sm:$0xff]
        %v2899 = vld [vmem:[%s5 + $0x7a0] sm:$0xff]
        %v2900 = vld [vmem:[%s5 + $0x7a8] sm:$0xff]
        %v2901 = vld [vmem:[%s5 + $0x7b0] sm:$0xff]
        %v2902 = vld [vmem:[%s5 + $0x7b8] sm:$0xff]
        %v2903 = vld [vmem:[%s5 + $0x7c0] sm:$0xff]
        %v2904 = vld [vmem:[%s5 + $0x7c8] sm:$0xff]
        %v2905 = vld [vmem:[%s5 + $0x7d0] sm:$0xff]
        %v2906 = vld [vmem:[%s5 + $0x7d8] sm:$0xff]
        %v2907 = vld [vmem:[%s5 + $0x7e0] sm:$0xff]
        %v2908 = vld [vmem:[%s5 + $0x7e8] sm:$0xff]
        %v2909 = vld [vmem:[%s5 + $0x7f0] sm:$0xff]
        %v2910 = vld [vmem:[%s5 + $0x7f8] sm:$0xff]
        %v2911 = vld [vmem:[%s5 + $0x800] sm:$0xff]
        %v2912 = vld [vmem:[%s5 + $0x808] sm:$0xff]
        %v2913 = vld [vmem:[%s5 + $0x810] sm:$0xff]
        %v2914 = vld [vmem:[%s5 + $0x818] sm:$0xff]
        %v2915 = vld [vmem:[%s5 + $0x820] sm:$0xff]
        %v2916 = vld [vmem:[%s5 + $0x828] sm:$0xff]
        %v2917 = vld [vmem:[%s5 + $0x830] sm:$0xff]
        %v2918 = vld [vmem:[%s5 + $0x838] sm:$0xff]
        %v2919 = vld [vmem:[%s5 + $0x840] sm:$0xff]
        %v2920 = vld [vmem:[%s5 + $0x848] sm:$0xff]
        %v2921 = vld [vmem:[%s5 + $0x850] sm:$0xff]
        %v2922 = vld [vmem:[%s5 + $0x858] sm:$0xff]
        %v2923 = vld [vmem:[%s5 + $0x860] sm:$0xff]
        %v2924 = vld [vmem:[%s5 + $0x868] sm:$0xff]
        %v2925 = vld [vmem:[%s5 + $0x870] sm:$0xff]
        %v2926 = vld [vmem:[%s5 + $0x878] sm:$0xff]
        %v2927 = vld [vmem:[%s5 + $0x880] sm:$0xff]
        %v2928 = vld [vmem:[%s5 + $0x888] sm:$0xff]
        %v2929 = vld [vmem:[%s5 + $0x890] sm:$0xff]
        %v2930 = vld [vmem:[%s5 + $0x898] sm:$0xff]
        %v2931 = vld [vmem:[%s5 + $0x8a0] sm:$0xff]
        %v2932 = vld [vmem:[%s5 + $0x8a8] sm:$0xff]
        %v2933 = vld [vmem:[%s5 + $0x8b0] sm:$0xff]
        %v2934 = vld [vmem:[%s5 + $0x8b8] sm:$0xff]
        %v2935 = vld [vmem:[%s5 + $0x8c0] sm:$0xff]
        %v2936 = vld [vmem:[%s5 + $0x8c8] sm:$0xff]
        %v2937 = vld [vmem:[%s5 + $0x8d0] sm:$0xff]
        %v2938 = vld [vmem:[%s5 + $0x8d8] sm:$0xff]
        %v2939 = vld [vmem:[%s5 + $0x8e0] sm:$0xff]
        %v2940 = vld [vmem:[%s5 + $0x8e8] sm:$0xff]
        %v2941 = vld [vmem:[%s5 + $0x8f0] sm:$0xff]
        %v2942 = vld [vmem:[%s5 + $0x8f8] sm:$0xff]
        %v2943 = vld [vmem:[%s5 + $0x900] sm:$0xff]
        %v2944 = vld [vmem:[%s5 + $0x908] sm:$0xff]
        %v2945 = vld [vmem:[%s5 + $0x910] sm:$0xff]
        %v2946 = vld [vmem:[%s5 + $0x918] sm:$0xff]
        %v2947 = vld [vmem:[%s5 + $0x920] sm:$0xff]
        %v2948 = vld [vmem:[%s5 + $0x928] sm:$0xff]
        %v2949 = vld [vmem:[%s5 + $0x930] sm:$0xff]
        %v2950 = vld [vmem:[%s5 + $0x938] sm:$0xff]
        %v2951 = vld [vmem:[%s5 + $0x940] sm:$0xff]
        %v2952 = vld [vmem:[%s5 + $0x948] sm:$0xff]
        %v2953 = vld [vmem:[%s5 + $0x950] sm:$0xff]
        %v2954 = vld [vmem:[%s5 + $0x958] sm:$0xff]
        %v2955 = vld [vmem:[%s5 + $0x960] sm:$0xff]
        %v2956 = vld [vmem:[%s5 + $0x968] sm:$0xff]
        %v2957 = vld [vmem:[%s5 + $0x970] sm:$0xff]
        %v2958 = vld [vmem:[%s5 + $0x978] sm:$0xff]
        %v2959 = vld [vmem:[%s5 + $0x980] sm:$0xff]
        %v2960 = vld [vmem:[%s5 + $0x988] sm:$0xff]
        %v2961 = vld [vmem:[%s5 + $0x990] sm:$0xff]
        %v2962 = vld [vmem:[%s5 + $0x998] sm:$0xff]
        %v2963 = vld [vmem:[%s5 + $0x9a0] sm:$0xff]
        %v2964 = vld [vmem:[%s5 + $0x9a8] sm:$0xff]
        %v2965 = vld [vmem:[%s5 + $0x9b0] sm:$0xff]
        %v2966 = vld [vmem:[%s5 + $0x9b8] sm:$0xff]
        %v2967 = vld [vmem:[%s5 + $0x9c0] sm:$0xff]
        %v2968 = vld [vmem:[%s5 + $0x9c8] sm:$0xff]
        %v2969 = vld [vmem:[%s5 + $0x9d0] sm:$0xff]
        %v2970 = vld [vmem:[%s5 + $0x9d8] sm:$0xff]
        %v2971 = vld [vmem:[%s5 + $0x9e0] sm:$0xff]
        %v2972 = vld [vmem:[%s5 + $0x9e8] sm:$0xff]
        %v2973 = vld [vmem:[%s5 + $0x9f0] sm:$0xff]
        %v2974 = vld [vmem:[%s5 + $0x9f8] sm:$0xff]
        %v2975 = vld [vmem:[%s5 + $0xa00] sm:$0xff]
        %v2976 = vld [vmem:[%s5 + $0xa08] sm:$0xff]
        %v2977 = vld [vmem:[%s5 + $0xa10] sm:$0xff]
        %v2978 = vld [vmem:[%s5 + $0xa18] sm:$0xff]
        %v2979 = vld [vmem:[%s5 + $0xa20] sm:$0xff]
        %v2980 = vld [vmem:[%s5 + $0xa28] sm:$0xff]
        %v2981 = vld [vmem:[%s5 + $0xa30] sm:$0xff]
        %v2982 = vld [vmem:[%s5 + $0xa38] sm:$0xff]
        %v2983 = vld [vmem:[%s5 + $0xa40] sm:$0xff]
        %v2984 = vld [vmem:[%s5 + $0xa48] sm:$0xff]
        %v2985 = vld [vmem:[%s5 + $0xa50] sm:$0xff]
        %v2986 = vld [vmem:[%s5 + $0xa58] sm:$0xff]
        %v2987 = vld [vmem:[%s5 + $0xa60] sm:$0xff]
        %v2988 = vld [vmem:[%s5 + $0xa68] sm:$0xff]
        %v2989 = vld [vmem:[%s5 + $0xa70] sm:$0xff]
        %v2990 = vld [vmem:[%s5 + $0xa78] sm:$0xff]
        %v2991 = vld [vmem:[%s5 + $0xa80] sm:$0xff]
        %v2992 = vld [vmem:[%s5 + $0xa88] sm:$0xff]
        %v2993 = vld [vmem:[%s5 + $0xa90] sm:$0xff]
        %v2994 = vld [vmem:[%s5 + $0xa98] sm:$0xff]
        %v2995 = vld [vmem:[%s5 + $0xaa0] sm:$0xff]
        %v2996 = vld [vmem:[%s5 + $0xaa8] sm:$0xff]
        %v2997 = vld [vmem:[%s5 + $0xab0] sm:$0xff]
        %v2998 = vld [vmem:[%s5 + $0xab8] sm:$0xff]
        %v2999 = vld [vmem:[%s5 + $0xac0] sm:$0xff]
        %v3000 = vld [vmem:[%s5 + $0xac8] sm:$0xff]
        %v3001 = vld [vmem:[%s5 + $0xad0] sm:$0xff]
        %v3002 = vld [vmem:[%s5 + $0xad8] sm:$0xff]
        %v3003 = vld [vmem:[%s5 + $0xae0] sm:$0xff]
        %v3004 = vld [vmem:[%s5 + $0xae8] sm:$0xff]
        %v3005 = vld [vmem:[%s5 + $0xaf0] sm:$0xff]
        %v3006 = vld [vmem:[%s5 + $0xaf8] sm:$0xff]
        %v3007 = vld [vmem:[%s5 + $0xb00] sm:$0xff]
        %v3008 = vld [vmem:[%s5 + $0xb08] sm:$0xff]
        %v3009 = vld [vmem:[%s5 + $0xb10] sm:$0xff]
        %v3010 = vld [vmem:[%s5 + $0xb18] sm:$0xff]
        %v3011 = vld [vmem:[%s5 + $0xb20] sm:$0xff]
        %v3012 = vld [vmem:[%s5 + $0xb28] sm:$0xff]
        %v3013 = vld [vmem:[%s5 + $0xb30] sm:$0xff]
        %v3014 = vld [vmem:[%s5 + $0xb38] sm:$0xff]
        %v3015 = vld [vmem:[%s5 + $0xb40] sm:$0xff]
        %v3016 = vld [vmem:[%s5 + $0xb48] sm:$0xff]
        %v3017 = vld [vmem:[%s5 + $0xb50] sm:$0xff]
        %v3018 = vld [vmem:[%s5 + $0xb58] sm:$0xff]
        %v3019 = vld [vmem:[%s5 + $0xb60] sm:$0xff]
        %v3020 = vld [vmem:[%s5 + $0xb68] sm:$0xff]
        %v3021 = vld [vmem:[%s5 + $0xb70] sm:$0xff]
        %v3022 = vld [vmem:[%s5 + $0xb78] sm:$0xff]
        %v3023 = vld [vmem:[%s5 + $0xb80] sm:$0xff]
        %v3024 = vld [vmem:[%s5 + $0xb88] sm:$0xff]
        %v3025 = vld [vmem:[%s5 + $0xb90] sm:$0xff]
        %v3026 = vld [vmem:[%s5 + $0xb98] sm:$0xff]
        %v3027 = vld [vmem:[%s5 + $0xba0] sm:$0xff]
        %v3028 = vld [vmem:[%s5 + $0xba8] sm:$0xff]
        %v3029 = vld [vmem:[%s5 + $0xbb0] sm:$0xff]
        %v3030 = vld [vmem:[%s5 + $0xbb8] sm:$0xff]
        %v3031 = vld [vmem:[%s5 + $0xbc0] sm:$0xff]
        %v3032 = vld [vmem:[%s5 + $0xbc8] sm:$0xff]
        %v3033 = vld [vmem:[%s5 + $0xbd0] sm:$0xff]
        %v3034 = vld [vmem:[%s5 + $0xbd8] sm:$0xff]
        %v3035 = vld [vmem:[%s5 + $0xbe0] sm:$0xff]
        %v3036 = vld [vmem:[%s5 + $0xbe8] sm:$0xff]
        %v3037 = vld [vmem:[%s5 + $0xbf0] sm:$0xff]
        %v3038 = vld [vmem:[%s5 + $0xbf8] sm:$0xff]
        %v3039 = vld [vmem:[%s5 + $0xc00] sm:$0xff]
        %v3040 = vld [vmem:[%s5 + $0xc08] sm:$0xff]
        %v3041 = vld [vmem:[%s5 + $0xc10] sm:$0xff]
        %v3042 = vld [vmem:[%s5 + $0xc18] sm:$0xff]
        %v3043 = vld [vmem:[%s5 + $0xc20] sm:$0xff]
        %v3044 = vld [vmem:[%s5 + $0xc28] sm:$0xff]
        %v3045 = vld [vmem:[%s5 + $0xc30] sm:$0xff]
        %v3046 = vld [vmem:[%s5 + $0xc38] sm:$0xff]
        %v3047 = vld [vmem:[%s5 + $0xc40] sm:$0xff]
        %v3048 = vld [vmem:[%s5 + $0xc48] sm:$0xff]
        %v3049 = vld [vmem:[%s5 + $0xc50] sm:$0xff]
        %v3050 = vld [vmem:[%s5 + $0xc58] sm:$0xff]
        %v3051 = vld [vmem:[%s5 + $0xc60] sm:$0xff]
        %v3052 = vld [vmem:[%s5 + $0xc68] sm:$0xff]
        %v3053 = vld [vmem:[%s5 + $0xc70] sm:$0xff]
        %v3054 = vld [vmem:[%s5 + $0xc78] sm:$0xff]
        %v3055 = vld [vmem:[%s5 + $0xc80] sm:$0xff]
        %v3056 = vld [vmem:[%s5 + $0xc88] sm:$0xff]
        %v3057 = vld [vmem:[%s5 + $0xc90] sm:$0xff]
        %v3058 = vld [vmem:[%s5 + $0xc98] sm:$0xff]
        %v3059 = vld [vmem:[%s5 + $0xca0] sm:$0xff]
        %v3060 = vld [vmem:[%s5 + $0xca8] sm:$0xff]
        %v3061 = vld [vmem:[%s5 + $0xcb0] sm:$0xff]
        %v3062 = vld [vmem:[%s5 + $0xcb8] sm:$0xff]
        %v3063 = vld [vmem:[%s5 + $0xcc0] sm:$0xff]
        %v3064 = vld [vmem:[%s5 + $0xcc8] sm:$0xff]
        %v3065 = vld [vmem:[%s5 + $0xcd0] sm:$0xff]
        %v3066 = vld [vmem:[%s5 + $0xcd8] sm:$0xff]
        %v3067 = vld [vmem:[%s5 + $0xce0] sm:$0xff]
        %v3068 = vld [vmem:[%s5 + $0xce8] sm:$0xff]
        %v3069 = vld [vmem:[%s5 + $0xcf0] sm:$0xff]
        %v3070 = vld [vmem:[%s5 + $0xcf8] sm:$0xff]
        %v3071 = vld [vmem:[%s5 + $0xd00] sm:$0xff]
        %v3072 = vld [vmem:[%s5 + $0xd08] sm:$0xff]
        %v3073 = vld [vmem:[%s5 + $0xd10] sm:$0xff]
        %v3074 = vld [vmem:[%s5 + $0xd18] sm:$0xff]
        %v3075 = vld [vmem:[%s5 + $0xd20] sm:$0xff]
        %v3076 = vld [vmem:[%s5 + $0xd28] sm:$0xff]
        %v3077 = vld [vmem:[%s5 + $0xd30] sm:$0xff]
        %v3078 = vld [vmem:[%s5 + $0xd38] sm:$0xff]
        %v3079 = vld [vmem:[%s5 + $0xd40] sm:$0xff]
        %v3080 = vld [vmem:[%s5 + $0xd48] sm:$0xff]
        %v3081 = vld [vmem:[%s5 + $0xd50] sm:$0xff]
        %v3082 = vld [vmem:[%s5 + $0xd58] sm:$0xff]
        %v3083 = vld [vmem:[%s5 + $0xd60] sm:$0xff]
        %v3084 = vld [vmem:[%s5 + $0xd68] sm:$0xff]
        %v3085 = vld [vmem:[%s5 + $0xd70] sm:$0xff]
        %v3086 = vld [vmem:[%s5 + $0xd78] sm:$0xff]
        %v3087 = vld [vmem:[%s5 + $0xd80] sm:$0xff]
        %v3088 = vld [vmem:[%s5 + $0xd88] sm:$0xff]
        %v3089 = vld [vmem:[%s5 + $0xd90] sm:$0xff]
        %v3090 = vld [vmem:[%s5 + $0xd98] sm:$0xff]
        %v3091 = vld [vmem:[%s5 + $0xda0] sm:$0xff]
        %v3092 = vld [vmem:[%s5 + $0xda8] sm:$0xff]
        %v3093 = vld [vmem:[%s5 + $0xdb0] sm:$0xff]
        %v3094 = vld [vmem:[%s5 + $0xdb8] sm:$0xff]
        %v3095 = vld [vmem:[%s5 + $0xdc0] sm:$0xff]
        %v3096 = vld [vmem:[%s5 + $0xdc8] sm:$0xff]
        %v3097 = vld [vmem:[%s5 + $0xdd0] sm:$0xff]
        %v3098 = vld [vmem:[%s5 + $0xdd8] sm:$0xff]
        %v3099 = vld [vmem:[%s5 + $0xde0] sm:$0xff]
        %v3100 = vld [vmem:[%s5 + $0xde8] sm:$0xff]
        %v3101 = vld [vmem:[%s5 + $0xdf0] sm:$0xff]
        %v3102 = vld [vmem:[%s5 + $0xdf8] sm:$0xff]
        %v3103 = vld [vmem:[%s5 + $0xe00] sm:$0xff]
        %v3104 = vld [vmem:[%s5 + $0xe08] sm:$0xff]
        %v3105 = vld [vmem:[%s5 + $0xe10] sm:$0xff]
        %v3106 = vld [vmem:[%s5 + $0xe18] sm:$0xff]
        %v3107 = vld [vmem:[%s5 + $0xe20] sm:$0xff]
        %v3108 = vld [vmem:[%s5 + $0xe28] sm:$0xff]
        %v3109 = vld [vmem:[%s5 + $0xe30] sm:$0xff]
        %v3110 = vld [vmem:[%s5 + $0xe38] sm:$0xff]
        %v3111 = vld [vmem:[%s5 + $0xe40] sm:$0xff]
        %v3112 = vld [vmem:[%s5 + $0xe48] sm:$0xff]
        %v3113 = vld [vmem:[%s5 + $0xe50] sm:$0xff]
        %v3114 = vld [vmem:[%s5 + $0xe58] sm:$0xff]
        %v3115 = vld [vmem:[%s5 + $0xe60] sm:$0xff]
        %v3116 = vld [vmem:[%s5 + $0xe68] sm:$0xff]
        %v3117 = vld [vmem:[%s5 + $0xe70] sm:$0xff]
        %v3118 = vld [vmem:[%s5 + $0xe78] sm:$0xff]
        %v3119 = vld [vmem:[%s5 + $0xe80] sm:$0xff]
        %v3120 = vld [vmem:[%s5 + $0xe88] sm:$0xff]
        %v3121 = vld [vmem:[%s5 + $0xe90] sm:$0xff]
        %v3122 = vld [vmem:[%s5 + $0xe98] sm:$0xff]
        %v3123 = vld [vmem:[%s5 + $0xea0] sm:$0xff]
        %v3124 = vld [vmem:[%s5 + $0xea8] sm:$0xff]
        %v3125 = vld [vmem:[%s5 + $0xeb0] sm:$0xff]
        %v3126 = vld [vmem:[%s5 + $0xeb8] sm:$0xff]
        %v3127 = vld [vmem:[%s5 + $0xec0] sm:$0xff]
        %v3128 = vld [vmem:[%s5 + $0xec8] sm:$0xff]
        %v3129 = vld [vmem:[%s5 + $0xed0] sm:$0xff]
        %v3130 = vld [vmem:[%s5 + $0xed8] sm:$0xff]
        %v3131 = vld [vmem:[%s5 + $0xee0] sm:$0xff]
        %v3132 = vld [vmem:[%s5 + $0xee8] sm:$0xff]
        %v3133 = vld [vmem:[%s5 + $0xef0] sm:$0xff]
        %v3134 = vld [vmem:[%s5 + $0xef8] sm:$0xff]
        %v3135 = vld [vmem:[%s5 + $0xf00] sm:$0xff]
        %v3136 = vld [vmem:[%s5 + $0xf08] sm:$0xff]
        %v3137 = vld [vmem:[%s5 + $0xf10] sm:$0xff]
        %v3138 = vld [vmem:[%s5 + $0xf18] sm:$0xff]
        %v3139 = vld [vmem:[%s5 + $0xf20] sm:$0xff]
        %v3140 = vld [vmem:[%s5 + $0xf28] sm:$0xff]
        %v3141 = vld [vmem:[%s5 + $0xf30] sm:$0xff]
        %v3142 = vld [vmem:[%s5 + $0xf38] sm:$0xff]
        %v3143 = vld [vmem:[%s5 + $0xf40] sm:$0xff]
        %v3144 = vld [vmem:[%s5 + $0xf48] sm:$0xff]
        %v3145 = vld [vmem:[%s5 + $0xf50] sm:$0xff]
        %v3146 = vld [vmem:[%s5 + $0xf58] sm:$0xff]
        %v3147 = vld [vmem:[%s5 + $0xf60] sm:$0xff]
        %v3148 = vld [vmem:[%s5 + $0xf68] sm:$0xff]
        %v3149 = vld [vmem:[%s5 + $0xf70] sm:$0xff]
        %v3150 = vld [vmem:[%s5 + $0xf78] sm:$0xff]
        %v3151 = vld [vmem:[%s5 + $0xf80] sm:$0xff]
        %v3152 = vld [vmem:[%s5 + $0xf88] sm:$0xff]
        %v3153 = vld [vmem:[%s5 + $0xf90] sm:$0xff]
        %v3154 = vld [vmem:[%s5 + $0xf98] sm:$0xff]
        %v3155 = vld [vmem:[%s5 + $0xfa0] sm:$0xff]
        %v3156 = vld [vmem:[%s5 + $0xfa8] sm:$0xff]
        %v3157 = vld [vmem:[%s5 + $0xfb0] sm:$0xff]
        %v3158 = vld [vmem:[%s5 + $0xfb8] sm:$0xff]
        %v3159 = vld [vmem:[%s5 + $0xfc0] sm:$0xff]
        %v3160 = vld [vmem:[%s5 + $0xfc8] sm:$0xff]
        %v3161 = vld [vmem:[%s5 + $0xfd0] sm:$0xff]
        %v3162 = vld [vmem:[%s5 + $0xfd8] sm:$0xff]
        %v3163 = vld [vmem:[%s5 + $0xfe0] sm:$0xff]
        %v3164 = vld [vmem:[%s5 + $0xfe8] sm:$0xff]
        %v3165 = vld [vmem:[%s5 + $0xff0] sm:$0xff]
        %v3166 = vld [vmem:[%s5 + $0xff8] sm:$0xff]
        %v3167 = vld [vmem:[%s5 + $0x1000] sm:$0xff]
        %v3168 = vld [vmem:[%s5 + $0x1008] sm:$0xff]
        %v3169 = vld [vmem:[%s5 + $0x1010] sm:$0xff]
        %v3170 = vld [vmem:[%s5 + $0x1018] sm:$0xff]
        %v3171 = vld [vmem:[%s5 + $0x1020] sm:$0xff]
        %v3172 = vld [vmem:[%s5 + $0x1028] sm:$0xff]
        %v3173 = vld [vmem:[%s5 + $0x1030] sm:$0xff]
        %v3174 = vld [vmem:[%s5 + $0x1038] sm:$0xff]
        %v3175 = vld [vmem:[%s5 + $0x1040] sm:$0xff]
        %v3176 = vld [vmem:[%s5 + $0x1048] sm:$0xff]
        %v3177 = vld [vmem:[%s5 + $0x1050] sm:$0xff]
        %v3178 = vld [vmem:[%s5 + $0x1058] sm:$0xff]
        %v3179 = vld [vmem:[%s5 + $0x1060] sm:$0xff]
        %v3180 = vld [vmem:[%s5 + $0x1068] sm:$0xff]
        %v3181 = vld [vmem:[%s5 + $0x1070] sm:$0xff]
        %v3182 = vld [vmem:[%s5 + $0x1078] sm:$0xff]
        %v3183 = vld [vmem:[%s5 + $0x1080] sm:$0xff]
        %v3184 = vld [vmem:[%s5 + $0x1088] sm:$0xff]
        %v3185 = vld [vmem:[%s5 + $0x1090] sm:$0xff]
        %v3186 = vld [vmem:[%s5 + $0x1098] sm:$0xff]
        %v3187 = vld [vmem:[%s5 + $0x10a0] sm:$0xff]
        %v3188 = vld [vmem:[%s5 + $0x10a8] sm:$0xff]
        %v3189 = vld [vmem:[%s5 + $0x10b0] sm:$0xff]
        %v3190 = vld [vmem:[%s5 + $0x10b8] sm:$0xff]
        %v3191 = vld [vmem:[%s5 + $0x10c0] sm:$0xff]
        %v3192 = vld [vmem:[%s5 + $0x10c8] sm:$0xff]
        %v3193 = vld [vmem:[%s5 + $0x10d0] sm:$0xff]
        %v3194 = vld [vmem:[%s5 + $0x10d8] sm:$0xff]
        %v3195 = vld [vmem:[%s5 + $0x10e0] sm:$0xff]
        %v3196 = vld [vmem:[%s5 + $0x10e8] sm:$0xff]
        %v3197 = vld [vmem:[%s5 + $0x10f0] sm:$0xff]
        %v3198 = vld [vmem:[%s5 + $0x10f8] sm:$0xff]
        %v3199 = vld [vmem:[%s5 + $0x1100] sm:$0xff]
        %v3200 = vld [vmem:[%s5 + $0x1108] sm:$0xff]
        %v3201 = vld [vmem:[%s5 + $0x1110] sm:$0xff]
        %v3202 = vld [vmem:[%s5 + $0x1118] sm:$0xff]
        %v3203 = vld [vmem:[%s5 + $0x1120] sm:$0xff]
        %v3204 = vld [vmem:[%s5 + $0x1128] sm:$0xff]
        %v3205 = vld [vmem:[%s5 + $0x1130] sm:$0xff]
        %v3206 = vld [vmem:[%s5 + $0x1138] sm:$0xff]
        %v3207 = vld [vmem:[%s5 + $0x1140] sm:$0xff]
        %v3208 = vld [vmem:[%s5 + $0x1148] sm:$0xff]
        %v3209 = vld [vmem:[%s5 + $0x1150] sm:$0xff]
        %v3210 = vld [vmem:[%s5 + $0x1158] sm:$0xff]
        %v3211 = vld [vmem:[%s5 + $0x1160] sm:$0xff]
        %v3212 = vld [vmem:[%s5 + $0x1168] sm:$0xff]
        %v3213 = vld [vmem:[%s5 + $0x1170] sm:$0xff]
        %v3214 = vld [vmem:[%s5 + $0x1178] sm:$0xff]
        %v3215 = vld [vmem:[%s5 + $0x1180] sm:$0xff]
        %v3216 = vld [vmem:[%s5 + $0x1188] sm:$0xff]
        %v3217 = vld [vmem:[%s5 + $0x1190] sm:$0xff]
        %v3218 = vld [vmem:[%s5 + $0x1198] sm:$0xff]
        %v3219 = vld [vmem:[%s5 + $0x11a0] sm:$0xff]
        %v3220 = vld [vmem:[%s5 + $0x11a8] sm:$0xff]
        %v3221 = vld [vmem:[%s5 + $0x11b0] sm:$0xff]
        %v3222 = vld [vmem:[%s5 + $0x11b8] sm:$0xff]
        %v3223 = vld [vmem:[%s5 + $0x11c0] sm:$0xff]
        %v3224 = vld [vmem:[%s5 + $0x11c8] sm:$0xff]
        %v3225 = vld [vmem:[%s5 + $0x11d0] sm:$0xff]
        %v3226 = vld [vmem:[%s5 + $0x11d8] sm:$0xff]
        %v3227 = vld [vmem:[%s5 + $0x11e0] sm:$0xff]
        %v3228 = vld [vmem:[%s5 + $0x11e8] sm:$0xff]
        %v3229 = vld [vmem:[%s5 + $0x11f0] sm:$0xff]
        %v3230 = vld [vmem:[%s5 + $0x11f8] sm:$0xff]
        %v3231 = vld [vmem:[%s6] sm:$0xff]
        %v3232 = vld [vmem:[%s6 + $0x8] sm:$0xf]
        %v3235 = vperm.slane %v3231, 0
        %v3236 = vperm.slane %v3231, 1
        %v3237 = vperm.slane %v3231, 2
        %v3238 = vperm.slane %v3231, 3
        %v3239 = vperm.slane %v3231, 4
        %v3240 = vperm.slane %v3231, 5
        %v3241 = vperm.slane %v3231, 6
        %v3242 = vperm.slane %v3231, 7
        %v3243 = vperm.slane %v3232, 0
        %v3244 = vperm.slane %v3232, 1
        %v3245 = vperm.slane %v3232, 2
        %v3246 = vperm.slane %v3232, 3
        %v3835 = vunpack.c.l.b16 %v2655
        %v3836 = vunpack.c.h.b16 %v2655
        %v3837 = vunpack.c.l.b16 %v2656
        %v3838 = vunpack.c.h.b16 %v2656
        %v3839 = vunpack.c.l.b16 %v2657
        %v3840 = vunpack.c.h.b16 %v2657
        %v3841 = vunpack.c.l.b16 %v2658
        %v3842 = vunpack.c.h.b16 %v2658
        %v3843 = vunpack.c.l.b16 %v2659
        %v3844 = vunpack.c.h.b16 %v2659
        %v3845 = vunpack.c.l.b16 %v2660
        %v3846 = vunpack.c.h.b16 %v2660
        %v3847 = vunpack.c.l.b16 %v2661
        %v3848 = vunpack.c.h.b16 %v2661
        %v3849 = vunpack.c.l.b16 %v2662
        %v3850 = vunpack.c.h.b16 %v2662
        %v3851 = vunpack.c.l.b16 %v2663
        %v3852 = vunpack.c.h.b16 %v2663
        %v3853 = vunpack.c.l.b16 %v2664
        %v3854 = vunpack.c.h.b16 %v2664
        %v3855 = vunpack.c.l.b16 %v2665
        %v3856 = vunpack.c.h.b16 %v2665
        %v3857 = vunpack.c.l.b16 %v2666
        %v3858 = vunpack.c.h.b16 %v2666
        %v3859 = vunpack.c.l.b16 %v2667
        %v3860 = vunpack.c.h.b16 %v2667
        %v3861 = vunpack.c.l.b16 %v2668
        %v3862 = vunpack.c.h.b16 %v2668
        %v3863 = vunpack.c.l.b16 %v2669
        %v3864 = vunpack.c.h.b16 %v2669
        %v3865 = vunpack.c.l.b16 %v2670
        %v3866 = vunpack.c.h.b16 %v2670
        %v3867 = vunpack.c.l.b16 %v2671
        %v3868 = vunpack.c.h.b16 %v2671
        %v3869 = vunpack.c.l.b16 %v2672
        %v3870 = vunpack.c.h.b16 %v2672
        %v3871 = vunpack.c.l.b16 %v2673
        %v3872 = vunpack.c.h.b16 %v2673
        %v3873 = vunpack.c.l.b16 %v2674
        %v3874 = vunpack.c.h.b16 %v2674
        %v3875 = vunpack.c.l.b16 %v2675
        %v3876 = vunpack.c.h.b16 %v2675
        %v3877 = vunpack.c.l.b16 %v2676
        %v3878 = vunpack.c.h.b16 %v2676
        %v3879 = vunpack.c.l.b16 %v2677
        %v3880 = vunpack.c.h.b16 %v2677
        %v3881 = vunpack.c.l.b16 %v2678
        %v3882 = vunpack.c.h.b16 %v2678
        %v3883 = vunpack.c.l.b16 %v2679
        %v3884 = vunpack.c.h.b16 %v2679
        %v3885 = vunpack.c.l.b16 %v2680
        %v3886 = vunpack.c.h.b16 %v2680
        %v3887 = vunpack.c.l.b16 %v2681
        %v3888 = vunpack.c.h.b16 %v2681
        %v3889 = vunpack.c.l.b16 %v2682
        %v3890 = vunpack.c.h.b16 %v2682
        %v3891 = vunpack.c.l.b16 %v2683
        %v3892 = vunpack.c.h.b16 %v2683
        %v3893 = vunpack.c.l.b16 %v2684
        %v3894 = vunpack.c.h.b16 %v2684
        %v3895 = vunpack.c.l.b16 %v2685
        %v3896 = vunpack.c.h.b16 %v2685
        %v3897 = vunpack.c.l.b16 %v2686
        %v3898 = vunpack.c.h.b16 %v2686
        %v3899 = vunpack.c.l.b16 %v2687
        %v3900 = vunpack.c.h.b16 %v2687
        %v3901 = vunpack.c.l.b16 %v2688
        %v3902 = vunpack.c.h.b16 %v2688
        %v3903 = vunpack.c.l.b16 %v2689
        %v3904 = vunpack.c.h.b16 %v2689
        %v3905 = vunpack.c.l.b16 %v2690
        %v3906 = vunpack.c.h.b16 %v2690
        %v3907 = vunpack.c.l.b16 %v2691
        %v3908 = vunpack.c.h.b16 %v2691
        %v3909 = vunpack.c.l.b16 %v2692
        %v3910 = vunpack.c.h.b16 %v2692
        %v3911 = vunpack.c.l.b16 %v2693
        %v3912 = vunpack.c.h.b16 %v2693
        %v3913 = vunpack.c.l.b16 %v2694
        %v3914 = vunpack.c.h.b16 %v2694
        %v3915 = vunpack.c.l.b16 %v2695
        %v3916 = vunpack.c.h.b16 %v2695
        %v3917 = vunpack.c.l.b16 %v2696
        %v3918 = vunpack.c.h.b16 %v2696
        %v3919 = vunpack.c.l.b16 %v2697
        %v3920 = vunpack.c.h.b16 %v2697
        %v3921 = vunpack.c.l.b16 %v2698
        %v3922 = vunpack.c.h.b16 %v2698
        %v3923 = vunpack.c.l.b16 %v2699
        %v3924 = vunpack.c.h.b16 %v2699
        %v3925 = vunpack.c.l.b16 %v2700
        %v3926 = vunpack.c.h.b16 %v2700
        %v3927 = vunpack.c.l.b16 %v2701
        %v3928 = vunpack.c.h.b16 %v2701
        %v3929 = vunpack.c.l.b16 %v2702
        %v3930 = vunpack.c.h.b16 %v2702
        %v3931 = vunpack.c.l.b16 %v2703
        %v3932 = vunpack.c.h.b16 %v2703
        %v3933 = vunpack.c.l.b16 %v2704
        %v3934 = vunpack.c.h.b16 %v2704
        %v3935 = vunpack.c.l.b16 %v2705
        %v3936 = vunpack.c.h.b16 %v2705
        %v3937 = vunpack.c.l.b16 %v2706
        %v3938 = vunpack.c.h.b16 %v2706
        %v3939 = vunpack.c.l.b16 %v2707
        %v3940 = vunpack.c.h.b16 %v2707
        %v3941 = vunpack.c.l.b16 %v2708
        %v3942 = vunpack.c.h.b16 %v2708
        %v3943 = vunpack.c.l.b16 %v2709
        %v3944 = vunpack.c.h.b16 %v2709
        %v3945 = vunpack.c.l.b16 %v2710
        %v3946 = vunpack.c.h.b16 %v2710
        %v3947 = vunpack.c.l.b16 %v2711
        %v3948 = vunpack.c.h.b16 %v2711
        %v3949 = vunpack.c.l.b16 %v2712
        %v3950 = vunpack.c.h.b16 %v2712
        %v3951 = vunpack.c.l.b16 %v2713
        %v3952 = vunpack.c.h.b16 %v2713
        %v3953 = vunpack.c.l.b16 %v2714
        %v3954 = vunpack.c.h.b16 %v2714
        %v3955 = vunpack.c.l.b16 %v2715
        %v3956 = vunpack.c.h.b16 %v2715
        %v3957 = vunpack.c.l.b16 %v2716
        %v3958 = vunpack.c.h.b16 %v2716
        %v3959 = vunpack.c.l.b16 %v2717
        %v3960 = vunpack.c.h.b16 %v2717
        %v3961 = vunpack.c.l.b16 %v2718
        %v3962 = vunpack.c.h.b16 %v2718
        %v3963 = vunpack.c.l.b16 %v2719
        %v3964 = vunpack.c.h.b16 %v2719
        %v3965 = vunpack.c.l.b16 %v2720
        %v3966 = vunpack.c.h.b16 %v2720
        %v3967 = vunpack.c.l.b16 %v2721
        %v3968 = vunpack.c.h.b16 %v2721
        %v3969 = vunpack.c.l.b16 %v2722
        %v3970 = vunpack.c.h.b16 %v2722
        %v3971 = vunpack.c.l.b16 %v2723
        %v3972 = vunpack.c.h.b16 %v2723
        %v3973 = vunpack.c.l.b16 %v2724
        %v3974 = vunpack.c.h.b16 %v2724
        %v3975 = vunpack.c.l.b16 %v2725
        %v3976 = vunpack.c.h.b16 %v2725
        %v3977 = vunpack.c.l.b16 %v2726
        %v3978 = vunpack.c.h.b16 %v2726
        %v3979 = vunpack.c.l.b16 %v2727
        %v3980 = vunpack.c.h.b16 %v2727
        %v3981 = vunpack.c.l.b16 %v2728
        %v3982 = vunpack.c.h.b16 %v2728
        %v3983 = vunpack.c.l.b16 %v2729
        %v3984 = vunpack.c.h.b16 %v2729
        %v3985 = vunpack.c.l.b16 %v2730
        %v3986 = vunpack.c.h.b16 %v2730
        %v3987 = vunpack.c.l.b16 %v2731
        %v3988 = vunpack.c.h.b16 %v2731
        %v3989 = vunpack.c.l.b16 %v2732
        %v3990 = vunpack.c.h.b16 %v2732
        %v3991 = vunpack.c.l.b16 %v2733
        %v3992 = vunpack.c.h.b16 %v2733
        %v3993 = vunpack.c.l.b16 %v2734
        %v3994 = vunpack.c.h.b16 %v2734
        %v3995 = vunpack.c.l.b16 %v2735
        %v3996 = vunpack.c.h.b16 %v2735
        %v3997 = vunpack.c.l.b16 %v2736
        %v3998 = vunpack.c.h.b16 %v2736
        %v3999 = vunpack.c.l.b16 %v2737
        %v4000 = vunpack.c.h.b16 %v2737
        %v4001 = vunpack.c.l.b16 %v2738
        %v4002 = vunpack.c.h.b16 %v2738
        %v4003 = vunpack.c.l.b16 %v2739
        %v4004 = vunpack.c.h.b16 %v2739
        %v4005 = vunpack.c.l.b16 %v2740
        %v4006 = vunpack.c.h.b16 %v2740
        %v4007 = vunpack.c.l.b16 %v2741
        %v4008 = vunpack.c.h.b16 %v2741
        %v4009 = vunpack.c.l.b16 %v2742
        %v4010 = vunpack.c.h.b16 %v2742
        %v4011 = vunpack.c.l.b16 %v2743
        %v4012 = vunpack.c.h.b16 %v2743
        %v4013 = vunpack.c.l.b16 %v2744
        %v4014 = vunpack.c.h.b16 %v2744
        %v4015 = vunpack.c.l.b16 %v2745
        %v4016 = vunpack.c.h.b16 %v2745
        %v4017 = vunpack.c.l.b16 %v2746
        %v4018 = vunpack.c.h.b16 %v2746
        %v4019 = vunpack.c.l.b16 %v2747
        %v4020 = vunpack.c.h.b16 %v2747
        %v4021 = vunpack.c.l.b16 %v2748
        %v4022 = vunpack.c.h.b16 %v2748
        %v4023 = vunpack.c.l.b16 %v2749
        %v4024 = vunpack.c.h.b16 %v2749
        %v4025 = vunpack.c.l.b16 %v2750
        %v4026 = vunpack.c.h.b16 %v2750
        %v4027 = vunpack.c.l.b16 %v2751
        %v4028 = vunpack.c.h.b16 %v2751
        %v4029 = vunpack.c.l.b16 %v2752
        %v4030 = vunpack.c.h.b16 %v2752
        %v4031 = vunpack.c.l.b16 %v2753
        %v4032 = vunpack.c.h.b16 %v2753
        %v4033 = vunpack.c.l.b16 %v2754
        %v4034 = vunpack.c.h.b16 %v2754
        %v4035 = vunpack.c.l.b16 %v2755
        %v4036 = vunpack.c.h.b16 %v2755
        %v4037 = vunpack.c.l.b16 %v2756
        %v4038 = vunpack.c.h.b16 %v2756
        %v4039 = vunpack.c.l.b16 %v2757
        %v4040 = vunpack.c.h.b16 %v2757
        %v4041 = vunpack.c.l.b16 %v2758
        %v4042 = vunpack.c.h.b16 %v2758
        %v4043 = vunpack.c.l.b16 %v2759
        %v4044 = vunpack.c.h.b16 %v2759
        %v4045 = vunpack.c.l.b16 %v2760
        %v4046 = vunpack.c.h.b16 %v2760
        %v4047 = vunpack.c.l.b16 %v2761
        %v4048 = vunpack.c.h.b16 %v2761
        %v4049 = vunpack.c.l.b16 %v2762
        %v4050 = vunpack.c.h.b16 %v2762
        %v4051 = vunpack.c.l.b16 %v2763
        %v4052 = vunpack.c.h.b16 %v2763
        %v4053 = vunpack.c.l.b16 %v2764
        %v4054 = vunpack.c.h.b16 %v2764
        %v4055 = vunpack.c.l.b16 %v2765
        %v4056 = vunpack.c.h.b16 %v2765
        %v4057 = vunpack.c.l.b16 %v2766
        %v4058 = vunpack.c.h.b16 %v2766
        %v4059 = vunpack.c.l.b16 %v2767
        %v4060 = vunpack.c.h.b16 %v2767
        %v4061 = vunpack.c.l.b16 %v2768
        %v4062 = vunpack.c.h.b16 %v2768
        %v4063 = vunpack.c.l.b16 %v2769
        %v4064 = vunpack.c.h.b16 %v2769
        %v4065 = vunpack.c.l.b16 %v2770
        %v4066 = vunpack.c.h.b16 %v2770
        %v4067 = vunpack.c.l.b16 %v2771
        %v4068 = vunpack.c.h.b16 %v2771
        %v4069 = vunpack.c.l.b16 %v2772
        %v4070 = vunpack.c.h.b16 %v2772
        %v4071 = vunpack.c.l.b16 %v2773
        %v4072 = vunpack.c.h.b16 %v2773
        %v4073 = vunpack.c.l.b16 %v2774
        %v4074 = vunpack.c.h.b16 %v2774
        %v4075 = vunpack.c.l.b16 %v2775
        %v4076 = vunpack.c.h.b16 %v2775
        %v4077 = vunpack.c.l.b16 %v2776
        %v4078 = vunpack.c.h.b16 %v2776
        %v4079 = vunpack.c.l.b16 %v2777
        %v4080 = vunpack.c.h.b16 %v2777
        %v4081 = vunpack.c.l.b16 %v2778
        %v4082 = vunpack.c.h.b16 %v2778
        %v4083 = vunpack.c.l.b16 %v2779
        %v4084 = vunpack.c.h.b16 %v2779
        %v4085 = vunpack.c.l.b16 %v2780
        %v4086 = vunpack.c.h.b16 %v2780
        %v4087 = vunpack.c.l.b16 %v2781
        %v4088 = vunpack.c.h.b16 %v2781
        %v4089 = vunpack.c.l.b16 %v2782
        %v4090 = vunpack.c.h.b16 %v2782
        %v4091 = vunpack.c.l.b16 %v2783
        %v4092 = vunpack.c.h.b16 %v2783
        %v4093 = vunpack.c.l.b16 %v2784
        %v4094 = vunpack.c.h.b16 %v2784
        %v4095 = vunpack.c.l.b16 %v2785
        %v4096 = vunpack.c.h.b16 %v2785
        %v4097 = vunpack.c.l.b16 %v2786
        %v4098 = vunpack.c.h.b16 %v2786
        %v4099 = vunpack.c.l.b16 %v2787
        %v4100 = vunpack.c.h.b16 %v2787
        %v4101 = vunpack.c.l.b16 %v2788
        %v4102 = vunpack.c.h.b16 %v2788
        %v4103 = vunpack.c.l.b16 %v2789
        %v4104 = vunpack.c.h.b16 %v2789
        %v4105 = vunpack.c.l.b16 %v2790
        %v4106 = vunpack.c.h.b16 %v2790
        %v4107 = vunpack.c.l.b16 %v2791
        %v4108 = vunpack.c.h.b16 %v2791
        %v4109 = vunpack.c.l.b16 %v2792
        %v4110 = vunpack.c.h.b16 %v2792
        %v4111 = vunpack.c.l.b16 %v2793
        %v4112 = vunpack.c.h.b16 %v2793
        %v4113 = vunpack.c.l.b16 %v2794
        %v4114 = vunpack.c.h.b16 %v2794
        %v4115 = vunpack.c.l.b16 %v2795
        %v4116 = vunpack.c.h.b16 %v2795
        %v4117 = vunpack.c.l.b16 %v2796
        %v4118 = vunpack.c.h.b16 %v2796
        %v4119 = vunpack.c.l.b16 %v2797
        %v4120 = vunpack.c.h.b16 %v2797
        %v4121 = vunpack.c.l.b16 %v2798
        %v4122 = vunpack.c.h.b16 %v2798
        %v4123 = vunpack.c.l.b16 %v2799
        %v4124 = vunpack.c.h.b16 %v2799
        %v4125 = vunpack.c.l.b16 %v2800
        %v4126 = vunpack.c.h.b16 %v2800
        %v4127 = vunpack.c.l.b16 %v2801
        %v4128 = vunpack.c.h.b16 %v2801
        %v4129 = vunpack.c.l.b16 %v2802
        %v4130 = vunpack.c.h.b16 %v2802
        %v4131 = vunpack.c.l.b16 %v2803
        %v4132 = vunpack.c.h.b16 %v2803
        %v4133 = vunpack.c.l.b16 %v2804
        %v4134 = vunpack.c.h.b16 %v2804
        %v4135 = vunpack.c.l.b16 %v2805
        %v4136 = vunpack.c.h.b16 %v2805
        %v4137 = vunpack.c.l.b16 %v2806
        %v4138 = vunpack.c.h.b16 %v2806
        %v4139 = vunpack.c.l.b16 %v2807
        %v4140 = vunpack.c.h.b16 %v2807
        %v4141 = vunpack.c.l.b16 %v2808
        %v4142 = vunpack.c.h.b16 %v2808
        %v4143 = vunpack.c.l.b16 %v2809
        %v4144 = vunpack.c.h.b16 %v2809
        %v4145 = vunpack.c.l.b16 %v2810
        %v4146 = vunpack.c.h.b16 %v2810
        %v4147 = vunpack.c.l.b16 %v2811
        %v4148 = vunpack.c.h.b16 %v2811
        %v4149 = vunpack.c.l.b16 %v2812
        %v4150 = vunpack.c.h.b16 %v2812
        %v4151 = vunpack.c.l.b16 %v2813
        %v4152 = vunpack.c.h.b16 %v2813
        %v4153 = vunpack.c.l.b16 %v2814
        %v4154 = vunpack.c.h.b16 %v2814
        %v4155 = vunpack.c.l.b16 %v2815
        %v4156 = vunpack.c.h.b16 %v2815
        %v4157 = vunpack.c.l.b16 %v2816
        %v4158 = vunpack.c.h.b16 %v2816
        %v4159 = vunpack.c.l.b16 %v2817
        %v4160 = vunpack.c.h.b16 %v2817
        %v4161 = vunpack.c.l.b16 %v2818
        %v4162 = vunpack.c.h.b16 %v2818
        %v4163 = vunpack.c.l.b16 %v2819
        %v4164 = vunpack.c.h.b16 %v2819
        %v4165 = vunpack.c.l.b16 %v2820
        %v4166 = vunpack.c.h.b16 %v2820
        %v4167 = vunpack.c.l.b16 %v2821
        %v4168 = vunpack.c.h.b16 %v2821
        %v4169 = vunpack.c.l.b16 %v2822
        %v4170 = vunpack.c.h.b16 %v2822
        %v4171 = vunpack.c.l.b16 %v2823
        %v4172 = vunpack.c.h.b16 %v2823
        %v4173 = vunpack.c.l.b16 %v2824
        %v4174 = vunpack.c.h.b16 %v2824
        %v4175 = vunpack.c.l.b16 %v2825
        %v4176 = vunpack.c.h.b16 %v2825
        %v4177 = vunpack.c.l.b16 %v2826
        %v4178 = vunpack.c.h.b16 %v2826
        %v4179 = vunpack.c.l.b16 %v2827
        %v4180 = vunpack.c.h.b16 %v2827
        %v4181 = vunpack.c.l.b16 %v2828
        %v4182 = vunpack.c.h.b16 %v2828
        %v4183 = vunpack.c.l.b16 %v2829
        %v4184 = vunpack.c.h.b16 %v2829
        %v4185 = vunpack.c.l.b16 %v2830
        %v4186 = vunpack.c.h.b16 %v2830
        %v4187 = vunpack.c.l.b16 %v2831
        %v4188 = vunpack.c.h.b16 %v2831
        %v4189 = vunpack.c.l.b16 %v2832
        %v4190 = vunpack.c.h.b16 %v2832
        %v4191 = vunpack.c.l.b16 %v2833
        %v4192 = vunpack.c.h.b16 %v2833
        %v4193 = vunpack.c.l.b16 %v2834
        %v4194 = vunpack.c.h.b16 %v2834
        %v4195 = vunpack.c.l.b16 %v2835
        %v4196 = vunpack.c.h.b16 %v2835
        %v4197 = vunpack.c.l.b16 %v2836
        %v4198 = vunpack.c.h.b16 %v2836
        %v4199 = vunpack.c.l.b16 %v2837
        %v4200 = vunpack.c.h.b16 %v2837
        %v4201 = vunpack.c.l.b16 %v2838
        %v4202 = vunpack.c.h.b16 %v2838
        %v4203 = vunpack.c.l.b16 %v2839
        %v4204 = vunpack.c.h.b16 %v2839
        %v4205 = vunpack.c.l.b16 %v2840
        %v4206 = vunpack.c.h.b16 %v2840
        %v4207 = vunpack.c.l.b16 %v2841
        %v4208 = vunpack.c.h.b16 %v2841
        %v4209 = vunpack.c.l.b16 %v2842
        %v4210 = vunpack.c.h.b16 %v2842
        %v4211 = vunpack.c.l.b16 %v2843
        %v4212 = vunpack.c.h.b16 %v2843
        %v4213 = vunpack.c.l.b16 %v2844
        %v4214 = vunpack.c.h.b16 %v2844
        %v4215 = vunpack.c.l.b16 %v2845
        %v4216 = vunpack.c.h.b16 %v2845
        %v4217 = vunpack.c.l.b16 %v2846
        %v4218 = vunpack.c.h.b16 %v2846
        %v4219 = vunpack.c.l.b16 %v2847
        %v4220 = vunpack.c.h.b16 %v2847
        %v4221 = vunpack.c.l.b16 %v2848
        %v4222 = vunpack.c.h.b16 %v2848
        %v4223 = vunpack.c.l.b16 %v2849
        %v4224 = vunpack.c.h.b16 %v2849
        %v4225 = vunpack.c.l.b16 %v2850
        %v4226 = vunpack.c.h.b16 %v2850
        %v4227 = vunpack.c.l.b16 %v2851
        %v4228 = vunpack.c.h.b16 %v2851
        %v4229 = vunpack.c.l.b16 %v2852
        %v4230 = vunpack.c.h.b16 %v2852
        %v4231 = vunpack.c.l.b16 %v2853
        %v4232 = vunpack.c.h.b16 %v2853
        %v4233 = vunpack.c.l.b16 %v2854
        %v4234 = vunpack.c.h.b16 %v2854
        %v4235 = vunpack.c.l.b16 %v2855
        %v4236 = vunpack.c.h.b16 %v2855
        %v4237 = vunpack.c.l.b16 %v2856
        %v4238 = vunpack.c.h.b16 %v2856
        %v4239 = vunpack.c.l.b16 %v2857
        %v4240 = vunpack.c.h.b16 %v2857
        %v4241 = vunpack.c.l.b16 %v2858
        %v4242 = vunpack.c.h.b16 %v2858
        %v4243 = vunpack.c.l.b16 %v2859
        %v4244 = vunpack.c.h.b16 %v2859
        %v4245 = vunpack.c.l.b16 %v2860
        %v4246 = vunpack.c.h.b16 %v2860
        %v4247 = vunpack.c.l.b16 %v2861
        %v4248 = vunpack.c.h.b16 %v2861
        %v4249 = vunpack.c.l.b16 %v2862
        %v4250 = vunpack.c.h.b16 %v2862
        %v4251 = vunpack.c.l.b16 %v2863
        %v4252 = vunpack.c.h.b16 %v2863
        %v4253 = vunpack.c.l.b16 %v2864
        %v4254 = vunpack.c.h.b16 %v2864
        %v4255 = vunpack.c.l.b16 %v2865
        %v4256 = vunpack.c.h.b16 %v2865
        %v4257 = vunpack.c.l.b16 %v2866
        %v4258 = vunpack.c.h.b16 %v2866
        %v4259 = vunpack.c.l.b16 %v2867
        %v4260 = vunpack.c.h.b16 %v2867
        %v4261 = vunpack.c.l.b16 %v2868
        %v4262 = vunpack.c.h.b16 %v2868
        %v4263 = vunpack.c.l.b16 %v2869
        %v4264 = vunpack.c.h.b16 %v2869
        %v4265 = vunpack.c.l.b16 %v2870
        %v4266 = vunpack.c.h.b16 %v2870
        %v4267 = vunpack.c.l.b16 %v2871
        %v4268 = vunpack.c.h.b16 %v2871
        %v4269 = vunpack.c.l.b16 %v2872
        %v4270 = vunpack.c.h.b16 %v2872
        %v4271 = vunpack.c.l.b16 %v2873
        %v4272 = vunpack.c.h.b16 %v2873
        %v4273 = vunpack.c.l.b16 %v2874
        %v4274 = vunpack.c.h.b16 %v2874
        %v4275 = vunpack.c.l.b16 %v2875
        %v4276 = vunpack.c.h.b16 %v2875
        %v4277 = vunpack.c.l.b16 %v2876
        %v4278 = vunpack.c.h.b16 %v2876
        %v4279 = vunpack.c.l.b16 %v2877
        %v4280 = vunpack.c.h.b16 %v2877
        %v4281 = vunpack.c.l.b16 %v2878
        %v4282 = vunpack.c.h.b16 %v2878
        %v4283 = vunpack.c.l.b16 %v2879
        %v4284 = vunpack.c.h.b16 %v2879
        %v4285 = vunpack.c.l.b16 %v2880
        %v4286 = vunpack.c.h.b16 %v2880
        %v4287 = vunpack.c.l.b16 %v2881
        %v4288 = vunpack.c.h.b16 %v2881
        %v4289 = vunpack.c.l.b16 %v2882
        %v4290 = vunpack.c.h.b16 %v2882
        %v4291 = vunpack.c.l.b16 %v2883
        %v4292 = vunpack.c.h.b16 %v2883
        %v4293 = vunpack.c.l.b16 %v2884
        %v4294 = vunpack.c.h.b16 %v2884
        %v4295 = vunpack.c.l.b16 %v2885
        %v4296 = vunpack.c.h.b16 %v2885
        %v4297 = vunpack.c.l.b16 %v2886
        %v4298 = vunpack.c.h.b16 %v2886
        %v4299 = vunpack.c.l.b16 %v2887
        %v4300 = vunpack.c.h.b16 %v2887
        %v4301 = vunpack.c.l.b16 %v2888
        %v4302 = vunpack.c.h.b16 %v2888
        %v4303 = vunpack.c.l.b16 %v2889
        %v4304 = vunpack.c.h.b16 %v2889
        %v4305 = vunpack.c.l.b16 %v2890
        %v4306 = vunpack.c.h.b16 %v2890
        %v4307 = vunpack.c.l.b16 %v2891
        %v4308 = vunpack.c.h.b16 %v2891
        %v4309 = vunpack.c.l.b16 %v2892
        %v4310 = vunpack.c.h.b16 %v2892
        %v4311 = vunpack.c.l.b16 %v2893
        %v4312 = vunpack.c.h.b16 %v2893
        %v4313 = vunpack.c.l.b16 %v2894
        %v4314 = vunpack.c.h.b16 %v2894
        %v4315 = vunpack.c.l.b16 %v2895
        %v4316 = vunpack.c.h.b16 %v2895
        %v4317 = vunpack.c.l.b16 %v2896
        %v4318 = vunpack.c.h.b16 %v2896
        %v4319 = vunpack.c.l.b16 %v2897
        %v4320 = vunpack.c.h.b16 %v2897
        %v4321 = vunpack.c.l.b16 %v2898
        %v4322 = vunpack.c.h.b16 %v2898
        %v4323 = vunpack.c.l.b16 %v2899
        %v4324 = vunpack.c.h.b16 %v2899
        %v4325 = vunpack.c.l.b16 %v2900
        %v4326 = vunpack.c.h.b16 %v2900
        %v4327 = vunpack.c.l.b16 %v2901
        %v4328 = vunpack.c.h.b16 %v2901
        %v4329 = vunpack.c.l.b16 %v2902
        %v4330 = vunpack.c.h.b16 %v2902
        %v4331 = vunpack.c.l.b16 %v2903
        %v4332 = vunpack.c.h.b16 %v2903
        %v4333 = vunpack.c.l.b16 %v2904
        %v4334 = vunpack.c.h.b16 %v2904
        %v4335 = vunpack.c.l.b16 %v2905
        %v4336 = vunpack.c.h.b16 %v2905
        %v4337 = vunpack.c.l.b16 %v2906
        %v4338 = vunpack.c.h.b16 %v2906
        %v4339 = vunpack.c.l.b16 %v2907
        %v4340 = vunpack.c.h.b16 %v2907
        %v4341 = vunpack.c.l.b16 %v2908
        %v4342 = vunpack.c.h.b16 %v2908
        %v4343 = vunpack.c.l.b16 %v2909
        %v4344 = vunpack.c.h.b16 %v2909
        %v4345 = vunpack.c.l.b16 %v2910
        %v4346 = vunpack.c.h.b16 %v2910
        %v4347 = vunpack.c.l.b16 %v2911
        %v4348 = vunpack.c.h.b16 %v2911
        %v4349 = vunpack.c.l.b16 %v2912
        %v4350 = vunpack.c.h.b16 %v2912
        %v4351 = vunpack.c.l.b16 %v2913
        %v4352 = vunpack.c.h.b16 %v2913
        %v4353 = vunpack.c.l.b16 %v2914
        %v4354 = vunpack.c.h.b16 %v2914
        %v4355 = vunpack.c.l.b16 %v2915
        %v4356 = vunpack.c.h.b16 %v2915
        %v4357 = vunpack.c.l.b16 %v2916
        %v4358 = vunpack.c.h.b16 %v2916
        %v4359 = vunpack.c.l.b16 %v2917
        %v4360 = vunpack.c.h.b16 %v2917
        %v4361 = vunpack.c.l.b16 %v2918
        %v4362 = vunpack.c.h.b16 %v2918
        %v4363 = vunpack.c.l.b16 %v2919
        %v4364 = vunpack.c.h.b16 %v2919
        %v4365 = vunpack.c.l.b16 %v2920
        %v4366 = vunpack.c.h.b16 %v2920
        %v4367 = vunpack.c.l.b16 %v2921
        %v4368 = vunpack.c.h.b16 %v2921
        %v4369 = vunpack.c.l.b16 %v2922
        %v4370 = vunpack.c.h.b16 %v2922
        %v4371 = vunpack.c.l.b16 %v2923
        %v4372 = vunpack.c.h.b16 %v2923
        %v4373 = vunpack.c.l.b16 %v2924
        %v4374 = vunpack.c.h.b16 %v2924
        %v4375 = vunpack.c.l.b16 %v2925
        %v4376 = vunpack.c.h.b16 %v2925
        %v4377 = vunpack.c.l.b16 %v2926
        %v4378 = vunpack.c.h.b16 %v2926
        %v4379 = vunpack.c.l.b16 %v2927
        %v4380 = vunpack.c.h.b16 %v2927
        %v4381 = vunpack.c.l.b16 %v2928
        %v4382 = vunpack.c.h.b16 %v2928
        %v4383 = vunpack.c.l.b16 %v2929
        %v4384 = vunpack.c.h.b16 %v2929
        %v4385 = vunpack.c.l.b16 %v2930
        %v4386 = vunpack.c.h.b16 %v2930
        %v4387 = vunpack.c.l.b16 %v2931
        %v4388 = vunpack.c.h.b16 %v2931
        %v4389 = vunpack.c.l.b16 %v2932
        %v4390 = vunpack.c.h.b16 %v2932
        %v4391 = vunpack.c.l.b16 %v2933
        %v4392 = vunpack.c.h.b16 %v2933
        %v4393 = vunpack.c.l.b16 %v2934
        %v4394 = vunpack.c.h.b16 %v2934
        %v4395 = vunpack.c.l.b16 %v2935
        %v4396 = vunpack.c.h.b16 %v2935
        %v4397 = vunpack.c.l.b16 %v2936
        %v4398 = vunpack.c.h.b16 %v2936
        %v4399 = vunpack.c.l.b16 %v2937
        %v4400 = vunpack.c.h.b16 %v2937
        %v4401 = vunpack.c.l.b16 %v2938
        %v4402 = vunpack.c.h.b16 %v2938
        %v4403 = vunpack.c.l.b16 %v2939
        %v4404 = vunpack.c.h.b16 %v2939
        %v4405 = vunpack.c.l.b16 %v2940
        %v4406 = vunpack.c.h.b16 %v2940
        %v4407 = vunpack.c.l.b16 %v2941
        %v4408 = vunpack.c.h.b16 %v2941
        %v4409 = vunpack.c.l.b16 %v2942
        %v4410 = vunpack.c.h.b16 %v2942
        %v4411 = vunpack.c.l.b16 %v2943
        %v4412 = vunpack.c.h.b16 %v2943
        %v4413 = vunpack.c.l.b16 %v2944
        %v4414 = vunpack.c.h.b16 %v2944
        %v4415 = vunpack.c.l.b16 %v2945
        %v4416 = vunpack.c.h.b16 %v2945
        %v4417 = vunpack.c.l.b16 %v2946
        %v4418 = vunpack.c.h.b16 %v2946
        %v4419 = vunpack.c.l.b16 %v2947
        %v4420 = vunpack.c.h.b16 %v2947
        %v4421 = vunpack.c.l.b16 %v2948
        %v4422 = vunpack.c.h.b16 %v2948
        %v4423 = vunpack.c.l.b16 %v2949
        %v4424 = vunpack.c.h.b16 %v2949
        %v4425 = vunpack.c.l.b16 %v2950
        %v4426 = vunpack.c.h.b16 %v2950
        %v4427 = vunpack.c.l.b16 %v2951
        %v4428 = vunpack.c.h.b16 %v2951
        %v4429 = vunpack.c.l.b16 %v2952
        %v4430 = vunpack.c.h.b16 %v2952
        %v4431 = vunpack.c.l.b16 %v2953
        %v4432 = vunpack.c.h.b16 %v2953
        %v4433 = vunpack.c.l.b16 %v2954
        %v4434 = vunpack.c.h.b16 %v2954
        %v4435 = vunpack.c.l.b16 %v2955
        %v4436 = vunpack.c.h.b16 %v2955
        %v4437 = vunpack.c.l.b16 %v2956
        %v4438 = vunpack.c.h.b16 %v2956
        %v4439 = vunpack.c.l.b16 %v2957
        %v4440 = vunpack.c.h.b16 %v2957
        %v4441 = vunpack.c.l.b16 %v2958
        %v4442 = vunpack.c.h.b16 %v2958
        %v4443 = vunpack.c.l.b16 %v2959
        %v4444 = vunpack.c.h.b16 %v2959
        %v4445 = vunpack.c.l.b16 %v2960
        %v4446 = vunpack.c.h.b16 %v2960
        %v4447 = vunpack.c.l.b16 %v2961
        %v4448 = vunpack.c.h.b16 %v2961
        %v4449 = vunpack.c.l.b16 %v2962
        %v4450 = vunpack.c.h.b16 %v2962
        %v4451 = vunpack.c.l.b16 %v2963
        %v4452 = vunpack.c.h.b16 %v2963
        %v4453 = vunpack.c.l.b16 %v2964
        %v4454 = vunpack.c.h.b16 %v2964
        %v4455 = vunpack.c.l.b16 %v2965
        %v4456 = vunpack.c.h.b16 %v2965
        %v4457 = vunpack.c.l.b16 %v2966
        %v4458 = vunpack.c.h.b16 %v2966
        %v4459 = vunpack.c.l.b16 %v2967
        %v4460 = vunpack.c.h.b16 %v2967
        %v4461 = vunpack.c.l.b16 %v2968
        %v4462 = vunpack.c.h.b16 %v2968
        %v4463 = vunpack.c.l.b16 %v2969
        %v4464 = vunpack.c.h.b16 %v2969
        %v4465 = vunpack.c.l.b16 %v2970
        %v4466 = vunpack.c.h.b16 %v2970
        %v4467 = vunpack.c.l.b16 %v2971
        %v4468 = vunpack.c.h.b16 %v2971
        %v4469 = vunpack.c.l.b16 %v2972
        %v4470 = vunpack.c.h.b16 %v2972
        %v4471 = vunpack.c.l.b16 %v2973
        %v4472 = vunpack.c.h.b16 %v2973
        %v4473 = vunpack.c.l.b16 %v2974
        %v4474 = vunpack.c.h.b16 %v2974
        %v4475 = vunpack.c.l.b16 %v2975
        %v4476 = vunpack.c.h.b16 %v2975
        %v4477 = vunpack.c.l.b16 %v2976
        %v4478 = vunpack.c.h.b16 %v2976
        %v4479 = vunpack.c.l.b16 %v2977
        %v4480 = vunpack.c.h.b16 %v2977
        %v4481 = vunpack.c.l.b16 %v2978
        %v4482 = vunpack.c.h.b16 %v2978
        %v4483 = vunpack.c.l.b16 %v2979
        %v4484 = vunpack.c.h.b16 %v2979
        %v4485 = vunpack.c.l.b16 %v2980
        %v4486 = vunpack.c.h.b16 %v2980
        %v4487 = vunpack.c.l.b16 %v2981
        %v4488 = vunpack.c.h.b16 %v2981
        %v4489 = vunpack.c.l.b16 %v2982
        %v4490 = vunpack.c.h.b16 %v2982
        %v4491 = vunpack.c.l.b16 %v2983
        %v4492 = vunpack.c.h.b16 %v2983
        %v4493 = vunpack.c.l.b16 %v2984
        %v4494 = vunpack.c.h.b16 %v2984
        %v4495 = vunpack.c.l.b16 %v2985
        %v4496 = vunpack.c.h.b16 %v2985
        %v4497 = vunpack.c.l.b16 %v2986
        %v4498 = vunpack.c.h.b16 %v2986
        %v4499 = vunpack.c.l.b16 %v2987
        %v4500 = vunpack.c.h.b16 %v2987
        %v4501 = vunpack.c.l.b16 %v2988
        %v4502 = vunpack.c.h.b16 %v2988
        %v4503 = vunpack.c.l.b16 %v2989
        %v4504 = vunpack.c.h.b16 %v2989
        %v4505 = vunpack.c.l.b16 %v2990
        %v4506 = vunpack.c.h.b16 %v2990
        %v4507 = vunpack.c.l.b16 %v2991
        %v4508 = vunpack.c.h.b16 %v2991
        %v4509 = vunpack.c.l.b16 %v2992
        %v4510 = vunpack.c.h.b16 %v2992
        %v4511 = vunpack.c.l.b16 %v2993
        %v4512 = vunpack.c.h.b16 %v2993
        %v4513 = vunpack.c.l.b16 %v2994
        %v4514 = vunpack.c.h.b16 %v2994
        %v4515 = vunpack.c.l.b16 %v2995
        %v4516 = vunpack.c.h.b16 %v2995
        %v4517 = vunpack.c.l.b16 %v2996
        %v4518 = vunpack.c.h.b16 %v2996
        %v4519 = vunpack.c.l.b16 %v2997
        %v4520 = vunpack.c.h.b16 %v2997
        %v4521 = vunpack.c.l.b16 %v2998
        %v4522 = vunpack.c.h.b16 %v2998
        %v4523 = vunpack.c.l.b16 %v2999
        %v4524 = vunpack.c.h.b16 %v2999
        %v4525 = vunpack.c.l.b16 %v3000
        %v4526 = vunpack.c.h.b16 %v3000
        %v4527 = vunpack.c.l.b16 %v3001
        %v4528 = vunpack.c.h.b16 %v3001
        %v4529 = vunpack.c.l.b16 %v3002
        %v4530 = vunpack.c.h.b16 %v3002
        %v4531 = vunpack.c.l.b16 %v3003
        %v4532 = vunpack.c.h.b16 %v3003
        %v4533 = vunpack.c.l.b16 %v3004
        %v4534 = vunpack.c.h.b16 %v3004
        %v4535 = vunpack.c.l.b16 %v3005
        %v4536 = vunpack.c.h.b16 %v3005
        %v4537 = vunpack.c.l.b16 %v3006
        %v4538 = vunpack.c.h.b16 %v3006
        %v4539 = vunpack.c.l.b16 %v3007
        %v4540 = vunpack.c.h.b16 %v3007
        %v4541 = vunpack.c.l.b16 %v3008
        %v4542 = vunpack.c.h.b16 %v3008
        %v4543 = vunpack.c.l.b16 %v3009
        %v4544 = vunpack.c.h.b16 %v3009
        %v4545 = vunpack.c.l.b16 %v3010
        %v4546 = vunpack.c.h.b16 %v3010
        %v4547 = vunpack.c.l.b16 %v3011
        %v4548 = vunpack.c.h.b16 %v3011
        %v4549 = vunpack.c.l.b16 %v3012
        %v4550 = vunpack.c.h.b16 %v3012
        %v4551 = vunpack.c.l.b16 %v3013
        %v4552 = vunpack.c.h.b16 %v3013
        %v4553 = vunpack.c.l.b16 %v3014
        %v4554 = vunpack.c.h.b16 %v3014
        %v4555 = vunpack.c.l.b16 %v3015
        %v4556 = vunpack.c.h.b16 %v3015
        %v4557 = vunpack.c.l.b16 %v3016
        %v4558 = vunpack.c.h.b16 %v3016
        %v4559 = vunpack.c.l.b16 %v3017
        %v4560 = vunpack.c.h.b16 %v3017
        %v4561 = vunpack.c.l.b16 %v3018
        %v4562 = vunpack.c.h.b16 %v3018
        %v4563 = vunpack.c.l.b16 %v3019
        %v4564 = vunpack.c.h.b16 %v3019
        %v4565 = vunpack.c.l.b16 %v3020
        %v4566 = vunpack.c.h.b16 %v3020
        %v4567 = vunpack.c.l.b16 %v3021
        %v4568 = vunpack.c.h.b16 %v3021
        %v4569 = vunpack.c.l.b16 %v3022
        %v4570 = vunpack.c.h.b16 %v3022
        %v4571 = vunpack.c.l.b16 %v3023
        %v4572 = vunpack.c.h.b16 %v3023
        %v4573 = vunpack.c.l.b16 %v3024
        %v4574 = vunpack.c.h.b16 %v3024
        %v4575 = vunpack.c.l.b16 %v3025
        %v4576 = vunpack.c.h.b16 %v3025
        %v4577 = vunpack.c.l.b16 %v3026
        %v4578 = vunpack.c.h.b16 %v3026
        %v4579 = vunpack.c.l.b16 %v3027
        %v4580 = vunpack.c.h.b16 %v3027
        %v4581 = vunpack.c.l.b16 %v3028
        %v4582 = vunpack.c.h.b16 %v3028
        %v4583 = vunpack.c.l.b16 %v3029
        %v4584 = vunpack.c.h.b16 %v3029
        %v4585 = vunpack.c.l.b16 %v3030
        %v4586 = vunpack.c.h.b16 %v3030
        %v4587 = vunpack.c.l.b16 %v3031
        %v4588 = vunpack.c.h.b16 %v3031
        %v4589 = vunpack.c.l.b16 %v3032
        %v4590 = vunpack.c.h.b16 %v3032
        %v4591 = vunpack.c.l.b16 %v3033
        %v4592 = vunpack.c.h.b16 %v3033
        %v4593 = vunpack.c.l.b16 %v3034
        %v4594 = vunpack.c.h.b16 %v3034
        %v4595 = vunpack.c.l.b16 %v3035
        %v4596 = vunpack.c.h.b16 %v3035
        %v4597 = vunpack.c.l.b16 %v3036
        %v4598 = vunpack.c.h.b16 %v3036
        %v4599 = vunpack.c.l.b16 %v3037
        %v4600 = vunpack.c.h.b16 %v3037
        %v4601 = vunpack.c.l.b16 %v3038
        %v4602 = vunpack.c.h.b16 %v3038
        %v4603 = vunpack.c.l.b16 %v3039
        %v4604 = vunpack.c.h.b16 %v3039
        %v4605 = vunpack.c.l.b16 %v3040
        %v4606 = vunpack.c.h.b16 %v3040
        %v4607 = vunpack.c.l.b16 %v3041
        %v4608 = vunpack.c.h.b16 %v3041
        %v4609 = vunpack.c.l.b16 %v3042
        %v4610 = vunpack.c.h.b16 %v3042
        %v4611 = vunpack.c.l.b16 %v3043
        %v4612 = vunpack.c.h.b16 %v3043
        %v4613 = vunpack.c.l.b16 %v3044
        %v4614 = vunpack.c.h.b16 %v3044
        %v4615 = vunpack.c.l.b16 %v3045
        %v4616 = vunpack.c.h.b16 %v3045
        %v4617 = vunpack.c.l.b16 %v3046
        %v4618 = vunpack.c.h.b16 %v3046
        %v4619 = vunpack.c.l.b16 %v3047
        %v4620 = vunpack.c.h.b16 %v3047
        %v4621 = vunpack.c.l.b16 %v3048
        %v4622 = vunpack.c.h.b16 %v3048
        %v4623 = vunpack.c.l.b16 %v3049
        %v4624 = vunpack.c.h.b16 %v3049
        %v4625 = vunpack.c.l.b16 %v3050
        %v4626 = vunpack.c.h.b16 %v3050
        %v4627 = vunpack.c.l.b16 %v3051
        %v4628 = vunpack.c.h.b16 %v3051
        %v4629 = vunpack.c.l.b16 %v3052
        %v4630 = vunpack.c.h.b16 %v3052
        %v4631 = vunpack.c.l.b16 %v3053
        %v4632 = vunpack.c.h.b16 %v3053
        %v4633 = vunpack.c.l.b16 %v3054
        %v4634 = vunpack.c.h.b16 %v3054
        %v4635 = vunpack.c.l.b16 %v3055
        %v4636 = vunpack.c.h.b16 %v3055
        %v4637 = vunpack.c.l.b16 %v3056
        %v4638 = vunpack.c.h.b16 %v3056
        %v4639 = vunpack.c.l.b16 %v3057
        %v4640 = vunpack.c.h.b16 %v3057
        %v4641 = vunpack.c.l.b16 %v3058
        %v4642 = vunpack.c.h.b16 %v3058
        %v4643 = vunpack.c.l.b16 %v3059
        %v4644 = vunpack.c.h.b16 %v3059
        %v4645 = vunpack.c.l.b16 %v3060
        %v4646 = vunpack.c.h.b16 %v3060
        %v4647 = vunpack.c.l.b16 %v3061
        %v4648 = vunpack.c.h.b16 %v3061
        %v4649 = vunpack.c.l.b16 %v3062
        %v4650 = vunpack.c.h.b16 %v3062
        %v4651 = vunpack.c.l.b16 %v3063
        %v4652 = vunpack.c.h.b16 %v3063
        %v4653 = vunpack.c.l.b16 %v3064
        %v4654 = vunpack.c.h.b16 %v3064
        %v4655 = vunpack.c.l.b16 %v3065
        %v4656 = vunpack.c.h.b16 %v3065
        %v4657 = vunpack.c.l.b16 %v3066
        %v4658 = vunpack.c.h.b16 %v3066
        %v4659 = vunpack.c.l.b16 %v3067
        %v4660 = vunpack.c.h.b16 %v3067
        %v4661 = vunpack.c.l.b16 %v3068
        %v4662 = vunpack.c.h.b16 %v3068
        %v4663 = vunpack.c.l.b16 %v3069
        %v4664 = vunpack.c.h.b16 %v3069
        %v4665 = vunpack.c.l.b16 %v3070
        %v4666 = vunpack.c.h.b16 %v3070
        %v4667 = vunpack.c.l.b16 %v3071
        %v4668 = vunpack.c.h.b16 %v3071
        %v4669 = vunpack.c.l.b16 %v3072
        %v4670 = vunpack.c.h.b16 %v3072
        %v4671 = vunpack.c.l.b16 %v3073
        %v4672 = vunpack.c.h.b16 %v3073
        %v4673 = vunpack.c.l.b16 %v3074
        %v4674 = vunpack.c.h.b16 %v3074
        %v4675 = vunpack.c.l.b16 %v3075
        %v4676 = vunpack.c.h.b16 %v3075
        %v4677 = vunpack.c.l.b16 %v3076
        %v4678 = vunpack.c.h.b16 %v3076
        %v4679 = vunpack.c.l.b16 %v3077
        %v4680 = vunpack.c.h.b16 %v3077
        %v4681 = vunpack.c.l.b16 %v3078
        %v4682 = vunpack.c.h.b16 %v3078
        %v4683 = vunpack.c.l.b16 %v3079
        %v4684 = vunpack.c.h.b16 %v3079
        %v4685 = vunpack.c.l.b16 %v3080
        %v4686 = vunpack.c.h.b16 %v3080
        %v4687 = vunpack.c.l.b16 %v3081
        %v4688 = vunpack.c.h.b16 %v3081
        %v4689 = vunpack.c.l.b16 %v3082
        %v4690 = vunpack.c.h.b16 %v3082
        %v4691 = vunpack.c.l.b16 %v3083
        %v4692 = vunpack.c.h.b16 %v3083
        %v4693 = vunpack.c.l.b16 %v3084
        %v4694 = vunpack.c.h.b16 %v3084
        %v4695 = vunpack.c.l.b16 %v3085
        %v4696 = vunpack.c.h.b16 %v3085
        %v4697 = vunpack.c.l.b16 %v3086
        %v4698 = vunpack.c.h.b16 %v3086
        %v4699 = vunpack.c.l.b16 %v3087
        %v4700 = vunpack.c.h.b16 %v3087
        %v4701 = vunpack.c.l.b16 %v3088
        %v4702 = vunpack.c.h.b16 %v3088
        %v4703 = vunpack.c.l.b16 %v3089
        %v4704 = vunpack.c.h.b16 %v3089
        %v4705 = vunpack.c.l.b16 %v3090
        %v4706 = vunpack.c.h.b16 %v3090
        %v4707 = vunpack.c.l.b16 %v3091
        %v4708 = vunpack.c.h.b16 %v3091
        %v4709 = vunpack.c.l.b16 %v3092
        %v4710 = vunpack.c.h.b16 %v3092
        %v4711 = vunpack.c.l.b16 %v3093
        %v4712 = vunpack.c.h.b16 %v3093
        %v4713 = vunpack.c.l.b16 %v3094
        %v4714 = vunpack.c.h.b16 %v3094
        %v4715 = vunpack.c.l.b16 %v3095
        %v4716 = vunpack.c.h.b16 %v3095
        %v4717 = vunpack.c.l.b16 %v3096
        %v4718 = vunpack.c.h.b16 %v3096
        %v4719 = vunpack.c.l.b16 %v3097
        %v4720 = vunpack.c.h.b16 %v3097
        %v4721 = vunpack.c.l.b16 %v3098
        %v4722 = vunpack.c.h.b16 %v3098
        %v4723 = vunpack.c.l.b16 %v3099
        %v4724 = vunpack.c.h.b16 %v3099
        %v4725 = vunpack.c.l.b16 %v3100
        %v4726 = vunpack.c.h.b16 %v3100
        %v4727 = vunpack.c.l.b16 %v3101
        %v4728 = vunpack.c.h.b16 %v3101
        %v4729 = vunpack.c.l.b16 %v3102
        %v4730 = vunpack.c.h.b16 %v3102
        %v4731 = vunpack.c.l.b16 %v3103
        %v4732 = vunpack.c.h.b16 %v3103
        %v4733 = vunpack.c.l.b16 %v3104
        %v4734 = vunpack.c.h.b16 %v3104
        %v4735 = vunpack.c.l.b16 %v3105
        %v4736 = vunpack.c.h.b16 %v3105
        %v4737 = vunpack.c.l.b16 %v3106
        %v4738 = vunpack.c.h.b16 %v3106
        %v4739 = vunpack.c.l.b16 %v3107
        %v4740 = vunpack.c.h.b16 %v3107
        %v4741 = vunpack.c.l.b16 %v3108
        %v4742 = vunpack.c.h.b16 %v3108
        %v4743 = vunpack.c.l.b16 %v3109
        %v4744 = vunpack.c.h.b16 %v3109
        %v4745 = vunpack.c.l.b16 %v3110
        %v4746 = vunpack.c.h.b16 %v3110
        %v4747 = vunpack.c.l.b16 %v3111
        %v4748 = vunpack.c.h.b16 %v3111
        %v4749 = vunpack.c.l.b16 %v3112
        %v4750 = vunpack.c.h.b16 %v3112
        %v4751 = vunpack.c.l.b16 %v3113
        %v4752 = vunpack.c.h.b16 %v3113
        %v4753 = vunpack.c.l.b16 %v3114
        %v4754 = vunpack.c.h.b16 %v3114
        %v4755 = vunpack.c.l.b16 %v3115
        %v4756 = vunpack.c.h.b16 %v3115
        %v4757 = vunpack.c.l.b16 %v3116
        %v4758 = vunpack.c.h.b16 %v3116
        %v4759 = vunpack.c.l.b16 %v3117
        %v4760 = vunpack.c.h.b16 %v3117
        %v4761 = vunpack.c.l.b16 %v3118
        %v4762 = vunpack.c.h.b16 %v3118
        %v4763 = vunpack.c.l.b16 %v3119
        %v4764 = vunpack.c.h.b16 %v3119
        %v4765 = vunpack.c.l.b16 %v3120
        %v4766 = vunpack.c.h.b16 %v3120
        %v4767 = vunpack.c.l.b16 %v3121
        %v4768 = vunpack.c.h.b16 %v3121
        %v4769 = vunpack.c.l.b16 %v3122
        %v4770 = vunpack.c.h.b16 %v3122
        %v4771 = vunpack.c.l.b16 %v3123
        %v4772 = vunpack.c.h.b16 %v3123
        %v4773 = vunpack.c.l.b16 %v3124
        %v4774 = vunpack.c.h.b16 %v3124
        %v4775 = vunpack.c.l.b16 %v3125
        %v4776 = vunpack.c.h.b16 %v3125
        %v4777 = vunpack.c.l.b16 %v3126
        %v4778 = vunpack.c.h.b16 %v3126
        %v4779 = vunpack.c.l.b16 %v3127
        %v4780 = vunpack.c.h.b16 %v3127
        %v4781 = vunpack.c.l.b16 %v3128
        %v4782 = vunpack.c.h.b16 %v3128
        %v4783 = vunpack.c.l.b16 %v3129
        %v4784 = vunpack.c.h.b16 %v3129
        %v4785 = vunpack.c.l.b16 %v3130
        %v4786 = vunpack.c.h.b16 %v3130
        %v4787 = vunpack.c.l.b16 %v3131
        %v4788 = vunpack.c.h.b16 %v3131
        %v4789 = vunpack.c.l.b16 %v3132
        %v4790 = vunpack.c.h.b16 %v3132
        %v4791 = vunpack.c.l.b16 %v3133
        %v4792 = vunpack.c.h.b16 %v3133
        %v4793 = vunpack.c.l.b16 %v3134
        %v4794 = vunpack.c.h.b16 %v3134
        %v4795 = vunpack.c.l.b16 %v3135
        %v4796 = vunpack.c.h.b16 %v3135
        %v4797 = vunpack.c.l.b16 %v3136
        %v4798 = vunpack.c.h.b16 %v3136
        %v4799 = vunpack.c.l.b16 %v3137
        %v4800 = vunpack.c.h.b16 %v3137
        %v4801 = vunpack.c.l.b16 %v3138
        %v4802 = vunpack.c.h.b16 %v3138
        %v4803 = vunpack.c.l.b16 %v3139
        %v4804 = vunpack.c.h.b16 %v3139
        %v4805 = vunpack.c.l.b16 %v3140
        %v4806 = vunpack.c.h.b16 %v3140
        %v4807 = vunpack.c.l.b16 %v3141
        %v4808 = vunpack.c.h.b16 %v3141
        %v4809 = vunpack.c.l.b16 %v3142
        %v4810 = vunpack.c.h.b16 %v3142
        %v4811 = vunpack.c.l.b16 %v3143
        %v4812 = vunpack.c.h.b16 %v3143
        %v4813 = vunpack.c.l.b16 %v3144
        %v4814 = vunpack.c.h.b16 %v3144
        %v4815 = vunpack.c.l.b16 %v3145
        %v4816 = vunpack.c.h.b16 %v3145
        %v4817 = vunpack.c.l.b16 %v3146
        %v4818 = vunpack.c.h.b16 %v3146
        %v4819 = vunpack.c.l.b16 %v3147
        %v4820 = vunpack.c.h.b16 %v3147
        %v4821 = vunpack.c.l.b16 %v3148
        %v4822 = vunpack.c.h.b16 %v3148
        %v4823 = vunpack.c.l.b16 %v3149
        %v4824 = vunpack.c.h.b16 %v3149
        %v4825 = vunpack.c.l.b16 %v3150
        %v4826 = vunpack.c.h.b16 %v3150
        %v4827 = vunpack.c.l.b16 %v3151
        %v4828 = vunpack.c.h.b16 %v3151
        %v4829 = vunpack.c.l.b16 %v3152
        %v4830 = vunpack.c.h.b16 %v3152
        %v4831 = vunpack.c.l.b16 %v3153
        %v4832 = vunpack.c.h.b16 %v3153
        %v4833 = vunpack.c.l.b16 %v3154
        %v4834 = vunpack.c.h.b16 %v3154
        %v4835 = vunpack.c.l.b16 %v3155
        %v4836 = vunpack.c.h.b16 %v3155
        %v4837 = vunpack.c.l.b16 %v3156
        %v4838 = vunpack.c.h.b16 %v3156
        %v4839 = vunpack.c.l.b16 %v3157
        %v4840 = vunpack.c.h.b16 %v3157
        %v4841 = vunpack.c.l.b16 %v3158
        %v4842 = vunpack.c.h.b16 %v3158
        %v4843 = vunpack.c.l.b16 %v3159
        %v4844 = vunpack.c.h.b16 %v3159
        %v4845 = vunpack.c.l.b16 %v3160
        %v4846 = vunpack.c.h.b16 %v3160
        %v4847 = vunpack.c.l.b16 %v3161
        %v4848 = vunpack.c.h.b16 %v3161
        %v4849 = vunpack.c.l.b16 %v3162
        %v4850 = vunpack.c.h.b16 %v3162
        %v4851 = vunpack.c.l.b16 %v3163
        %v4852 = vunpack.c.h.b16 %v3163
        %v4853 = vunpack.c.l.b16 %v3164
        %v4854 = vunpack.c.h.b16 %v3164
        %v4855 = vunpack.c.l.b16 %v3165
        %v4856 = vunpack.c.h.b16 %v3165
        %v4857 = vunpack.c.l.b16 %v3166
        %v4858 = vunpack.c.h.b16 %v3166
        %v4859 = vunpack.c.l.b16 %v3167
        %v4860 = vunpack.c.h.b16 %v3167
        %v4861 = vunpack.c.l.b16 %v3168
        %v4862 = vunpack.c.h.b16 %v3168
        %v4863 = vunpack.c.l.b16 %v3169
        %v4864 = vunpack.c.h.b16 %v3169
        %v4865 = vunpack.c.l.b16 %v3170
        %v4866 = vunpack.c.h.b16 %v3170
        %v4867 = vunpack.c.l.b16 %v3171
        %v4868 = vunpack.c.h.b16 %v3171
        %v4869 = vunpack.c.l.b16 %v3172
        %v4870 = vunpack.c.h.b16 %v3172
        %v4871 = vunpack.c.l.b16 %v3173
        %v4872 = vunpack.c.h.b16 %v3173
        %v4873 = vunpack.c.l.b16 %v3174
        %v4874 = vunpack.c.h.b16 %v3174
        %v4875 = vunpack.c.l.b16 %v3175
        %v4876 = vunpack.c.h.b16 %v3175
        %v4877 = vunpack.c.l.b16 %v3176
        %v4878 = vunpack.c.h.b16 %v3176
        %v4879 = vunpack.c.l.b16 %v3177
        %v4880 = vunpack.c.h.b16 %v3177
        %v4881 = vunpack.c.l.b16 %v3178
        %v4882 = vunpack.c.h.b16 %v3178
        %v4883 = vunpack.c.l.b16 %v3179
        %v4884 = vunpack.c.h.b16 %v3179
        %v4885 = vunpack.c.l.b16 %v3180
        %v4886 = vunpack.c.h.b16 %v3180
        %v4887 = vunpack.c.l.b16 %v3181
        %v4888 = vunpack.c.h.b16 %v3181
        %v4889 = vunpack.c.l.b16 %v3182
        %v4890 = vunpack.c.h.b16 %v3182
        %v4891 = vunpack.c.l.b16 %v3183
        %v4892 = vunpack.c.h.b16 %v3183
        %v4893 = vunpack.c.l.b16 %v3184
        %v4894 = vunpack.c.h.b16 %v3184
        %v4895 = vunpack.c.l.b16 %v3185
        %v4896 = vunpack.c.h.b16 %v3185
        %v4897 = vunpack.c.l.b16 %v3186
        %v4898 = vunpack.c.h.b16 %v3186
        %v4899 = vunpack.c.l.b16 %v3187
        %v4900 = vunpack.c.h.b16 %v3187
        %v4901 = vunpack.c.l.b16 %v3188
        %v4902 = vunpack.c.h.b16 %v3188
        %v4903 = vunpack.c.l.b16 %v3189
        %v4904 = vunpack.c.h.b16 %v3189
        %v4905 = vunpack.c.l.b16 %v3190
        %v4906 = vunpack.c.h.b16 %v3190
        %v4907 = vunpack.c.l.b16 %v3191
        %v4908 = vunpack.c.h.b16 %v3191
        %v4909 = vunpack.c.l.b16 %v3192
        %v4910 = vunpack.c.h.b16 %v3192
        %v4911 = vunpack.c.l.b16 %v3193
        %v4912 = vunpack.c.h.b16 %v3193
        %v4913 = vunpack.c.l.b16 %v3194
        %v4914 = vunpack.c.h.b16 %v3194
        %v4915 = vunpack.c.l.b16 %v3195
        %v4916 = vunpack.c.h.b16 %v3195
        %v4917 = vunpack.c.l.b16 %v3196
        %v4918 = vunpack.c.h.b16 %v3196
        %v4919 = vunpack.c.l.b16 %v3197
        %v4920 = vunpack.c.h.b16 %v3197
        %v4921 = vunpack.c.l.b16 %v3198
        %v4922 = vunpack.c.h.b16 %v3198
        %v4923 = vunpack.c.l.b16 %v3199
        %v4924 = vunpack.c.h.b16 %v3199
        %v4925 = vunpack.c.l.b16 %v3200
        %v4926 = vunpack.c.h.b16 %v3200
        %v4927 = vunpack.c.l.b16 %v3201
        %v4928 = vunpack.c.h.b16 %v3201
        %v4929 = vunpack.c.l.b16 %v3202
        %v4930 = vunpack.c.h.b16 %v3202
        %v4931 = vunpack.c.l.b16 %v3203
        %v4932 = vunpack.c.h.b16 %v3203
        %v4933 = vunpack.c.l.b16 %v3204
        %v4934 = vunpack.c.h.b16 %v3204
        %v4935 = vunpack.c.l.b16 %v3205
        %v4936 = vunpack.c.h.b16 %v3205
        %v4937 = vunpack.c.l.b16 %v3206
        %v4938 = vunpack.c.h.b16 %v3206
        %v4939 = vunpack.c.l.b16 %v3207
        %v4940 = vunpack.c.h.b16 %v3207
        %v4941 = vunpack.c.l.b16 %v3208
        %v4942 = vunpack.c.h.b16 %v3208
        %v4943 = vunpack.c.l.b16 %v3209
        %v4944 = vunpack.c.h.b16 %v3209
        %v4945 = vunpack.c.l.b16 %v3210
        %v4946 = vunpack.c.h.b16 %v3210
        %v4947 = vunpack.c.l.b16 %v3211
        %v4948 = vunpack.c.h.b16 %v3211
        %v4949 = vunpack.c.l.b16 %v3212
        %v4950 = vunpack.c.h.b16 %v3212
        %v4951 = vunpack.c.l.b16 %v3213
        %v4952 = vunpack.c.h.b16 %v3213
        %v4953 = vunpack.c.l.b16 %v3214
        %v4954 = vunpack.c.h.b16 %v3214
        %v4955 = vunpack.c.l.b16 %v3215
        %v4956 = vunpack.c.h.b16 %v3215
        %v4957 = vunpack.c.l.b16 %v3216
        %v4958 = vunpack.c.h.b16 %v3216
        %v4959 = vunpack.c.l.b16 %v3217
        %v4960 = vunpack.c.h.b16 %v3217
        %v4961 = vunpack.c.l.b16 %v3218
        %v4962 = vunpack.c.h.b16 %v3218
        %v4963 = vunpack.c.l.b16 %v3219
        %v4964 = vunpack.c.h.b16 %v3219
        %v4965 = vunpack.c.l.b16 %v3220
        %v4966 = vunpack.c.h.b16 %v3220
        %v4967 = vunpack.c.l.b16 %v3221
        %v4968 = vunpack.c.h.b16 %v3221
        %v4969 = vunpack.c.l.b16 %v3222
        %v4970 = vunpack.c.h.b16 %v3222
        %v4971 = vunpack.c.l.b16 %v3223
        %v4972 = vunpack.c.h.b16 %v3223
        %v4973 = vunpack.c.l.b16 %v3224
        %v4974 = vunpack.c.h.b16 %v3224
        %v4975 = vunpack.c.l.b16 %v3225
        %v4976 = vunpack.c.h.b16 %v3225
        %v4977 = vunpack.c.l.b16 %v3226
        %v4978 = vunpack.c.h.b16 %v3226
        %v4979 = vunpack.c.l.b16 %v3227
        %v4980 = vunpack.c.h.b16 %v3227
        %v4981 = vunpack.c.l.b16 %v3228
        %v4982 = vunpack.c.h.b16 %v3228
        %v4983 = vunpack.c.l.b16 %v3229
        %v4984 = vunpack.c.h.b16 %v3229
        %v4985 = vunpack.c.l.b16 %v3230
        %v4986 = vunpack.c.h.b16 %v3230
        %v4987 = vpack.c.b16 %v3847, %v3835
        %v4988 = vpack.c.b16 %v3848, %v3836
        %v4989 = vpack.c.b16 %v3849, %v3837
        %v4990 = vpack.c.b16 %v3850, %v3838
        %v4991 = vpack.c.b16 %v3851, %v3839
        %v4992 = vpack.c.b16 %v3852, %v3840
        %v4993 = vpack.c.b16 %v3853, %v3841
        %v4994 = vpack.c.b16 %v3854, %v3842
        %v4995 = vpack.c.b16 %v3855, %v3843
        %v4996 = vpack.c.b16 %v3856, %v3844
        %v4997 = vpack.c.b16 %v3857, %v3845
        %v4998 = vpack.c.b16 %v3858, %v3846
        %v4999 = vpack.c.b16 %v3871, %v3859
        %v5000 = vpack.c.b16 %v3872, %v3860
        %v5001 = vpack.c.b16 %v3873, %v3861
        %v5002 = vpack.c.b16 %v3874, %v3862
        %v5003 = vpack.c.b16 %v3875, %v3863
        %v5004 = vpack.c.b16 %v3876, %v3864
        %v5005 = vpack.c.b16 %v3877, %v3865
        %v5006 = vpack.c.b16 %v3878, %v3866
        %v5007 = vpack.c.b16 %v3879, %v3867
        %v5008 = vpack.c.b16 %v3880, %v3868
        %v5009 = vpack.c.b16 %v3881, %v3869
        %v5010 = vpack.c.b16 %v3882, %v3870
        %v5011 = vpack.c.b16 %v3895, %v3883
        %v5012 = vpack.c.b16 %v3896, %v3884
        %v5013 = vpack.c.b16 %v3897, %v3885
        %v5014 = vpack.c.b16 %v3898, %v3886
        %v5015 = vpack.c.b16 %v3899, %v3887
        %v5016 = vpack.c.b16 %v3900, %v3888
        %v5017 = vpack.c.b16 %v3901, %v3889
        %v5018 = vpack.c.b16 %v3902, %v3890
        %v5019 = vpack.c.b16 %v3903, %v3891
        %v5020 = vpack.c.b16 %v3904, %v3892
        %v5021 = vpack.c.b16 %v3905, %v3893
        %v5022 = vpack.c.b16 %v3906, %v3894
        %v5023 = vpack.c.b16 %v3919, %v3907
        %v5024 = vpack.c.b16 %v3920, %v3908
        %v5025 = vpack.c.b16 %v3921, %v3909
        %v5026 = vpack.c.b16 %v3922, %v3910
        %v5027 = vpack.c.b16 %v3923, %v3911
        %v5028 = vpack.c.b16 %v3924, %v3912
        %v5029 = vpack.c.b16 %v3925, %v3913
        %v5030 = vpack.c.b16 %v3926, %v3914
        %v5031 = vpack.c.b16 %v3927, %v3915
        %v5032 = vpack.c.b16 %v3928, %v3916
        %v5033 = vpack.c.b16 %v3929, %v3917
        %v5034 = vpack.c.b16 %v3930, %v3918
        %v5035 = vpack.c.b16 %v3943, %v3931
        %v5036 = vpack.c.b16 %v3944, %v3932
        %v5037 = vpack.c.b16 %v3945, %v3933
        %v5038 = vpack.c.b16 %v3946, %v3934
        %v5039 = vpack.c.b16 %v3947, %v3935
        %v5040 = vpack.c.b16 %v3948, %v3936
        %v5041 = vpack.c.b16 %v3949, %v3937
        %v5042 = vpack.c.b16 %v3950, %v3938
        %v5043 = vpack.c.b16 %v3951, %v3939
        %v5044 = vpack.c.b16 %v3952, %v3940
        %v5045 = vpack.c.b16 %v3953, %v3941
        %v5046 = vpack.c.b16 %v3954, %v3942
        %v5047 = vpack.c.b16 %v3967, %v3955
        %v5048 = vpack.c.b16 %v3968, %v3956
        %v5049 = vpack.c.b16 %v3969, %v3957
        %v5050 = vpack.c.b16 %v3970, %v3958
        %v5051 = vpack.c.b16 %v3971, %v3959
        %v5052 = vpack.c.b16 %v3972, %v3960
        %v5053 = vpack.c.b16 %v3973, %v3961
        %v5054 = vpack.c.b16 %v3974, %v3962
        %v5055 = vpack.c.b16 %v3975, %v3963
        %v5056 = vpack.c.b16 %v3976, %v3964
        %v5057 = vpack.c.b16 %v3977, %v3965
        %v5058 = vpack.c.b16 %v3978, %v3966
        %v5059 = vpack.c.b16 %v3991, %v3979
        %v5060 = vpack.c.b16 %v3992, %v3980
        %v5061 = vpack.c.b16 %v3993, %v3981
        %v5062 = vpack.c.b16 %v3994, %v3982
        %v5063 = vpack.c.b16 %v3995, %v3983
        %v5064 = vpack.c.b16 %v3996, %v3984
        %v5065 = vpack.c.b16 %v3997, %v3985
        %v5066 = vpack.c.b16 %v3998, %v3986
        %v5067 = vpack.c.b16 %v3999, %v3987
        %v5068 = vpack.c.b16 %v4000, %v3988
        %v5069 = vpack.c.b16 %v4001, %v3989
        %v5070 = vpack.c.b16 %v4002, %v3990
        %v5071 = vpack.c.b16 %v4015, %v4003
        %v5072 = vpack.c.b16 %v4016, %v4004
        %v5073 = vpack.c.b16 %v4017, %v4005
        %v5074 = vpack.c.b16 %v4018, %v4006
        %v5075 = vpack.c.b16 %v4019, %v4007
        %v5076 = vpack.c.b16 %v4020, %v4008
        %v5077 = vpack.c.b16 %v4021, %v4009
        %v5078 = vpack.c.b16 %v4022, %v4010
        %v5079 = vpack.c.b16 %v4023, %v4011
        %v5080 = vpack.c.b16 %v4024, %v4012
        %v5081 = vpack.c.b16 %v4025, %v4013
        %v5082 = vpack.c.b16 %v4026, %v4014
        %v5083 = vpack.c.b16 %v4039, %v4027
        %v5084 = vpack.c.b16 %v4040, %v4028
        %v5085 = vpack.c.b16 %v4041, %v4029
        %v5086 = vpack.c.b16 %v4042, %v4030
        %v5087 = vpack.c.b16 %v4043, %v4031
        %v5088 = vpack.c.b16 %v4044, %v4032
        %v5089 = vpack.c.b16 %v4045, %v4033
        %v5090 = vpack.c.b16 %v4046, %v4034
        %v5091 = vpack.c.b16 %v4047, %v4035
        %v5092 = vpack.c.b16 %v4048, %v4036
        %v5093 = vpack.c.b16 %v4049, %v4037
        %v5094 = vpack.c.b16 %v4050, %v4038
        %v5095 = vpack.c.b16 %v4063, %v4051
        %v5096 = vpack.c.b16 %v4064, %v4052
        %v5097 = vpack.c.b16 %v4065, %v4053
        %v5098 = vpack.c.b16 %v4066, %v4054
        %v5099 = vpack.c.b16 %v4067, %v4055
        %v5100 = vpack.c.b16 %v4068, %v4056
        %v5101 = vpack.c.b16 %v4069, %v4057
        %v5102 = vpack.c.b16 %v4070, %v4058
        %v5103 = vpack.c.b16 %v4071, %v4059
        %v5104 = vpack.c.b16 %v4072, %v4060
        %v5105 = vpack.c.b16 %v4073, %v4061
        %v5106 = vpack.c.b16 %v4074, %v4062
        %v5107 = vpack.c.b16 %v4087, %v4075
        %v5108 = vpack.c.b16 %v4088, %v4076
        %v5109 = vpack.c.b16 %v4089, %v4077
        %v5110 = vpack.c.b16 %v4090, %v4078
        %v5111 = vpack.c.b16 %v4091, %v4079
        %v5112 = vpack.c.b16 %v4092, %v4080
        %v5113 = vpack.c.b16 %v4093, %v4081
        %v5114 = vpack.c.b16 %v4094, %v4082
        %v5115 = vpack.c.b16 %v4095, %v4083
        %v5116 = vpack.c.b16 %v4096, %v4084
        %v5117 = vpack.c.b16 %v4097, %v4085
        %v5118 = vpack.c.b16 %v4098, %v4086
        %v5119 = vpack.c.b16 %v4111, %v4099
        %v5120 = vpack.c.b16 %v4112, %v4100
        %v5121 = vpack.c.b16 %v4113, %v4101
        %v5122 = vpack.c.b16 %v4114, %v4102
        %v5123 = vpack.c.b16 %v4115, %v4103
        %v5124 = vpack.c.b16 %v4116, %v4104
        %v5125 = vpack.c.b16 %v4117, %v4105
        %v5126 = vpack.c.b16 %v4118, %v4106
        %v5127 = vpack.c.b16 %v4119, %v4107
        %v5128 = vpack.c.b16 %v4120, %v4108
        %v5129 = vpack.c.b16 %v4121, %v4109
        %v5130 = vpack.c.b16 %v4122, %v4110
        %v5131 = vpack.c.b16 %v4135, %v4123
        %v5132 = vpack.c.b16 %v4136, %v4124
        %v5133 = vpack.c.b16 %v4137, %v4125
        %v5134 = vpack.c.b16 %v4138, %v4126
        %v5135 = vpack.c.b16 %v4139, %v4127
        %v5136 = vpack.c.b16 %v4140, %v4128
        %v5137 = vpack.c.b16 %v4141, %v4129
        %v5138 = vpack.c.b16 %v4142, %v4130
        %v5139 = vpack.c.b16 %v4143, %v4131
        %v5140 = vpack.c.b16 %v4144, %v4132
        %v5141 = vpack.c.b16 %v4145, %v4133
        %v5142 = vpack.c.b16 %v4146, %v4134
        %v5143 = vpack.c.b16 %v4159, %v4147
        %v5144 = vpack.c.b16 %v4160, %v4148
        %v5145 = vpack.c.b16 %v4161, %v4149
        %v5146 = vpack.c.b16 %v4162, %v4150
        %v5147 = vpack.c.b16 %v4163, %v4151
        %v5148 = vpack.c.b16 %v4164, %v4152
        %v5149 = vpack.c.b16 %v4165, %v4153
        %v5150 = vpack.c.b16 %v4166, %v4154
        %v5151 = vpack.c.b16 %v4167, %v4155
        %v5152 = vpack.c.b16 %v4168, %v4156
        %v5153 = vpack.c.b16 %v4169, %v4157
        %v5154 = vpack.c.b16 %v4170, %v4158
        %v5155 = vpack.c.b16 %v4183, %v4171
        %v5156 = vpack.c.b16 %v4184, %v4172
        %v5157 = vpack.c.b16 %v4185, %v4173
        %v5158 = vpack.c.b16 %v4186, %v4174
        %v5159 = vpack.c.b16 %v4187, %v4175
        %v5160 = vpack.c.b16 %v4188, %v4176
        %v5161 = vpack.c.b16 %v4189, %v4177
        %v5162 = vpack.c.b16 %v4190, %v4178
        %v5163 = vpack.c.b16 %v4191, %v4179
        %v5164 = vpack.c.b16 %v4192, %v4180
        %v5165 = vpack.c.b16 %v4193, %v4181
        %v5166 = vpack.c.b16 %v4194, %v4182
        %v5167 = vpack.c.b16 %v4207, %v4195
        %v5168 = vpack.c.b16 %v4208, %v4196
        %v5169 = vpack.c.b16 %v4209, %v4197
        %v5170 = vpack.c.b16 %v4210, %v4198
        %v5171 = vpack.c.b16 %v4211, %v4199
        %v5172 = vpack.c.b16 %v4212, %v4200
        %v5173 = vpack.c.b16 %v4213, %v4201
        %v5174 = vpack.c.b16 %v4214, %v4202
        %v5175 = vpack.c.b16 %v4215, %v4203
        %v5176 = vpack.c.b16 %v4216, %v4204
        %v5177 = vpack.c.b16 %v4217, %v4205
        %v5178 = vpack.c.b16 %v4218, %v4206
        %v5179 = vpack.c.b16 %v4231, %v4219
        %v5180 = vpack.c.b16 %v4232, %v4220
        %v5181 = vpack.c.b16 %v4233, %v4221
        %v5182 = vpack.c.b16 %v4234, %v4222
        %v5183 = vpack.c.b16 %v4235, %v4223
        %v5184 = vpack.c.b16 %v4236, %v4224
        %v5185 = vpack.c.b16 %v4237, %v4225
        %v5186 = vpack.c.b16 %v4238, %v4226
        %v5187 = vpack.c.b16 %v4239, %v4227
        %v5188 = vpack.c.b16 %v4240, %v4228
        %v5189 = vpack.c.b16 %v4241, %v4229
        %v5190 = vpack.c.b16 %v4242, %v4230
        %v5191 = vpack.c.b16 %v4255, %v4243
        %v5192 = vpack.c.b16 %v4256, %v4244
        %v5193 = vpack.c.b16 %v4257, %v4245
        %v5194 = vpack.c.b16 %v4258, %v4246
        %v5195 = vpack.c.b16 %v4259, %v4247
        %v5196 = vpack.c.b16 %v4260, %v4248
        %v5197 = vpack.c.b16 %v4261, %v4249
        %v5198 = vpack.c.b16 %v4262, %v4250
        %v5199 = vpack.c.b16 %v4263, %v4251
        %v5200 = vpack.c.b16 %v4264, %v4252
        %v5201 = vpack.c.b16 %v4265, %v4253
        %v5202 = vpack.c.b16 %v4266, %v4254
        %v5203 = vpack.c.b16 %v4279, %v4267
        %v5204 = vpack.c.b16 %v4280, %v4268
        %v5205 = vpack.c.b16 %v4281, %v4269
        %v5206 = vpack.c.b16 %v4282, %v4270
        %v5207 = vpack.c.b16 %v4283, %v4271
        %v5208 = vpack.c.b16 %v4284, %v4272
        %v5209 = vpack.c.b16 %v4285, %v4273
        %v5210 = vpack.c.b16 %v4286, %v4274
        %v5211 = vpack.c.b16 %v4287, %v4275
        %v5212 = vpack.c.b16 %v4288, %v4276
        %v5213 = vpack.c.b16 %v4289, %v4277
        %v5214 = vpack.c.b16 %v4290, %v4278
        %v5215 = vpack.c.b16 %v4303, %v4291
        %v5216 = vpack.c.b16 %v4304, %v4292
        %v5217 = vpack.c.b16 %v4305, %v4293
        %v5218 = vpack.c.b16 %v4306, %v4294
        %v5219 = vpack.c.b16 %v4307, %v4295
        %v5220 = vpack.c.b16 %v4308, %v4296
        %v5221 = vpack.c.b16 %v4309, %v4297
        %v5222 = vpack.c.b16 %v4310, %v4298
        %v5223 = vpack.c.b16 %v4311, %v4299
        %v5224 = vpack.c.b16 %v4312, %v4300
        %v5225 = vpack.c.b16 %v4313, %v4301
        %v5226 = vpack.c.b16 %v4314, %v4302
        %v5227 = vpack.c.b16 %v4327, %v4315
        %v5228 = vpack.c.b16 %v4328, %v4316
        %v5229 = vpack.c.b16 %v4329, %v4317
        %v5230 = vpack.c.b16 %v4330, %v4318
        %v5231 = vpack.c.b16 %v4331, %v4319
        %v5232 = vpack.c.b16 %v4332, %v4320
        %v5233 = vpack.c.b16 %v4333, %v4321
        %v5234 = vpack.c.b16 %v4334, %v4322
        %v5235 = vpack.c.b16 %v4335, %v4323
        %v5236 = vpack.c.b16 %v4336, %v4324
        %v5237 = vpack.c.b16 %v4337, %v4325
        %v5238 = vpack.c.b16 %v4338, %v4326
        %v5239 = vpack.c.b16 %v4351, %v4339
        %v5240 = vpack.c.b16 %v4352, %v4340
        %v5241 = vpack.c.b16 %v4353, %v4341
        %v5242 = vpack.c.b16 %v4354, %v4342
        %v5243 = vpack.c.b16 %v4355, %v4343
        %v5244 = vpack.c.b16 %v4356, %v4344
        %v5245 = vpack.c.b16 %v4357, %v4345
        %v5246 = vpack.c.b16 %v4358, %v4346
        %v5247 = vpack.c.b16 %v4359, %v4347
        %v5248 = vpack.c.b16 %v4360, %v4348
        %v5249 = vpack.c.b16 %v4361, %v4349
        %v5250 = vpack.c.b16 %v4362, %v4350
        %v5251 = vpack.c.b16 %v4375, %v4363
        %v5252 = vpack.c.b16 %v4376, %v4364
        %v5253 = vpack.c.b16 %v4377, %v4365
        %v5254 = vpack.c.b16 %v4378, %v4366
        %v5255 = vpack.c.b16 %v4379, %v4367
        %v5256 = vpack.c.b16 %v4380, %v4368
        %v5257 = vpack.c.b16 %v4381, %v4369
        %v5258 = vpack.c.b16 %v4382, %v4370
        %v5259 = vpack.c.b16 %v4383, %v4371
        %v5260 = vpack.c.b16 %v4384, %v4372
        %v5261 = vpack.c.b16 %v4385, %v4373
        %v5262 = vpack.c.b16 %v4386, %v4374
        %v5263 = vpack.c.b16 %v4399, %v4387
        %v5264 = vpack.c.b16 %v4400, %v4388
        %v5265 = vpack.c.b16 %v4401, %v4389
        %v5266 = vpack.c.b16 %v4402, %v4390
        %v5267 = vpack.c.b16 %v4403, %v4391
        %v5268 = vpack.c.b16 %v4404, %v4392
        %v5269 = vpack.c.b16 %v4405, %v4393
        %v5270 = vpack.c.b16 %v4406, %v4394
        %v5271 = vpack.c.b16 %v4407, %v4395
        %v5272 = vpack.c.b16 %v4408, %v4396
        %v5273 = vpack.c.b16 %v4409, %v4397
        %v5274 = vpack.c.b16 %v4410, %v4398
        %v5275 = vpack.c.b16 %v4423, %v4411
        %v5276 = vpack.c.b16 %v4424, %v4412
        %v5277 = vpack.c.b16 %v4425, %v4413
        %v5278 = vpack.c.b16 %v4426, %v4414
        %v5279 = vpack.c.b16 %v4427, %v4415
        %v5280 = vpack.c.b16 %v4428, %v4416
        %v5281 = vpack.c.b16 %v4429, %v4417
        %v5282 = vpack.c.b16 %v4430, %v4418
        %v5283 = vpack.c.b16 %v4431, %v4419
        %v5284 = vpack.c.b16 %v4432, %v4420
        %v5285 = vpack.c.b16 %v4433, %v4421
        %v5286 = vpack.c.b16 %v4434, %v4422
        %v5287 = vpack.c.b16 %v4447, %v4435
        %v5288 = vpack.c.b16 %v4448, %v4436
        %v5289 = vpack.c.b16 %v4449, %v4437
        %v5290 = vpack.c.b16 %v4450, %v4438
        %v5291 = vpack.c.b16 %v4451, %v4439
        %v5292 = vpack.c.b16 %v4452, %v4440
        %v5293 = vpack.c.b16 %v4453, %v4441
        %v5294 = vpack.c.b16 %v4454, %v4442
        %v5295 = vpack.c.b16 %v4455, %v4443
        %v5296 = vpack.c.b16 %v4456, %v4444
        %v5297 = vpack.c.b16 %v4457, %v4445
        %v5298 = vpack.c.b16 %v4458, %v4446
        %v5299 = vpack.c.b16 %v4471, %v4459
        %v5300 = vpack.c.b16 %v4472, %v4460
        %v5301 = vpack.c.b16 %v4473, %v4461
        %v5302 = vpack.c.b16 %v4474, %v4462
        %v5303 = vpack.c.b16 %v4475, %v4463
        %v5304 = vpack.c.b16 %v4476, %v4464
        %v5305 = vpack.c.b16 %v4477, %v4465
        %v5306 = vpack.c.b16 %v4478, %v4466
        %v5307 = vpack.c.b16 %v4479, %v4467
        %v5308 = vpack.c.b16 %v4480, %v4468
        %v5309 = vpack.c.b16 %v4481, %v4469
        %v5310 = vpack.c.b16 %v4482, %v4470
        %v5311 = vpack.c.b16 %v4495, %v4483
        %v5312 = vpack.c.b16 %v4496, %v4484
        %v5313 = vpack.c.b16 %v4497, %v4485
        %v5314 = vpack.c.b16 %v4498, %v4486
        %v5315 = vpack.c.b16 %v4499, %v4487
        %v5316 = vpack.c.b16 %v4500, %v4488
        %v5317 = vpack.c.b16 %v4501, %v4489
        %v5318 = vpack.c.b16 %v4502, %v4490
        %v5319 = vpack.c.b16 %v4503, %v4491
        %v5320 = vpack.c.b16 %v4504, %v4492
        %v5321 = vpack.c.b16 %v4505, %v4493
        %v5322 = vpack.c.b16 %v4506, %v4494
        %v5323 = vpack.c.b16 %v4519, %v4507
        %v5324 = vpack.c.b16 %v4520, %v4508
        %v5325 = vpack.c.b16 %v4521, %v4509
        %v5326 = vpack.c.b16 %v4522, %v4510
        %v5327 = vpack.c.b16 %v4523, %v4511
        %v5328 = vpack.c.b16 %v4524, %v4512
        %v5329 = vpack.c.b16 %v4525, %v4513
        %v5330 = vpack.c.b16 %v4526, %v4514
        %v5331 = vpack.c.b16 %v4527, %v4515
        %v5332 = vpack.c.b16 %v4528, %v4516
        %v5333 = vpack.c.b16 %v4529, %v4517
        %v5334 = vpack.c.b16 %v4530, %v4518
        %v5335 = vpack.c.b16 %v4543, %v4531
        %v5336 = vpack.c.b16 %v4544, %v4532
        %v5337 = vpack.c.b16 %v4545, %v4533
        %v5338 = vpack.c.b16 %v4546, %v4534
        %v5339 = vpack.c.b16 %v4547, %v4535
        %v5340 = vpack.c.b16 %v4548, %v4536
        %v5341 = vpack.c.b16 %v4549, %v4537
        %v5342 = vpack.c.b16 %v4550, %v4538
        %v5343 = vpack.c.b16 %v4551, %v4539
        %v5344 = vpack.c.b16 %v4552, %v4540
        %v5345 = vpack.c.b16 %v4553, %v4541
        %v5346 = vpack.c.b16 %v4554, %v4542
        %v5347 = vpack.c.b16 %v4567, %v4555
        %v5348 = vpack.c.b16 %v4568, %v4556
        %v5349 = vpack.c.b16 %v4569, %v4557
        %v5350 = vpack.c.b16 %v4570, %v4558
        %v5351 = vpack.c.b16 %v4571, %v4559
        %v5352 = vpack.c.b16 %v4572, %v4560
        %v5353 = vpack.c.b16 %v4573, %v4561
        %v5354 = vpack.c.b16 %v4574, %v4562
        %v5355 = vpack.c.b16 %v4575, %v4563
        %v5356 = vpack.c.b16 %v4576, %v4564
        %v5357 = vpack.c.b16 %v4577, %v4565
        %v5358 = vpack.c.b16 %v4578, %v4566
        %v5359 = vpack.c.b16 %v4591, %v4579
        %v5360 = vpack.c.b16 %v4592, %v4580
        %v5361 = vpack.c.b16 %v4593, %v4581
        %v5362 = vpack.c.b16 %v4594, %v4582
        %v5363 = vpack.c.b16 %v4595, %v4583
        %v5364 = vpack.c.b16 %v4596, %v4584
        %v5365 = vpack.c.b16 %v4597, %v4585
        %v5366 = vpack.c.b16 %v4598, %v4586
        %v5367 = vpack.c.b16 %v4599, %v4587
        %v5368 = vpack.c.b16 %v4600, %v4588
        %v5369 = vpack.c.b16 %v4601, %v4589
        %v5370 = vpack.c.b16 %v4602, %v4590
        %v5371 = vpack.c.b16 %v4615, %v4603
        %v5372 = vpack.c.b16 %v4616, %v4604
        %v5373 = vpack.c.b16 %v4617, %v4605
        %v5374 = vpack.c.b16 %v4618, %v4606
        %v5375 = vpack.c.b16 %v4619, %v4607
        %v5376 = vpack.c.b16 %v4620, %v4608
        %v5377 = vpack.c.b16 %v4621, %v4609
        %v5378 = vpack.c.b16 %v4622, %v4610
        %v5379 = vpack.c.b16 %v4623, %v4611
        %v5380 = vpack.c.b16 %v4624, %v4612
        %v5381 = vpack.c.b16 %v4625, %v4613
        %v5382 = vpack.c.b16 %v4626, %v4614
        %v5383 = vpack.c.b16 %v4639, %v4627
        %v5384 = vpack.c.b16 %v4640, %v4628
        %v5385 = vpack.c.b16 %v4641, %v4629
        %v5386 = vpack.c.b16 %v4642, %v4630
        %v5387 = vpack.c.b16 %v4643, %v4631
        %v5388 = vpack.c.b16 %v4644, %v4632
        %v5389 = vpack.c.b16 %v4645, %v4633
        %v5390 = vpack.c.b16 %v4646, %v4634
        %v5391 = vpack.c.b16 %v4647, %v4635
        %v5392 = vpack.c.b16 %v4648, %v4636
        %v5393 = vpack.c.b16 %v4649, %v4637
        %v5394 = vpack.c.b16 %v4650, %v4638
        %v5395 = vpack.c.b16 %v4663, %v4651
        %v5396 = vpack.c.b16 %v4664, %v4652
        %v5397 = vpack.c.b16 %v4665, %v4653
        %v5398 = vpack.c.b16 %v4666, %v4654
        %v5399 = vpack.c.b16 %v4667, %v4655
        %v5400 = vpack.c.b16 %v4668, %v4656
        %v5401 = vpack.c.b16 %v4669, %v4657
        %v5402 = vpack.c.b16 %v4670, %v4658
        %v5403 = vpack.c.b16 %v4671, %v4659
        %v5404 = vpack.c.b16 %v4672, %v4660
        %v5405 = vpack.c.b16 %v4673, %v4661
        %v5406 = vpack.c.b16 %v4674, %v4662
        %v5407 = vpack.c.b16 %v4687, %v4675
        %v5408 = vpack.c.b16 %v4688, %v4676
        %v5409 = vpack.c.b16 %v4689, %v4677
        %v5410 = vpack.c.b16 %v4690, %v4678
        %v5411 = vpack.c.b16 %v4691, %v4679
        %v5412 = vpack.c.b16 %v4692, %v4680
        %v5413 = vpack.c.b16 %v4693, %v4681
        %v5414 = vpack.c.b16 %v4694, %v4682
        %v5415 = vpack.c.b16 %v4695, %v4683
        %v5416 = vpack.c.b16 %v4696, %v4684
        %v5417 = vpack.c.b16 %v4697, %v4685
        %v5418 = vpack.c.b16 %v4698, %v4686
        %v5419 = vpack.c.b16 %v4711, %v4699
        %v5420 = vpack.c.b16 %v4712, %v4700
        %v5421 = vpack.c.b16 %v4713, %v4701
        %v5422 = vpack.c.b16 %v4714, %v4702
        %v5423 = vpack.c.b16 %v4715, %v4703
        %v5424 = vpack.c.b16 %v4716, %v4704
        %v5425 = vpack.c.b16 %v4717, %v4705
        %v5426 = vpack.c.b16 %v4718, %v4706
        %v5427 = vpack.c.b16 %v4719, %v4707
        %v5428 = vpack.c.b16 %v4720, %v4708
        %v5429 = vpack.c.b16 %v4721, %v4709
        %v5430 = vpack.c.b16 %v4722, %v4710
        %v5431 = vpack.c.b16 %v4735, %v4723
        %v5432 = vpack.c.b16 %v4736, %v4724
        %v5433 = vpack.c.b16 %v4737, %v4725
        %v5434 = vpack.c.b16 %v4738, %v4726
        %v5435 = vpack.c.b16 %v4739, %v4727
        %v5436 = vpack.c.b16 %v4740, %v4728
        %v5437 = vpack.c.b16 %v4741, %v4729
        %v5438 = vpack.c.b16 %v4742, %v4730
        %v5439 = vpack.c.b16 %v4743, %v4731
        %v5440 = vpack.c.b16 %v4744, %v4732
        %v5441 = vpack.c.b16 %v4745, %v4733
        %v5442 = vpack.c.b16 %v4746, %v4734
        %v5443 = vpack.c.b16 %v4759, %v4747
        %v5444 = vpack.c.b16 %v4760, %v4748
        %v5445 = vpack.c.b16 %v4761, %v4749
        %v5446 = vpack.c.b16 %v4762, %v4750
        %v5447 = vpack.c.b16 %v4763, %v4751
        %v5448 = vpack.c.b16 %v4764, %v4752
        %v5449 = vpack.c.b16 %v4765, %v4753
        %v5450 = vpack.c.b16 %v4766, %v4754
        %v5451 = vpack.c.b16 %v4767, %v4755
        %v5452 = vpack.c.b16 %v4768, %v4756
        %v5453 = vpack.c.b16 %v4769, %v4757
        %v5454 = vpack.c.b16 %v4770, %v4758
        %v5455 = vpack.c.b16 %v4783, %v4771
        %v5456 = vpack.c.b16 %v4784, %v4772
        %v5457 = vpack.c.b16 %v4785, %v4773
        %v5458 = vpack.c.b16 %v4786, %v4774
        %v5459 = vpack.c.b16 %v4787, %v4775
        %v5460 = vpack.c.b16 %v4788, %v4776
        %v5461 = vpack.c.b16 %v4789, %v4777
        %v5462 = vpack.c.b16 %v4790, %v4778
        %v5463 = vpack.c.b16 %v4791, %v4779
        %v5464 = vpack.c.b16 %v4792, %v4780
        %v5465 = vpack.c.b16 %v4793, %v4781
        %v5466 = vpack.c.b16 %v4794, %v4782
        %v5467 = vpack.c.b16 %v4807, %v4795
        %v5468 = vpack.c.b16 %v4808, %v4796
        %v5469 = vpack.c.b16 %v4809, %v4797
        %v5470 = vpack.c.b16 %v4810, %v4798
        %v5471 = vpack.c.b16 %v4811, %v4799
        %v5472 = vpack.c.b16 %v4812, %v4800
        %v5473 = vpack.c.b16 %v4813, %v4801
        %v5474 = vpack.c.b16 %v4814, %v4802
        %v5475 = vpack.c.b16 %v4815, %v4803
        %v5476 = vpack.c.b16 %v4816, %v4804
        %v5477 = vpack.c.b16 %v4817, %v4805
        %v5478 = vpack.c.b16 %v4818, %v4806
        %v5479 = vpack.c.b16 %v4831, %v4819
        %v5480 = vpack.c.b16 %v4832, %v4820
        %v5481 = vpack.c.b16 %v4833, %v4821
        %v5482 = vpack.c.b16 %v4834, %v4822
        %v5483 = vpack.c.b16 %v4835, %v4823
        %v5484 = vpack.c.b16 %v4836, %v4824
        %v5485 = vpack.c.b16 %v4837, %v4825
        %v5486 = vpack.c.b16 %v4838, %v4826
        %v5487 = vpack.c.b16 %v4839, %v4827
        %v5488 = vpack.c.b16 %v4840, %v4828
        %v5489 = vpack.c.b16 %v4841, %v4829
        %v5490 = vpack.c.b16 %v4842, %v4830
        %v5491 = vpack.c.b16 %v4855, %v4843
        %v5492 = vpack.c.b16 %v4856, %v4844
        %v5493 = vpack.c.b16 %v4857, %v4845
        %v5494 = vpack.c.b16 %v4858, %v4846
        %v5495 = vpack.c.b16 %v4859, %v4847
        %v5496 = vpack.c.b16 %v4860, %v4848
        %v5497 = vpack.c.b16 %v4861, %v4849
        %v5498 = vpack.c.b16 %v4862, %v4850
        %v5499 = vpack.c.b16 %v4863, %v4851
        %v5500 = vpack.c.b16 %v4864, %v4852
        %v5501 = vpack.c.b16 %v4865, %v4853
        %v5502 = vpack.c.b16 %v4866, %v4854
        %v5503 = vpack.c.b16 %v4879, %v4867
        %v5504 = vpack.c.b16 %v4880, %v4868
        %v5505 = vpack.c.b16 %v4881, %v4869
        %v5506 = vpack.c.b16 %v4882, %v4870
        %v5507 = vpack.c.b16 %v4883, %v4871
        %v5508 = vpack.c.b16 %v4884, %v4872
        %v5509 = vpack.c.b16 %v4885, %v4873
        %v5510 = vpack.c.b16 %v4886, %v4874
        %v5511 = vpack.c.b16 %v4887, %v4875
        %v5512 = vpack.c.b16 %v4888, %v4876
        %v5513 = vpack.c.b16 %v4889, %v4877
        %v5514 = vpack.c.b16 %v4890, %v4878
        %v5515 = vpack.c.b16 %v4903, %v4891
        %v5516 = vpack.c.b16 %v4904, %v4892
        %v5517 = vpack.c.b16 %v4905, %v4893
        %v5518 = vpack.c.b16 %v4906, %v4894
        %v5519 = vpack.c.b16 %v4907, %v4895
        %v5520 = vpack.c.b16 %v4908, %v4896
        %v5521 = vpack.c.b16 %v4909, %v4897
        %v5522 = vpack.c.b16 %v4910, %v4898
        %v5523 = vpack.c.b16 %v4911, %v4899
        %v5524 = vpack.c.b16 %v4912, %v4900
        %v5525 = vpack.c.b16 %v4913, %v4901
        %v5526 = vpack.c.b16 %v4914, %v4902
        %v5527 = vpack.c.b16 %v4927, %v4915
        %v5528 = vpack.c.b16 %v4928, %v4916
        %v5529 = vpack.c.b16 %v4929, %v4917
        %v5530 = vpack.c.b16 %v4930, %v4918
        %v5531 = vpack.c.b16 %v4931, %v4919
        %v5532 = vpack.c.b16 %v4932, %v4920
        %v5533 = vpack.c.b16 %v4933, %v4921
        %v5534 = vpack.c.b16 %v4934, %v4922
        %v5535 = vpack.c.b16 %v4935, %v4923
        %v5536 = vpack.c.b16 %v4936, %v4924
        %v5537 = vpack.c.b16 %v4937, %v4925
        %v5538 = vpack.c.b16 %v4938, %v4926
        %v5539 = vpack.c.b16 %v4951, %v4939
        %v5540 = vpack.c.b16 %v4952, %v4940
        %v5541 = vpack.c.b16 %v4953, %v4941
        %v5542 = vpack.c.b16 %v4954, %v4942
        %v5543 = vpack.c.b16 %v4955, %v4943
        %v5544 = vpack.c.b16 %v4956, %v4944
        %v5545 = vpack.c.b16 %v4957, %v4945
        %v5546 = vpack.c.b16 %v4958, %v4946
        %v5547 = vpack.c.b16 %v4959, %v4947
        %v5548 = vpack.c.b16 %v4960, %v4948
        %v5549 = vpack.c.b16 %v4961, %v4949
        %v5550 = vpack.c.b16 %v4962, %v4950
        %v5551 = vpack.c.b16 %v4975, %v4963
        %v5552 = vpack.c.b16 %v4976, %v4964
        %v5553 = vpack.c.b16 %v4977, %v4965
        %v5554 = vpack.c.b16 %v4978, %v4966
        %v5555 = vpack.c.b16 %v4979, %v4967
        %v5556 = vpack.c.b16 %v4980, %v4968
        %v5557 = vpack.c.b16 %v4981, %v4969
        %v5558 = vpack.c.b16 %v4982, %v4970
        %v5559 = vpack.c.b16 %v4983, %v4971
        %v5560 = vpack.c.b16 %v4984, %v4972
        %v5561 = vpack.c.b16 %v4985, %v4973
        %v5562 = vpack.c.b16 %v4986, %v4974
        %6139 = vmatpush.bf16.msra.mxu0 %v5071
        %6140 = vmatpush.bf16.msra.mxu0 %v5059
        %6141 = vmatpush.bf16.msra.mxu0 %v5047
        %6142 = vmatpush.bf16.msra.mxu0 %v5035
        %6143 = vmatpush.bf16.msra.mxu0 %v5023
        %6144 = vmatpush.bf16.msra.mxu0 %v5011
        %6145 = vmatpush.bf16.msra.mxu0 %v4999
        %6146 = vmatpush.bf16.msra.mxu0 %v4987
        %6147 = vmatmul.bf16.gmra.mxu0 %v2649
        %v6148 = vpop.f32.mrf.mxu0
        %v6149 = vadd.f32 %v3235, %v6148
        %v6150 = vpop.f32.mrf.mxu0
        %6151 = vdwg.mxu0
        %6152 = vmatpush.bf16.msra.mxu0 %v5167
        %6153 = vmatpush.bf16.msra.mxu0 %v5155
        %6154 = vmatpush.bf16.msra.mxu0 %v5143
        %6155 = vmatpush.bf16.msra.mxu0 %v5131
        %6156 = vmatpush.bf16.msra.mxu0 %v5119
        %6157 = vmatpush.bf16.msra.mxu0 %v5107
        %6158 = vmatpush.bf16.msra.mxu0 %v5095
        %6159 = vmatpush.bf16.msra.mxu0 %v5083
        %6160 = vmatmul.bf16.gmra.mxu0 %v2650
        %v6161 = vpop.f32.mrf.mxu0
        %v6162 = vadd.f32 %v6149, %v6161
        %v6163 = vpop.f32.mrf.mxu0
        %6164 = vdwg.mxu0
        %6165 = vmatpush.bf16.msra.mxu0 %v5263
        %6166 = vmatpush.bf16.msra.mxu0 %v5251
        %6167 = vmatpush.bf16.msra.mxu0 %v5239
        %6168 = vmatpush.bf16.msra.mxu0 %v5227
        %6169 = vmatpush.bf16.msra.mxu0 %v5215
        %6170 = vmatpush.bf16.msra.mxu0 %v5203
        %6171 = vmatpush.bf16.msra.mxu0 %v5191
        %6172 = vmatpush.bf16.msra.mxu0 %v5179
        %6173 = vmatmul.bf16.gmra.mxu0 %v2651
        %v6174 = vpop.f32.mrf.mxu0
        %v6175 = vadd.f32 %v6162, %v6174
        %v6176 = vpop.f32.mrf.mxu0
        %6177 = vdwg.mxu0
        %6178 = vmatpush.bf16.msra.mxu0 %v5359
        %6179 = vmatpush.bf16.msra.mxu0 %v5347
        %6180 = vmatpush.bf16.msra.mxu0 %v5335
        %6181 = vmatpush.bf16.msra.mxu0 %v5323
        %6182 = vmatpush.bf16.msra.mxu0 %v5311
        %6183 = vmatpush.bf16.msra.mxu0 %v5299
        %6184 = vmatpush.bf16.msra.mxu0 %v5287
        %6185 = vmatpush.bf16.msra.mxu0 %v5275
        %6186 = vmatmul.bf16.gmra.mxu0 %v2652
        %v6187 = vpop.f32.mrf.mxu0
        %v6188 = vadd.f32 %v6175, %v6187
        %v6189 = vpop.f32.mrf.mxu0
        %6190 = vdwg.mxu0
        %6191 = vmatpush.bf16.msra.mxu0 %v5455
        %6192 = vmatpush.bf16.msra.mxu0 %v5443
        %6193 = vmatpush.bf16.msra.mxu0 %v5431
        %6194 = vmatpush.bf16.msra.mxu0 %v5419
        %6195 = vmatpush.bf16.msra.mxu0 %v5407
        %6196 = vmatpush.bf16.msra.mxu0 %v5395
        %6197 = vmatpush.bf16.msra.mxu0 %v5383
        %6198 = vmatpush.bf16.msra.mxu0 %v5371
        %6199 = vmatmul.bf16.gmra.mxu0 %v2653
        %v6200 = vpop.f32.mrf.mxu0
        %v6201 = vadd.f32 %v6188, %v6200
        %v6202 = vpop.f32.mrf.mxu0
        %6203 = vdwg.mxu0
        %6204 = vmatpush.bf16.msra.mxu0 %v5551
        %6205 = vmatpush.bf16.msra.mxu0 %v5539
        %6206 = vmatpush.bf16.msra.mxu0 %v5527
        %6207 = vmatpush.bf16.msra.mxu0 %v5515
        %6208 = vmatpush.bf16.msra.mxu0 %v5503
        %6209 = vmatpush.bf16.msra.mxu0 %v5491
        %6210 = vmatpush.bf16.msra.mxu0 %v5479
        %6211 = vmatpush.bf16.msra.mxu0 %v5467
        %6212 = vmatmul.bf16.gmra.mxu0 %v2654
        %v6213 = vpop.f32.mrf.mxu0
        %v6214 = vadd.f32 %v6201, %v6213
        %v6215 = vpop.f32.mrf.mxu0
        %6216 = vdwg.mxu0
        %6217 = vmatpush.bf16.msra.mxu0 %v5072
        %6218 = vmatpush.bf16.msra.mxu0 %v5060
        %6219 = vmatpush.bf16.msra.mxu0 %v5048
        %6220 = vmatpush.bf16.msra.mxu0 %v5036
        %6221 = vmatpush.bf16.msra.mxu0 %v5024
        %6222 = vmatpush.bf16.msra.mxu0 %v5012
        %6223 = vmatpush.bf16.msra.mxu0 %v5000
        %6224 = vmatpush.bf16.msra.mxu0 %v4988
        %6225 = vmatmul.bf16.gmra.mxu0 %v2649
        %v6226 = vpop.f32.mrf.mxu0
        %v6227 = vadd.f32 %v3236, %v6226
        %v6228 = vpop.f32.mrf.mxu0
        %6229 = vdwg.mxu0
        %6230 = vmatpush.bf16.msra.mxu0 %v5168
        %6231 = vmatpush.bf16.msra.mxu0 %v5156
        %6232 = vmatpush.bf16.msra.mxu0 %v5144
        %6233 = vmatpush.bf16.msra.mxu0 %v5132
        %6234 = vmatpush.bf16.msra.mxu0 %v5120
        %6235 = vmatpush.bf16.msra.mxu0 %v5108
        %6236 = vmatpush.bf16.msra.mxu0 %v5096
        %6237 = vmatpush.bf16.msra.mxu0 %v5084
        %6238 = vmatmul.bf16.gmra.mxu0 %v2650
        %v6239 = vpop.f32.mrf.mxu0
        %v6240 = vadd.f32 %v6227, %v6239
        %v6241 = vpop.f32.mrf.mxu0
        %6242 = vdwg.mxu0
        %6243 = vmatpush.bf16.msra.mxu0 %v5264
        %6244 = vmatpush.bf16.msra.mxu0 %v5252
        %6245 = vmatpush.bf16.msra.mxu0 %v5240
        %6246 = vmatpush.bf16.msra.mxu0 %v5228
        %6247 = vmatpush.bf16.msra.mxu0 %v5216
        %6248 = vmatpush.bf16.msra.mxu0 %v5204
        %6249 = vmatpush.bf16.msra.mxu0 %v5192
        %6250 = vmatpush.bf16.msra.mxu0 %v5180
        %6251 = vmatmul.bf16.gmra.mxu0 %v2651
        %v6252 = vpop.f32.mrf.mxu0
        %v6253 = vadd.f32 %v6240, %v6252
        %v6254 = vpop.f32.mrf.mxu0
        %6255 = vdwg.mxu0
        %6256 = vmatpush.bf16.msra.mxu0 %v5360
        %6257 = vmatpush.bf16.msra.mxu0 %v5348
        %6258 = vmatpush.bf16.msra.mxu0 %v5336
        %6259 = vmatpush.bf16.msra.mxu0 %v5324
        %6260 = vmatpush.bf16.msra.mxu0 %v5312
        %6261 = vmatpush.bf16.msra.mxu0 %v5300
        %6262 = vmatpush.bf16.msra.mxu0 %v5288
        %6263 = vmatpush.bf16.msra.mxu0 %v5276
        %6264 = vmatmul.bf16.gmra.mxu0 %v2652
        %v6265 = vpop.f32.mrf.mxu0
        %v6266 = vadd.f32 %v6253, %v6265
        %v6267 = vpop.f32.mrf.mxu0
        %6268 = vdwg.mxu0
        %6269 = vmatpush.bf16.msra.mxu0 %v5456
        %6270 = vmatpush.bf16.msra.mxu0 %v5444
        %6271 = vmatpush.bf16.msra.mxu0 %v5432
        %6272 = vmatpush.bf16.msra.mxu0 %v5420
        %6273 = vmatpush.bf16.msra.mxu0 %v5408
        %6274 = vmatpush.bf16.msra.mxu0 %v5396
        %6275 = vmatpush.bf16.msra.mxu0 %v5384
        %6276 = vmatpush.bf16.msra.mxu0 %v5372
        %6277 = vmatmul.bf16.gmra.mxu0 %v2653
        %v6278 = vpop.f32.mrf.mxu0
        %v6279 = vadd.f32 %v6266, %v6278
        %v6280 = vpop.f32.mrf.mxu0
        %6281 = vdwg.mxu0
        %6282 = vmatpush.bf16.msra.mxu0 %v5552
        %6283 = vmatpush.bf16.msra.mxu0 %v5540
        %6284 = vmatpush.bf16.msra.mxu0 %v5528
        %6285 = vmatpush.bf16.msra.mxu0 %v5516
        %6286 = vmatpush.bf16.msra.mxu0 %v5504
        %6287 = vmatpush.bf16.msra.mxu0 %v5492
        %6288 = vmatpush.bf16.msra.mxu0 %v5480
        %6289 = vmatpush.bf16.msra.mxu0 %v5468
        %6290 = vmatmul.bf16.gmra.mxu0 %v2654
        %v6291 = vpop.f32.mrf.mxu0
        %v6292 = vadd.f32 %v6279, %v6291
        %v6293 = vpop.f32.mrf.mxu0
        %6294 = vdwg.mxu0
        %6295 = vmatpush.bf16.msra.mxu0 %v5073
        %6296 = vmatpush.bf16.msra.mxu0 %v5061
        %6297 = vmatpush.bf16.msra.mxu0 %v5049
        %6298 = vmatpush.bf16.msra.mxu0 %v5037
        %6299 = vmatpush.bf16.msra.mxu0 %v5025
        %6300 = vmatpush.bf16.msra.mxu0 %v5013
        %6301 = vmatpush.bf16.msra.mxu0 %v5001
        %6302 = vmatpush.bf16.msra.mxu0 %v4989
        %6303 = vmatmul.bf16.gmra.mxu0 %v2649
        %v6304 = vpop.f32.mrf.mxu0
        %v6305 = vadd.f32 %v3237, %v6304
        %v6306 = vpop.f32.mrf.mxu0
        %6307 = vdwg.mxu0
        %6308 = vmatpush.bf16.msra.mxu0 %v5169
        %6309 = vmatpush.bf16.msra.mxu0 %v5157
        %6310 = vmatpush.bf16.msra.mxu0 %v5145
        %6311 = vmatpush.bf16.msra.mxu0 %v5133
        %6312 = vmatpush.bf16.msra.mxu0 %v5121
        %6313 = vmatpush.bf16.msra.mxu0 %v5109
        %6314 = vmatpush.bf16.msra.mxu0 %v5097
        %6315 = vmatpush.bf16.msra.mxu0 %v5085
        %6316 = vmatmul.bf16.gmra.mxu0 %v2650
        %v6317 = vpop.f32.mrf.mxu0
        %v6318 = vadd.f32 %v6305, %v6317
        %v6319 = vpop.f32.mrf.mxu0
        %6320 = vdwg.mxu0
        %6321 = vmatpush.bf16.msra.mxu0 %v5265
        %6322 = vmatpush.bf16.msra.mxu0 %v5253
        %6323 = vmatpush.bf16.msra.mxu0 %v5241
        %6324 = vmatpush.bf16.msra.mxu0 %v5229
        %6325 = vmatpush.bf16.msra.mxu0 %v5217
        %6326 = vmatpush.bf16.msra.mxu0 %v5205
        %6327 = vmatpush.bf16.msra.mxu0 %v5193
        %6328 = vmatpush.bf16.msra.mxu0 %v5181
        %6329 = vmatmul.bf16.gmra.mxu0 %v2651
        %v6330 = vpop.f32.mrf.mxu0
        %v6331 = vadd.f32 %v6318, %v6330
        %v6332 = vpop.f32.mrf.mxu0
        %6333 = vdwg.mxu0
        %6334 = vmatpush.bf16.msra.mxu0 %v5361
        %6335 = vmatpush.bf16.msra.mxu0 %v5349
        %6336 = vmatpush.bf16.msra.mxu0 %v5337
        %6337 = vmatpush.bf16.msra.mxu0 %v5325
        %6338 = vmatpush.bf16.msra.mxu0 %v5313
        %6339 = vmatpush.bf16.msra.mxu0 %v5301
        %6340 = vmatpush.bf16.msra.mxu0 %v5289
        %6341 = vmatpush.bf16.msra.mxu0 %v5277
        %6342 = vmatmul.bf16.gmra.mxu0 %v2652
        %v6343 = vpop.f32.mrf.mxu0
        %v6344 = vadd.f32 %v6331, %v6343
        %v6345 = vpop.f32.mrf.mxu0
        %6346 = vdwg.mxu0
        %6347 = vmatpush.bf16.msra.mxu0 %v5457
        %6348 = vmatpush.bf16.msra.mxu0 %v5445
        %6349 = vmatpush.bf16.msra.mxu0 %v5433
        %6350 = vmatpush.bf16.msra.mxu0 %v5421
        %6351 = vmatpush.bf16.msra.mxu0 %v5409
        %6352 = vmatpush.bf16.msra.mxu0 %v5397
        %6353 = vmatpush.bf16.msra.mxu0 %v5385
        %6354 = vmatpush.bf16.msra.mxu0 %v5373
        %6355 = vmatmul.bf16.gmra.mxu0 %v2653
        %v6356 = vpop.f32.mrf.mxu0
        %v6357 = vadd.f32 %v6344, %v6356
        %v6358 = vpop.f32.mrf.mxu0
        %6359 = vdwg.mxu0
        %6360 = vmatpush.bf16.msra.mxu0 %v5553
        %6361 = vmatpush.bf16.msra.mxu0 %v5541
        %6362 = vmatpush.bf16.msra.mxu0 %v5529
        %6363 = vmatpush.bf16.msra.mxu0 %v5517
        %6364 = vmatpush.bf16.msra.mxu0 %v5505
        %6365 = vmatpush.bf16.msra.mxu0 %v5493
        %6366 = vmatpush.bf16.msra.mxu0 %v5481
        %6367 = vmatpush.bf16.msra.mxu0 %v5469
        %6368 = vmatmul.bf16.gmra.mxu0 %v2654
        %v6369 = vpop.f32.mrf.mxu0
        %v6370 = vadd.f32 %v6357, %v6369
        %v6371 = vpop.f32.mrf.mxu0
        %6372 = vdwg.mxu0
        %6373 = vmatpush.bf16.msra.mxu0 %v5074
        %6374 = vmatpush.bf16.msra.mxu0 %v5062
        %6375 = vmatpush.bf16.msra.mxu0 %v5050
        %6376 = vmatpush.bf16.msra.mxu0 %v5038
        %6377 = vmatpush.bf16.msra.mxu0 %v5026
        %6378 = vmatpush.bf16.msra.mxu0 %v5014
        %6379 = vmatpush.bf16.msra.mxu0 %v5002
        %6380 = vmatpush.bf16.msra.mxu0 %v4990
        %6381 = vmatmul.bf16.gmra.mxu0 %v2649
        %v6382 = vpop.f32.mrf.mxu0
        %v6383 = vadd.f32 %v3238, %v6382
        %v6384 = vpop.f32.mrf.mxu0
        %6385 = vdwg.mxu0
        %6386 = vmatpush.bf16.msra.mxu0 %v5170
        %6387 = vmatpush.bf16.msra.mxu0 %v5158
        %6388 = vmatpush.bf16.msra.mxu0 %v5146
        %6389 = vmatpush.bf16.msra.mxu0 %v5134
        %6390 = vmatpush.bf16.msra.mxu0 %v5122
        %6391 = vmatpush.bf16.msra.mxu0 %v5110
        %6392 = vmatpush.bf16.msra.mxu0 %v5098
        %6393 = vmatpush.bf16.msra.mxu0 %v5086
        %6394 = vmatmul.bf16.gmra.mxu0 %v2650
        %v6395 = vpop.f32.mrf.mxu0
        %v6396 = vadd.f32 %v6383, %v6395
        %v6397 = vpop.f32.mrf.mxu0
        %6398 = vdwg.mxu0
        %6399 = vmatpush.bf16.msra.mxu0 %v5266
        %6400 = vmatpush.bf16.msra.mxu0 %v5254
        %6401 = vmatpush.bf16.msra.mxu0 %v5242
        %6402 = vmatpush.bf16.msra.mxu0 %v5230
        %6403 = vmatpush.bf16.msra.mxu0 %v5218
        %6404 = vmatpush.bf16.msra.mxu0 %v5206
        %6405 = vmatpush.bf16.msra.mxu0 %v5194
        %6406 = vmatpush.bf16.msra.mxu0 %v5182
        %6407 = vmatmul.bf16.gmra.mxu0 %v2651
        %v6408 = vpop.f32.mrf.mxu0
        %v6409 = vadd.f32 %v6396, %v6408
        %v6410 = vpop.f32.mrf.mxu0
        %6411 = vdwg.mxu0
        %6412 = vmatpush.bf16.msra.mxu0 %v5362
        %6413 = vmatpush.bf16.msra.mxu0 %v5350
        %6414 = vmatpush.bf16.msra.mxu0 %v5338
        %6415 = vmatpush.bf16.msra.mxu0 %v5326
        %6416 = vmatpush.bf16.msra.mxu0 %v5314
        %6417 = vmatpush.bf16.msra.mxu0 %v5302
        %6418 = vmatpush.bf16.msra.mxu0 %v5290
        %6419 = vmatpush.bf16.msra.mxu0 %v5278
        %6420 = vmatmul.bf16.gmra.mxu0 %v2652
        %v6421 = vpop.f32.mrf.mxu0
        %v6422 = vadd.f32 %v6409, %v6421
        %v6423 = vpop.f32.mrf.mxu0
        %6424 = vdwg.mxu0
        %6425 = vmatpush.bf16.msra.mxu0 %v5458
        %6426 = vmatpush.bf16.msra.mxu0 %v5446
        %6427 = vmatpush.bf16.msra.mxu0 %v5434
        %6428 = vmatpush.bf16.msra.mxu0 %v5422
        %6429 = vmatpush.bf16.msra.mxu0 %v5410
        %6430 = vmatpush.bf16.msra.mxu0 %v5398
        %6431 = vmatpush.bf16.msra.mxu0 %v5386
        %6432 = vmatpush.bf16.msra.mxu0 %v5374
        %6433 = vmatmul.bf16.gmra.mxu0 %v2653
        %v6434 = vpop.f32.mrf.mxu0
        %v6435 = vadd.f32 %v6422, %v6434
        %v6436 = vpop.f32.mrf.mxu0
        %6437 = vdwg.mxu0
        %6438 = vmatpush.bf16.msra.mxu0 %v5554
        %6439 = vmatpush.bf16.msra.mxu0 %v5542
        %6440 = vmatpush.bf16.msra.mxu0 %v5530
        %6441 = vmatpush.bf16.msra.mxu0 %v5518
        %6442 = vmatpush.bf16.msra.mxu0 %v5506
        %6443 = vmatpush.bf16.msra.mxu0 %v5494
        %6444 = vmatpush.bf16.msra.mxu0 %v5482
        %6445 = vmatpush.bf16.msra.mxu0 %v5470
        %6446 = vmatmul.bf16.gmra.mxu0 %v2654
        %v6447 = vpop.f32.mrf.mxu0
        %v6448 = vadd.f32 %v6435, %v6447
        %v6449 = vpop.f32.mrf.mxu0
        %6450 = vdwg.mxu0
        %6451 = vmatpush.bf16.msra.mxu0 %v5075
        %6452 = vmatpush.bf16.msra.mxu0 %v5063
        %6453 = vmatpush.bf16.msra.mxu0 %v5051
        %6454 = vmatpush.bf16.msra.mxu0 %v5039
        %6455 = vmatpush.bf16.msra.mxu0 %v5027
        %6456 = vmatpush.bf16.msra.mxu0 %v5015
        %6457 = vmatpush.bf16.msra.mxu0 %v5003
        %6458 = vmatpush.bf16.msra.mxu0 %v4991
        %6459 = vmatmul.bf16.gmra.mxu0 %v2649
        %v6460 = vpop.f32.mrf.mxu0
        %v6461 = vadd.f32 %v3239, %v6460
        %v6462 = vpop.f32.mrf.mxu0
        %6463 = vdwg.mxu0
        %6464 = vmatpush.bf16.msra.mxu0 %v5171
        %6465 = vmatpush.bf16.msra.mxu0 %v5159
        %6466 = vmatpush.bf16.msra.mxu0 %v5147
        %6467 = vmatpush.bf16.msra.mxu0 %v5135
        %6468 = vmatpush.bf16.msra.mxu0 %v5123
        %6469 = vmatpush.bf16.msra.mxu0 %v5111
        %6470 = vmatpush.bf16.msra.mxu0 %v5099
        %6471 = vmatpush.bf16.msra.mxu0 %v5087
        %6472 = vmatmul.bf16.gmra.mxu0 %v2650
        %v6473 = vpop.f32.mrf.mxu0
        %v6474 = vadd.f32 %v6461, %v6473
        %v6475 = vpop.f32.mrf.mxu0
        %6476 = vdwg.mxu0
        %6477 = vmatpush.bf16.msra.mxu0 %v5267
        %6478 = vmatpush.bf16.msra.mxu0 %v5255
        %6479 = vmatpush.bf16.msra.mxu0 %v5243
        %6480 = vmatpush.bf16.msra.mxu0 %v5231
        %6481 = vmatpush.bf16.msra.mxu0 %v5219
        %6482 = vmatpush.bf16.msra.mxu0 %v5207
        %6483 = vmatpush.bf16.msra.mxu0 %v5195
        %6484 = vmatpush.bf16.msra.mxu0 %v5183
        %6485 = vmatmul.bf16.gmra.mxu0 %v2651
        %v6486 = vpop.f32.mrf.mxu0
        %v6487 = vadd.f32 %v6474, %v6486
        %v6488 = vpop.f32.mrf.mxu0
        %6489 = vdwg.mxu0
        %6490 = vmatpush.bf16.msra.mxu0 %v5363
        %6491 = vmatpush.bf16.msra.mxu0 %v5351
        %6492 = vmatpush.bf16.msra.mxu0 %v5339
        %6493 = vmatpush.bf16.msra.mxu0 %v5327
        %6494 = vmatpush.bf16.msra.mxu0 %v5315
        %6495 = vmatpush.bf16.msra.mxu0 %v5303
        %6496 = vmatpush.bf16.msra.mxu0 %v5291
        %6497 = vmatpush.bf16.msra.mxu0 %v5279
        %6498 = vmatmul.bf16.gmra.mxu0 %v2652
        %v6499 = vpop.f32.mrf.mxu0
        %v6500 = vadd.f32 %v6487, %v6499
        %v6501 = vpop.f32.mrf.mxu0
        %6502 = vdwg.mxu0
        %6503 = vmatpush.bf16.msra.mxu0 %v5459
        %6504 = vmatpush.bf16.msra.mxu0 %v5447
        %6505 = vmatpush.bf16.msra.mxu0 %v5435
        %6506 = vmatpush.bf16.msra.mxu0 %v5423
        %6507 = vmatpush.bf16.msra.mxu0 %v5411
        %6508 = vmatpush.bf16.msra.mxu0 %v5399
        %6509 = vmatpush.bf16.msra.mxu0 %v5387
        %6510 = vmatpush.bf16.msra.mxu0 %v5375
        %6511 = vmatmul.bf16.gmra.mxu0 %v2653
        %v6512 = vpop.f32.mrf.mxu0
        %v6513 = vadd.f32 %v6500, %v6512
        %v6514 = vpop.f32.mrf.mxu0
        %6515 = vdwg.mxu0
        %6516 = vmatpush.bf16.msra.mxu0 %v5555
        %6517 = vmatpush.bf16.msra.mxu0 %v5543
        %6518 = vmatpush.bf16.msra.mxu0 %v5531
        %6519 = vmatpush.bf16.msra.mxu0 %v5519
        %6520 = vmatpush.bf16.msra.mxu0 %v5507
        %6521 = vmatpush.bf16.msra.mxu0 %v5495
        %6522 = vmatpush.bf16.msra.mxu0 %v5483
        %6523 = vmatpush.bf16.msra.mxu0 %v5471
        %6524 = vmatmul.bf16.gmra.mxu0 %v2654
        %v6525 = vpop.f32.mrf.mxu0
        %v6526 = vadd.f32 %v6513, %v6525
        %v6527 = vpop.f32.mrf.mxu0
        %6528 = vdwg.mxu0
        %6529 = vmatpush.bf16.msra.mxu0 %v5076
        %6530 = vmatpush.bf16.msra.mxu0 %v5064
        %6531 = vmatpush.bf16.msra.mxu0 %v5052
        %6532 = vmatpush.bf16.msra.mxu0 %v5040
        %6533 = vmatpush.bf16.msra.mxu0 %v5028
        %6534 = vmatpush.bf16.msra.mxu0 %v5016
        %6535 = vmatpush.bf16.msra.mxu0 %v5004
        %6536 = vmatpush.bf16.msra.mxu0 %v4992
        %6537 = vmatmul.bf16.gmra.mxu0 %v2649
        %v6538 = vpop.f32.mrf.mxu0
        %v6539 = vadd.f32 %v3240, %v6538
        %v6540 = vpop.f32.mrf.mxu0
        %6541 = vdwg.mxu0
        %6542 = vmatpush.bf16.msra.mxu0 %v5172
        %6543 = vmatpush.bf16.msra.mxu0 %v5160
        %6544 = vmatpush.bf16.msra.mxu0 %v5148
        %6545 = vmatpush.bf16.msra.mxu0 %v5136
        %6546 = vmatpush.bf16.msra.mxu0 %v5124
        %6547 = vmatpush.bf16.msra.mxu0 %v5112
        %6548 = vmatpush.bf16.msra.mxu0 %v5100
        %6549 = vmatpush.bf16.msra.mxu0 %v5088
        %6550 = vmatmul.bf16.gmra.mxu0 %v2650
        %v6551 = vpop.f32.mrf.mxu0
        %v6552 = vadd.f32 %v6539, %v6551
        %v6553 = vpop.f32.mrf.mxu0
        %6554 = vdwg.mxu0
        %6555 = vmatpush.bf16.msra.mxu0 %v5268
        %6556 = vmatpush.bf16.msra.mxu0 %v5256
        %6557 = vmatpush.bf16.msra.mxu0 %v5244
        %6558 = vmatpush.bf16.msra.mxu0 %v5232
        %6559 = vmatpush.bf16.msra.mxu0 %v5220
        %6560 = vmatpush.bf16.msra.mxu0 %v5208
        %6561 = vmatpush.bf16.msra.mxu0 %v5196
        %6562 = vmatpush.bf16.msra.mxu0 %v5184
        %6563 = vmatmul.bf16.gmra.mxu0 %v2651
        %v6564 = vpop.f32.mrf.mxu0
        %v6565 = vadd.f32 %v6552, %v6564
        %v6566 = vpop.f32.mrf.mxu0
        %6567 = vdwg.mxu0
        %6568 = vmatpush.bf16.msra.mxu0 %v5364
        %6569 = vmatpush.bf16.msra.mxu0 %v5352
        %6570 = vmatpush.bf16.msra.mxu0 %v5340
        %6571 = vmatpush.bf16.msra.mxu0 %v5328
        %6572 = vmatpush.bf16.msra.mxu0 %v5316
        %6573 = vmatpush.bf16.msra.mxu0 %v5304
        %6574 = vmatpush.bf16.msra.mxu0 %v5292
        %6575 = vmatpush.bf16.msra.mxu0 %v5280
        %6576 = vmatmul.bf16.gmra.mxu0 %v2652
        %v6577 = vpop.f32.mrf.mxu0
        %v6578 = vadd.f32 %v6565, %v6577
        %v6579 = vpop.f32.mrf.mxu0
        %6580 = vdwg.mxu0
        %6581 = vmatpush.bf16.msra.mxu0 %v5460
        %6582 = vmatpush.bf16.msra.mxu0 %v5448
        %6583 = vmatpush.bf16.msra.mxu0 %v5436
        %6584 = vmatpush.bf16.msra.mxu0 %v5424
        %6585 = vmatpush.bf16.msra.mxu0 %v5412
        %6586 = vmatpush.bf16.msra.mxu0 %v5400
        %6587 = vmatpush.bf16.msra.mxu0 %v5388
        %6588 = vmatpush.bf16.msra.mxu0 %v5376
        %6589 = vmatmul.bf16.gmra.mxu0 %v2653
        %v6590 = vpop.f32.mrf.mxu0
        %v6591 = vadd.f32 %v6578, %v6590
        %v6592 = vpop.f32.mrf.mxu0
        %6593 = vdwg.mxu0
        %6594 = vmatpush.bf16.msra.mxu0 %v5556
        %6595 = vmatpush.bf16.msra.mxu0 %v5544
        %6596 = vmatpush.bf16.msra.mxu0 %v5532
        %6597 = vmatpush.bf16.msra.mxu0 %v5520
        %6598 = vmatpush.bf16.msra.mxu0 %v5508
        %6599 = vmatpush.bf16.msra.mxu0 %v5496
        %6600 = vmatpush.bf16.msra.mxu0 %v5484
        %6601 = vmatpush.bf16.msra.mxu0 %v5472
        %6602 = vmatmul.bf16.gmra.mxu0 %v2654
        %v6603 = vpop.f32.mrf.mxu0
        %v6604 = vadd.f32 %v6591, %v6603
        %v6605 = vpop.f32.mrf.mxu0
        %6606 = vdwg.mxu0
        %6607 = vmatpush.bf16.msra.mxu0 %v5077
        %6608 = vmatpush.bf16.msra.mxu0 %v5065
        %6609 = vmatpush.bf16.msra.mxu0 %v5053
        %6610 = vmatpush.bf16.msra.mxu0 %v5041
        %6611 = vmatpush.bf16.msra.mxu0 %v5029
        %6612 = vmatpush.bf16.msra.mxu0 %v5017
        %6613 = vmatpush.bf16.msra.mxu0 %v5005
        %6614 = vmatpush.bf16.msra.mxu0 %v4993
        %6615 = vmatmul.bf16.gmra.mxu0 %v2649
        %v6616 = vpop.f32.mrf.mxu0
        %v6617 = vadd.f32 %v3241, %v6616
        %v6618 = vpop.f32.mrf.mxu0
        %6619 = vdwg.mxu0
        %6620 = vmatpush.bf16.msra.mxu0 %v5173
        %6621 = vmatpush.bf16.msra.mxu0 %v5161
        %6622 = vmatpush.bf16.msra.mxu0 %v5149
        %6623 = vmatpush.bf16.msra.mxu0 %v5137
        %6624 = vmatpush.bf16.msra.mxu0 %v5125
        %6625 = vmatpush.bf16.msra.mxu0 %v5113
        %6626 = vmatpush.bf16.msra.mxu0 %v5101
        %6627 = vmatpush.bf16.msra.mxu0 %v5089
        %6628 = vmatmul.bf16.gmra.mxu0 %v2650
        %v6629 = vpop.f32.mrf.mxu0
        %v6630 = vadd.f32 %v6617, %v6629
        %v6631 = vpop.f32.mrf.mxu0
        %6632 = vdwg.mxu0
        %6633 = vmatpush.bf16.msra.mxu0 %v5269
        %6634 = vmatpush.bf16.msra.mxu0 %v5257
        %6635 = vmatpush.bf16.msra.mxu0 %v5245
        %6636 = vmatpush.bf16.msra.mxu0 %v5233
        %6637 = vmatpush.bf16.msra.mxu0 %v5221
        %6638 = vmatpush.bf16.msra.mxu0 %v5209
        %6639 = vmatpush.bf16.msra.mxu0 %v5197
        %6640 = vmatpush.bf16.msra.mxu0 %v5185
        %6641 = vmatmul.bf16.gmra.mxu0 %v2651
        %v6642 = vpop.f32.mrf.mxu0
        %v6643 = vadd.f32 %v6630, %v6642
        %v6644 = vpop.f32.mrf.mxu0
        %6645 = vdwg.mxu0
        %6646 = vmatpush.bf16.msra.mxu0 %v5365
        %6647 = vmatpush.bf16.msra.mxu0 %v5353
        %6648 = vmatpush.bf16.msra.mxu0 %v5341
        %6649 = vmatpush.bf16.msra.mxu0 %v5329
        %6650 = vmatpush.bf16.msra.mxu0 %v5317
        %6651 = vmatpush.bf16.msra.mxu0 %v5305
        %6652 = vmatpush.bf16.msra.mxu0 %v5293
        %6653 = vmatpush.bf16.msra.mxu0 %v5281
        %6654 = vmatmul.bf16.gmra.mxu0 %v2652
        %v6655 = vpop.f32.mrf.mxu0
        %v6656 = vadd.f32 %v6643, %v6655
        %v6657 = vpop.f32.mrf.mxu0
        %6658 = vdwg.mxu0
        %6659 = vmatpush.bf16.msra.mxu0 %v5461
        %6660 = vmatpush.bf16.msra.mxu0 %v5449
        %6661 = vmatpush.bf16.msra.mxu0 %v5437
        %6662 = vmatpush.bf16.msra.mxu0 %v5425
        %6663 = vmatpush.bf16.msra.mxu0 %v5413
        %6664 = vmatpush.bf16.msra.mxu0 %v5401
        %6665 = vmatpush.bf16.msra.mxu0 %v5389
        %6666 = vmatpush.bf16.msra.mxu0 %v5377
        %6667 = vmatmul.bf16.gmra.mxu0 %v2653
        %v6668 = vpop.f32.mrf.mxu0
        %v6669 = vadd.f32 %v6656, %v6668
        %v6670 = vpop.f32.mrf.mxu0
        %6671 = vdwg.mxu0
        %6672 = vmatpush.bf16.msra.mxu0 %v5557
        %6673 = vmatpush.bf16.msra.mxu0 %v5545
        %6674 = vmatpush.bf16.msra.mxu0 %v5533
        %6675 = vmatpush.bf16.msra.mxu0 %v5521
        %6676 = vmatpush.bf16.msra.mxu0 %v5509
        %6677 = vmatpush.bf16.msra.mxu0 %v5497
        %6678 = vmatpush.bf16.msra.mxu0 %v5485
        %6679 = vmatpush.bf16.msra.mxu0 %v5473
        %6680 = vmatmul.bf16.gmra.mxu0 %v2654
        %v6681 = vpop.f32.mrf.mxu0
        %v6682 = vadd.f32 %v6669, %v6681
        %v6683 = vpop.f32.mrf.mxu0
        %6684 = vdwg.mxu0
        %6685 = vmatpush.bf16.msra.mxu0 %v5078
        %6686 = vmatpush.bf16.msra.mxu0 %v5066
        %6687 = vmatpush.bf16.msra.mxu0 %v5054
        %6688 = vmatpush.bf16.msra.mxu0 %v5042
        %6689 = vmatpush.bf16.msra.mxu0 %v5030
        %6690 = vmatpush.bf16.msra.mxu0 %v5018
        %6691 = vmatpush.bf16.msra.mxu0 %v5006
        %6692 = vmatpush.bf16.msra.mxu0 %v4994
        %6693 = vmatmul.bf16.gmra.mxu0 %v2649
        %v6694 = vpop.f32.mrf.mxu0
        %v6695 = vadd.f32 %v3242, %v6694
        %v6696 = vpop.f32.mrf.mxu0
        %6697 = vdwg.mxu0
        %6698 = vmatpush.bf16.msra.mxu0 %v5174
        %6699 = vmatpush.bf16.msra.mxu0 %v5162
        %6700 = vmatpush.bf16.msra.mxu0 %v5150
        %6701 = vmatpush.bf16.msra.mxu0 %v5138
        %6702 = vmatpush.bf16.msra.mxu0 %v5126
        %6703 = vmatpush.bf16.msra.mxu0 %v5114
        %6704 = vmatpush.bf16.msra.mxu0 %v5102
        %6705 = vmatpush.bf16.msra.mxu0 %v5090
        %6706 = vmatmul.bf16.gmra.mxu0 %v2650
        %v6707 = vpop.f32.mrf.mxu0
        %v6708 = vadd.f32 %v6695, %v6707
        %v6709 = vpop.f32.mrf.mxu0
        %6710 = vdwg.mxu0
        %6711 = vmatpush.bf16.msra.mxu0 %v5270
        %6712 = vmatpush.bf16.msra.mxu0 %v5258
        %6713 = vmatpush.bf16.msra.mxu0 %v5246
        %6714 = vmatpush.bf16.msra.mxu0 %v5234
        %6715 = vmatpush.bf16.msra.mxu0 %v5222
        %6716 = vmatpush.bf16.msra.mxu0 %v5210
        %6717 = vmatpush.bf16.msra.mxu0 %v5198
        %6718 = vmatpush.bf16.msra.mxu0 %v5186
        %6719 = vmatmul.bf16.gmra.mxu0 %v2651
        %v6720 = vpop.f32.mrf.mxu0
        %v6721 = vadd.f32 %v6708, %v6720
        %v6722 = vpop.f32.mrf.mxu0
        %6723 = vdwg.mxu0
        %6724 = vmatpush.bf16.msra.mxu0 %v5366
        %6725 = vmatpush.bf16.msra.mxu0 %v5354
        %6726 = vmatpush.bf16.msra.mxu0 %v5342
        %6727 = vmatpush.bf16.msra.mxu0 %v5330
        %6728 = vmatpush.bf16.msra.mxu0 %v5318
        %6729 = vmatpush.bf16.msra.mxu0 %v5306
        %6730 = vmatpush.bf16.msra.mxu0 %v5294
        %6731 = vmatpush.bf16.msra.mxu0 %v5282
        %6732 = vmatmul.bf16.gmra.mxu0 %v2652
        %v6733 = vpop.f32.mrf.mxu0
        %v6734 = vadd.f32 %v6721, %v6733
        %v6735 = vpop.f32.mrf.mxu0
        %6736 = vdwg.mxu0
        %6737 = vmatpush.bf16.msra.mxu0 %v5462
        %6738 = vmatpush.bf16.msra.mxu0 %v5450
        %6739 = vmatpush.bf16.msra.mxu0 %v5438
        %6740 = vmatpush.bf16.msra.mxu0 %v5426
        %6741 = vmatpush.bf16.msra.mxu0 %v5414
        %6742 = vmatpush.bf16.msra.mxu0 %v5402
        %6743 = vmatpush.bf16.msra.mxu0 %v5390
        %6744 = vmatpush.bf16.msra.mxu0 %v5378
        %6745 = vmatmul.bf16.gmra.mxu0 %v2653
        %v6746 = vpop.f32.mrf.mxu0
        %v6747 = vadd.f32 %v6734, %v6746
        %v6748 = vpop.f32.mrf.mxu0
        %6749 = vdwg.mxu0
        %6750 = vmatpush.bf16.msra.mxu0 %v5558
        %6751 = vmatpush.bf16.msra.mxu0 %v5546
        %6752 = vmatpush.bf16.msra.mxu0 %v5534
        %6753 = vmatpush.bf16.msra.mxu0 %v5522
        %6754 = vmatpush.bf16.msra.mxu0 %v5510
        %6755 = vmatpush.bf16.msra.mxu0 %v5498
        %6756 = vmatpush.bf16.msra.mxu0 %v5486
        %6757 = vmatpush.bf16.msra.mxu0 %v5474
        %6758 = vmatmul.bf16.gmra.mxu0 %v2654
        %v6759 = vpop.f32.mrf.mxu0
        %v6760 = vadd.f32 %v6747, %v6759
        %v6761 = vpop.f32.mrf.mxu0
        %6762 = vdwg.mxu0
        %6763 = vmatpush.bf16.msra.mxu0 %v5079
        %6764 = vmatpush.bf16.msra.mxu0 %v5067
        %6765 = vmatpush.bf16.msra.mxu0 %v5055
        %6766 = vmatpush.bf16.msra.mxu0 %v5043
        %6767 = vmatpush.bf16.msra.mxu0 %v5031
        %6768 = vmatpush.bf16.msra.mxu0 %v5019
        %6769 = vmatpush.bf16.msra.mxu0 %v5007
        %6770 = vmatpush.bf16.msra.mxu0 %v4995
        %6771 = vmatmul.bf16.gmra.mxu0 %v2649
        %v6772 = vpop.f32.mrf.mxu0
        %v6773 = vadd.f32 %v3243, %v6772
        %v6774 = vpop.f32.mrf.mxu0
        %6775 = vdwg.mxu0
        %6776 = vmatpush.bf16.msra.mxu0 %v5175
        %6777 = vmatpush.bf16.msra.mxu0 %v5163
        %6778 = vmatpush.bf16.msra.mxu0 %v5151
        %6779 = vmatpush.bf16.msra.mxu0 %v5139
        %6780 = vmatpush.bf16.msra.mxu0 %v5127
        %6781 = vmatpush.bf16.msra.mxu0 %v5115
        %6782 = vmatpush.bf16.msra.mxu0 %v5103
        %6783 = vmatpush.bf16.msra.mxu0 %v5091
        %6784 = vmatmul.bf16.gmra.mxu0 %v2650
        %v6785 = vpop.f32.mrf.mxu0
        %v6786 = vadd.f32 %v6773, %v6785
        %v6787 = vpop.f32.mrf.mxu0
        %6788 = vdwg.mxu0
        %6789 = vmatpush.bf16.msra.mxu0 %v5271
        %6790 = vmatpush.bf16.msra.mxu0 %v5259
        %6791 = vmatpush.bf16.msra.mxu0 %v5247
        %6792 = vmatpush.bf16.msra.mxu0 %v5235
        %6793 = vmatpush.bf16.msra.mxu0 %v5223
        %6794 = vmatpush.bf16.msra.mxu0 %v5211
        %6795 = vmatpush.bf16.msra.mxu0 %v5199
        %6796 = vmatpush.bf16.msra.mxu0 %v5187
        %6797 = vmatmul.bf16.gmra.mxu0 %v2651
        %v6798 = vpop.f32.mrf.mxu0
        %v6799 = vadd.f32 %v6786, %v6798
        %v6800 = vpop.f32.mrf.mxu0
        %6801 = vdwg.mxu0
        %6802 = vmatpush.bf16.msra.mxu0 %v5367
        %6803 = vmatpush.bf16.msra.mxu0 %v5355
        %6804 = vmatpush.bf16.msra.mxu0 %v5343
        %6805 = vmatpush.bf16.msra.mxu0 %v5331
        %6806 = vmatpush.bf16.msra.mxu0 %v5319
        %6807 = vmatpush.bf16.msra.mxu0 %v5307
        %6808 = vmatpush.bf16.msra.mxu0 %v5295
        %6809 = vmatpush.bf16.msra.mxu0 %v5283
        %6810 = vmatmul.bf16.gmra.mxu0 %v2652
        %v6811 = vpop.f32.mrf.mxu0
        %v6812 = vadd.f32 %v6799, %v6811
        %v6813 = vpop.f32.mrf.mxu0
        %6814 = vdwg.mxu0
        %6815 = vmatpush.bf16.msra.mxu0 %v5463
        %6816 = vmatpush.bf16.msra.mxu0 %v5451
        %6817 = vmatpush.bf16.msra.mxu0 %v5439
        %6818 = vmatpush.bf16.msra.mxu0 %v5427
        %6819 = vmatpush.bf16.msra.mxu0 %v5415
        %6820 = vmatpush.bf16.msra.mxu0 %v5403
        %6821 = vmatpush.bf16.msra.mxu0 %v5391
        %6822 = vmatpush.bf16.msra.mxu0 %v5379
        %6823 = vmatmul.bf16.gmra.mxu0 %v2653
        %v6824 = vpop.f32.mrf.mxu0
        %v6825 = vadd.f32 %v6812, %v6824
        %v6826 = vpop.f32.mrf.mxu0
        %6827 = vdwg.mxu0
        %6828 = vmatpush.bf16.msra.mxu0 %v5559
        %6829 = vmatpush.bf16.msra.mxu0 %v5547
        %6830 = vmatpush.bf16.msra.mxu0 %v5535
        %6831 = vmatpush.bf16.msra.mxu0 %v5523
        %6832 = vmatpush.bf16.msra.mxu0 %v5511
        %6833 = vmatpush.bf16.msra.mxu0 %v5499
        %6834 = vmatpush.bf16.msra.mxu0 %v5487
        %6835 = vmatpush.bf16.msra.mxu0 %v5475
        %6836 = vmatmul.bf16.gmra.mxu0 %v2654
        %v6837 = vpop.f32.mrf.mxu0
        %v6838 = vadd.f32 %v6825, %v6837
        %v6839 = vpop.f32.mrf.mxu0
        %6840 = vdwg.mxu0
        %6841 = vmatpush.bf16.msra.mxu0 %v5080
        %6842 = vmatpush.bf16.msra.mxu0 %v5068
        %6843 = vmatpush.bf16.msra.mxu0 %v5056
        %6844 = vmatpush.bf16.msra.mxu0 %v5044
        %6845 = vmatpush.bf16.msra.mxu0 %v5032
        %6846 = vmatpush.bf16.msra.mxu0 %v5020
        %6847 = vmatpush.bf16.msra.mxu0 %v5008
        %6848 = vmatpush.bf16.msra.mxu0 %v4996
        %6849 = vmatmul.bf16.gmra.mxu0 %v2649
        %v6850 = vpop.f32.mrf.mxu0
        %v6851 = vadd.f32 %v3244, %v6850
        %v6852 = vpop.f32.mrf.mxu0
        %6853 = vdwg.mxu0
        %6854 = vmatpush.bf16.msra.mxu0 %v5176
        %6855 = vmatpush.bf16.msra.mxu0 %v5164
        %6856 = vmatpush.bf16.msra.mxu0 %v5152
        %6857 = vmatpush.bf16.msra.mxu0 %v5140
        %6858 = vmatpush.bf16.msra.mxu0 %v5128
        %6859 = vmatpush.bf16.msra.mxu0 %v5116
        %6860 = vmatpush.bf16.msra.mxu0 %v5104
        %6861 = vmatpush.bf16.msra.mxu0 %v5092
        %6862 = vmatmul.bf16.gmra.mxu0 %v2650
        %v6863 = vpop.f32.mrf.mxu0
        %v6864 = vadd.f32 %v6851, %v6863
        %v6865 = vpop.f32.mrf.mxu0
        %6866 = vdwg.mxu0
        %6867 = vmatpush.bf16.msra.mxu0 %v5272
        %6868 = vmatpush.bf16.msra.mxu0 %v5260
        %6869 = vmatpush.bf16.msra.mxu0 %v5248
        %6870 = vmatpush.bf16.msra.mxu0 %v5236
        %6871 = vmatpush.bf16.msra.mxu0 %v5224
        %6872 = vmatpush.bf16.msra.mxu0 %v5212
        %6873 = vmatpush.bf16.msra.mxu0 %v5200
        %6874 = vmatpush.bf16.msra.mxu0 %v5188
        %6875 = vmatmul.bf16.gmra.mxu0 %v2651
        %v6876 = vpop.f32.mrf.mxu0
        %v6877 = vadd.f32 %v6864, %v6876
        %v6878 = vpop.f32.mrf.mxu0
        %6879 = vdwg.mxu0
        %6880 = vmatpush.bf16.msra.mxu0 %v5368
        %6881 = vmatpush.bf16.msra.mxu0 %v5356
        %6882 = vmatpush.bf16.msra.mxu0 %v5344
        %6883 = vmatpush.bf16.msra.mxu0 %v5332
        %6884 = vmatpush.bf16.msra.mxu0 %v5320
        %6885 = vmatpush.bf16.msra.mxu0 %v5308
        %6886 = vmatpush.bf16.msra.mxu0 %v5296
        %6887 = vmatpush.bf16.msra.mxu0 %v5284
        %6888 = vmatmul.bf16.gmra.mxu0 %v2652
        %v6889 = vpop.f32.mrf.mxu0
        %v6890 = vadd.f32 %v6877, %v6889
        %v6891 = vpop.f32.mrf.mxu0
        %6892 = vdwg.mxu0
        %6893 = vmatpush.bf16.msra.mxu0 %v5464
        %6894 = vmatpush.bf16.msra.mxu0 %v5452
        %6895 = vmatpush.bf16.msra.mxu0 %v5440
        %6896 = vmatpush.bf16.msra.mxu0 %v5428
        %6897 = vmatpush.bf16.msra.mxu0 %v5416
        %6898 = vmatpush.bf16.msra.mxu0 %v5404
        %6899 = vmatpush.bf16.msra.mxu0 %v5392
        %6900 = vmatpush.bf16.msra.mxu0 %v5380
        %6901 = vmatmul.bf16.gmra.mxu0 %v2653
        %v6902 = vpop.f32.mrf.mxu0
        %v6903 = vadd.f32 %v6890, %v6902
        %v6904 = vpop.f32.mrf.mxu0
        %6905 = vdwg.mxu0
        %6906 = vmatpush.bf16.msra.mxu0 %v5560
        %6907 = vmatpush.bf16.msra.mxu0 %v5548
        %6908 = vmatpush.bf16.msra.mxu0 %v5536
        %6909 = vmatpush.bf16.msra.mxu0 %v5524
        %6910 = vmatpush.bf16.msra.mxu0 %v5512
        %6911 = vmatpush.bf16.msra.mxu0 %v5500
        %6912 = vmatpush.bf16.msra.mxu0 %v5488
        %6913 = vmatpush.bf16.msra.mxu0 %v5476
        %6914 = vmatmul.bf16.gmra.mxu0 %v2654
        %v6915 = vpop.f32.mrf.mxu0
        %v6916 = vadd.f32 %v6903, %v6915
        %v6917 = vpop.f32.mrf.mxu0
        %6918 = vdwg.mxu0
        %6919 = vmatpush.bf16.msra.mxu0 %v5081
        %6920 = vmatpush.bf16.msra.mxu0 %v5069
        %6921 = vmatpush.bf16.msra.mxu0 %v5057
        %6922 = vmatpush.bf16.msra.mxu0 %v5045
        %6923 = vmatpush.bf16.msra.mxu0 %v5033
        %6924 = vmatpush.bf16.msra.mxu0 %v5021
        %6925 = vmatpush.bf16.msra.mxu0 %v5009
        %6926 = vmatpush.bf16.msra.mxu0 %v4997
        %6927 = vmatmul.bf16.gmra.mxu0 %v2649
        %v6928 = vpop.f32.mrf.mxu0
        %v6929 = vadd.f32 %v3245, %v6928
        %v6930 = vpop.f32.mrf.mxu0
        %6931 = vdwg.mxu0
        %6932 = vmatpush.bf16.msra.mxu0 %v5177
        %6933 = vmatpush.bf16.msra.mxu0 %v5165
        %6934 = vmatpush.bf16.msra.mxu0 %v5153
        %6935 = vmatpush.bf16.msra.mxu0 %v5141
        %6936 = vmatpush.bf16.msra.mxu0 %v5129
        %6937 = vmatpush.bf16.msra.mxu0 %v5117
        %6938 = vmatpush.bf16.msra.mxu0 %v5105
        %6939 = vmatpush.bf16.msra.mxu0 %v5093
        %6940 = vmatmul.bf16.gmra.mxu0 %v2650
        %v6941 = vpop.f32.mrf.mxu0
        %v6942 = vadd.f32 %v6929, %v6941
        %v6943 = vpop.f32.mrf.mxu0
        %6944 = vdwg.mxu0
        %6945 = vmatpush.bf16.msra.mxu0 %v5273
        %6946 = vmatpush.bf16.msra.mxu0 %v5261
        %6947 = vmatpush.bf16.msra.mxu0 %v5249
        %6948 = vmatpush.bf16.msra.mxu0 %v5237
        %6949 = vmatpush.bf16.msra.mxu0 %v5225
        %6950 = vmatpush.bf16.msra.mxu0 %v5213
        %6951 = vmatpush.bf16.msra.mxu0 %v5201
        %6952 = vmatpush.bf16.msra.mxu0 %v5189
        %6953 = vmatmul.bf16.gmra.mxu0 %v2651
        %v6954 = vpop.f32.mrf.mxu0
        %v6955 = vadd.f32 %v6942, %v6954
        %v6956 = vpop.f32.mrf.mxu0
        %6957 = vdwg.mxu0
        %6958 = vmatpush.bf16.msra.mxu0 %v5369
        %6959 = vmatpush.bf16.msra.mxu0 %v5357
        %6960 = vmatpush.bf16.msra.mxu0 %v5345
        %6961 = vmatpush.bf16.msra.mxu0 %v5333
        %6962 = vmatpush.bf16.msra.mxu0 %v5321
        %6963 = vmatpush.bf16.msra.mxu0 %v5309
        %6964 = vmatpush.bf16.msra.mxu0 %v5297
        %6965 = vmatpush.bf16.msra.mxu0 %v5285
        %6966 = vmatmul.bf16.gmra.mxu0 %v2652
        %v6967 = vpop.f32.mrf.mxu0
        %v6968 = vadd.f32 %v6955, %v6967
        %v6969 = vpop.f32.mrf.mxu0
        %6970 = vdwg.mxu0
        %6971 = vmatpush.bf16.msra.mxu0 %v5465
        %6972 = vmatpush.bf16.msra.mxu0 %v5453
        %6973 = vmatpush.bf16.msra.mxu0 %v5441
        %6974 = vmatpush.bf16.msra.mxu0 %v5429
        %6975 = vmatpush.bf16.msra.mxu0 %v5417
        %6976 = vmatpush.bf16.msra.mxu0 %v5405
        %6977 = vmatpush.bf16.msra.mxu0 %v5393
        %6978 = vmatpush.bf16.msra.mxu0 %v5381
        %6979 = vmatmul.bf16.gmra.mxu0 %v2653
        %v6980 = vpop.f32.mrf.mxu0
        %v6981 = vadd.f32 %v6968, %v6980
        %v6982 = vpop.f32.mrf.mxu0
        %6983 = vdwg.mxu0
        %6984 = vmatpush.bf16.msra.mxu0 %v5561
        %6985 = vmatpush.bf16.msra.mxu0 %v5549
        %6986 = vmatpush.bf16.msra.mxu0 %v5537
        %6987 = vmatpush.bf16.msra.mxu0 %v5525
        %6988 = vmatpush.bf16.msra.mxu0 %v5513
        %6989 = vmatpush.bf16.msra.mxu0 %v5501
        %6990 = vmatpush.bf16.msra.mxu0 %v5489
        %6991 = vmatpush.bf16.msra.mxu0 %v5477
        %6992 = vmatmul.bf16.gmra.mxu0 %v2654
        %v6993 = vpop.f32.mrf.mxu0
        %v6994 = vadd.f32 %v6981, %v6993
        %v6995 = vpop.f32.mrf.mxu0
        %6996 = vdwg.mxu0
        %6997 = vmatpush.bf16.msra.mxu0 %v5082
        %6998 = vmatpush.bf16.msra.mxu0 %v5070
        %6999 = vmatpush.bf16.msra.mxu0 %v5058
        %7000 = vmatpush.bf16.msra.mxu0 %v5046
        %7001 = vmatpush.bf16.msra.mxu0 %v5034
        %7002 = vmatpush.bf16.msra.mxu0 %v5022
        %7003 = vmatpush.bf16.msra.mxu0 %v5010
        %7004 = vmatpush.bf16.msra.mxu0 %v4998
        %7005 = vmatmul.bf16.gmra.mxu0 %v2649
        %v7006 = vpop.f32.mrf.mxu0
        %v7007 = vadd.f32 %v3246, %v7006
        %v7008 = vpop.f32.mrf.mxu0
        %7009 = vdwg.mxu0
        %7010 = vmatpush.bf16.msra.mxu0 %v5178
        %7011 = vmatpush.bf16.msra.mxu0 %v5166
        %7012 = vmatpush.bf16.msra.mxu0 %v5154
        %7013 = vmatpush.bf16.msra.mxu0 %v5142
        %7014 = vmatpush.bf16.msra.mxu0 %v5130
        %7015 = vmatpush.bf16.msra.mxu0 %v5118
        %7016 = vmatpush.bf16.msra.mxu0 %v5106
        %7017 = vmatpush.bf16.msra.mxu0 %v5094
        %7018 = vmatmul.bf16.gmra.mxu0 %v2650
        %v7019 = vpop.f32.mrf.mxu0
        %v7020 = vadd.f32 %v7007, %v7019
        %v7021 = vpop.f32.mrf.mxu0
        %7022 = vdwg.mxu0
        %7023 = vmatpush.bf16.msra.mxu0 %v5274
        %7024 = vmatpush.bf16.msra.mxu0 %v5262
        %7025 = vmatpush.bf16.msra.mxu0 %v5250
        %7026 = vmatpush.bf16.msra.mxu0 %v5238
        %7027 = vmatpush.bf16.msra.mxu0 %v5226
        %7028 = vmatpush.bf16.msra.mxu0 %v5214
        %7029 = vmatpush.bf16.msra.mxu0 %v5202
        %7030 = vmatpush.bf16.msra.mxu0 %v5190
        %7031 = vmatmul.bf16.gmra.mxu0 %v2651
        %v7032 = vpop.f32.mrf.mxu0
        %v7033 = vadd.f32 %v7020, %v7032
        %v7034 = vpop.f32.mrf.mxu0
        %7035 = vdwg.mxu0
        %7036 = vmatpush.bf16.msra.mxu0 %v5370
        %7037 = vmatpush.bf16.msra.mxu0 %v5358
        %7038 = vmatpush.bf16.msra.mxu0 %v5346
        %7039 = vmatpush.bf16.msra.mxu0 %v5334
        %7040 = vmatpush.bf16.msra.mxu0 %v5322
        %7041 = vmatpush.bf16.msra.mxu0 %v5310
        %7042 = vmatpush.bf16.msra.mxu0 %v5298
        %7043 = vmatpush.bf16.msra.mxu0 %v5286
        %7044 = vmatmul.bf16.gmra.mxu0 %v2652
        %v7045 = vpop.f32.mrf.mxu0
        %v7046 = vadd.f32 %v7033, %v7045
        %v7047 = vpop.f32.mrf.mxu0
        %7048 = vdwg.mxu0
        %7049 = vmatpush.bf16.msra.mxu0 %v5466
        %7050 = vmatpush.bf16.msra.mxu0 %v5454
        %7051 = vmatpush.bf16.msra.mxu0 %v5442
        %7052 = vmatpush.bf16.msra.mxu0 %v5430
        %7053 = vmatpush.bf16.msra.mxu0 %v5418
        %7054 = vmatpush.bf16.msra.mxu0 %v5406
        %7055 = vmatpush.bf16.msra.mxu0 %v5394
        %7056 = vmatpush.bf16.msra.mxu0 %v5382
        %7057 = vmatmul.bf16.gmra.mxu0 %v2653
        %v7058 = vpop.f32.mrf.mxu0
        %v7059 = vadd.f32 %v7046, %v7058
        %v7060 = vpop.f32.mrf.mxu0
        %7061 = vdwg.mxu0
        %7062 = vmatpush.bf16.msra.mxu0 %v5562
        %7063 = vmatpush.bf16.msra.mxu0 %v5550
        %7064 = vmatpush.bf16.msra.mxu0 %v5538
        %7065 = vmatpush.bf16.msra.mxu0 %v5526
        %7066 = vmatpush.bf16.msra.mxu0 %v5514
        %7067 = vmatpush.bf16.msra.mxu0 %v5502
        %7068 = vmatpush.bf16.msra.mxu0 %v5490
        %7069 = vmatpush.bf16.msra.mxu0 %v5478
        %7070 = vmatmul.bf16.gmra.mxu0 %v2654
        %v7071 = vpop.f32.mrf.mxu0
        %v7072 = vadd.f32 %v7059, %v7071
        %v7073 = vpop.f32.mrf.mxu0
        %7074 = vdwg.mxu0
        %v7075 = vpack.c.bf16 %v2256, %v2256
        %v7076 = vpack.c.bf16 %v6214, %v6214
        %v7077 = vpack.c.bf16 %v6682, %v6682
        %vm7078 = vcmask 523264
        %v7080 = vsel %vm7078, %v7075, 0
        %v7083 = vsel %vm7078, %v7076, 0
        %7085 = vmatpush.bf16.xpose.msra.mxu0 0
        %7086 = vmatpush.bf16.xpose.msra.mxu0 0
        %7087 = vmatpush.bf16.xpose.msra.mxu0 0
        %7088 = vmatpush.bf16.xpose.msra.mxu0 0
        %7089 = vmatpush.bf16.xpose.msra.mxu0 0
        %7090 = vmatpush.bf16.xpose.msra.mxu0 0
        %7091 = vmatpush.bf16.xpose.msra.mxu0 0
        %7092 = vmatpush.bf16.xpose.msra.mxu0 %v7083
        %7093 = vmatmul.bf16.gmra.mxu0 %v7080
        %v7094 = vpop.f32.mrf.mxu0
        %v7095 = vadd.f32 0.0, %v7094
        %v7096 = vpop.f32.mrf.mxu0
        %7097 = vdwg.mxu0
        %v7098 = vmul.f32 %v7095, 0.125
        %v7100 = vperm.slane %v432, 0
        %v7102 = vadd.f32 %v7098, %v7100
        %vm7103 = vcmask 64512
        %v7104 = vsel %vm7103, %v7102, -inf
        %7105 = vmax.xlane.f32.xlu0 %v7104
        %v7106 = vpop.xlane.xlu0 %7105
        %v7107 = vsub.f32 %v7102, %v7106
        %v7108 = vmul.f32 %v7107, 1.442695
        %v7109 = vpow.pop %v7108
        %v7110 = vsel %vm7103, %v7109, 0.0
        %7111 = vadd.xlane.f32.xlu0 %v7110
        %v7112 = vpop.xlane.xlu0 %7111
        %v7113 = vrcp.pop %v7112
        %v7114 = vmul.f32 %v7112, %v7113
        %v7115 = vsub.f32 1.0, %v7114
        %v7116 = vmul.f32 %v7113, %v7115
        %v7117 = vadd.f32 %v7113, %v7116
        %vm7118 = vweird.f32 %v7112
        %vm7119 = vweird.f32 %v7113
        %vm7120 = vmor %vm7118, %vm7119
        %v7121 = vsel %vm7120, %v7113, %v7117
        %v7122 = vand.u32 2147483647, %v7112
        %vm7123 = vcmp.eq.f32.partialorder %v7122, 8.507059e+37
        %v7124 = vand.u32 %v7112, 2147483648
        %v7125 = vor.u32 1.1754944e-38, %v7124
        %v7126 = vsel %vm7123, %v7125, %v7121
        %v7127 = vmul.f32 %v7109, %v7126
        %v7128 = vpack.c.bf16 %v7127, %v7127
        %v7130 = vsel %vm7103, %v7128, 0
        %vm7132 = vcmask 1043456
        %v7134 = vsel %vm7132, %v7077, 0
        %7136 = vmatpush.bf16.msra.mxu0 0
        %7137 = vmatpush.bf16.msra.mxu0 0
        %7138 = vmatpush.bf16.msra.mxu0 0
        %7139 = vmatpush.bf16.msra.mxu0 0
        %7140 = vmatpush.bf16.msra.mxu0 0
        %7141 = vmatpush.bf16.msra.mxu0 0
        %7142 = vmatpush.bf16.msra.mxu0 0
        %7143 = vmatpush.bf16.msra.mxu0 %v7134
        %7144 = vmatmul.bf16.gmra.mxu0 %v7130
        %v7145 = vpop.f32.mrf.mxu0
        %v7146 = vadd.f32 0.0, %v7145
        %v7147 = vpop.f32.mrf.mxu0
        %7148 = vdwg.mxu0
        %7150 = vrot.lane.b32.xlu0 %v7075, 64
        %v7151 = vpop.permute.xlu0 %7150
        %7153 = vrot.lane.b32.xlu0 %v7076, 64
        %v7154 = vpop.permute.xlu0 %7153
        %v7156 = vsel %vm7078, %v7151, 0
        %v7159 = vsel %vm7078, %v7154, 0
        %7161 = vmatpush.bf16.xpose.msra.mxu0 0
        %7162 = vmatpush.bf16.xpose.msra.mxu0 0
        %7163 = vmatpush.bf16.xpose.msra.mxu0 0
        %7164 = vmatpush.bf16.xpose.msra.mxu0 0
        %7165 = vmatpush.bf16.xpose.msra.mxu0 0
        %7166 = vmatpush.bf16.xpose.msra.mxu0 0
        %7167 = vmatpush.bf16.xpose.msra.mxu0 0
        %7168 = vmatpush.bf16.xpose.msra.mxu0 %v7159
        %7169 = vmatmul.bf16.gmra.mxu0 %v7156
        %v7170 = vpop.f32.mrf.mxu0
        %v7171 = vadd.f32 0.0, %v7170
        %v7172 = vpop.f32.mrf.mxu0
        %7173 = vdwg.mxu0
        %v7174 = vmul.f32 %v7171, 0.125
        %v7175 = vadd.f32 %v7174, %v7100
        %v7176 = vsel %vm7103, %v7175, -inf
        %7177 = vmax.xlane.f32.xlu0 %v7176
        %v7178 = vpop.xlane.xlu0 %7177
        %v7179 = vsub.f32 %v7175, %v7178
        %v7180 = vmul.f32 %v7179, 1.442695
        %v7181 = vpow.pop %v7180
        %v7182 = vsel %vm7103, %v7181, 0.0
        %7183 = vadd.xlane.f32.xlu0 %v7182
        %v7184 = vpop.xlane.xlu0 %7183
        %v7185 = vrcp.pop %v7184
        %v7186 = vmul.f32 %v7184, %v7185
        %v7187 = vsub.f32 1.0, %v7186
        %v7188 = vmul.f32 %v7185, %v7187
        %v7189 = vadd.f32 %v7185, %v7188
        %vm7190 = vweird.f32 %v7184
        %vm7191 = vweird.f32 %v7185
        %vm7192 = vmor %vm7190, %vm7191
        %v7193 = vsel %vm7192, %v7185, %v7189
        %v7194 = vand.u32 2147483647, %v7184
        %vm7195 = vcmp.eq.f32.partialorder %v7194, 8.507059e+37
        %v7196 = vand.u32 %v7184, 2147483648
        %v7197 = vor.u32 1.1754944e-38, %v7196
        %v7198 = vsel %vm7195, %v7197, %v7193
        %v7199 = vmul.f32 %v7181, %v7198
        %v7200 = vpack.c.bf16 %v7199, %v7199
        %7202 = vrot.lane.b32.xlu0 %v7077, 64
        %v7203 = vpop.permute.xlu0 %7202
        %v7205 = vsel %vm7103, %v7200, 0
        %v7208 = vsel %vm7132, %v7203, 0
        %7210 = vmatpush.bf16.msra.mxu0 0
        %7211 = vmatpush.bf16.msra.mxu0 0
        %7212 = vmatpush.bf16.msra.mxu0 0
        %7213 = vmatpush.bf16.msra.mxu0 0
        %7214 = vmatpush.bf16.msra.mxu0 0
        %7215 = vmatpush.bf16.msra.mxu0 0
        %7216 = vmatpush.bf16.msra.mxu0 0
        %7217 = vmatpush.bf16.msra.mxu0 %v7208
        %7218 = vmatmul.bf16.gmra.mxu0 %v7205
        %v7219 = vpop.f32.mrf.mxu0
        %v7220 = vadd.f32 0.0, %v7219
        %v7221 = vpop.f32.mrf.mxu0
        %7222 = vdwg.mxu0
        %v7223 = vpack.c.bf16 %v2334, %v2334
        %v7224 = vpack.c.bf16 %v6292, %v6292
        %v7225 = vpack.c.bf16 %v6760, %v6760
        %v7227 = vsel %vm7078, %v7223, 0
        %v7230 = vsel %vm7078, %v7224, 0
        %7232 = vmatpush.bf16.xpose.msra.mxu0 0
        %7233 = vmatpush.bf16.xpose.msra.mxu0 0
        %7234 = vmatpush.bf16.xpose.msra.mxu0 0
        %7235 = vmatpush.bf16.xpose.msra.mxu0 0
        %7236 = vmatpush.bf16.xpose.msra.mxu0 0
        %7237 = vmatpush.bf16.xpose.msra.mxu0 0
        %7238 = vmatpush.bf16.xpose.msra.mxu0 0
        %7239 = vmatpush.bf16.xpose.msra.mxu0 %v7230
        %7240 = vmatmul.bf16.gmra.mxu0 %v7227
        %v7241 = vpop.f32.mrf.mxu0
        %v7242 = vadd.f32 0.0, %v7241
        %v7243 = vpop.f32.mrf.mxu0
        %7244 = vdwg.mxu0
        %v7245 = vmul.f32 %v7242, 0.125
        %v7246 = vadd.f32 %v7245, %v7100
        %v7247 = vsel %vm7103, %v7246, -inf
        %7248 = vmax.xlane.f32.xlu0 %v7247
        %v7249 = vpop.xlane.xlu0 %7248
        %v7250 = vsub.f32 %v7246, %v7249
        %v7251 = vmul.f32 %v7250, 1.442695
        %v7252 = vpow.pop %v7251
        %v7253 = vsel %vm7103, %v7252, 0.0
        %7254 = vadd.xlane.f32.xlu0 %v7253
        %v7255 = vpop.xlane.xlu0 %7254
        %v7256 = vrcp.pop %v7255
        %v7257 = vmul.f32 %v7255, %v7256
        %v7258 = vsub.f32 1.0, %v7257
        %v7259 = vmul.f32 %v7256, %v7258
        %v7260 = vadd.f32 %v7256, %v7259
        %vm7261 = vweird.f32 %v7255
        %vm7262 = vweird.f32 %v7256
        %vm7263 = vmor %vm7261, %vm7262
        %v7264 = vsel %vm7263, %v7256, %v7260
        %v7265 = vand.u32 2147483647, %v7255
        %vm7266 = vcmp.eq.f32.partialorder %v7265, 8.507059e+37
        %v7267 = vand.u32 %v7255, 2147483648
        %v7268 = vor.u32 1.1754944e-38, %v7267
        %v7269 = vsel %vm7266, %v7268, %v7264
        %v7270 = vmul.f32 %v7252, %v7269
        %v7271 = vpack.c.bf16 %v7270, %v7270
        %v7273 = vsel %vm7103, %v7271, 0
        %v7276 = vsel %vm7132, %v7225, 0
        %7278 = vmatpush.bf16.msra.mxu0 0
        %7279 = vmatpush.bf16.msra.mxu0 0
        %7280 = vmatpush.bf16.msra.mxu0 0
        %7281 = vmatpush.bf16.msra.mxu0 0
        %7282 = vmatpush.bf16.msra.mxu0 0
        %7283 = vmatpush.bf16.msra.mxu0 0
        %7284 = vmatpush.bf16.msra.mxu0 0
        %7285 = vmatpush.bf16.msra.mxu0 %v7276
        %7286 = vmatmul.bf16.gmra.mxu0 %v7273
        %v7287 = vpop.f32.mrf.mxu0
        %v7288 = vadd.f32 0.0, %v7287
        %v7289 = vpop.f32.mrf.mxu0
        %7290 = vdwg.mxu0
        %7292 = vrot.lane.b32.xlu0 %v7223, 64
        %v7293 = vpop.permute.xlu0 %7292
        %7295 = vrot.lane.b32.xlu0 %v7224, 64
        %v7296 = vpop.permute.xlu0 %7295
        %v7298 = vsel %vm7078, %v7293, 0
        %v7301 = vsel %vm7078, %v7296, 0
        %7303 = vmatpush.bf16.xpose.msra.mxu0 0
        %7304 = vmatpush.bf16.xpose.msra.mxu0 0
        %7305 = vmatpush.bf16.xpose.msra.mxu0 0
        %7306 = vmatpush.bf16.xpose.msra.mxu0 0
        %7307 = vmatpush.bf16.xpose.msra.mxu0 0
        %7308 = vmatpush.bf16.xpose.msra.mxu0 0
        %7309 = vmatpush.bf16.xpose.msra.mxu0 0
        %7310 = vmatpush.bf16.xpose.msra.mxu0 %v7301
        %7311 = vmatmul.bf16.gmra.mxu0 %v7298
        %v7312 = vpop.f32.mrf.mxu0
        %v7313 = vadd.f32 0.0, %v7312
        %v7314 = vpop.f32.mrf.mxu0
        %7315 = vdwg.mxu0
        %v7316 = vmul.f32 %v7313, 0.125
        %v7317 = vadd.f32 %v7316, %v7100
        %v7318 = vsel %vm7103, %v7317, -inf
        %7319 = vmax.xlane.f32.xlu0 %v7318
        %v7320 = vpop.xlane.xlu0 %7319
        %v7321 = vsub.f32 %v7317, %v7320
        %v7322 = vmul.f32 %v7321, 1.442695
        %v7323 = vpow.pop %v7322
        %v7324 = vsel %vm7103, %v7323, 0.0
        %7325 = vadd.xlane.f32.xlu0 %v7324
        %v7326 = vpop.xlane.xlu0 %7325
        %v7327 = vrcp.pop %v7326
        %v7328 = vmul.f32 %v7326, %v7327
        %v7329 = vsub.f32 1.0, %v7328
        %v7330 = vmul.f32 %v7327, %v7329
        %v7331 = vadd.f32 %v7327, %v7330
        %vm7332 = vweird.f32 %v7326
        %vm7333 = vweird.f32 %v7327
        %vm7334 = vmor %vm7332, %vm7333
        %v7335 = vsel %vm7334, %v7327, %v7331
        %v7336 = vand.u32 2147483647, %v7326
        %vm7337 = vcmp.eq.f32.partialorder %v7336, 8.507059e+37
        %v7338 = vand.u32 %v7326, 2147483648
        %v7339 = vor.u32 1.1754944e-38, %v7338
        %v7340 = vsel %vm7337, %v7339, %v7335
        %v7341 = vmul.f32 %v7323, %v7340
        %v7342 = vpack.c.bf16 %v7341, %v7341
        %7344 = vrot.lane.b32.xlu0 %v7225, 64
        %v7345 = vpop.permute.xlu0 %7344
        %v7347 = vsel %vm7103, %v7342, 0
        %v7350 = vsel %vm7132, %v7345, 0
        %7352 = vmatpush.bf16.msra.mxu0 0
        %7353 = vmatpush.bf16.msra.mxu0 0
        %7354 = vmatpush.bf16.msra.mxu0 0
        %7355 = vmatpush.bf16.msra.mxu0 0
        %7356 = vmatpush.bf16.msra.mxu0 0
        %7357 = vmatpush.bf16.msra.mxu0 0
        %7358 = vmatpush.bf16.msra.mxu0 0
        %7359 = vmatpush.bf16.msra.mxu0 %v7350
        %7360 = vmatmul.bf16.gmra.mxu0 %v7347
        %v7361 = vpop.f32.mrf.mxu0
        %v7362 = vadd.f32 0.0, %v7361
        %v7363 = vpop.f32.mrf.mxu0
        %7364 = vdwg.mxu0
        %v7365 = vpack.c.bf16 %v2412, %v2412
        %v7366 = vpack.c.bf16 %v6370, %v6370
        %v7367 = vpack.c.bf16 %v6838, %v6838
        %v7369 = vsel %vm7078, %v7365, 0
        %v7372 = vsel %vm7078, %v7366, 0
        %7374 = vmatpush.bf16.xpose.msra.mxu0 0
        %7375 = vmatpush.bf16.xpose.msra.mxu0 0
        %7376 = vmatpush.bf16.xpose.msra.mxu0 0
        %7377 = vmatpush.bf16.xpose.msra.mxu0 0
        %7378 = vmatpush.bf16.xpose.msra.mxu0 0
        %7379 = vmatpush.bf16.xpose.msra.mxu0 0
        %7380 = vmatpush.bf16.xpose.msra.mxu0 0
        %7381 = vmatpush.bf16.xpose.msra.mxu0 %v7372
        %7382 = vmatmul.bf16.gmra.mxu0 %v7369
        %v7383 = vpop.f32.mrf.mxu0
        %v7384 = vadd.f32 0.0, %v7383
        %v7385 = vpop.f32.mrf.mxu0
        %7386 = vdwg.mxu0
        %v7387 = vmul.f32 %v7384, 0.125
        %v7388 = vadd.f32 %v7387, %v7100
        %v7389 = vsel %vm7103, %v7388, -inf
        %7390 = vmax.xlane.f32.xlu0 %v7389
        %v7391 = vpop.xlane.xlu0 %7390
        %v7392 = vsub.f32 %v7388, %v7391
        %v7393 = vmul.f32 %v7392, 1.442695
        %v7394 = vpow.pop %v7393
        %v7395 = vsel %vm7103, %v7394, 0.0
        %7396 = vadd.xlane.f32.xlu0 %v7395
        %v7397 = vpop.xlane.xlu0 %7396
        %v7398 = vrcp.pop %v7397
        %v7399 = vmul.f32 %v7397, %v7398
        %v7400 = vsub.f32 1.0, %v7399
        %v7401 = vmul.f32 %v7398, %v7400
        %v7402 = vadd.f32 %v7398, %v7401
        %vm7403 = vweird.f32 %v7397
        %vm7404 = vweird.f32 %v7398
        %vm7405 = vmor %vm7403, %vm7404
        %v7406 = vsel %vm7405, %v7398, %v7402
        %v7407 = vand.u32 2147483647, %v7397
        %vm7408 = vcmp.eq.f32.partialorder %v7407, 8.507059e+37
        %v7409 = vand.u32 %v7397, 2147483648
        %v7410 = vor.u32 1.1754944e-38, %v7409
        %v7411 = vsel %vm7408, %v7410, %v7406
        %v7412 = vmul.f32 %v7394, %v7411
        %v7413 = vpack.c.bf16 %v7412, %v7412
        %v7415 = vsel %vm7103, %v7413, 0
        %v7418 = vsel %vm7132, %v7367, 0
        %7420 = vmatpush.bf16.msra.mxu0 0
        %7421 = vmatpush.bf16.msra.mxu0 0
        %7422 = vmatpush.bf16.msra.mxu0 0
        %7423 = vmatpush.bf16.msra.mxu0 0
        %7424 = vmatpush.bf16.msra.mxu0 0
        %7425 = vmatpush.bf16.msra.mxu0 0
        %7426 = vmatpush.bf16.msra.mxu0 0
        %7427 = vmatpush.bf16.msra.mxu0 %v7418
        %7428 = vmatmul.bf16.gmra.mxu0 %v7415
        %v7429 = vpop.f32.mrf.mxu0
        %v7430 = vadd.f32 0.0, %v7429
        %v7431 = vpop.f32.mrf.mxu0
        %7432 = vdwg.mxu0
        %7434 = vrot.lane.b32.xlu0 %v7365, 64
        %v7435 = vpop.permute.xlu0 %7434
        %7437 = vrot.lane.b32.xlu0 %v7366, 64
        %v7438 = vpop.permute.xlu0 %7437
        %v7440 = vsel %vm7078, %v7435, 0
        %v7443 = vsel %vm7078, %v7438, 0
        %7445 = vmatpush.bf16.xpose.msra.mxu0 0
        %7446 = vmatpush.bf16.xpose.msra.mxu0 0
        %7447 = vmatpush.bf16.xpose.msra.mxu0 0
        %7448 = vmatpush.bf16.xpose.msra.mxu0 0
        %7449 = vmatpush.bf16.xpose.msra.mxu0 0
        %7450 = vmatpush.bf16.xpose.msra.mxu0 0
        %7451 = vmatpush.bf16.xpose.msra.mxu0 0
        %7452 = vmatpush.bf16.xpose.msra.mxu0 %v7443
        %7453 = vmatmul.bf16.gmra.mxu0 %v7440
        %v7454 = vpop.f32.mrf.mxu0
        %v7455 = vadd.f32 0.0, %v7454
        %v7456 = vpop.f32.mrf.mxu0
        %7457 = vdwg.mxu0
        %v7458 = vmul.f32 %v7455, 0.125
        %v7459 = vadd.f32 %v7458, %v7100
        %v7460 = vsel %vm7103, %v7459, -inf
        %7461 = vmax.xlane.f32.xlu0 %v7460
        %v7462 = vpop.xlane.xlu0 %7461
        %v7463 = vsub.f32 %v7459, %v7462
        %v7464 = vmul.f32 %v7463, 1.442695
        %v7465 = vpow.pop %v7464
        %v7466 = vsel %vm7103, %v7465, 0.0
        %7467 = vadd.xlane.f32.xlu0 %v7466
        %v7468 = vpop.xlane.xlu0 %7467
        %v7469 = vrcp.pop %v7468
        %v7470 = vmul.f32 %v7468, %v7469
        %v7471 = vsub.f32 1.0, %v7470
        %v7472 = vmul.f32 %v7469, %v7471
        %v7473 = vadd.f32 %v7469, %v7472
        %vm7474 = vweird.f32 %v7468
        %vm7475 = vweird.f32 %v7469
        %vm7476 = vmor %vm7474, %vm7475
        %v7477 = vsel %vm7476, %v7469, %v7473
        %v7478 = vand.u32 2147483647, %v7468
        %vm7479 = vcmp.eq.f32.partialorder %v7478, 8.507059e+37
        %v7480 = vand.u32 %v7468, 2147483648
        %v7481 = vor.u32 1.1754944e-38, %v7480
        %v7482 = vsel %vm7479, %v7481, %v7477
        %v7483 = vmul.f32 %v7465, %v7482
        %v7484 = vpack.c.bf16 %v7483, %v7483
        %7486 = vrot.lane.b32.xlu0 %v7367, 64
        %v7487 = vpop.permute.xlu0 %7486
        %v7489 = vsel %vm7103, %v7484, 0
        %v7492 = vsel %vm7132, %v7487, 0
        %7494 = vmatpush.bf16.msra.mxu0 0
        %7495 = vmatpush.bf16.msra.mxu0 0
        %7496 = vmatpush.bf16.msra.mxu0 0
        %7497 = vmatpush.bf16.msra.mxu0 0
        %7498 = vmatpush.bf16.msra.mxu0 0
        %7499 = vmatpush.bf16.msra.mxu0 0
        %7500 = vmatpush.bf16.msra.mxu0 0
        %7501 = vmatpush.bf16.msra.mxu0 %v7492
        %7502 = vmatmul.bf16.gmra.mxu0 %v7489
        %v7503 = vpop.f32.mrf.mxu0
        %v7504 = vadd.f32 0.0, %v7503
        %v7505 = vpop.f32.mrf.mxu0
        %7506 = vdwg.mxu0
        %v7507 = vpack.c.bf16 %v2490, %v2490
        %v7508 = vpack.c.bf16 %v6448, %v6448
        %v7509 = vpack.c.bf16 %v6916, %v6916
        %v7511 = vsel %vm7078, %v7507, 0
        %v7514 = vsel %vm7078, %v7508, 0
        %7516 = vmatpush.bf16.xpose.msra.mxu0 0
        %7517 = vmatpush.bf16.xpose.msra.mxu0 0
        %7518 = vmatpush.bf16.xpose.msra.mxu0 0
        %7519 = vmatpush.bf16.xpose.msra.mxu0 0
        %7520 = vmatpush.bf16.xpose.msra.mxu0 0
        %7521 = vmatpush.bf16.xpose.msra.mxu0 0
        %7522 = vmatpush.bf16.xpose.msra.mxu0 0
        %7523 = vmatpush.bf16.xpose.msra.mxu0 %v7514
        %7524 = vmatmul.bf16.gmra.mxu0 %v7511
        %v7525 = vpop.f32.mrf.mxu0
        %v7526 = vadd.f32 0.0, %v7525
        %v7527 = vpop.f32.mrf.mxu0
        %7528 = vdwg.mxu0
        %v7529 = vmul.f32 %v7526, 0.125
        %v7530 = vadd.f32 %v7529, %v7100
        %v7531 = vsel %vm7103, %v7530, -inf
        %7532 = vmax.xlane.f32.xlu0 %v7531
        %v7533 = vpop.xlane.xlu0 %7532
        %v7534 = vsub.f32 %v7530, %v7533
        %v7535 = vmul.f32 %v7534, 1.442695
        %v7536 = vpow.pop %v7535
        %v7537 = vsel %vm7103, %v7536, 0.0
        %7538 = vadd.xlane.f32.xlu0 %v7537
        %v7539 = vpop.xlane.xlu0 %7538
        %v7540 = vrcp.pop %v7539
        %v7541 = vmul.f32 %v7539, %v7540
        %v7542 = vsub.f32 1.0, %v7541
        %v7543 = vmul.f32 %v7540, %v7542
        %v7544 = vadd.f32 %v7540, %v7543
        %vm7545 = vweird.f32 %v7539
        %vm7546 = vweird.f32 %v7540
        %vm7547 = vmor %vm7545, %vm7546
        %v7548 = vsel %vm7547, %v7540, %v7544
        %v7549 = vand.u32 2147483647, %v7539
        %vm7550 = vcmp.eq.f32.partialorder %v7549, 8.507059e+37
        %v7551 = vand.u32 %v7539, 2147483648
        %v7552 = vor.u32 1.1754944e-38, %v7551
        %v7553 = vsel %vm7550, %v7552, %v7548
        %v7554 = vmul.f32 %v7536, %v7553
        %v7555 = vpack.c.bf16 %v7554, %v7554
        %v7557 = vsel %vm7103, %v7555, 0
        %v7560 = vsel %vm7132, %v7509, 0
        %7562 = vmatpush.bf16.msra.mxu0 0
        %7563 = vmatpush.bf16.msra.mxu0 0
        %7564 = vmatpush.bf16.msra.mxu0 0
        %7565 = vmatpush.bf16.msra.mxu0 0
        %7566 = vmatpush.bf16.msra.mxu0 0
        %7567 = vmatpush.bf16.msra.mxu0 0
        %7568 = vmatpush.bf16.msra.mxu0 0
        %7569 = vmatpush.bf16.msra.mxu0 %v7560
        %7570 = vmatmul.bf16.gmra.mxu0 %v7557
        %v7571 = vpop.f32.mrf.mxu0
        %v7572 = vadd.f32 0.0, %v7571
        %v7573 = vpop.f32.mrf.mxu0
        %7574 = vdwg.mxu0
        %7576 = vrot.lane.b32.xlu0 %v7507, 64
        %v7577 = vpop.permute.xlu0 %7576
        %7579 = vrot.lane.b32.xlu0 %v7508, 64
        %v7580 = vpop.permute.xlu0 %7579
        %v7582 = vsel %vm7078, %v7577, 0
        %v7585 = vsel %vm7078, %v7580, 0
        %7587 = vmatpush.bf16.xpose.msra.mxu0 0
        %7588 = vmatpush.bf16.xpose.msra.mxu0 0
        %7589 = vmatpush.bf16.xpose.msra.mxu0 0
        %7590 = vmatpush.bf16.xpose.msra.mxu0 0
        %7591 = vmatpush.bf16.xpose.msra.mxu0 0
        %7592 = vmatpush.bf16.xpose.msra.mxu0 0
        %7593 = vmatpush.bf16.xpose.msra.mxu0 0
        %7594 = vmatpush.bf16.xpose.msra.mxu0 %v7585
        %7595 = vmatmul.bf16.gmra.mxu0 %v7582
        %v7596 = vpop.f32.mrf.mxu0
        %v7597 = vadd.f32 0.0, %v7596
        %v7598 = vpop.f32.mrf.mxu0
        %7599 = vdwg.mxu0
        %v7600 = vmul.f32 %v7597, 0.125
        %v7601 = vadd.f32 %v7600, %v7100
        %v7602 = vsel %vm7103, %v7601, -inf
        %7603 = vmax.xlane.f32.xlu0 %v7602
        %v7604 = vpop.xlane.xlu0 %7603
        %v7605 = vsub.f32 %v7601, %v7604
        %v7606 = vmul.f32 %v7605, 1.442695
        %v7607 = vpow.pop %v7606
        %v7608 = vsel %vm7103, %v7607, 0.0
        %7609 = vadd.xlane.f32.xlu0 %v7608
        %v7610 = vpop.xlane.xlu0 %7609
        %v7611 = vrcp.pop %v7610
        %v7612 = vmul.f32 %v7610, %v7611
        %v7613 = vsub.f32 1.0, %v7612
        %v7614 = vmul.f32 %v7611, %v7613
        %v7615 = vadd.f32 %v7611, %v7614
        %vm7616 = vweird.f32 %v7610
        %vm7617 = vweird.f32 %v7611
        %vm7618 = vmor %vm7616, %vm7617
        %v7619 = vsel %vm7618, %v7611, %v7615
        %v7620 = vand.u32 2147483647, %v7610
        %vm7621 = vcmp.eq.f32.partialorder %v7620, 8.507059e+37
        %v7622 = vand.u32 %v7610, 2147483648
        %v7623 = vor.u32 1.1754944e-38, %v7622
        %v7624 = vsel %vm7621, %v7623, %v7619
        %v7625 = vmul.f32 %v7607, %v7624
        %v7626 = vpack.c.bf16 %v7625, %v7625
        %7628 = vrot.lane.b32.xlu0 %v7509, 64
        %v7629 = vpop.permute.xlu0 %7628
        %v7631 = vsel %vm7103, %v7626, 0
        %v7634 = vsel %vm7132, %v7629, 0
        %7636 = vmatpush.bf16.msra.mxu0 0
        %7637 = vmatpush.bf16.msra.mxu0 0
        %7638 = vmatpush.bf16.msra.mxu0 0
        %7639 = vmatpush.bf16.msra.mxu0 0
        %7640 = vmatpush.bf16.msra.mxu0 0
        %7641 = vmatpush.bf16.msra.mxu0 0
        %7642 = vmatpush.bf16.msra.mxu0 0
        %7643 = vmatpush.bf16.msra.mxu0 %v7634
        %7644 = vmatmul.bf16.gmra.mxu0 %v7631
        %v7645 = vpop.f32.mrf.mxu0
        %v7646 = vadd.f32 0.0, %v7645
        %v7647 = vpop.f32.mrf.mxu0
        %7648 = vdwg.mxu0
        %v7649 = vpack.c.bf16 %v2568, %v2568
        %v7650 = vpack.c.bf16 %v6526, %v6526
        %v7651 = vpack.c.bf16 %v6994, %v6994
        %v7653 = vsel %vm7078, %v7649, 0
        %v7656 = vsel %vm7078, %v7650, 0
        %7658 = vmatpush.bf16.xpose.msra.mxu0 0
        %7659 = vmatpush.bf16.xpose.msra.mxu0 0
        %7660 = vmatpush.bf16.xpose.msra.mxu0 0
        %7661 = vmatpush.bf16.xpose.msra.mxu0 0
        %7662 = vmatpush.bf16.xpose.msra.mxu0 0
        %7663 = vmatpush.bf16.xpose.msra.mxu0 0
        %7664 = vmatpush.bf16.xpose.msra.mxu0 0
        %7665 = vmatpush.bf16.xpose.msra.mxu0 %v7656
        %7666 = vmatmul.bf16.gmra.mxu0 %v7653
        %v7667 = vpop.f32.mrf.mxu0
        %v7668 = vadd.f32 0.0, %v7667
        %v7669 = vpop.f32.mrf.mxu0
        %7670 = vdwg.mxu0
        %v7671 = vmul.f32 %v7668, 0.125
        %v7672 = vadd.f32 %v7671, %v7100
        %v7673 = vsel %vm7103, %v7672, -inf
        %7674 = vmax.xlane.f32.xlu0 %v7673
        %v7675 = vpop.xlane.xlu0 %7674
        %v7676 = vsub.f32 %v7672, %v7675
        %v7677 = vmul.f32 %v7676, 1.442695
        %v7678 = vpow.pop %v7677
        %v7679 = vsel %vm7103, %v7678, 0.0
        %7680 = vadd.xlane.f32.xlu0 %v7679
        %v7681 = vpop.xlane.xlu0 %7680
        %v7682 = vrcp.pop %v7681
        %v7683 = vmul.f32 %v7681, %v7682
        %v7684 = vsub.f32 1.0, %v7683
        %v7685 = vmul.f32 %v7682, %v7684
        %v7686 = vadd.f32 %v7682, %v7685
        %vm7687 = vweird.f32 %v7681
        %vm7688 = vweird.f32 %v7682
        %vm7689 = vmor %vm7687, %vm7688
        %v7690 = vsel %vm7689, %v7682, %v7686
        %v7691 = vand.u32 2147483647, %v7681
        %vm7692 = vcmp.eq.f32.partialorder %v7691, 8.507059e+37
        %v7693 = vand.u32 %v7681, 2147483648
        %v7694 = vor.u32 1.1754944e-38, %v7693
        %v7695 = vsel %vm7692, %v7694, %v7690
        %v7696 = vmul.f32 %v7678, %v7695
        %v7697 = vpack.c.bf16 %v7696, %v7696
        %v7699 = vsel %vm7103, %v7697, 0
        %v7702 = vsel %vm7132, %v7651, 0
        %7704 = vmatpush.bf16.msra.mxu0 0
        %7705 = vmatpush.bf16.msra.mxu0 0
        %7706 = vmatpush.bf16.msra.mxu0 0
        %7707 = vmatpush.bf16.msra.mxu0 0
        %7708 = vmatpush.bf16.msra.mxu0 0
        %7709 = vmatpush.bf16.msra.mxu0 0
        %7710 = vmatpush.bf16.msra.mxu0 0
        %7711 = vmatpush.bf16.msra.mxu0 %v7702
        %7712 = vmatmul.bf16.gmra.mxu0 %v7699
        %v7713 = vpop.f32.mrf.mxu0
        %v7714 = vadd.f32 0.0, %v7713
        %v7715 = vpop.f32.mrf.mxu0
        %7716 = vdwg.mxu0
        %7718 = vrot.lane.b32.xlu0 %v7649, 64
        %v7719 = vpop.permute.xlu0 %7718
        %7721 = vrot.lane.b32.xlu0 %v7650, 64
        %v7722 = vpop.permute.xlu0 %7721
        %v7724 = vsel %vm7078, %v7719, 0
        %v7727 = vsel %vm7078, %v7722, 0
        %7729 = vmatpush.bf16.xpose.msra.mxu0 0
        %7730 = vmatpush.bf16.xpose.msra.mxu0 0
        %7731 = vmatpush.bf16.xpose.msra.mxu0 0
        %7732 = vmatpush.bf16.xpose.msra.mxu0 0
        %7733 = vmatpush.bf16.xpose.msra.mxu0 0
        %7734 = vmatpush.bf16.xpose.msra.mxu0 0
        %7735 = vmatpush.bf16.xpose.msra.mxu0 0
        %7736 = vmatpush.bf16.xpose.msra.mxu0 %v7727
        %7737 = vmatmul.bf16.gmra.mxu0 %v7724
        %v7738 = vpop.f32.mrf.mxu0
        %v7739 = vadd.f32 0.0, %v7738
        %v7740 = vpop.f32.mrf.mxu0
        %7741 = vdwg.mxu0
        %v7742 = vmul.f32 %v7739, 0.125
        %v7743 = vadd.f32 %v7742, %v7100
        %v7744 = vsel %vm7103, %v7743, -inf
        %7745 = vmax.xlane.f32.xlu0 %v7744
        %v7746 = vpop.xlane.xlu0 %7745
        %v7747 = vsub.f32 %v7743, %v7746
        %v7748 = vmul.f32 %v7747, 1.442695
        %v7749 = vpow.pop %v7748
        %v7750 = vsel %vm7103, %v7749, 0.0
        %7751 = vadd.xlane.f32.xlu0 %v7750
        %v7752 = vpop.xlane.xlu0 %7751
        %v7753 = vrcp.pop %v7752
        %v7754 = vmul.f32 %v7752, %v7753
        %v7755 = vsub.f32 1.0, %v7754
        %v7756 = vmul.f32 %v7753, %v7755
        %v7757 = vadd.f32 %v7753, %v7756
        %vm7758 = vweird.f32 %v7752
        %vm7759 = vweird.f32 %v7753
        %vm7760 = vmor %vm7758, %vm7759
        %v7761 = vsel %vm7760, %v7753, %v7757
        %v7762 = vand.u32 2147483647, %v7752
        %vm7763 = vcmp.eq.f32.partialorder %v7762, 8.507059e+37
        %v7764 = vand.u32 %v7752, 2147483648
        %v7765 = vor.u32 1.1754944e-38, %v7764
        %v7766 = vsel %vm7763, %v7765, %v7761
        %v7767 = vmul.f32 %v7749, %v7766
        %v7768 = vpack.c.bf16 %v7767, %v7767
        %7770 = vrot.lane.b32.xlu0 %v7651, 64
        %v7771 = vpop.permute.xlu0 %7770
        %v7773 = vsel %vm7103, %v7768, 0
        %v7776 = vsel %vm7132, %v7771, 0
        %7778 = vmatpush.bf16.msra.mxu0 0
        %7779 = vmatpush.bf16.msra.mxu0 0
        %7780 = vmatpush.bf16.msra.mxu0 0
        %7781 = vmatpush.bf16.msra.mxu0 0
        %7782 = vmatpush.bf16.msra.mxu0 0
        %7783 = vmatpush.bf16.msra.mxu0 0
        %7784 = vmatpush.bf16.msra.mxu0 0
        %7785 = vmatpush.bf16.msra.mxu0 %v7776
        %7786 = vmatmul.bf16.gmra.mxu0 %v7773
        %v7787 = vpop.f32.mrf.mxu0
        %v7788 = vadd.f32 0.0, %v7787
        %v7789 = vpop.f32.mrf.mxu0
        %7790 = vdwg.mxu0
        %v7791 = vpack.c.bf16 %v2646, %v2646
        %v7792 = vpack.c.bf16 %v6604, %v6604
        %v7793 = vpack.c.bf16 %v7072, %v7072
        %v7795 = vsel %vm7078, %v7791, 0
        %v7798 = vsel %vm7078, %v7792, 0
        %7800 = vmatpush.bf16.xpose.msra.mxu0 0
        %7801 = vmatpush.bf16.xpose.msra.mxu0 0
        %7802 = vmatpush.bf16.xpose.msra.mxu0 0
        %7803 = vmatpush.bf16.xpose.msra.mxu0 0
        %7804 = vmatpush.bf16.xpose.msra.mxu0 0
        %7805 = vmatpush.bf16.xpose.msra.mxu0 0
        %7806 = vmatpush.bf16.xpose.msra.mxu0 0
        %7807 = vmatpush.bf16.xpose.msra.mxu0 %v7798
        %7808 = vmatmul.bf16.gmra.mxu0 %v7795
        %v7809 = vpop.f32.mrf.mxu0
        %v7810 = vadd.f32 0.0, %v7809
        %v7811 = vpop.f32.mrf.mxu0
        %7812 = vdwg.mxu0
        %v7813 = vmul.f32 %v7810, 0.125
        %v7814 = vadd.f32 %v7813, %v7100
        %v7815 = vsel %vm7103, %v7814, -inf
        %7816 = vmax.xlane.f32.xlu0 %v7815
        %v7817 = vpop.xlane.xlu0 %7816
        %v7818 = vsub.f32 %v7814, %v7817
        %v7819 = vmul.f32 %v7818, 1.442695
        %v7820 = vpow.pop %v7819
        %v7821 = vsel %vm7103, %v7820, 0.0
        %7822 = vadd.xlane.f32.xlu0 %v7821
        %v7823 = vpop.xlane.xlu0 %7822
        %v7824 = vrcp.pop %v7823
        %v7825 = vmul.f32 %v7823, %v7824
        %v7826 = vsub.f32 1.0, %v7825
        %v7827 = vmul.f32 %v7824, %v7826
        %v7828 = vadd.f32 %v7824, %v7827
        %vm7829 = vweird.f32 %v7823
        %vm7830 = vweird.f32 %v7824
        %vm7831 = vmor %vm7829, %vm7830
        %v7832 = vsel %vm7831, %v7824, %v7828
        %v7833 = vand.u32 2147483647, %v7823
        %vm7834 = vcmp.eq.f32.partialorder %v7833, 8.507059e+37
        %v7835 = vand.u32 %v7823, 2147483648
        %v7836 = vor.u32 1.1754944e-38, %v7835
        %v7837 = vsel %vm7834, %v7836, %v7832
        %v7838 = vmul.f32 %v7820, %v7837
        %v7839 = vpack.c.bf16 %v7838, %v7838
        %v7841 = vsel %vm7103, %v7839, 0
        %v7844 = vsel %vm7132, %v7793, 0
        %7846 = vmatpush.bf16.msra.mxu0 0
        %7847 = vmatpush.bf16.msra.mxu0 0
        %7848 = vmatpush.bf16.msra.mxu0 0
        %7849 = vmatpush.bf16.msra.mxu0 0
        %7850 = vmatpush.bf16.msra.mxu0 0
        %7851 = vmatpush.bf16.msra.mxu0 0
        %7852 = vmatpush.bf16.msra.mxu0 0
        %7853 = vmatpush.bf16.msra.mxu0 %v7844
        %7854 = vmatmul.bf16.gmra.mxu0 %v7841
        %v7855 = vpop.f32.mrf.mxu0
        %v7856 = vadd.f32 0.0, %v7855
        %v7857 = vpop.f32.mrf.mxu0
        %7858 = vdwg.mxu0
        %7860 = vrot.lane.b32.xlu0 %v7791, 64
        %v7861 = vpop.permute.xlu0 %7860
        %7863 = vrot.lane.b32.xlu0 %v7792, 64
        %v7864 = vpop.permute.xlu0 %7863
        %v7866 = vsel %vm7078, %v7861, 0
        %v7869 = vsel %vm7078, %v7864, 0
        %7871 = vmatpush.bf16.xpose.msra.mxu0 0
        %7872 = vmatpush.bf16.xpose.msra.mxu0 0
        %7873 = vmatpush.bf16.xpose.msra.mxu0 0
        %7874 = vmatpush.bf16.xpose.msra.mxu0 0
        %7875 = vmatpush.bf16.xpose.msra.mxu0 0
        %7876 = vmatpush.bf16.xpose.msra.mxu0 0
        %7877 = vmatpush.bf16.xpose.msra.mxu0 0
        %7878 = vmatpush.bf16.xpose.msra.mxu0 %v7869
        %7879 = vmatmul.bf16.gmra.mxu0 %v7866
        %v7880 = vpop.f32.mrf.mxu0
        %v7881 = vadd.f32 0.0, %v7880
        %v7882 = vpop.f32.mrf.mxu0
        %7883 = vdwg.mxu0
        %v7884 = vmul.f32 %v7881, 0.125
        %v7885 = vadd.f32 %v7884, %v7100
        %v7886 = vsel %vm7103, %v7885, -inf
        %7887 = vmax.xlane.f32.xlu0 %v7886
        %v7888 = vpop.xlane.xlu0 %7887
        %v7889 = vsub.f32 %v7885, %v7888
        %v7890 = vmul.f32 %v7889, 1.442695
        %v7891 = vpow.pop %v7890
        %v7892 = vsel %vm7103, %v7891, 0.0
        %7893 = vadd.xlane.f32.xlu0 %v7892
        %v7894 = vpop.xlane.xlu0 %7893
        %v7895 = vrcp.pop %v7894
        %v7896 = vmul.f32 %v7894, %v7895
        %v7897 = vsub.f32 1.0, %v7896
        %v7898 = vmul.f32 %v7895, %v7897
        %v7899 = vadd.f32 %v7895, %v7898
        %vm7900 = vweird.f32 %v7894
        %vm7901 = vweird.f32 %v7895
        %vm7902 = vmor %vm7900, %vm7901
        %v7903 = vsel %vm7902, %v7895, %v7899
        %v7904 = vand.u32 2147483647, %v7894
        %vm7905 = vcmp.eq.f32.partialorder %v7904, 8.507059e+37
        %v7906 = vand.u32 %v7894, 2147483648
        %v7907 = vor.u32 1.1754944e-38, %v7906
        %v7908 = vsel %vm7905, %v7907, %v7903
        %v7909 = vmul.f32 %v7891, %v7908
        %v7910 = vpack.c.bf16 %v7909, %v7909
        %7912 = vrot.lane.b32.xlu0 %v7793, 64
        %v7913 = vpop.permute.xlu0 %7912
        %v7915 = vsel %vm7103, %v7910, 0
        %v7918 = vsel %vm7132, %v7913, 0
        %7920 = vmatpush.bf16.msra.mxu0 0
        %7921 = vmatpush.bf16.msra.mxu0 0
        %7922 = vmatpush.bf16.msra.mxu0 0
        %7923 = vmatpush.bf16.msra.mxu0 0
        %7924 = vmatpush.bf16.msra.mxu0 0
        %7925 = vmatpush.bf16.msra.mxu0 0
        %7926 = vmatpush.bf16.msra.mxu0 0
        %7927 = vmatpush.bf16.msra.mxu0 %v7918
        %7928 = vmatmul.bf16.gmra.mxu0 %v7915
        %v7929 = vpop.f32.mrf.mxu0
        %v7930 = vadd.f32 0.0, %v7929
        %v7931 = vpop.f32.mrf.mxu0
        %7932 = vdwg.mxu0
        %7934 = vrot.lane.b32.xlu0 %v7220, 64
        %v7935 = vpop.permute.xlu0 %7934
        %7938 = vrot.lane.b32.xlu0 %v7362, 64
        %v7939 = vpop.permute.xlu0 %7938
        %7942 = vrot.lane.b32.xlu0 %v7504, 64
        %v7943 = vpop.permute.xlu0 %7942
        %7946 = vrot.lane.b32.xlu0 %v7646, 64
        %v7947 = vpop.permute.xlu0 %7946
        %7950 = vrot.lane.b32.xlu0 %v7788, 64
        %v7951 = vpop.permute.xlu0 %7950
        %7954 = vrot.lane.b32.xlu0 %v7930, 64
        %v7955 = vpop.permute.xlu0 %7954
        %v7957 = vsel %vm7078, %v7146, %v7935
        %v7958 = vsel %vm7078, %v7288, %v7939
        %v7959 = vsel %vm7078, %v7430, %v7943
        %v7960 = vsel %vm7078, %v7572, %v7947
        %v7961 = vsel %vm7078, %v7714, %v7951
        %v7962 = vsel %vm7078, %v7856, %v7955
        %v7963 = vpack.c.bf16 %v7957, %v7957
        %v7964 = vpack.c.bf16 %v7958, %v7958
        %v7965 = vpack.c.bf16 %v7959, %v7959
        %v7966 = vpack.c.bf16 %v7960, %v7960
        %v7967 = vpack.c.bf16 %v7961, %v7961
        %v7968 = vpack.c.bf16 %v7962, %v7962
        %v7969 = vld [vmem:[%s7] sm:$0xff]
        %v7970 = vld [vmem:[%s7 + $0x8] sm:$0xff]
        %v7971 = vld [vmem:[%s7 + $0x10] sm:$0xff]
        %v7972 = vld [vmem:[%s7 + $0x18] sm:$0xff]
        %v7973 = vld [vmem:[%s7 + $0x20] sm:$0xff]
        %v7974 = vld [vmem:[%s7 + $0x28] sm:$0xff]
        %v7975 = vld [vmem:[%s7 + $0x30] sm:$0xff]
        %v7976 = vld [vmem:[%s7 + $0x38] sm:$0xff]
        %v7977 = vld [vmem:[%s7 + $0x40] sm:$0xff]
        %v7978 = vld [vmem:[%s7 + $0x48] sm:$0xff]
        %v7979 = vld [vmem:[%s7 + $0x50] sm:$0xff]
        %v7980 = vld [vmem:[%s7 + $0x58] sm:$0xff]
        %v7981 = vld [vmem:[%s7 + $0x60] sm:$0xff]
        %v7982 = vld [vmem:[%s7 + $0x68] sm:$0xff]
        %v7983 = vld [vmem:[%s7 + $0x70] sm:$0xff]
        %v7984 = vld [vmem:[%s7 + $0x78] sm:$0xff]
        %v7985 = vld [vmem:[%s7 + $0x80] sm:$0xff]
        %v7986 = vld [vmem:[%s7 + $0x88] sm:$0xff]
        %v7987 = vld [vmem:[%s7 + $0x90] sm:$0xff]
        %v7988 = vld [vmem:[%s7 + $0x98] sm:$0xff]
        %v7989 = vld [vmem:[%s7 + $0xa0] sm:$0xff]
        %v7990 = vld [vmem:[%s7 + $0xa8] sm:$0xff]
        %v7991 = vld [vmem:[%s7 + $0xb0] sm:$0xff]
        %v7992 = vld [vmem:[%s7 + $0xb8] sm:$0xff]
        %v7993 = vld [vmem:[%s7 + $0xc0] sm:$0xff]
        %v7994 = vld [vmem:[%s7 + $0xc8] sm:$0xff]
        %v7995 = vld [vmem:[%s7 + $0xd0] sm:$0xff]
        %v7996 = vld [vmem:[%s7 + $0xd8] sm:$0xff]
        %v7997 = vld [vmem:[%s7 + $0xe0] sm:$0xff]
        %v7998 = vld [vmem:[%s7 + $0xe8] sm:$0xff]
        %v7999 = vld [vmem:[%s7 + $0xf0] sm:$0xff]
        %v8000 = vld [vmem:[%s7 + $0xf8] sm:$0xff]
        %v8001 = vld [vmem:[%s7 + $0x100] sm:$0xff]
        %v8002 = vld [vmem:[%s7 + $0x108] sm:$0xff]
        %v8003 = vld [vmem:[%s7 + $0x110] sm:$0xff]
        %v8004 = vld [vmem:[%s7 + $0x118] sm:$0xff]
        %v8005 = vld [vmem:[%s7 + $0x120] sm:$0xff]
        %v8006 = vld [vmem:[%s7 + $0x128] sm:$0xff]
        %v8007 = vld [vmem:[%s7 + $0x130] sm:$0xff]
        %v8008 = vld [vmem:[%s7 + $0x138] sm:$0xff]
        %v8009 = vld [vmem:[%s7 + $0x140] sm:$0xff]
        %v8010 = vld [vmem:[%s7 + $0x148] sm:$0xff]
        %v8011 = vld [vmem:[%s7 + $0x150] sm:$0xff]
        %v8012 = vld [vmem:[%s7 + $0x158] sm:$0xff]
        %v8013 = vld [vmem:[%s7 + $0x160] sm:$0xff]
        %v8014 = vld [vmem:[%s7 + $0x168] sm:$0xff]
        %v8015 = vld [vmem:[%s7 + $0x170] sm:$0xff]
        %v8016 = vld [vmem:[%s7 + $0x178] sm:$0xff]
        %v8017 = vld [vmem:[%s7 + $0x180] sm:$0xff]
        %v8018 = vld [vmem:[%s7 + $0x188] sm:$0xff]
        %v8019 = vld [vmem:[%s7 + $0x190] sm:$0xff]
        %v8020 = vld [vmem:[%s7 + $0x198] sm:$0xff]
        %v8021 = vld [vmem:[%s7 + $0x1a0] sm:$0xff]
        %v8022 = vld [vmem:[%s7 + $0x1a8] sm:$0xff]
        %v8023 = vld [vmem:[%s7 + $0x1b0] sm:$0xff]
        %v8024 = vld [vmem:[%s7 + $0x1b8] sm:$0xff]
        %v8025 = vld [vmem:[%s7 + $0x1c0] sm:$0xff]
        %v8026 = vld [vmem:[%s7 + $0x1c8] sm:$0xff]
        %v8027 = vld [vmem:[%s7 + $0x1d0] sm:$0xff]
        %v8028 = vld [vmem:[%s7 + $0x1d8] sm:$0xff]
        %v8029 = vld [vmem:[%s7 + $0x1e0] sm:$0xff]
        %v8030 = vld [vmem:[%s7 + $0x1e8] sm:$0xff]
        %v8031 = vld [vmem:[%s7 + $0x1f0] sm:$0xff]
        %v8032 = vld [vmem:[%s7 + $0x1f8] sm:$0xff]
        %v8033 = vld [vmem:[%s7 + $0x200] sm:$0xff]
        %v8034 = vld [vmem:[%s7 + $0x208] sm:$0xff]
        %v8035 = vld [vmem:[%s7 + $0x210] sm:$0xff]
        %v8036 = vld [vmem:[%s7 + $0x218] sm:$0xff]
        %v8037 = vld [vmem:[%s7 + $0x220] sm:$0xff]
        %v8038 = vld [vmem:[%s7 + $0x228] sm:$0xff]
        %v8039 = vld [vmem:[%s7 + $0x230] sm:$0xff]
        %v8040 = vld [vmem:[%s7 + $0x238] sm:$0xff]
        %v8041 = vld [vmem:[%s7 + $0x240] sm:$0xff]
        %v8042 = vld [vmem:[%s7 + $0x248] sm:$0xff]
        %v8043 = vld [vmem:[%s7 + $0x250] sm:$0xff]
        %v8044 = vld [vmem:[%s7 + $0x258] sm:$0xff]
        %v8045 = vld [vmem:[%s7 + $0x260] sm:$0xff]
        %v8046 = vld [vmem:[%s7 + $0x268] sm:$0xff]
        %v8047 = vld [vmem:[%s7 + $0x270] sm:$0xff]
        %v8048 = vld [vmem:[%s7 + $0x278] sm:$0xff]
        %v8049 = vld [vmem:[%s7 + $0x280] sm:$0xff]
        %v8050 = vld [vmem:[%s7 + $0x288] sm:$0xff]
        %v8051 = vld [vmem:[%s7 + $0x290] sm:$0xff]
        %v8052 = vld [vmem:[%s7 + $0x298] sm:$0xff]
        %v8053 = vld [vmem:[%s7 + $0x2a0] sm:$0xff]
        %v8054 = vld [vmem:[%s7 + $0x2a8] sm:$0xff]
        %v8055 = vld [vmem:[%s7 + $0x2b0] sm:$0xff]
        %v8056 = vld [vmem:[%s7 + $0x2b8] sm:$0xff]
        %v8057 = vld [vmem:[%s7 + $0x2c0] sm:$0xff]
        %v8058 = vld [vmem:[%s7 + $0x2c8] sm:$0xff]
        %v8059 = vld [vmem:[%s7 + $0x2d0] sm:$0xff]
        %v8060 = vld [vmem:[%s7 + $0x2d8] sm:$0xff]
        %v8061 = vld [vmem:[%s7 + $0x2e0] sm:$0xff]
        %v8062 = vld [vmem:[%s7 + $0x2e8] sm:$0xff]
        %v8063 = vld [vmem:[%s7 + $0x2f0] sm:$0xff]
        %v8064 = vld [vmem:[%s7 + $0x2f8] sm:$0xff]
        %v8065 = vld [vmem:[%s7 + $0x300] sm:$0xff]
        %v8066 = vld [vmem:[%s7 + $0x308] sm:$0xff]
        %v8067 = vld [vmem:[%s7 + $0x310] sm:$0xff]
        %v8068 = vld [vmem:[%s7 + $0x318] sm:$0xff]
        %v8069 = vld [vmem:[%s7 + $0x320] sm:$0xff]
        %v8070 = vld [vmem:[%s7 + $0x328] sm:$0xff]
        %v8071 = vld [vmem:[%s7 + $0x330] sm:$0xff]
        %v8072 = vld [vmem:[%s7 + $0x338] sm:$0xff]
        %v8073 = vld [vmem:[%s7 + $0x340] sm:$0xff]
        %v8074 = vld [vmem:[%s7 + $0x348] sm:$0xff]
        %v8075 = vld [vmem:[%s7 + $0x350] sm:$0xff]
        %v8076 = vld [vmem:[%s7 + $0x358] sm:$0xff]
        %v8077 = vld [vmem:[%s7 + $0x360] sm:$0xff]
        %v8078 = vld [vmem:[%s7 + $0x368] sm:$0xff]
        %v8079 = vld [vmem:[%s7 + $0x370] sm:$0xff]
        %v8080 = vld [vmem:[%s7 + $0x378] sm:$0xff]
        %v8081 = vld [vmem:[%s7 + $0x380] sm:$0xff]
        %v8082 = vld [vmem:[%s7 + $0x388] sm:$0xff]
        %v8083 = vld [vmem:[%s7 + $0x390] sm:$0xff]
        %v8084 = vld [vmem:[%s7 + $0x398] sm:$0xff]
        %v8085 = vld [vmem:[%s7 + $0x3a0] sm:$0xff]
        %v8086 = vld [vmem:[%s7 + $0x3a8] sm:$0xff]
        %v8087 = vld [vmem:[%s7 + $0x3b0] sm:$0xff]
        %v8088 = vld [vmem:[%s7 + $0x3b8] sm:$0xff]
        %v8089 = vld [vmem:[%s7 + $0x3c0] sm:$0xff]
        %v8090 = vld [vmem:[%s7 + $0x3c8] sm:$0xff]
        %v8091 = vld [vmem:[%s7 + $0x3d0] sm:$0xff]
        %v8092 = vld [vmem:[%s7 + $0x3d8] sm:$0xff]
        %v8093 = vld [vmem:[%s7 + $0x3e0] sm:$0xff]
        %v8094 = vld [vmem:[%s7 + $0x3e8] sm:$0xff]
        %v8095 = vld [vmem:[%s7 + $0x3f0] sm:$0xff]
        %v8096 = vld [vmem:[%s7 + $0x3f8] sm:$0xff]
        %v8097 = vld [vmem:[%s7 + $0x400] sm:$0xff]
        %v8098 = vld [vmem:[%s7 + $0x408] sm:$0xff]
        %v8099 = vld [vmem:[%s7 + $0x410] sm:$0xff]
        %v8100 = vld [vmem:[%s7 + $0x418] sm:$0xff]
        %v8101 = vld [vmem:[%s7 + $0x420] sm:$0xff]
        %v8102 = vld [vmem:[%s7 + $0x428] sm:$0xff]
        %v8103 = vld [vmem:[%s7 + $0x430] sm:$0xff]
        %v8104 = vld [vmem:[%s7 + $0x438] sm:$0xff]
        %v8105 = vld [vmem:[%s7 + $0x440] sm:$0xff]
        %v8106 = vld [vmem:[%s7 + $0x448] sm:$0xff]
        %v8107 = vld [vmem:[%s7 + $0x450] sm:$0xff]
        %v8108 = vld [vmem:[%s7 + $0x458] sm:$0xff]
        %v8109 = vld [vmem:[%s7 + $0x460] sm:$0xff]
        %v8110 = vld [vmem:[%s7 + $0x468] sm:$0xff]
        %v8111 = vld [vmem:[%s7 + $0x470] sm:$0xff]
        %v8112 = vld [vmem:[%s7 + $0x478] sm:$0xff]
        %v8113 = vld [vmem:[%s7 + $0x480] sm:$0xff]
        %v8114 = vld [vmem:[%s7 + $0x488] sm:$0xff]
        %v8115 = vld [vmem:[%s7 + $0x490] sm:$0xff]
        %v8116 = vld [vmem:[%s7 + $0x498] sm:$0xff]
        %v8117 = vld [vmem:[%s7 + $0x4a0] sm:$0xff]
        %v8118 = vld [vmem:[%s7 + $0x4a8] sm:$0xff]
        %v8119 = vld [vmem:[%s7 + $0x4b0] sm:$0xff]
        %v8120 = vld [vmem:[%s7 + $0x4b8] sm:$0xff]
        %v8121 = vld [vmem:[%s7 + $0x4c0] sm:$0xff]
        %v8122 = vld [vmem:[%s7 + $0x4c8] sm:$0xff]
        %v8123 = vld [vmem:[%s7 + $0x4d0] sm:$0xff]
        %v8124 = vld [vmem:[%s7 + $0x4d8] sm:$0xff]
        %v8125 = vld [vmem:[%s7 + $0x4e0] sm:$0xff]
        %v8126 = vld [vmem:[%s7 + $0x4e8] sm:$0xff]
        %v8127 = vld [vmem:[%s7 + $0x4f0] sm:$0xff]
        %v8128 = vld [vmem:[%s7 + $0x4f8] sm:$0xff]
        %v8129 = vld [vmem:[%s7 + $0x500] sm:$0xff]
        %v8130 = vld [vmem:[%s7 + $0x508] sm:$0xff]
        %v8131 = vld [vmem:[%s7 + $0x510] sm:$0xff]
        %v8132 = vld [vmem:[%s7 + $0x518] sm:$0xff]
        %v8133 = vld [vmem:[%s7 + $0x520] sm:$0xff]
        %v8134 = vld [vmem:[%s7 + $0x528] sm:$0xff]
        %v8135 = vld [vmem:[%s7 + $0x530] sm:$0xff]
        %v8136 = vld [vmem:[%s7 + $0x538] sm:$0xff]
        %v8137 = vld [vmem:[%s7 + $0x540] sm:$0xff]
        %v8138 = vld [vmem:[%s7 + $0x548] sm:$0xff]
        %v8139 = vld [vmem:[%s7 + $0x550] sm:$0xff]
        %v8140 = vld [vmem:[%s7 + $0x558] sm:$0xff]
        %v8141 = vld [vmem:[%s7 + $0x560] sm:$0xff]
        %v8142 = vld [vmem:[%s7 + $0x568] sm:$0xff]
        %v8143 = vld [vmem:[%s7 + $0x570] sm:$0xff]
        %v8144 = vld [vmem:[%s7 + $0x578] sm:$0xff]
        %v8145 = vld [vmem:[%s7 + $0x580] sm:$0xff]
        %v8146 = vld [vmem:[%s7 + $0x588] sm:$0xff]
        %v8147 = vld [vmem:[%s7 + $0x590] sm:$0xff]
        %v8148 = vld [vmem:[%s7 + $0x598] sm:$0xff]
        %v8149 = vld [vmem:[%s7 + $0x5a0] sm:$0xff]
        %v8150 = vld [vmem:[%s7 + $0x5a8] sm:$0xff]
        %v8151 = vld [vmem:[%s7 + $0x5b0] sm:$0xff]
        %v8152 = vld [vmem:[%s7 + $0x5b8] sm:$0xff]
        %v8153 = vld [vmem:[%s7 + $0x5c0] sm:$0xff]
        %v8154 = vld [vmem:[%s7 + $0x5c8] sm:$0xff]
        %v8155 = vld [vmem:[%s7 + $0x5d0] sm:$0xff]
        %v8156 = vld [vmem:[%s7 + $0x5d8] sm:$0xff]
        %v8157 = vld [vmem:[%s7 + $0x5e0] sm:$0xff]
        %v8158 = vld [vmem:[%s7 + $0x5e8] sm:$0xff]
        %v8159 = vld [vmem:[%s7 + $0x5f0] sm:$0xff]
        %v8160 = vld [vmem:[%s7 + $0x5f8] sm:$0xff]
        %v8161 = vld [vmem:[%s7 + $0x600] sm:$0xff]
        %v8162 = vld [vmem:[%s7 + $0x608] sm:$0xff]
        %v8163 = vld [vmem:[%s7 + $0x610] sm:$0xff]
        %v8164 = vld [vmem:[%s7 + $0x618] sm:$0xff]
        %v8165 = vld [vmem:[%s7 + $0x620] sm:$0xff]
        %v8166 = vld [vmem:[%s7 + $0x628] sm:$0xff]
        %v8167 = vld [vmem:[%s7 + $0x630] sm:$0xff]
        %v8168 = vld [vmem:[%s7 + $0x638] sm:$0xff]
        %v8169 = vld [vmem:[%s7 + $0x640] sm:$0xff]
        %v8170 = vld [vmem:[%s7 + $0x648] sm:$0xff]
        %v8171 = vld [vmem:[%s7 + $0x650] sm:$0xff]
        %v8172 = vld [vmem:[%s7 + $0x658] sm:$0xff]
        %v8173 = vld [vmem:[%s7 + $0x660] sm:$0xff]
        %v8174 = vld [vmem:[%s7 + $0x668] sm:$0xff]
        %v8175 = vld [vmem:[%s7 + $0x670] sm:$0xff]
        %v8176 = vld [vmem:[%s7 + $0x678] sm:$0xff]
        %v8177 = vld [vmem:[%s7 + $0x680] sm:$0xff]
        %v8178 = vld [vmem:[%s7 + $0x688] sm:$0xff]
        %v8179 = vld [vmem:[%s7 + $0x690] sm:$0xff]
        %v8180 = vld [vmem:[%s7 + $0x698] sm:$0xff]
        %v8181 = vld [vmem:[%s7 + $0x6a0] sm:$0xff]
        %v8182 = vld [vmem:[%s7 + $0x6a8] sm:$0xff]
        %v8183 = vld [vmem:[%s7 + $0x6b0] sm:$0xff]
        %v8184 = vld [vmem:[%s7 + $0x6b8] sm:$0xff]
        %v8185 = vld [vmem:[%s7 + $0x6c0] sm:$0xff]
        %v8186 = vld [vmem:[%s7 + $0x6c8] sm:$0xff]
        %v8187 = vld [vmem:[%s7 + $0x6d0] sm:$0xff]
        %v8188 = vld [vmem:[%s7 + $0x6d8] sm:$0xff]
        %v8189 = vld [vmem:[%s7 + $0x6e0] sm:$0xff]
        %v8190 = vld [vmem:[%s7 + $0x6e8] sm:$0xff]
        %v8191 = vld [vmem:[%s7 + $0x6f0] sm:$0xff]
        %v8192 = vld [vmem:[%s7 + $0x6f8] sm:$0xff]
        %v8193 = vld [vmem:[%s7 + $0x700] sm:$0xff]
        %v8194 = vld [vmem:[%s7 + $0x708] sm:$0xff]
        %v8195 = vld [vmem:[%s7 + $0x710] sm:$0xff]
        %v8196 = vld [vmem:[%s7 + $0x718] sm:$0xff]
        %v8197 = vld [vmem:[%s7 + $0x720] sm:$0xff]
        %v8198 = vld [vmem:[%s7 + $0x728] sm:$0xff]
        %v8199 = vld [vmem:[%s7 + $0x730] sm:$0xff]
        %v8200 = vld [vmem:[%s7 + $0x738] sm:$0xff]
        %v8201 = vld [vmem:[%s7 + $0x740] sm:$0xff]
        %v8202 = vld [vmem:[%s7 + $0x748] sm:$0xff]
        %v8203 = vld [vmem:[%s7 + $0x750] sm:$0xff]
        %v8204 = vld [vmem:[%s7 + $0x758] sm:$0xff]
        %v8205 = vld [vmem:[%s7 + $0x760] sm:$0xff]
        %v8206 = vld [vmem:[%s7 + $0x768] sm:$0xff]
        %v8207 = vld [vmem:[%s7 + $0x770] sm:$0xff]
        %v8208 = vld [vmem:[%s7 + $0x778] sm:$0xff]
        %v8209 = vld [vmem:[%s7 + $0x780] sm:$0xff]
        %v8210 = vld [vmem:[%s7 + $0x788] sm:$0xff]
        %v8211 = vld [vmem:[%s7 + $0x790] sm:$0xff]
        %v8212 = vld [vmem:[%s7 + $0x798] sm:$0xff]
        %v8213 = vld [vmem:[%s7 + $0x7a0] sm:$0xff]
        %v8214 = vld [vmem:[%s7 + $0x7a8] sm:$0xff]
        %v8215 = vld [vmem:[%s7 + $0x7b0] sm:$0xff]
        %v8216 = vld [vmem:[%s7 + $0x7b8] sm:$0xff]
        %v8217 = vld [vmem:[%s7 + $0x7c0] sm:$0xff]
        %v8218 = vld [vmem:[%s7 + $0x7c8] sm:$0xff]
        %v8219 = vld [vmem:[%s7 + $0x7d0] sm:$0xff]
        %v8220 = vld [vmem:[%s7 + $0x7d8] sm:$0xff]
        %v8221 = vld [vmem:[%s7 + $0x7e0] sm:$0xff]
        %v8222 = vld [vmem:[%s7 + $0x7e8] sm:$0xff]
        %v8223 = vld [vmem:[%s7 + $0x7f0] sm:$0xff]
        %v8224 = vld [vmem:[%s7 + $0x7f8] sm:$0xff]
        %v8225 = vld [vmem:[%s7 + $0x800] sm:$0xff]
        %v8226 = vld [vmem:[%s7 + $0x808] sm:$0xff]
        %v8227 = vld [vmem:[%s7 + $0x810] sm:$0xff]
        %v8228 = vld [vmem:[%s7 + $0x818] sm:$0xff]
        %v8229 = vld [vmem:[%s7 + $0x820] sm:$0xff]
        %v8230 = vld [vmem:[%s7 + $0x828] sm:$0xff]
        %v8231 = vld [vmem:[%s7 + $0x830] sm:$0xff]
        %v8232 = vld [vmem:[%s7 + $0x838] sm:$0xff]
        %v8233 = vld [vmem:[%s7 + $0x840] sm:$0xff]
        %v8234 = vld [vmem:[%s7 + $0x848] sm:$0xff]
        %v8235 = vld [vmem:[%s7 + $0x850] sm:$0xff]
        %v8236 = vld [vmem:[%s7 + $0x858] sm:$0xff]
        %v8237 = vld [vmem:[%s7 + $0x860] sm:$0xff]
        %v8238 = vld [vmem:[%s7 + $0x868] sm:$0xff]
        %v8239 = vld [vmem:[%s7 + $0x870] sm:$0xff]
        %v8240 = vld [vmem:[%s7 + $0x878] sm:$0xff]
        %v8241 = vld [vmem:[%s7 + $0x880] sm:$0xff]
        %v8242 = vld [vmem:[%s7 + $0x888] sm:$0xff]
        %v8243 = vld [vmem:[%s7 + $0x890] sm:$0xff]
        %v8244 = vld [vmem:[%s7 + $0x898] sm:$0xff]
        %v8245 = vld [vmem:[%s7 + $0x8a0] sm:$0xff]
        %v8246 = vld [vmem:[%s7 + $0x8a8] sm:$0xff]
        %v8247 = vld [vmem:[%s7 + $0x8b0] sm:$0xff]
        %v8248 = vld [vmem:[%s7 + $0x8b8] sm:$0xff]
        %v8249 = vld [vmem:[%s7 + $0x8c0] sm:$0xff]
        %v8250 = vld [vmem:[%s7 + $0x8c8] sm:$0xff]
        %v8251 = vld [vmem:[%s7 + $0x8d0] sm:$0xff]
        %v8252 = vld [vmem:[%s7 + $0x8d8] sm:$0xff]
        %v8253 = vld [vmem:[%s7 + $0x8e0] sm:$0xff]
        %v8254 = vld [vmem:[%s7 + $0x8e8] sm:$0xff]
        %v8255 = vld [vmem:[%s7 + $0x8f0] sm:$0xff]
        %v8256 = vld [vmem:[%s7 + $0x8f8] sm:$0xff]
        %v8257 = vld [vmem:[%s8] sm:$0x3f]
        %v8259 = vperm.slane %v8257, 0
        %v8260 = vperm.slane %v8257, 1
        %v8261 = vperm.slane %v8257, 2
        %v8262 = vperm.slane %v8257, 3
        %v8263 = vperm.slane %v8257, 4
        %v8264 = vperm.slane %v8257, 5
        %v8559 = vunpack.c.l.b16 %v7969
        %v8560 = vunpack.c.h.b16 %v7969
        %v8561 = vunpack.c.l.b16 %v7970
        %v8562 = vunpack.c.h.b16 %v7970
        %v8563 = vunpack.c.l.b16 %v7971
        %v8564 = vunpack.c.h.b16 %v7971
        %v8565 = vunpack.c.l.b16 %v7972
        %v8566 = vunpack.c.h.b16 %v7972
        %v8567 = vunpack.c.l.b16 %v7973
        %v8568 = vunpack.c.h.b16 %v7973
        %v8569 = vunpack.c.l.b16 %v7974
        %v8570 = vunpack.c.h.b16 %v7974
        %v8571 = vunpack.c.l.b16 %v7975
        %v8572 = vunpack.c.h.b16 %v7975
        %v8573 = vunpack.c.l.b16 %v7976
        %v8574 = vunpack.c.h.b16 %v7976
        %v8575 = vunpack.c.l.b16 %v7977
        %v8576 = vunpack.c.h.b16 %v7977
        %v8577 = vunpack.c.l.b16 %v7978
        %v8578 = vunpack.c.h.b16 %v7978
        %v8579 = vunpack.c.l.b16 %v7979
        %v8580 = vunpack.c.h.b16 %v7979
        %v8581 = vunpack.c.l.b16 %v7980
        %v8582 = vunpack.c.h.b16 %v7980
        %v8583 = vunpack.c.l.b16 %v7981
        %v8584 = vunpack.c.h.b16 %v7981
        %v8585 = vunpack.c.l.b16 %v7982
        %v8586 = vunpack.c.h.b16 %v7982
        %v8587 = vunpack.c.l.b16 %v7983
        %v8588 = vunpack.c.h.b16 %v7983
        %v8589 = vunpack.c.l.b16 %v7984
        %v8590 = vunpack.c.h.b16 %v7984
        %v8591 = vunpack.c.l.b16 %v7985
        %v8592 = vunpack.c.h.b16 %v7985
        %v8593 = vunpack.c.l.b16 %v7986
        %v8594 = vunpack.c.h.b16 %v7986
        %v8595 = vunpack.c.l.b16 %v7987
        %v8596 = vunpack.c.h.b16 %v7987
        %v8597 = vunpack.c.l.b16 %v7988
        %v8598 = vunpack.c.h.b16 %v7988
        %v8599 = vunpack.c.l.b16 %v7989
        %v8600 = vunpack.c.h.b16 %v7989
        %v8601 = vunpack.c.l.b16 %v7990
        %v8602 = vunpack.c.h.b16 %v7990
        %v8603 = vunpack.c.l.b16 %v7991
        %v8604 = vunpack.c.h.b16 %v7991
        %v8605 = vunpack.c.l.b16 %v7992
        %v8606 = vunpack.c.h.b16 %v7992
        %v8607 = vunpack.c.l.b16 %v7993
        %v8608 = vunpack.c.h.b16 %v7993
        %v8609 = vunpack.c.l.b16 %v7994
        %v8610 = vunpack.c.h.b16 %v7994
        %v8611 = vunpack.c.l.b16 %v7995
        %v8612 = vunpack.c.h.b16 %v7995
        %v8613 = vunpack.c.l.b16 %v7996
        %v8614 = vunpack.c.h.b16 %v7996
        %v8615 = vunpack.c.l.b16 %v7997
        %v8616 = vunpack.c.h.b16 %v7997
        %v8617 = vunpack.c.l.b16 %v7998
        %v8618 = vunpack.c.h.b16 %v7998
        %v8619 = vunpack.c.l.b16 %v7999
        %v8620 = vunpack.c.h.b16 %v7999
        %v8621 = vunpack.c.l.b16 %v8000
        %v8622 = vunpack.c.h.b16 %v8000
        %v8623 = vunpack.c.l.b16 %v8001
        %v8624 = vunpack.c.h.b16 %v8001
        %v8625 = vunpack.c.l.b16 %v8002
        %v8626 = vunpack.c.h.b16 %v8002
        %v8627 = vunpack.c.l.b16 %v8003
        %v8628 = vunpack.c.h.b16 %v8003
        %v8629 = vunpack.c.l.b16 %v8004
        %v8630 = vunpack.c.h.b16 %v8004
        %v8631 = vunpack.c.l.b16 %v8005
        %v8632 = vunpack.c.h.b16 %v8005
        %v8633 = vunpack.c.l.b16 %v8006
        %v8634 = vunpack.c.h.b16 %v8006
        %v8635 = vunpack.c.l.b16 %v8007
        %v8636 = vunpack.c.h.b16 %v8007
        %v8637 = vunpack.c.l.b16 %v8008
        %v8638 = vunpack.c.h.b16 %v8008
        %v8639 = vunpack.c.l.b16 %v8009
        %v8640 = vunpack.c.h.b16 %v8009
        %v8641 = vunpack.c.l.b16 %v8010
        %v8642 = vunpack.c.h.b16 %v8010
        %v8643 = vunpack.c.l.b16 %v8011
        %v8644 = vunpack.c.h.b16 %v8011
        %v8645 = vunpack.c.l.b16 %v8012
        %v8646 = vunpack.c.h.b16 %v8012
        %v8647 = vunpack.c.l.b16 %v8013
        %v8648 = vunpack.c.h.b16 %v8013
        %v8649 = vunpack.c.l.b16 %v8014
        %v8650 = vunpack.c.h.b16 %v8014
        %v8651 = vunpack.c.l.b16 %v8015
        %v8652 = vunpack.c.h.b16 %v8015
        %v8653 = vunpack.c.l.b16 %v8016
        %v8654 = vunpack.c.h.b16 %v8016
        %v8655 = vunpack.c.l.b16 %v8017
        %v8656 = vunpack.c.h.b16 %v8017
        %v8657 = vunpack.c.l.b16 %v8018
        %v8658 = vunpack.c.h.b16 %v8018
        %v8659 = vunpack.c.l.b16 %v8019
        %v8660 = vunpack.c.h.b16 %v8019
        %v8661 = vunpack.c.l.b16 %v8020
        %v8662 = vunpack.c.h.b16 %v8020
        %v8663 = vunpack.c.l.b16 %v8021
        %v8664 = vunpack.c.h.b16 %v8021
        %v8665 = vunpack.c.l.b16 %v8022
        %v8666 = vunpack.c.h.b16 %v8022
        %v8667 = vunpack.c.l.b16 %v8023
        %v8668 = vunpack.c.h.b16 %v8023
        %v8669 = vunpack.c.l.b16 %v8024
        %v8670 = vunpack.c.h.b16 %v8024
        %v8671 = vunpack.c.l.b16 %v8025
        %v8672 = vunpack.c.h.b16 %v8025
        %v8673 = vunpack.c.l.b16 %v8026
        %v8674 = vunpack.c.h.b16 %v8026
        %v8675 = vunpack.c.l.b16 %v8027
        %v8676 = vunpack.c.h.b16 %v8027
        %v8677 = vunpack.c.l.b16 %v8028
        %v8678 = vunpack.c.h.b16 %v8028
        %v8679 = vunpack.c.l.b16 %v8029
        %v8680 = vunpack.c.h.b16 %v8029
        %v8681 = vunpack.c.l.b16 %v8030
        %v8682 = vunpack.c.h.b16 %v8030
        %v8683 = vunpack.c.l.b16 %v8031
        %v8684 = vunpack.c.h.b16 %v8031
        %v8685 = vunpack.c.l.b16 %v8032
        %v8686 = vunpack.c.h.b16 %v8032
        %v8687 = vunpack.c.l.b16 %v8033
        %v8688 = vunpack.c.h.b16 %v8033
        %v8689 = vunpack.c.l.b16 %v8034
        %v8690 = vunpack.c.h.b16 %v8034
        %v8691 = vunpack.c.l.b16 %v8035
        %v8692 = vunpack.c.h.b16 %v8035
        %v8693 = vunpack.c.l.b16 %v8036
        %v8694 = vunpack.c.h.b16 %v8036
        %v8695 = vunpack.c.l.b16 %v8037
        %v8696 = vunpack.c.h.b16 %v8037
        %v8697 = vunpack.c.l.b16 %v8038
        %v8698 = vunpack.c.h.b16 %v8038
        %v8699 = vunpack.c.l.b16 %v8039
        %v8700 = vunpack.c.h.b16 %v8039
        %v8701 = vunpack.c.l.b16 %v8040
        %v8702 = vunpack.c.h.b16 %v8040
        %v8703 = vunpack.c.l.b16 %v8041
        %v8704 = vunpack.c.h.b16 %v8041
        %v8705 = vunpack.c.l.b16 %v8042
        %v8706 = vunpack.c.h.b16 %v8042
        %v8707 = vunpack.c.l.b16 %v8043
        %v8708 = vunpack.c.h.b16 %v8043
        %v8709 = vunpack.c.l.b16 %v8044
        %v8710 = vunpack.c.h.b16 %v8044
        %v8711 = vunpack.c.l.b16 %v8045
        %v8712 = vunpack.c.h.b16 %v8045
        %v8713 = vunpack.c.l.b16 %v8046
        %v8714 = vunpack.c.h.b16 %v8046
        %v8715 = vunpack.c.l.b16 %v8047
        %v8716 = vunpack.c.h.b16 %v8047
        %v8717 = vunpack.c.l.b16 %v8048
        %v8718 = vunpack.c.h.b16 %v8048
        %v8719 = vunpack.c.l.b16 %v8049
        %v8720 = vunpack.c.h.b16 %v8049
        %v8721 = vunpack.c.l.b16 %v8050
        %v8722 = vunpack.c.h.b16 %v8050
        %v8723 = vunpack.c.l.b16 %v8051
        %v8724 = vunpack.c.h.b16 %v8051
        %v8725 = vunpack.c.l.b16 %v8052
        %v8726 = vunpack.c.h.b16 %v8052
        %v8727 = vunpack.c.l.b16 %v8053
        %v8728 = vunpack.c.h.b16 %v8053
        %v8729 = vunpack.c.l.b16 %v8054
        %v8730 = vunpack.c.h.b16 %v8054
        %v8731 = vunpack.c.l.b16 %v8055
        %v8732 = vunpack.c.h.b16 %v8055
        %v8733 = vunpack.c.l.b16 %v8056
        %v8734 = vunpack.c.h.b16 %v8056
        %v8735 = vunpack.c.l.b16 %v8057
        %v8736 = vunpack.c.h.b16 %v8057
        %v8737 = vunpack.c.l.b16 %v8058
        %v8738 = vunpack.c.h.b16 %v8058
        %v8739 = vunpack.c.l.b16 %v8059
        %v8740 = vunpack.c.h.b16 %v8059
        %v8741 = vunpack.c.l.b16 %v8060
        %v8742 = vunpack.c.h.b16 %v8060
        %v8743 = vunpack.c.l.b16 %v8061
        %v8744 = vunpack.c.h.b16 %v8061
        %v8745 = vunpack.c.l.b16 %v8062
        %v8746 = vunpack.c.h.b16 %v8062
        %v8747 = vunpack.c.l.b16 %v8063
        %v8748 = vunpack.c.h.b16 %v8063
        %v8749 = vunpack.c.l.b16 %v8064
        %v8750 = vunpack.c.h.b16 %v8064
        %v8751 = vunpack.c.l.b16 %v8065
        %v8752 = vunpack.c.h.b16 %v8065
        %v8753 = vunpack.c.l.b16 %v8066
        %v8754 = vunpack.c.h.b16 %v8066
        %v8755 = vunpack.c.l.b16 %v8067
        %v8756 = vunpack.c.h.b16 %v8067
        %v8757 = vunpack.c.l.b16 %v8068
        %v8758 = vunpack.c.h.b16 %v8068
        %v8759 = vunpack.c.l.b16 %v8069
        %v8760 = vunpack.c.h.b16 %v8069
        %v8761 = vunpack.c.l.b16 %v8070
        %v8762 = vunpack.c.h.b16 %v8070
        %v8763 = vunpack.c.l.b16 %v8071
        %v8764 = vunpack.c.h.b16 %v8071
        %v8765 = vunpack.c.l.b16 %v8072
        %v8766 = vunpack.c.h.b16 %v8072
        %v8767 = vunpack.c.l.b16 %v8073
        %v8768 = vunpack.c.h.b16 %v8073
        %v8769 = vunpack.c.l.b16 %v8074
        %v8770 = vunpack.c.h.b16 %v8074
        %v8771 = vunpack.c.l.b16 %v8075
        %v8772 = vunpack.c.h.b16 %v8075
        %v8773 = vunpack.c.l.b16 %v8076
        %v8774 = vunpack.c.h.b16 %v8076
        %v8775 = vunpack.c.l.b16 %v8077
        %v8776 = vunpack.c.h.b16 %v8077
        %v8777 = vunpack.c.l.b16 %v8078
        %v8778 = vunpack.c.h.b16 %v8078
        %v8779 = vunpack.c.l.b16 %v8079
        %v8780 = vunpack.c.h.b16 %v8079
        %v8781 = vunpack.c.l.b16 %v8080
        %v8782 = vunpack.c.h.b16 %v8080
        %v8783 = vunpack.c.l.b16 %v8081
        %v8784 = vunpack.c.h.b16 %v8081
        %v8785 = vunpack.c.l.b16 %v8082
        %v8786 = vunpack.c.h.b16 %v8082
        %v8787 = vunpack.c.l.b16 %v8083
        %v8788 = vunpack.c.h.b16 %v8083
        %v8789 = vunpack.c.l.b16 %v8084
        %v8790 = vunpack.c.h.b16 %v8084
        %v8791 = vunpack.c.l.b16 %v8085
        %v8792 = vunpack.c.h.b16 %v8085
        %v8793 = vunpack.c.l.b16 %v8086
        %v8794 = vunpack.c.h.b16 %v8086
        %v8795 = vunpack.c.l.b16 %v8087
        %v8796 = vunpack.c.h.b16 %v8087
        %v8797 = vunpack.c.l.b16 %v8088
        %v8798 = vunpack.c.h.b16 %v8088
        %v8799 = vunpack.c.l.b16 %v8089
        %v8800 = vunpack.c.h.b16 %v8089
        %v8801 = vunpack.c.l.b16 %v8090
        %v8802 = vunpack.c.h.b16 %v8090
        %v8803 = vunpack.c.l.b16 %v8091
        %v8804 = vunpack.c.h.b16 %v8091
        %v8805 = vunpack.c.l.b16 %v8092
        %v8806 = vunpack.c.h.b16 %v8092
        %v8807 = vunpack.c.l.b16 %v8093
        %v8808 = vunpack.c.h.b16 %v8093
        %v8809 = vunpack.c.l.b16 %v8094
        %v8810 = vunpack.c.h.b16 %v8094
        %v8811 = vunpack.c.l.b16 %v8095
        %v8812 = vunpack.c.h.b16 %v8095
        %v8813 = vunpack.c.l.b16 %v8096
        %v8814 = vunpack.c.h.b16 %v8096
        %v8815 = vunpack.c.l.b16 %v8097
        %v8816 = vunpack.c.h.b16 %v8097
        %v8817 = vunpack.c.l.b16 %v8098
        %v8818 = vunpack.c.h.b16 %v8098
        %v8819 = vunpack.c.l.b16 %v8099
        %v8820 = vunpack.c.h.b16 %v8099
        %v8821 = vunpack.c.l.b16 %v8100
        %v8822 = vunpack.c.h.b16 %v8100
        %v8823 = vunpack.c.l.b16 %v8101
        %v8824 = vunpack.c.h.b16 %v8101
        %v8825 = vunpack.c.l.b16 %v8102
        %v8826 = vunpack.c.h.b16 %v8102
        %v8827 = vunpack.c.l.b16 %v8103
        %v8828 = vunpack.c.h.b16 %v8103
        %v8829 = vunpack.c.l.b16 %v8104
        %v8830 = vunpack.c.h.b16 %v8104
        %v8831 = vunpack.c.l.b16 %v8105
        %v8832 = vunpack.c.h.b16 %v8105
        %v8833 = vunpack.c.l.b16 %v8106
        %v8834 = vunpack.c.h.b16 %v8106
        %v8835 = vunpack.c.l.b16 %v8107
        %v8836 = vunpack.c.h.b16 %v8107
        %v8837 = vunpack.c.l.b16 %v8108
        %v8838 = vunpack.c.h.b16 %v8108
        %v8839 = vunpack.c.l.b16 %v8109
        %v8840 = vunpack.c.h.b16 %v8109
        %v8841 = vunpack.c.l.b16 %v8110
        %v8842 = vunpack.c.h.b16 %v8110
        %v8843 = vunpack.c.l.b16 %v8111
        %v8844 = vunpack.c.h.b16 %v8111
        %v8845 = vunpack.c.l.b16 %v8112
        %v8846 = vunpack.c.h.b16 %v8112
        %v8847 = vunpack.c.l.b16 %v8113
        %v8848 = vunpack.c.h.b16 %v8113
        %v8849 = vunpack.c.l.b16 %v8114
        %v8850 = vunpack.c.h.b16 %v8114
        %v8851 = vunpack.c.l.b16 %v8115
        %v8852 = vunpack.c.h.b16 %v8115
        %v8853 = vunpack.c.l.b16 %v8116
        %v8854 = vunpack.c.h.b16 %v8116
        %v8855 = vunpack.c.l.b16 %v8117
        %v8856 = vunpack.c.h.b16 %v8117
        %v8857 = vunpack.c.l.b16 %v8118
        %v8858 = vunpack.c.h.b16 %v8118
        %v8859 = vunpack.c.l.b16 %v8119
        %v8860 = vunpack.c.h.b16 %v8119
        %v8861 = vunpack.c.l.b16 %v8120
        %v8862 = vunpack.c.h.b16 %v8120
        %v8863 = vunpack.c.l.b16 %v8121
        %v8864 = vunpack.c.h.b16 %v8121
        %v8865 = vunpack.c.l.b16 %v8122
        %v8866 = vunpack.c.h.b16 %v8122
        %v8867 = vunpack.c.l.b16 %v8123
        %v8868 = vunpack.c.h.b16 %v8123
        %v8869 = vunpack.c.l.b16 %v8124
        %v8870 = vunpack.c.h.b16 %v8124
        %v8871 = vunpack.c.l.b16 %v8125
        %v8872 = vunpack.c.h.b16 %v8125
        %v8873 = vunpack.c.l.b16 %v8126
        %v8874 = vunpack.c.h.b16 %v8126
        %v8875 = vunpack.c.l.b16 %v8127
        %v8876 = vunpack.c.h.b16 %v8127
        %v8877 = vunpack.c.l.b16 %v8128
        %v8878 = vunpack.c.h.b16 %v8128
        %v8879 = vunpack.c.l.b16 %v8129
        %v8880 = vunpack.c.h.b16 %v8129
        %v8881 = vunpack.c.l.b16 %v8130
        %v8882 = vunpack.c.h.b16 %v8130
        %v8883 = vunpack.c.l.b16 %v8131
        %v8884 = vunpack.c.h.b16 %v8131
        %v8885 = vunpack.c.l.b16 %v8132
        %v8886 = vunpack.c.h.b16 %v8132
        %v8887 = vunpack.c.l.b16 %v8133
        %v8888 = vunpack.c.h.b16 %v8133
        %v8889 = vunpack.c.l.b16 %v8134
        %v8890 = vunpack.c.h.b16 %v8134
        %v8891 = vunpack.c.l.b16 %v8135
        %v8892 = vunpack.c.h.b16 %v8135
        %v8893 = vunpack.c.l.b16 %v8136
        %v8894 = vunpack.c.h.b16 %v8136
        %v8895 = vunpack.c.l.b16 %v8137
        %v8896 = vunpack.c.h.b16 %v8137
        %v8897 = vunpack.c.l.b16 %v8138
        %v8898 = vunpack.c.h.b16 %v8138
        %v8899 = vunpack.c.l.b16 %v8139
        %v8900 = vunpack.c.h.b16 %v8139
        %v8901 = vunpack.c.l.b16 %v8140
        %v8902 = vunpack.c.h.b16 %v8140
        %v8903 = vunpack.c.l.b16 %v8141
        %v8904 = vunpack.c.h.b16 %v8141
        %v8905 = vunpack.c.l.b16 %v8142
        %v8906 = vunpack.c.h.b16 %v8142
        %v8907 = vunpack.c.l.b16 %v8143
        %v8908 = vunpack.c.h.b16 %v8143
        %v8909 = vunpack.c.l.b16 %v8144
        %v8910 = vunpack.c.h.b16 %v8144
        %v8911 = vunpack.c.l.b16 %v8145
        %v8912 = vunpack.c.h.b16 %v8145
        %v8913 = vunpack.c.l.b16 %v8146
        %v8914 = vunpack.c.h.b16 %v8146
        %v8915 = vunpack.c.l.b16 %v8147
        %v8916 = vunpack.c.h.b16 %v8147
        %v8917 = vunpack.c.l.b16 %v8148
        %v8918 = vunpack.c.h.b16 %v8148
        %v8919 = vunpack.c.l.b16 %v8149
        %v8920 = vunpack.c.h.b16 %v8149
        %v8921 = vunpack.c.l.b16 %v8150
        %v8922 = vunpack.c.h.b16 %v8150
        %v8923 = vunpack.c.l.b16 %v8151
        %v8924 = vunpack.c.h.b16 %v8151
        %v8925 = vunpack.c.l.b16 %v8152
        %v8926 = vunpack.c.h.b16 %v8152
        %v8927 = vunpack.c.l.b16 %v8153
        %v8928 = vunpack.c.h.b16 %v8153
        %v8929 = vunpack.c.l.b16 %v8154
        %v8930 = vunpack.c.h.b16 %v8154
        %v8931 = vunpack.c.l.b16 %v8155
        %v8932 = vunpack.c.h.b16 %v8155
        %v8933 = vunpack.c.l.b16 %v8156
        %v8934 = vunpack.c.h.b16 %v8156
        %v8935 = vunpack.c.l.b16 %v8157
        %v8936 = vunpack.c.h.b16 %v8157
        %v8937 = vunpack.c.l.b16 %v8158
        %v8938 = vunpack.c.h.b16 %v8158
        %v8939 = vunpack.c.l.b16 %v8159
        %v8940 = vunpack.c.h.b16 %v8159
        %v8941 = vunpack.c.l.b16 %v8160
        %v8942 = vunpack.c.h.b16 %v8160
        %v8943 = vunpack.c.l.b16 %v8161
        %v8944 = vunpack.c.h.b16 %v8161
        %v8945 = vunpack.c.l.b16 %v8162
        %v8946 = vunpack.c.h.b16 %v8162
        %v8947 = vunpack.c.l.b16 %v8163
        %v8948 = vunpack.c.h.b16 %v8163
        %v8949 = vunpack.c.l.b16 %v8164
        %v8950 = vunpack.c.h.b16 %v8164
        %v8951 = vunpack.c.l.b16 %v8165
        %v8952 = vunpack.c.h.b16 %v8165
        %v8953 = vunpack.c.l.b16 %v8166
        %v8954 = vunpack.c.h.b16 %v8166
        %v8955 = vunpack.c.l.b16 %v8167
        %v8956 = vunpack.c.h.b16 %v8167
        %v8957 = vunpack.c.l.b16 %v8168
        %v8958 = vunpack.c.h.b16 %v8168
        %v8959 = vunpack.c.l.b16 %v8169
        %v8960 = vunpack.c.h.b16 %v8169
        %v8961 = vunpack.c.l.b16 %v8170
        %v8962 = vunpack.c.h.b16 %v8170
        %v8963 = vunpack.c.l.b16 %v8171
        %v8964 = vunpack.c.h.b16 %v8171
        %v8965 = vunpack.c.l.b16 %v8172
        %v8966 = vunpack.c.h.b16 %v8172
        %v8967 = vunpack.c.l.b16 %v8173
        %v8968 = vunpack.c.h.b16 %v8173
        %v8969 = vunpack.c.l.b16 %v8174
        %v8970 = vunpack.c.h.b16 %v8174
        %v8971 = vunpack.c.l.b16 %v8175
        %v8972 = vunpack.c.h.b16 %v8175
        %v8973 = vunpack.c.l.b16 %v8176
        %v8974 = vunpack.c.h.b16 %v8176
        %v8975 = vunpack.c.l.b16 %v8177
        %v8976 = vunpack.c.h.b16 %v8177
        %v8977 = vunpack.c.l.b16 %v8178
        %v8978 = vunpack.c.h.b16 %v8178
        %v8979 = vunpack.c.l.b16 %v8179
        %v8980 = vunpack.c.h.b16 %v8179
        %v8981 = vunpack.c.l.b16 %v8180
        %v8982 = vunpack.c.h.b16 %v8180
        %v8983 = vunpack.c.l.b16 %v8181
        %v8984 = vunpack.c.h.b16 %v8181
        %v8985 = vunpack.c.l.b16 %v8182
        %v8986 = vunpack.c.h.b16 %v8182
        %v8987 = vunpack.c.l.b16 %v8183
        %v8988 = vunpack.c.h.b16 %v8183
        %v8989 = vunpack.c.l.b16 %v8184
        %v8990 = vunpack.c.h.b16 %v8184
        %v8991 = vunpack.c.l.b16 %v8185
        %v8992 = vunpack.c.h.b16 %v8185
        %v8993 = vunpack.c.l.b16 %v8186
        %v8994 = vunpack.c.h.b16 %v8186
        %v8995 = vunpack.c.l.b16 %v8187
        %v8996 = vunpack.c.h.b16 %v8187
        %v8997 = vunpack.c.l.b16 %v8188
        %v8998 = vunpack.c.h.b16 %v8188
        %v8999 = vunpack.c.l.b16 %v8189
        %v9000 = vunpack.c.h.b16 %v8189
        %v9001 = vunpack.c.l.b16 %v8190
        %v9002 = vunpack.c.h.b16 %v8190
        %v9003 = vunpack.c.l.b16 %v8191
        %v9004 = vunpack.c.h.b16 %v8191
        %v9005 = vunpack.c.l.b16 %v8192
        %v9006 = vunpack.c.h.b16 %v8192
        %v9007 = vunpack.c.l.b16 %v8193
        %v9008 = vunpack.c.h.b16 %v8193
        %v9009 = vunpack.c.l.b16 %v8194
        %v9010 = vunpack.c.h.b16 %v8194
        %v9011 = vunpack.c.l.b16 %v8195
        %v9012 = vunpack.c.h.b16 %v8195
        %v9013 = vunpack.c.l.b16 %v8196
        %v9014 = vunpack.c.h.b16 %v8196
        %v9015 = vunpack.c.l.b16 %v8197
        %v9016 = vunpack.c.h.b16 %v8197
        %v9017 = vunpack.c.l.b16 %v8198
        %v9018 = vunpack.c.h.b16 %v8198
        %v9019 = vunpack.c.l.b16 %v8199
        %v9020 = vunpack.c.h.b16 %v8199
        %v9021 = vunpack.c.l.b16 %v8200
        %v9022 = vunpack.c.h.b16 %v8200
        %v9023 = vunpack.c.l.b16 %v8201
        %v9024 = vunpack.c.h.b16 %v8201
        %v9025 = vunpack.c.l.b16 %v8202
        %v9026 = vunpack.c.h.b16 %v8202
        %v9027 = vunpack.c.l.b16 %v8203
        %v9028 = vunpack.c.h.b16 %v8203
        %v9029 = vunpack.c.l.b16 %v8204
        %v9030 = vunpack.c.h.b16 %v8204
        %v9031 = vunpack.c.l.b16 %v8205
        %v9032 = vunpack.c.h.b16 %v8205
        %v9033 = vunpack.c.l.b16 %v8206
        %v9034 = vunpack.c.h.b16 %v8206
        %v9035 = vunpack.c.l.b16 %v8207
        %v9036 = vunpack.c.h.b16 %v8207
        %v9037 = vunpack.c.l.b16 %v8208
        %v9038 = vunpack.c.h.b16 %v8208
        %v9039 = vunpack.c.l.b16 %v8209
        %v9040 = vunpack.c.h.b16 %v8209
        %v9041 = vunpack.c.l.b16 %v8210
        %v9042 = vunpack.c.h.b16 %v8210
        %v9043 = vunpack.c.l.b16 %v8211
        %v9044 = vunpack.c.h.b16 %v8211
        %v9045 = vunpack.c.l.b16 %v8212
        %v9046 = vunpack.c.h.b16 %v8212
        %v9047 = vunpack.c.l.b16 %v8213
        %v9048 = vunpack.c.h.b16 %v8213
        %v9049 = vunpack.c.l.b16 %v8214
        %v9050 = vunpack.c.h.b16 %v8214
        %v9051 = vunpack.c.l.b16 %v8215
        %v9052 = vunpack.c.h.b16 %v8215
        %v9053 = vunpack.c.l.b16 %v8216
        %v9054 = vunpack.c.h.b16 %v8216
        %v9055 = vunpack.c.l.b16 %v8217
        %v9056 = vunpack.c.h.b16 %v8217
        %v9057 = vunpack.c.l.b16 %v8218
        %v9058 = vunpack.c.h.b16 %v8218
        %v9059 = vunpack.c.l.b16 %v8219
        %v9060 = vunpack.c.h.b16 %v8219
        %v9061 = vunpack.c.l.b16 %v8220
        %v9062 = vunpack.c.h.b16 %v8220
        %v9063 = vunpack.c.l.b16 %v8221
        %v9064 = vunpack.c.h.b16 %v8221
        %v9065 = vunpack.c.l.b16 %v8222
        %v9066 = vunpack.c.h.b16 %v8222
        %v9067 = vunpack.c.l.b16 %v8223
        %v9068 = vunpack.c.h.b16 %v8223
        %v9069 = vunpack.c.l.b16 %v8224
        %v9070 = vunpack.c.h.b16 %v8224
        %v9071 = vunpack.c.l.b16 %v8225
        %v9072 = vunpack.c.h.b16 %v8225
        %v9073 = vunpack.c.l.b16 %v8226
        %v9074 = vunpack.c.h.b16 %v8226
        %v9075 = vunpack.c.l.b16 %v8227
        %v9076 = vunpack.c.h.b16 %v8227
        %v9077 = vunpack.c.l.b16 %v8228
        %v9078 = vunpack.c.h.b16 %v8228
        %v9079 = vunpack.c.l.b16 %v8229
        %v9080 = vunpack.c.h.b16 %v8229
        %v9081 = vunpack.c.l.b16 %v8230
        %v9082 = vunpack.c.h.b16 %v8230
        %v9083 = vunpack.c.l.b16 %v8231
        %v9084 = vunpack.c.h.b16 %v8231
        %v9085 = vunpack.c.l.b16 %v8232
        %v9086 = vunpack.c.h.b16 %v8232
        %v9087 = vunpack.c.l.b16 %v8233
        %v9088 = vunpack.c.h.b16 %v8233
        %v9089 = vunpack.c.l.b16 %v8234
        %v9090 = vunpack.c.h.b16 %v8234
        %v9091 = vunpack.c.l.b16 %v8235
        %v9092 = vunpack.c.h.b16 %v8235
        %v9093 = vunpack.c.l.b16 %v8236
        %v9094 = vunpack.c.h.b16 %v8236
        %v9095 = vunpack.c.l.b16 %v8237
        %v9096 = vunpack.c.h.b16 %v8237
        %v9097 = vunpack.c.l.b16 %v8238
        %v9098 = vunpack.c.h.b16 %v8238
        %v9099 = vunpack.c.l.b16 %v8239
        %v9100 = vunpack.c.h.b16 %v8239
        %v9101 = vunpack.c.l.b16 %v8240
        %v9102 = vunpack.c.h.b16 %v8240
        %v9103 = vunpack.c.l.b16 %v8241
        %v9104 = vunpack.c.h.b16 %v8241
        %v9105 = vunpack.c.l.b16 %v8242
        %v9106 = vunpack.c.h.b16 %v8242
        %v9107 = vunpack.c.l.b16 %v8243
        %v9108 = vunpack.c.h.b16 %v8243
        %v9109 = vunpack.c.l.b16 %v8244
        %v9110 = vunpack.c.h.b16 %v8244
        %v9111 = vunpack.c.l.b16 %v8245
        %v9112 = vunpack.c.h.b16 %v8245
        %v9113 = vunpack.c.l.b16 %v8246
        %v9114 = vunpack.c.h.b16 %v8246
        %v9115 = vunpack.c.l.b16 %v8247
        %v9116 = vunpack.c.h.b16 %v8247
        %v9117 = vunpack.c.l.b16 %v8248
        %v9118 = vunpack.c.h.b16 %v8248
        %v9119 = vunpack.c.l.b16 %v8249
        %v9120 = vunpack.c.h.b16 %v8249
        %v9121 = vunpack.c.l.b16 %v8250
        %v9122 = vunpack.c.h.b16 %v8250
        %v9123 = vunpack.c.l.b16 %v8251
        %v9124 = vunpack.c.h.b16 %v8251
        %v9125 = vunpack.c.l.b16 %v8252
        %v9126 = vunpack.c.h.b16 %v8252
        %v9127 = vunpack.c.l.b16 %v8253
        %v9128 = vunpack.c.h.b16 %v8253
        %v9129 = vunpack.c.l.b16 %v8254
        %v9130 = vunpack.c.h.b16 %v8254
        %v9131 = vunpack.c.l.b16 %v8255
        %v9132 = vunpack.c.h.b16 %v8255
        %v9133 = vunpack.c.l.b16 %v8256
        %v9134 = vunpack.c.h.b16 %v8256
        %v9135 = vpack.c.b16 %v8565, %v8559
        %v9136 = vpack.c.b16 %v8566, %v8560
        %v9137 = vpack.c.b16 %v8567, %v8561
        %v9138 = vpack.c.b16 %v8568, %v8562
        %v9139 = vpack.c.b16 %v8569, %v8563
        %v9140 = vpack.c.b16 %v8570, %v8564
        %v9141 = vpack.c.b16 %v8577, %v8571
        %v9142 = vpack.c.b16 %v8578, %v8572
        %v9143 = vpack.c.b16 %v8579, %v8573
        %v9144 = vpack.c.b16 %v8580, %v8574
        %v9145 = vpack.c.b16 %v8581, %v8575
        %v9146 = vpack.c.b16 %v8582, %v8576
        %v9147 = vpack.c.b16 %v8589, %v8583
        %v9148 = vpack.c.b16 %v8590, %v8584
        %v9149 = vpack.c.b16 %v8591, %v8585
        %v9150 = vpack.c.b16 %v8592, %v8586
        %v9151 = vpack.c.b16 %v8593, %v8587
        %v9152 = vpack.c.b16 %v8594, %v8588
        %v9153 = vpack.c.b16 %v8601, %v8595
        %v9154 = vpack.c.b16 %v8602, %v8596
        %v9155 = vpack.c.b16 %v8603, %v8597
        %v9156 = vpack.c.b16 %v8604, %v8598
        %v9157 = vpack.c.b16 %v8605, %v8599
        %v9158 = vpack.c.b16 %v8606, %v8600
        %v9159 = vpack.c.b16 %v8613, %v8607
        %v9160 = vpack.c.b16 %v8614, %v8608
        %v9161 = vpack.c.b16 %v8615, %v8609
        %v9162 = vpack.c.b16 %v8616, %v8610
        %v9163 = vpack.c.b16 %v8617, %v8611
        %v9164 = vpack.c.b16 %v8618, %v8612
        %v9165 = vpack.c.b16 %v8625, %v8619
        %v9166 = vpack.c.b16 %v8626, %v8620
        %v9167 = vpack.c.b16 %v8627, %v8621
        %v9168 = vpack.c.b16 %v8628, %v8622
        %v9169 = vpack.c.b16 %v8629, %v8623
        %v9170 = vpack.c.b16 %v8630, %v8624
        %v9171 = vpack.c.b16 %v8637, %v8631
        %v9172 = vpack.c.b16 %v8638, %v8632
        %v9173 = vpack.c.b16 %v8639, %v8633
        %v9174 = vpack.c.b16 %v8640, %v8634
        %v9175 = vpack.c.b16 %v8641, %v8635
        %v9176 = vpack.c.b16 %v8642, %v8636
        %v9177 = vpack.c.b16 %v8649, %v8643
        %v9178 = vpack.c.b16 %v8650, %v8644
        %v9179 = vpack.c.b16 %v8651, %v8645
        %v9180 = vpack.c.b16 %v8652, %v8646
        %v9181 = vpack.c.b16 %v8653, %v8647
        %v9182 = vpack.c.b16 %v8654, %v8648
        %v9183 = vpack.c.b16 %v8661, %v8655
        %v9184 = vpack.c.b16 %v8662, %v8656
        %v9185 = vpack.c.b16 %v8663, %v8657
        %v9186 = vpack.c.b16 %v8664, %v8658
        %v9187 = vpack.c.b16 %v8665, %v8659
        %v9188 = vpack.c.b16 %v8666, %v8660
        %v9189 = vpack.c.b16 %v8673, %v8667
        %v9190 = vpack.c.b16 %v8674, %v8668
        %v9191 = vpack.c.b16 %v8675, %v8669
        %v9192 = vpack.c.b16 %v8676, %v8670
        %v9193 = vpack.c.b16 %v8677, %v8671
        %v9194 = vpack.c.b16 %v8678, %v8672
        %v9195 = vpack.c.b16 %v8685, %v8679
        %v9196 = vpack.c.b16 %v8686, %v8680
        %v9197 = vpack.c.b16 %v8687, %v8681
        %v9198 = vpack.c.b16 %v8688, %v8682
        %v9199 = vpack.c.b16 %v8689, %v8683
        %v9200 = vpack.c.b16 %v8690, %v8684
        %v9201 = vpack.c.b16 %v8697, %v8691
        %v9202 = vpack.c.b16 %v8698, %v8692
        %v9203 = vpack.c.b16 %v8699, %v8693
        %v9204 = vpack.c.b16 %v8700, %v8694
        %v9205 = vpack.c.b16 %v8701, %v8695
        %v9206 = vpack.c.b16 %v8702, %v8696
        %v9207 = vpack.c.b16 %v8709, %v8703
        %v9208 = vpack.c.b16 %v8710, %v8704
        %v9209 = vpack.c.b16 %v8711, %v8705
        %v9210 = vpack.c.b16 %v8712, %v8706
        %v9211 = vpack.c.b16 %v8713, %v8707
        %v9212 = vpack.c.b16 %v8714, %v8708
        %v9213 = vpack.c.b16 %v8721, %v8715
        %v9214 = vpack.c.b16 %v8722, %v8716
        %v9215 = vpack.c.b16 %v8723, %v8717
        %v9216 = vpack.c.b16 %v8724, %v8718
        %v9217 = vpack.c.b16 %v8725, %v8719
        %v9218 = vpack.c.b16 %v8726, %v8720
        %v9219 = vpack.c.b16 %v8733, %v8727
        %v9220 = vpack.c.b16 %v8734, %v8728
        %v9221 = vpack.c.b16 %v8735, %v8729
        %v9222 = vpack.c.b16 %v8736, %v8730
        %v9223 = vpack.c.b16 %v8737, %v8731
        %v9224 = vpack.c.b16 %v8738, %v8732
        %v9225 = vpack.c.b16 %v8745, %v8739
        %v9226 = vpack.c.b16 %v8746, %v8740
        %v9227 = vpack.c.b16 %v8747, %v8741
        %v9228 = vpack.c.b16 %v8748, %v8742
        %v9229 = vpack.c.b16 %v8749, %v8743
        %v9230 = vpack.c.b16 %v8750, %v8744
        %v9231 = vpack.c.b16 %v8757, %v8751
        %v9232 = vpack.c.b16 %v8758, %v8752
        %v9233 = vpack.c.b16 %v8759, %v8753
        %v9234 = vpack.c.b16 %v8760, %v8754
        %v9235 = vpack.c.b16 %v8761, %v8755
        %v9236 = vpack.c.b16 %v8762, %v8756
        %v9237 = vpack.c.b16 %v8769, %v8763
        %v9238 = vpack.c.b16 %v8770, %v8764
        %v9239 = vpack.c.b16 %v8771, %v8765
        %v9240 = vpack.c.b16 %v8772, %v8766
        %v9241 = vpack.c.b16 %v8773, %v8767
        %v9242 = vpack.c.b16 %v8774, %v8768
        %v9243 = vpack.c.b16 %v8781, %v8775
        %v9244 = vpack.c.b16 %v8782, %v8776
        %v9245 = vpack.c.b16 %v8783, %v8777
        %v9246 = vpack.c.b16 %v8784, %v8778
        %v9247 = vpack.c.b16 %v8785, %v8779
        %v9248 = vpack.c.b16 %v8786, %v8780
        %v9249 = vpack.c.b16 %v8793, %v8787
        %v9250 = vpack.c.b16 %v8794, %v8788
        %v9251 = vpack.c.b16 %v8795, %v8789
        %v9252 = vpack.c.b16 %v8796, %v8790
        %v9253 = vpack.c.b16 %v8797, %v8791
        %v9254 = vpack.c.b16 %v8798, %v8792
        %v9255 = vpack.c.b16 %v8805, %v8799
        %v9256 = vpack.c.b16 %v8806, %v8800
        %v9257 = vpack.c.b16 %v8807, %v8801
        %v9258 = vpack.c.b16 %v8808, %v8802
        %v9259 = vpack.c.b16 %v8809, %v8803
        %v9260 = vpack.c.b16 %v8810, %v8804
        %v9261 = vpack.c.b16 %v8817, %v8811
        %v9262 = vpack.c.b16 %v8818, %v8812
        %v9263 = vpack.c.b16 %v8819, %v8813
        %v9264 = vpack.c.b16 %v8820, %v8814
        %v9265 = vpack.c.b16 %v8821, %v8815
        %v9266 = vpack.c.b16 %v8822, %v8816
        %v9267 = vpack.c.b16 %v8829, %v8823
        %v9268 = vpack.c.b16 %v8830, %v8824
        %v9269 = vpack.c.b16 %v8831, %v8825
        %v9270 = vpack.c.b16 %v8832, %v8826
        %v9271 = vpack.c.b16 %v8833, %v8827
        %v9272 = vpack.c.b16 %v8834, %v8828
        %v9273 = vpack.c.b16 %v8841, %v8835
        %v9274 = vpack.c.b16 %v8842, %v8836
        %v9275 = vpack.c.b16 %v8843, %v8837
        %v9276 = vpack.c.b16 %v8844, %v8838
        %v9277 = vpack.c.b16 %v8845, %v8839
        %v9278 = vpack.c.b16 %v8846, %v8840
        %v9279 = vpack.c.b16 %v8853, %v8847
        %v9280 = vpack.c.b16 %v8854, %v8848
        %v9281 = vpack.c.b16 %v8855, %v8849
        %v9282 = vpack.c.b16 %v8856, %v8850
        %v9283 = vpack.c.b16 %v8857, %v8851
        %v9284 = vpack.c.b16 %v8858, %v8852
        %v9285 = vpack.c.b16 %v8865, %v8859
        %v9286 = vpack.c.b16 %v8866, %v8860
        %v9287 = vpack.c.b16 %v8867, %v8861
        %v9288 = vpack.c.b16 %v8868, %v8862
        %v9289 = vpack.c.b16 %v8869, %v8863
        %v9290 = vpack.c.b16 %v8870, %v8864
        %v9291 = vpack.c.b16 %v8877, %v8871
        %v9292 = vpack.c.b16 %v8878, %v8872
        %v9293 = vpack.c.b16 %v8879, %v8873
        %v9294 = vpack.c.b16 %v8880, %v8874
        %v9295 = vpack.c.b16 %v8881, %v8875
        %v9296 = vpack.c.b16 %v8882, %v8876
        %v9297 = vpack.c.b16 %v8889, %v8883
        %v9298 = vpack.c.b16 %v8890, %v8884
        %v9299 = vpack.c.b16 %v8891, %v8885
        %v9300 = vpack.c.b16 %v8892, %v8886
        %v9301 = vpack.c.b16 %v8893, %v8887
        %v9302 = vpack.c.b16 %v8894, %v8888
        %v9303 = vpack.c.b16 %v8901, %v8895
        %v9304 = vpack.c.b16 %v8902, %v8896
        %v9305 = vpack.c.b16 %v8903, %v8897
        %v9306 = vpack.c.b16 %v8904, %v8898
        %v9307 = vpack.c.b16 %v8905, %v8899
        %v9308 = vpack.c.b16 %v8906, %v8900
        %v9309 = vpack.c.b16 %v8913, %v8907
        %v9310 = vpack.c.b16 %v8914, %v8908
        %v9311 = vpack.c.b16 %v8915, %v8909
        %v9312 = vpack.c.b16 %v8916, %v8910
        %v9313 = vpack.c.b16 %v8917, %v8911
        %v9314 = vpack.c.b16 %v8918, %v8912
        %v9315 = vpack.c.b16 %v8925, %v8919
        %v9316 = vpack.c.b16 %v8926, %v8920
        %v9317 = vpack.c.b16 %v8927, %v8921
        %v9318 = vpack.c.b16 %v8928, %v8922
        %v9319 = vpack.c.b16 %v8929, %v8923
        %v9320 = vpack.c.b16 %v8930, %v8924
        %v9321 = vpack.c.b16 %v8937, %v8931
        %v9322 = vpack.c.b16 %v8938, %v8932
        %v9323 = vpack.c.b16 %v8939, %v8933
        %v9324 = vpack.c.b16 %v8940, %v8934
        %v9325 = vpack.c.b16 %v8941, %v8935
        %v9326 = vpack.c.b16 %v8942, %v8936
        %v9327 = vpack.c.b16 %v8949, %v8943
        %v9328 = vpack.c.b16 %v8950, %v8944
        %v9329 = vpack.c.b16 %v8951, %v8945
        %v9330 = vpack.c.b16 %v8952, %v8946
        %v9331 = vpack.c.b16 %v8953, %v8947
        %v9332 = vpack.c.b16 %v8954, %v8948
        %v9333 = vpack.c.b16 %v8961, %v8955
        %v9334 = vpack.c.b16 %v8962, %v8956
        %v9335 = vpack.c.b16 %v8963, %v8957
        %v9336 = vpack.c.b16 %v8964, %v8958
        %v9337 = vpack.c.b16 %v8965, %v8959
        %v9338 = vpack.c.b16 %v8966, %v8960
        %v9339 = vpack.c.b16 %v8973, %v8967
        %v9340 = vpack.c.b16 %v8974, %v8968
        %v9341 = vpack.c.b16 %v8975, %v8969
        %v9342 = vpack.c.b16 %v8976, %v8970
        %v9343 = vpack.c.b16 %v8977, %v8971
        %v9344 = vpack.c.b16 %v8978, %v8972
        %v9345 = vpack.c.b16 %v8985, %v8979
        %v9346 = vpack.c.b16 %v8986, %v8980
        %v9347 = vpack.c.b16 %v8987, %v8981
        %v9348 = vpack.c.b16 %v8988, %v8982
        %v9349 = vpack.c.b16 %v8989, %v8983
        %v9350 = vpack.c.b16 %v8990, %v8984
        %v9351 = vpack.c.b16 %v8997, %v8991
        %v9352 = vpack.c.b16 %v8998, %v8992
        %v9353 = vpack.c.b16 %v8999, %v8993
        %v9354 = vpack.c.b16 %v9000, %v8994
        %v9355 = vpack.c.b16 %v9001, %v8995
        %v9356 = vpack.c.b16 %v9002, %v8996
        %v9357 = vpack.c.b16 %v9009, %v9003
        %v9358 = vpack.c.b16 %v9010, %v9004
        %v9359 = vpack.c.b16 %v9011, %v9005
        %v9360 = vpack.c.b16 %v9012, %v9006
        %v9361 = vpack.c.b16 %v9013, %v9007
        %v9362 = vpack.c.b16 %v9014, %v9008
        %v9363 = vpack.c.b16 %v9021, %v9015
        %v9364 = vpack.c.b16 %v9022, %v9016
        %v9365 = vpack.c.b16 %v9023, %v9017
        %v9366 = vpack.c.b16 %v9024, %v9018
        %v9367 = vpack.c.b16 %v9025, %v9019
        %v9368 = vpack.c.b16 %v9026, %v9020
        %v9369 = vpack.c.b16 %v9033, %v9027
        %v9370 = vpack.c.b16 %v9034, %v9028
        %v9371 = vpack.c.b16 %v9035, %v9029
        %v9372 = vpack.c.b16 %v9036, %v9030
        %v9373 = vpack.c.b16 %v9037, %v9031
        %v9374 = vpack.c.b16 %v9038, %v9032
        %v9375 = vpack.c.b16 %v9045, %v9039
        %v9376 = vpack.c.b16 %v9046, %v9040
        %v9377 = vpack.c.b16 %v9047, %v9041
        %v9378 = vpack.c.b16 %v9048, %v9042
        %v9379 = vpack.c.b16 %v9049, %v9043
        %v9380 = vpack.c.b16 %v9050, %v9044
        %v9381 = vpack.c.b16 %v9057, %v9051
        %v9382 = vpack.c.b16 %v9058, %v9052
        %v9383 = vpack.c.b16 %v9059, %v9053
        %v9384 = vpack.c.b16 %v9060, %v9054
        %v9385 = vpack.c.b16 %v9061, %v9055
        %v9386 = vpack.c.b16 %v9062, %v9056
        %v9387 = vpack.c.b16 %v9069, %v9063
        %v9388 = vpack.c.b16 %v9070, %v9064
        %v9389 = vpack.c.b16 %v9071, %v9065
        %v9390 = vpack.c.b16 %v9072, %v9066
        %v9391 = vpack.c.b16 %v9073, %v9067
        %v9392 = vpack.c.b16 %v9074, %v9068
        %v9393 = vpack.c.b16 %v9081, %v9075
        %v9394 = vpack.c.b16 %v9082, %v9076
        %v9395 = vpack.c.b16 %v9083, %v9077
        %v9396 = vpack.c.b16 %v9084, %v9078
        %v9397 = vpack.c.b16 %v9085, %v9079
        %v9398 = vpack.c.b16 %v9086, %v9080
        %v9399 = vpack.c.b16 %v9093, %v9087
        %v9400 = vpack.c.b16 %v9094, %v9088
        %v9401 = vpack.c.b16 %v9095, %v9089
        %v9402 = vpack.c.b16 %v9096, %v9090
        %v9403 = vpack.c.b16 %v9097, %v9091
        %v9404 = vpack.c.b16 %v9098, %v9092
        %v9405 = vpack.c.b16 %v9105, %v9099
        %v9406 = vpack.c.b16 %v9106, %v9100
        %v9407 = vpack.c.b16 %v9107, %v9101
        %v9408 = vpack.c.b16 %v9108, %v9102
        %v9409 = vpack.c.b16 %v9109, %v9103
        %v9410 = vpack.c.b16 %v9110, %v9104
        %v9411 = vpack.c.b16 %v9117, %v9111
        %v9412 = vpack.c.b16 %v9118, %v9112
        %v9413 = vpack.c.b16 %v9119, %v9113
        %v9414 = vpack.c.b16 %v9120, %v9114
        %v9415 = vpack.c.b16 %v9121, %v9115
        %v9416 = vpack.c.b16 %v9122, %v9116
        %v9417 = vpack.c.b16 %v9129, %v9123
        %v9418 = vpack.c.b16 %v9130, %v9124
        %v9419 = vpack.c.b16 %v9131, %v9125
        %v9420 = vpack.c.b16 %v9132, %v9126
        %v9421 = vpack.c.b16 %v9133, %v9127
        %v9422 = vpack.c.b16 %v9134, %v9128
        %9711 = vmatpush.bf16.msra.mxu0 %v9177
        %9712 = vmatpush.bf16.msra.mxu0 %v9171
        %9713 = vmatpush.bf16.msra.mxu0 %v9165
        %9714 = vmatpush.bf16.msra.mxu0 %v9159
        %9715 = vmatpush.bf16.msra.mxu0 %v9153
        %9716 = vmatpush.bf16.msra.mxu0 %v9147
        %9717 = vmatpush.bf16.msra.mxu0 %v9141
        %9718 = vmatpush.bf16.msra.mxu0 %v9135
        %9719 = vmatmul.bf16.gmra.mxu0 %v7963
        %v9720 = vpop.f32.mrf.mxu0
        %v9721 = vadd.f32 %v8259, %v9720
        %v9722 = vpop.f32.mrf.mxu0
        %9723 = vdwg.mxu0
        %9724 = vmatpush.bf16.msra.mxu0 %v9225
        %9725 = vmatpush.bf16.msra.mxu0 %v9219
        %9726 = vmatpush.bf16.msra.mxu0 %v9213
        %9727 = vmatpush.bf16.msra.mxu0 %v9207
        %9728 = vmatpush.bf16.msra.mxu0 %v9201
        %9729 = vmatpush.bf16.msra.mxu0 %v9195
        %9730 = vmatpush.bf16.msra.mxu0 %v9189
        %9731 = vmatpush.bf16.msra.mxu0 %v9183
        %9732 = vmatmul.bf16.gmra.mxu0 %v7964
        %v9733 = vpop.f32.mrf.mxu0
        %v9734 = vadd.f32 %v9721, %v9733
        %v9735 = vpop.f32.mrf.mxu0
        %9736 = vdwg.mxu0
        %9737 = vmatpush.bf16.msra.mxu0 %v9273
        %9738 = vmatpush.bf16.msra.mxu0 %v9267
        %9739 = vmatpush.bf16.msra.mxu0 %v9261
        %9740 = vmatpush.bf16.msra.mxu0 %v9255
        %9741 = vmatpush.bf16.msra.mxu0 %v9249
        %9742 = vmatpush.bf16.msra.mxu0 %v9243
        %9743 = vmatpush.bf16.msra.mxu0 %v9237
        %9744 = vmatpush.bf16.msra.mxu0 %v9231
        %9745 = vmatmul.bf16.gmra.mxu0 %v7965
        %v9746 = vpop.f32.mrf.mxu0
        %v9747 = vadd.f32 %v9734, %v9746
        %v9748 = vpop.f32.mrf.mxu0
        %9749 = vdwg.mxu0
        %9750 = vmatpush.bf16.msra.mxu0 %v9321
        %9751 = vmatpush.bf16.msra.mxu0 %v9315
        %9752 = vmatpush.bf16.msra.mxu0 %v9309
        %9753 = vmatpush.bf16.msra.mxu0 %v9303
        %9754 = vmatpush.bf16.msra.mxu0 %v9297
        %9755 = vmatpush.bf16.msra.mxu0 %v9291
        %9756 = vmatpush.bf16.msra.mxu0 %v9285
        %9757 = vmatpush.bf16.msra.mxu0 %v9279
        %9758 = vmatmul.bf16.gmra.mxu0 %v7966
        %v9759 = vpop.f32.mrf.mxu0
        %v9760 = vadd.f32 %v9747, %v9759
        %v9761 = vpop.f32.mrf.mxu0
        %9762 = vdwg.mxu0
        %9763 = vmatpush.bf16.msra.mxu0 %v9369
        %9764 = vmatpush.bf16.msra.mxu0 %v9363
        %9765 = vmatpush.bf16.msra.mxu0 %v9357
        %9766 = vmatpush.bf16.msra.mxu0 %v9351
        %9767 = vmatpush.bf16.msra.mxu0 %v9345
        %9768 = vmatpush.bf16.msra.mxu0 %v9339
        %9769 = vmatpush.bf16.msra.mxu0 %v9333
        %9770 = vmatpush.bf16.msra.mxu0 %v9327
        %9771 = vmatmul.bf16.gmra.mxu0 %v7967
        %v9772 = vpop.f32.mrf.mxu0
        %v9773 = vadd.f32 %v9760, %v9772
        %v9774 = vpop.f32.mrf.mxu0
        %9775 = vdwg.mxu0
        %9776 = vmatpush.bf16.msra.mxu0 %v9417
        %9777 = vmatpush.bf16.msra.mxu0 %v9411
        %9778 = vmatpush.bf16.msra.mxu0 %v9405
        %9779 = vmatpush.bf16.msra.mxu0 %v9399
        %9780 = vmatpush.bf16.msra.mxu0 %v9393
        %9781 = vmatpush.bf16.msra.mxu0 %v9387
        %9782 = vmatpush.bf16.msra.mxu0 %v9381
        %9783 = vmatpush.bf16.msra.mxu0 %v9375
        %9784 = vmatmul.bf16.gmra.mxu0 %v7968
        %v9785 = vpop.f32.mrf.mxu0
        %v9786 = vadd.f32 %v9773, %v9785
        %v9787 = vpop.f32.mrf.mxu0
        %9788 = vdwg.mxu0
        %9789 = vmatpush.bf16.msra.mxu0 %v9178
        %9790 = vmatpush.bf16.msra.mxu0 %v9172
        %9791 = vmatpush.bf16.msra.mxu0 %v9166
        %9792 = vmatpush.bf16.msra.mxu0 %v9160
        %9793 = vmatpush.bf16.msra.mxu0 %v9154
        %9794 = vmatpush.bf16.msra.mxu0 %v9148
        %9795 = vmatpush.bf16.msra.mxu0 %v9142
        %9796 = vmatpush.bf16.msra.mxu0 %v9136
        %9797 = vmatmul.bf16.gmra.mxu0 %v7963
        %v9798 = vpop.f32.mrf.mxu0
        %v9799 = vadd.f32 %v8260, %v9798
        %v9800 = vpop.f32.mrf.mxu0
        %9801 = vdwg.mxu0
        %9802 = vmatpush.bf16.msra.mxu0 %v9226
        %9803 = vmatpush.bf16.msra.mxu0 %v9220
        %9804 = vmatpush.bf16.msra.mxu0 %v9214
        %9805 = vmatpush.bf16.msra.mxu0 %v9208
        %9806 = vmatpush.bf16.msra.mxu0 %v9202
        %9807 = vmatpush.bf16.msra.mxu0 %v9196
        %9808 = vmatpush.bf16.msra.mxu0 %v9190
        %9809 = vmatpush.bf16.msra.mxu0 %v9184
        %9810 = vmatmul.bf16.gmra.mxu0 %v7964
        %v9811 = vpop.f32.mrf.mxu0
        %v9812 = vadd.f32 %v9799, %v9811
        %v9813 = vpop.f32.mrf.mxu0
        %9814 = vdwg.mxu0
        %9815 = vmatpush.bf16.msra.mxu0 %v9274
        %9816 = vmatpush.bf16.msra.mxu0 %v9268
        %9817 = vmatpush.bf16.msra.mxu0 %v9262
        %9818 = vmatpush.bf16.msra.mxu0 %v9256
        %9819 = vmatpush.bf16.msra.mxu0 %v9250
        %9820 = vmatpush.bf16.msra.mxu0 %v9244
        %9821 = vmatpush.bf16.msra.mxu0 %v9238
        %9822 = vmatpush.bf16.msra.mxu0 %v9232
        %9823 = vmatmul.bf16.gmra.mxu0 %v7965
        %v9824 = vpop.f32.mrf.mxu0
        %v9825 = vadd.f32 %v9812, %v9824
        %v9826 = vpop.f32.mrf.mxu0
        %9827 = vdwg.mxu0
        %9828 = vmatpush.bf16.msra.mxu0 %v9322
        %9829 = vmatpush.bf16.msra.mxu0 %v9316
        %9830 = vmatpush.bf16.msra.mxu0 %v9310
        %9831 = vmatpush.bf16.msra.mxu0 %v9304
        %9832 = vmatpush.bf16.msra.mxu0 %v9298
        %9833 = vmatpush.bf16.msra.mxu0 %v9292
        %9834 = vmatpush.bf16.msra.mxu0 %v9286
        %9835 = vmatpush.bf16.msra.mxu0 %v9280
        %9836 = vmatmul.bf16.gmra.mxu0 %v7966
        %v9837 = vpop.f32.mrf.mxu0
        %v9838 = vadd.f32 %v9825, %v9837
        %v9839 = vpop.f32.mrf.mxu0
        %9840 = vdwg.mxu0
        %9841 = vmatpush.bf16.msra.mxu0 %v9370
        %9842 = vmatpush.bf16.msra.mxu0 %v9364
        %9843 = vmatpush.bf16.msra.mxu0 %v9358
        %9844 = vmatpush.bf16.msra.mxu0 %v9352
        %9845 = vmatpush.bf16.msra.mxu0 %v9346
        %9846 = vmatpush.bf16.msra.mxu0 %v9340
        %9847 = vmatpush.bf16.msra.mxu0 %v9334
        %9848 = vmatpush.bf16.msra.mxu0 %v9328
        %9849 = vmatmul.bf16.gmra.mxu0 %v7967
        %v9850 = vpop.f32.mrf.mxu0
        %v9851 = vadd.f32 %v9838, %v9850
        %v9852 = vpop.f32.mrf.mxu0
        %9853 = vdwg.mxu0
        %9854 = vmatpush.bf16.msra.mxu0 %v9418
        %9855 = vmatpush.bf16.msra.mxu0 %v9412
        %9856 = vmatpush.bf16.msra.mxu0 %v9406
        %9857 = vmatpush.bf16.msra.mxu0 %v9400
        %9858 = vmatpush.bf16.msra.mxu0 %v9394
        %9859 = vmatpush.bf16.msra.mxu0 %v9388
        %9860 = vmatpush.bf16.msra.mxu0 %v9382
        %9861 = vmatpush.bf16.msra.mxu0 %v9376
        %9862 = vmatmul.bf16.gmra.mxu0 %v7968
        %v9863 = vpop.f32.mrf.mxu0
        %v9864 = vadd.f32 %v9851, %v9863
        %v9865 = vpop.f32.mrf.mxu0
        %9866 = vdwg.mxu0
        %9867 = vmatpush.bf16.msra.mxu0 %v9179
        %9868 = vmatpush.bf16.msra.mxu0 %v9173
        %9869 = vmatpush.bf16.msra.mxu0 %v9167
        %9870 = vmatpush.bf16.msra.mxu0 %v9161
        %9871 = vmatpush.bf16.msra.mxu0 %v9155
        %9872 = vmatpush.bf16.msra.mxu0 %v9149
        %9873 = vmatpush.bf16.msra.mxu0 %v9143
        %9874 = vmatpush.bf16.msra.mxu0 %v9137
        %9875 = vmatmul.bf16.gmra.mxu0 %v7963
        %v9876 = vpop.f32.mrf.mxu0
        %v9877 = vadd.f32 %v8261, %v9876
        %v9878 = vpop.f32.mrf.mxu0
        %9879 = vdwg.mxu0
        %9880 = vmatpush.bf16.msra.mxu0 %v9227
        %9881 = vmatpush.bf16.msra.mxu0 %v9221
        %9882 = vmatpush.bf16.msra.mxu0 %v9215
        %9883 = vmatpush.bf16.msra.mxu0 %v9209
        %9884 = vmatpush.bf16.msra.mxu0 %v9203
        %9885 = vmatpush.bf16.msra.mxu0 %v9197
        %9886 = vmatpush.bf16.msra.mxu0 %v9191
        %9887 = vmatpush.bf16.msra.mxu0 %v9185
        %9888 = vmatmul.bf16.gmra.mxu0 %v7964
        %v9889 = vpop.f32.mrf.mxu0
        %v9890 = vadd.f32 %v9877, %v9889
        %v9891 = vpop.f32.mrf.mxu0
        %9892 = vdwg.mxu0
        %9893 = vmatpush.bf16.msra.mxu0 %v9275
        %9894 = vmatpush.bf16.msra.mxu0 %v9269
        %9895 = vmatpush.bf16.msra.mxu0 %v9263
        %9896 = vmatpush.bf16.msra.mxu0 %v9257
        %9897 = vmatpush.bf16.msra.mxu0 %v9251
        %9898 = vmatpush.bf16.msra.mxu0 %v9245
        %9899 = vmatpush.bf16.msra.mxu0 %v9239
        %9900 = vmatpush.bf16.msra.mxu0 %v9233
        %9901 = vmatmul.bf16.gmra.mxu0 %v7965
        %v9902 = vpop.f32.mrf.mxu0
        %v9903 = vadd.f32 %v9890, %v9902
        %v9904 = vpop.f32.mrf.mxu0
        %9905 = vdwg.mxu0
        %9906 = vmatpush.bf16.msra.mxu0 %v9323
        %9907 = vmatpush.bf16.msra.mxu0 %v9317
        %9908 = vmatpush.bf16.msra.mxu0 %v9311
        %9909 = vmatpush.bf16.msra.mxu0 %v9305
        %9910 = vmatpush.bf16.msra.mxu0 %v9299
        %9911 = vmatpush.bf16.msra.mxu0 %v9293
        %9912 = vmatpush.bf16.msra.mxu0 %v9287
        %9913 = vmatpush.bf16.msra.mxu0 %v9281
        %9914 = vmatmul.bf16.gmra.mxu0 %v7966
        %v9915 = vpop.f32.mrf.mxu0
        %v9916 = vadd.f32 %v9903, %v9915
        %v9917 = vpop.f32.mrf.mxu0
        %9918 = vdwg.mxu0
        %9919 = vmatpush.bf16.msra.mxu0 %v9371
        %9920 = vmatpush.bf16.msra.mxu0 %v9365
        %9921 = vmatpush.bf16.msra.mxu0 %v9359
        %9922 = vmatpush.bf16.msra.mxu0 %v9353
        %9923 = vmatpush.bf16.msra.mxu0 %v9347
        %9924 = vmatpush.bf16.msra.mxu0 %v9341
        %9925 = vmatpush.bf16.msra.mxu0 %v9335
        %9926 = vmatpush.bf16.msra.mxu0 %v9329
        %9927 = vmatmul.bf16.gmra.mxu0 %v7967
        %v9928 = vpop.f32.mrf.mxu0
        %v9929 = vadd.f32 %v9916, %v9928
        %v9930 = vpop.f32.mrf.mxu0
        %9931 = vdwg.mxu0
        %9932 = vmatpush.bf16.msra.mxu0 %v9419
        %9933 = vmatpush.bf16.msra.mxu0 %v9413
        %9934 = vmatpush.bf16.msra.mxu0 %v9407
        %9935 = vmatpush.bf16.msra.mxu0 %v9401
        %9936 = vmatpush.bf16.msra.mxu0 %v9395
        %9937 = vmatpush.bf16.msra.mxu0 %v9389
        %9938 = vmatpush.bf16.msra.mxu0 %v9383
        %9939 = vmatpush.bf16.msra.mxu0 %v9377
        %9940 = vmatmul.bf16.gmra.mxu0 %v7968
        %v9941 = vpop.f32.mrf.mxu0
        %v9942 = vadd.f32 %v9929, %v9941
        %v9943 = vpop.f32.mrf.mxu0
        %9944 = vdwg.mxu0
        %9945 = vmatpush.bf16.msra.mxu0 %v9180
        %9946 = vmatpush.bf16.msra.mxu0 %v9174
        %9947 = vmatpush.bf16.msra.mxu0 %v9168
        %9948 = vmatpush.bf16.msra.mxu0 %v9162
        %9949 = vmatpush.bf16.msra.mxu0 %v9156
        %9950 = vmatpush.bf16.msra.mxu0 %v9150
        %9951 = vmatpush.bf16.msra.mxu0 %v9144
        %9952 = vmatpush.bf16.msra.mxu0 %v9138
        %9953 = vmatmul.bf16.gmra.mxu0 %v7963
        %v9954 = vpop.f32.mrf.mxu0
        %v9955 = vadd.f32 %v8262, %v9954
        %v9956 = vpop.f32.mrf.mxu0
        %9957 = vdwg.mxu0
        %9958 = vmatpush.bf16.msra.mxu0 %v9228
        %9959 = vmatpush.bf16.msra.mxu0 %v9222
        %9960 = vmatpush.bf16.msra.mxu0 %v9216
        %9961 = vmatpush.bf16.msra.mxu0 %v9210
        %9962 = vmatpush.bf16.msra.mxu0 %v9204
        %9963 = vmatpush.bf16.msra.mxu0 %v9198
        %9964 = vmatpush.bf16.msra.mxu0 %v9192
        %9965 = vmatpush.bf16.msra.mxu0 %v9186
        %9966 = vmatmul.bf16.gmra.mxu0 %v7964
        %v9967 = vpop.f32.mrf.mxu0
        %v9968 = vadd.f32 %v9955, %v9967
        %v9969 = vpop.f32.mrf.mxu0
        %9970 = vdwg.mxu0
        %9971 = vmatpush.bf16.msra.mxu0 %v9276
        %9972 = vmatpush.bf16.msra.mxu0 %v9270
        %9973 = vmatpush.bf16.msra.mxu0 %v9264
        %9974 = vmatpush.bf16.msra.mxu0 %v9258
        %9975 = vmatpush.bf16.msra.mxu0 %v9252
        %9976 = vmatpush.bf16.msra.mxu0 %v9246
        %9977 = vmatpush.bf16.msra.mxu0 %v9240
        %9978 = vmatpush.bf16.msra.mxu0 %v9234
        %9979 = vmatmul.bf16.gmra.mxu0 %v7965
        %v9980 = vpop.f32.mrf.mxu0
        %v9981 = vadd.f32 %v9968, %v9980
        %v9982 = vpop.f32.mrf.mxu0
        %9983 = vdwg.mxu0
        %9984 = vmatpush.bf16.msra.mxu0 %v9324
        %9985 = vmatpush.bf16.msra.mxu0 %v9318
        %9986 = vmatpush.bf16.msra.mxu0 %v9312
        %9987 = vmatpush.bf16.msra.mxu0 %v9306
        %9988 = vmatpush.bf16.msra.mxu0 %v9300
        %9989 = vmatpush.bf16.msra.mxu0 %v9294
        %9990 = vmatpush.bf16.msra.mxu0 %v9288
        %9991 = vmatpush.bf16.msra.mxu0 %v9282
        %9992 = vmatmul.bf16.gmra.mxu0 %v7966
        %v9993 = vpop.f32.mrf.mxu0
        %v9994 = vadd.f32 %v9981, %v9993
        %v9995 = vpop.f32.mrf.mxu0
        %9996 = vdwg.mxu0
        %9997 = vmatpush.bf16.msra.mxu0 %v9372
        %9998 = vmatpush.bf16.msra.mxu0 %v9366
        %9999 = vmatpush.bf16.msra.mxu0 %v9360
        %10000 = vmatpush.bf16.msra.mxu0 %v9354
        %10001 = vmatpush.bf16.msra.mxu0 %v9348
        %10002 = vmatpush.bf16.msra.mxu0 %v9342
        %10003 = vmatpush.bf16.msra.mxu0 %v9336
        %10004 = vmatpush.bf16.msra.mxu0 %v9330
        %10005 = vmatmul.bf16.gmra.mxu0 %v7967
        %v10006 = vpop.f32.mrf.mxu0
        %v10007 = vadd.f32 %v9994, %v10006
        %v10008 = vpop.f32.mrf.mxu0
        %10009 = vdwg.mxu0
        %10010 = vmatpush.bf16.msra.mxu0 %v9420
        %10011 = vmatpush.bf16.msra.mxu0 %v9414
        %10012 = vmatpush.bf16.msra.mxu0 %v9408
        %10013 = vmatpush.bf16.msra.mxu0 %v9402
        %10014 = vmatpush.bf16.msra.mxu0 %v9396
        %10015 = vmatpush.bf16.msra.mxu0 %v9390
        %10016 = vmatpush.bf16.msra.mxu0 %v9384
        %10017 = vmatpush.bf16.msra.mxu0 %v9378
        %10018 = vmatmul.bf16.gmra.mxu0 %v7968
        %v10019 = vpop.f32.mrf.mxu0
        %v10020 = vadd.f32 %v10007, %v10019
        %v10021 = vpop.f32.mrf.mxu0
        %10022 = vdwg.mxu0
        %10023 = vmatpush.bf16.msra.mxu0 %v9181
        %10024 = vmatpush.bf16.msra.mxu0 %v9175
        %10025 = vmatpush.bf16.msra.mxu0 %v9169
        %10026 = vmatpush.bf16.msra.mxu0 %v9163
        %10027 = vmatpush.bf16.msra.mxu0 %v9157
        %10028 = vmatpush.bf16.msra.mxu0 %v9151
        %10029 = vmatpush.bf16.msra.mxu0 %v9145
        %10030 = vmatpush.bf16.msra.mxu0 %v9139
        %10031 = vmatmul.bf16.gmra.mxu0 %v7963
        %v10032 = vpop.f32.mrf.mxu0
        %v10033 = vadd.f32 %v8263, %v10032
        %v10034 = vpop.f32.mrf.mxu0
        %10035 = vdwg.mxu0
        %10036 = vmatpush.bf16.msra.mxu0 %v9229
        %10037 = vmatpush.bf16.msra.mxu0 %v9223
        %10038 = vmatpush.bf16.msra.mxu0 %v9217
        %10039 = vmatpush.bf16.msra.mxu0 %v9211
        %10040 = vmatpush.bf16.msra.mxu0 %v9205
        %10041 = vmatpush.bf16.msra.mxu0 %v9199
        %10042 = vmatpush.bf16.msra.mxu0 %v9193
        %10043 = vmatpush.bf16.msra.mxu0 %v9187
        %10044 = vmatmul.bf16.gmra.mxu0 %v7964
        %v10045 = vpop.f32.mrf.mxu0
        %v10046 = vadd.f32 %v10033, %v10045
        %v10047 = vpop.f32.mrf.mxu0
        %10048 = vdwg.mxu0
        %10049 = vmatpush.bf16.msra.mxu0 %v9277
        %10050 = vmatpush.bf16.msra.mxu0 %v9271
        %10051 = vmatpush.bf16.msra.mxu0 %v9265
        %10052 = vmatpush.bf16.msra.mxu0 %v9259
        %10053 = vmatpush.bf16.msra.mxu0 %v9253
        %10054 = vmatpush.bf16.msra.mxu0 %v9247
        %10055 = vmatpush.bf16.msra.mxu0 %v9241
        %10056 = vmatpush.bf16.msra.mxu0 %v9235
        %10057 = vmatmul.bf16.gmra.mxu0 %v7965
        %v10058 = vpop.f32.mrf.mxu0
        %v10059 = vadd.f32 %v10046, %v10058
        %v10060 = vpop.f32.mrf.mxu0
        %10061 = vdwg.mxu0
        %10062 = vmatpush.bf16.msra.mxu0 %v9325
        %10063 = vmatpush.bf16.msra.mxu0 %v9319
        %10064 = vmatpush.bf16.msra.mxu0 %v9313
        %10065 = vmatpush.bf16.msra.mxu0 %v9307
        %10066 = vmatpush.bf16.msra.mxu0 %v9301
        %10067 = vmatpush.bf16.msra.mxu0 %v9295
        %10068 = vmatpush.bf16.msra.mxu0 %v9289
        %10069 = vmatpush.bf16.msra.mxu0 %v9283
        %10070 = vmatmul.bf16.gmra.mxu0 %v7966
        %v10071 = vpop.f32.mrf.mxu0
        %v10072 = vadd.f32 %v10059, %v10071
        %v10073 = vpop.f32.mrf.mxu0
        %10074 = vdwg.mxu0
        %10075 = vmatpush.bf16.msra.mxu0 %v9373
        %10076 = vmatpush.bf16.msra.mxu0 %v9367
        %10077 = vmatpush.bf16.msra.mxu0 %v9361
        %10078 = vmatpush.bf16.msra.mxu0 %v9355
        %10079 = vmatpush.bf16.msra.mxu0 %v9349
        %10080 = vmatpush.bf16.msra.mxu0 %v9343
        %10081 = vmatpush.bf16.msra.mxu0 %v9337
        %10082 = vmatpush.bf16.msra.mxu0 %v9331
        %10083 = vmatmul.bf16.gmra.mxu0 %v7967
        %v10084 = vpop.f32.mrf.mxu0
        %v10085 = vadd.f32 %v10072, %v10084
        %v10086 = vpop.f32.mrf.mxu0
        %10087 = vdwg.mxu0
        %10088 = vmatpush.bf16.msra.mxu0 %v9421
        %10089 = vmatpush.bf16.msra.mxu0 %v9415
        %10090 = vmatpush.bf16.msra.mxu0 %v9409
        %10091 = vmatpush.bf16.msra.mxu0 %v9403
        %10092 = vmatpush.bf16.msra.mxu0 %v9397
        %10093 = vmatpush.bf16.msra.mxu0 %v9391
        %10094 = vmatpush.bf16.msra.mxu0 %v9385
        %10095 = vmatpush.bf16.msra.mxu0 %v9379
        %10096 = vmatmul.bf16.gmra.mxu0 %v7968
        %v10097 = vpop.f32.mrf.mxu0
        %v10098 = vadd.f32 %v10085, %v10097
        %v10099 = vpop.f32.mrf.mxu0
        %10100 = vdwg.mxu0
        %10101 = vmatpush.bf16.msra.mxu0 %v9182
        %10102 = vmatpush.bf16.msra.mxu0 %v9176
        %10103 = vmatpush.bf16.msra.mxu0 %v9170
        %10104 = vmatpush.bf16.msra.mxu0 %v9164
        %10105 = vmatpush.bf16.msra.mxu0 %v9158
        %10106 = vmatpush.bf16.msra.mxu0 %v9152
        %10107 = vmatpush.bf16.msra.mxu0 %v9146
        %10108 = vmatpush.bf16.msra.mxu0 %v9140
        %10109 = vmatmul.bf16.gmra.mxu0 %v7963
        %v10110 = vpop.f32.mrf.mxu0
        %v10111 = vadd.f32 %v8264, %v10110
        %v10112 = vpop.f32.mrf.mxu0
        %10113 = vdwg.mxu0
        %10114 = vmatpush.bf16.msra.mxu0 %v9230
        %10115 = vmatpush.bf16.msra.mxu0 %v9224
        %10116 = vmatpush.bf16.msra.mxu0 %v9218
        %10117 = vmatpush.bf16.msra.mxu0 %v9212
        %10118 = vmatpush.bf16.msra.mxu0 %v9206
        %10119 = vmatpush.bf16.msra.mxu0 %v9200
        %10120 = vmatpush.bf16.msra.mxu0 %v9194
        %10121 = vmatpush.bf16.msra.mxu0 %v9188
        %10122 = vmatmul.bf16.gmra.mxu0 %v7964
        %v10123 = vpop.f32.mrf.mxu0
        %v10124 = vadd.f32 %v10111, %v10123
        %v10125 = vpop.f32.mrf.mxu0
        %10126 = vdwg.mxu0
        %10127 = vmatpush.bf16.msra.mxu0 %v9278
        %10128 = vmatpush.bf16.msra.mxu0 %v9272
        %10129 = vmatpush.bf16.msra.mxu0 %v9266
        %10130 = vmatpush.bf16.msra.mxu0 %v9260
        %10131 = vmatpush.bf16.msra.mxu0 %v9254
        %10132 = vmatpush.bf16.msra.mxu0 %v9248
        %10133 = vmatpush.bf16.msra.mxu0 %v9242
        %10134 = vmatpush.bf16.msra.mxu0 %v9236
        %10135 = vmatmul.bf16.gmra.mxu0 %v7965
        %v10136 = vpop.f32.mrf.mxu0
        %v10137 = vadd.f32 %v10124, %v10136
        %v10138 = vpop.f32.mrf.mxu0
        %10139 = vdwg.mxu0
        %10140 = vmatpush.bf16.msra.mxu0 %v9326
        %10141 = vmatpush.bf16.msra.mxu0 %v9320
        %10142 = vmatpush.bf16.msra.mxu0 %v9314
        %10143 = vmatpush.bf16.msra.mxu0 %v9308
        %10144 = vmatpush.bf16.msra.mxu0 %v9302
        %10145 = vmatpush.bf16.msra.mxu0 %v9296
        %10146 = vmatpush.bf16.msra.mxu0 %v9290
        %10147 = vmatpush.bf16.msra.mxu0 %v9284
        %10148 = vmatmul.bf16.gmra.mxu0 %v7966
        %v10149 = vpop.f32.mrf.mxu0
        %v10150 = vadd.f32 %v10137, %v10149
        %v10151 = vpop.f32.mrf.mxu0
        %10152 = vdwg.mxu0
        %10153 = vmatpush.bf16.msra.mxu0 %v9374
        %10154 = vmatpush.bf16.msra.mxu0 %v9368
        %10155 = vmatpush.bf16.msra.mxu0 %v9362
        %10156 = vmatpush.bf16.msra.mxu0 %v9356
        %10157 = vmatpush.bf16.msra.mxu0 %v9350
        %10158 = vmatpush.bf16.msra.mxu0 %v9344
        %10159 = vmatpush.bf16.msra.mxu0 %v9338
        %10160 = vmatpush.bf16.msra.mxu0 %v9332
        %10161 = vmatmul.bf16.gmra.mxu0 %v7967
        %v10162 = vpop.f32.mrf.mxu0
        %v10163 = vadd.f32 %v10150, %v10162
        %v10164 = vpop.f32.mrf.mxu0
        %10165 = vdwg.mxu0
        %10166 = vmatpush.bf16.msra.mxu0 %v9422
        %10167 = vmatpush.bf16.msra.mxu0 %v9416
        %10168 = vmatpush.bf16.msra.mxu0 %v9410
        %10169 = vmatpush.bf16.msra.mxu0 %v9404
        %10170 = vmatpush.bf16.msra.mxu0 %v9398
        %10171 = vmatpush.bf16.msra.mxu0 %v9392
        %10172 = vmatpush.bf16.msra.mxu0 %v9386
        %10173 = vmatpush.bf16.msra.mxu0 %v9380
        %10174 = vmatmul.bf16.gmra.mxu0 %v7968
        %v10175 = vpop.f32.mrf.mxu0
        %v10176 = vadd.f32 %v10163, %v10175
        %v10177 = vpop.f32.mrf.mxu0
        %10178 = vdwg.mxu0
        %v10179 = vadd.f32 %v9786, %v420
        %v10180 = vadd.f32 %v9864, %v421
        %v10181 = vadd.f32 %v9942, %v422
        %v10182 = vadd.f32 %v10020, %v423
        %v10183 = vadd.f32 %v10098, %v424
        %v10184 = vadd.f32 %v10176, %v425
        %v10185 = vadd.f32 %v10179, %v10180
        %v10186 = vadd.f32 %v10185, %v10181
        %v10187 = vadd.f32 %v10186, %v10182
        %v10188 = vadd.f32 %v10187, %v10183
        %v10189 = vadd.f32 %v10188, %v10184
        %10190 = vadd.xlane.f32.xlu0 %v10189
        %v10191 = vpop.xlane.xlu0 %10190
        %v10192 = vrcp.pop 768.0
        %v10193 = vmul.f32 768.0, %v10192
        %v10194 = vsub.f32 1.0, %v10193
        %v10195 = vmul.f32 %v10192, %v10194
        %v10196 = vadd.f32 %v10192, %v10195
        %vm10197 = vweird.f32 %v10192
        %v10198 = vsel %vm10197, %v10192, %v10196
        %v10199 = vmul.f32 %v10191, %v10198
        %v10200 = vsub.f32 %v10179, %v10199
        %v10201 = vsub.f32 %v10180, %v10199
        %v10202 = vsub.f32 %v10181, %v10199
        %v10203 = vsub.f32 %v10182, %v10199
        %v10204 = vsub.f32 %v10183, %v10199
        %v10205 = vsub.f32 %v10184, %v10199
        %v10206 = vmul.f32 %v10200, %v10200
        %v10207 = vmul.f32 %v10201, %v10201
        %v10208 = vmul.f32 %v10202, %v10202
        %v10209 = vmul.f32 %v10203, %v10203
        %v10210 = vmul.f32 %v10204, %v10204
        %v10211 = vmul.f32 %v10205, %v10205
        %v10212 = vadd.f32 %v10206, %v10207
        %v10213 = vadd.f32 %v10212, %v10208
        %v10214 = vadd.f32 %v10213, %v10209
        %v10215 = vadd.f32 %v10214, %v10210
        %v10216 = vadd.f32 %v10215, %v10211
        %10217 = vadd.xlane.f32.xlu0 %v10216
        %v10218 = vpop.xlane.xlu0 %10217
        %v10219 = vmul.f32 %v10218, %v10198
        %v10220 = vadd.f32 %v10219, 1e-12
        %v10221 = vrsqrt.pop %v10220
        %v10222 = vmul.f32 %v10221, %v10220
        %v10223 = vmul.f32 %v10222, %v10221
        %v10224 = vmul.f32 0.5, %v10223
        %v10225 = vsub.f32 1.5, %v10224
        %v10226 = vmul.f32 %v10221, %v10225
        %vm10227 = vweird.f32 %v10220
        %vm10228 = vweird.f32 %v10221
        %vm10229 = vmor %vm10227, %vm10228
        %v10230 = vsel %vm10229, %v10221, %v10226
        %v10231 = vmul.f32 %v10200, %v10230
        %v10232 = vmul.f32 %v10201, %v10230
        %v10233 = vmul.f32 %v10202, %v10230
        %v10234 = vmul.f32 %v10203, %v10230
        %v10235 = vmul.f32 %v10204, %v10230
        %v10236 = vmul.f32 %v10205, %v10230
        %v10237 = vld [vmem:[%s9] sm:$0x3f]
        %v10239 = vperm.slane %v10237, 0
        %v10240 = vperm.slane %v10237, 1
        %v10241 = vperm.slane %v10237, 2
        %v10242 = vperm.slane %v10237, 3
        %v10243 = vperm.slane %v10237, 4
        %v10244 = vperm.slane %v10237, 5
        %v10251 = vmul.f32 %v10239, %v10231
        %v10252 = vmul.f32 %v10240, %v10232
        %v10253 = vmul.f32 %v10241, %v10233
        %v10254 = vmul.f32 %v10242, %v10234
        %v10255 = vmul.f32 %v10243, %v10235
        %v10256 = vmul.f32 %v10244, %v10236
        %v10257 = vld [vmem:[%s10] sm:$0x3f]
        %v10259 = vperm.slane %v10257, 0
        %v10260 = vperm.slane %v10257, 1
        %v10261 = vperm.slane %v10257, 2
        %v10262 = vperm.slane %v10257, 3
        %v10263 = vperm.slane %v10257, 4
        %v10264 = vperm.slane %v10257, 5
        %v10271 = vadd.f32 %v10251, %v10259
        %v10272 = vadd.f32 %v10252, %v10260
        %v10273 = vadd.f32 %v10253, %v10261
        %v10274 = vadd.f32 %v10254, %v10262
        %v10275 = vadd.f32 %v10255, %v10263
        %v10276 = vadd.f32 %v10256, %v10264
        %10277 = vst [vmem:[%s405] sm:$0xff] %v10271
        %10278 = vst [vmem:[%s405 + $0x8] sm:$0xff] %v10272
        %10279 = vst [vmem:[%s405 + $0x10] sm:$0xff] %v10273
        %10280 = vst [vmem:[%s405 + $0x18] sm:$0xff] %v10274
        %10281 = vst [vmem:[%s405 + $0x20] sm:$0xff] %v10275
        %10282 = vst [vmem:[%s405 + $0x28] sm:$0xff] %v10276
        %s10283 = sand.u32 %s279, 1
        %s10284 = scalar_lea.sflag [#allocation3], %s10283
        %s10285 = sand.u32 %s279, 1
        %s10286 = smul.addr %s10285, 48
        %s10287 = scalar_lea.vmem [#allocation2], %s10286
        // Predicated region
        $region65: #{bert_cross_attention.1} parent=63 // pred_check
          %p10288 = pneg %p289
        $region66: #{bert_cross_attention.1} parent=63 // pred_check_branch
          %10290 = sbr.rel (%p10288) target = $region68
        $region67: #{bert_cross_attention.1} parent=63 // pred_region
          %10292 = vsyncadd %s10284, 0
          %s10293 = smul.addr %s25, 6
          %s10294 = smul.addr %s10293, 8
          %s10295 = scalar_lea.hbm %s11, %s10294
          %s10297 = sshll.u32 %s10287, 4
          %s10298 = int_to_ptr.vmem [resolvable:$true] %s10297
          %s10299 = sshll.u32 %s10295, 4
          %s10300 = int_to_ptr.hbm [resolvable:$true] %s10299
          %10302 = dma.vmem_to_hbm [thread:$0]  %s10298, 768, %s10300, %s10284
        $region68: #{bert_cross_attention.1} parent=63 // pred_fallthru
          _
      $region64: #{bert_cross_attention.1} parent=5 // pred_fallthru
        _
      %p10303 = scmp.le.s32.totalorder 2, %s20
      // Predicated region
      $region69: #{bert_cross_attention.1} parent=5 // pred_check
        %p10304 = pneg %p10303
      $region70: #{bert_cross_attention.1} parent=5 // pred_check_branch
        %10306 = sbr.rel (%p10304) target = $region72
      $region71: #{bert_cross_attention.1} parent=5 // pred_region
        %s10307 = ssub.s32 %s20, 2
        // Predicated region
        $region73: #{bert_cross_attention.1} parent=71 // pred_check
          %p10308 = pneg %p295
        $region74: #{bert_cross_attention.1} parent=71 // pred_check_branch
          %10310 = sbr.rel (%p10308) target = $region76
        $region75: #{bert_cross_attention.1} parent=71 // pred_region
          %s10311 = sand.u32 %s280, 1
          %s10312 = scalar_lea.sflag [#allocation3], %s10311
          %s10313 = sand.u32 %s280, 1
          %s10314 = smul.addr %s10313, 48
          %s10315 = scalar_lea.vmem [#allocation2], %s10314
          %10317 = dma.done %s10312, 768
        $region76: #{bert_cross_attention.1} parent=71 // pred_fallthru
          _
      $region72: #{bert_cross_attention.1} parent=5 // pred_fallthru
        _
    $region6: #{bert_cross_attention.1} parent=1 // loop_footer
      %s24 = sadd.s32 1, %s20
    $region7: #{bert_cross_attention.1} parent=1 // loop_footer_branch
      %19 = sbr.rel target = $region3
    $region8: #{bert_cross_attention.1} parent=1 // loop_exit
      _
    %10318 = vsyncpa [#allocation3], 1
    %s10319 = scalar_lea.sflag [#allocation3], 1
    %10320 = vsyncpa %s10319, 1

</llo_original>
